<compile_context>
chip_gen: v7x
topology: tpu7x:2x2x1
jax: 0.10.0
libtpu: 0.0.40
codegen_flags: <defaults>
</compile_context>

<pallas_src>
import functools
import math

import jax
import jax.numpy as jnp
from jax.experimental import pallas as pl
from jax.experimental.pallas import tpu as pltpu


# -----------------------------------------------------------------------------
# Helpers
# -----------------------------------------------------------------------------
def _round_up(x, m):
    return ((x + m - 1) // m) * m


# Packed gate order: PyTorch [i, f, g, o] -> [i, f, o, g] so a single sigmoid
# covers lanes [0, 3*Hp) and a single tanh covers [3*Hp, 4*Hp).
_GATE_PERM = (0, 1, 3, 2)


def _pack_gate_cols(w, hidden, hidden_p):
    """w: (rows, 4*hidden) -> (rows, 4*hidden_p), gate-reordered + zero-padded."""
    rows = w.shape[0]
    w4 = w.reshape(rows, 4, hidden)[:, _GATE_PERM, :]
    w4 = jnp.pad(w4, ((0, 0), (0, 0), (0, hidden_p - hidden)))
    return w4.reshape(rows, 4 * hidden_p)


def _pad_rows(w, rows_p):
    return jnp.pad(w, ((0, rows_p - w.shape[0]), (0, 0)))


def _nbytes(shape, dtype=jnp.float32):
    return int(math.prod(shape)) * jnp.dtype(dtype).itemsize


# -----------------------------------------------------------------------------
# Fused kernel: both LSTM layers + hoisted output Linear, chunked time grid.
# -----------------------------------------------------------------------------
def _fused_lstm_kernel(tok_ref, h_init_ref, c_init_ref,
                       w_ih0_ref, w_hh0_ref, b0_ref,
                       *rest,
                       num_layers, t_chunk, batch_p, hidden_p,
                       seq_len, seq_len_pad, num_chunks):
    rest = list(rest)
    layer_refs = []
    for _ in range(num_layers - 1):
        layer_refs.append(tuple(rest[:3]))     # (w_ih_T, w_hh_T, bias)
        rest = rest[3:]
    (w_lin_ref, b_lin_ref,
     logits_ref, hn_ref, cn_ref,
     h_scr, c_scr, hseq_scr) = rest

    Hp = hidden_p
    Bp = batch_p
    chunk = pl.program_id(0)

    # Chunk 0: seed the persistent recurrent-state scratch.
    @pl.when(chunk == 0)
    def _():
        h_scr[...] = h_init_ref[...]
        c_scr[...] = c_init_ref[...]

    # Hoisted bias broadcasts (JAX does not CSE broadcast_in_dim; inside the
    # unrolled step it would be re-emitted every timestep).
    b0_b = jnp.broadcast_to(b0_ref[...], (Bp, 4 * Hp))
    b_bs = [jnp.broadcast_to(b_ref[...], (Bp, 4 * Hp))
            for (_, _, b_ref) in layer_refs]

    def cell(gates, c):
        sfo = jax.nn.sigmoid(gates[:, :3 * Hp])          # [i | f | o], one EUP pass
        i_g = sfo[:, 0 * Hp:1 * Hp]
        f_g = sfo[:, 1 * Hp:2 * Hp]
        o_g = sfo[:, 2 * Hp:3 * Hp]
        g_g = jnp.tanh(gates[:, 3 * Hp:4 * Hp])
        c_new = f_g * c + i_g * g_g
        h_new = o_g * jnp.tanh(c_new)
        return h_new, c_new

    def gather_x0(t_global):
        # Identity embedding + layer-0 input matmul == row gather of W_ih0^T by
        # the token id, driven by SMEM-prefetched ids.
        base = t_global * Bp
        rows = [w_ih0_ref[pl.ds(tok_ref[base + b], 1), :] for b in range(Bp)]
        return jnp.concatenate(rows, axis=0)             # (Bp, 4Hp)

    def step(t, carry):
        hs, cs = carry
        hs, cs = list(hs), list(cs)
        t_global = chunk * t_chunk + t

        # Layer 0: gathered input projection + one recurrent MXU dot.
        gates = (gather_x0(t_global)
                 + jnp.dot(hs[0], w_hh0_ref[...],
                           preferred_element_type=jnp.float32)
                 + b0_b)
        h_new, c_new = cell(gates, cs[0])
        if seq_len_pad != seq_len:                       # only traced if padding exists
            valid = t_global < seq_len
            h_new = jnp.where(valid, h_new, hs[0])
            c_new = jnp.where(valid, c_new, cs[0])
        hs[0], cs[0] = h_new, c_new
        x_in = h_new

        # Layers >= 1: two accumulating dots (no per-step lane concat).
        for l in range(1, num_layers):
            w_ih_ref, w_hh_ref, _ = layer_refs[l - 1]
            gates = (jnp.dot(x_in, w_ih_ref[...],
                             preferred_element_type=jnp.float32)
                     + jnp.dot(hs[l], w_hh_ref[...],
                               preferred_element_type=jnp.float32)
                     + b_bs[l - 1])
            h_new, c_new = cell(gates, cs[l])
            if seq_len_pad != seq_len:
                valid = t_global < seq_len
                h_new = jnp.where(valid, h_new, hs[l])
                c_new = jnp.where(valid, c_new, cs[l])
            hs[l], cs[l] = h_new, c_new
            x_in = h_new

        # Stash top-layer h; the vocab projection is hoisted out of the loop.
        hseq_scr[t] = x_in
        return tuple(hs), tuple(cs)

    init = (tuple(h_scr[l] for l in range(num_layers)),
            tuple(c_scr[l] for l in range(num_layers)))
    hs, cs = jax.lax.fori_loop(0, t_chunk, step, init,
                               unroll=min(t_chunk, 8))

    # Persist recurrent state for the next chunk.
    for l in range(num_layers):
        h_scr[l] = hs[l]
        c_scr[l] = cs[l]

    # Output Linear once per chunk: (T*Bp, Hp) @ (Hp, Vp), lane-dense store.
    h_seq = hseq_scr[...].reshape(t_chunk * Bp, Hp)
    logits_ref[...] = (jnp.dot(h_seq, w_lin_ref[...],
                               preferred_element_type=jnp.float32)
                       + b_lin_ref[...])

    # Final states (padded timesteps never update the carry).
    @pl.when(chunk == num_chunks - 1)
    def _():
        for l in range(num_layers):
            hn_ref[l] = hs[l]
            cn_ref[l] = cs[l]


# -----------------------------------------------------------------------------
# Parameters: PyTorch layout + kernel-layout packing (done once, not per call)
# -----------------------------------------------------------------------------
def init_params(key, vocab, hidden, num_layers):
    params = {"lstm": []}
    for layer in range(num_layers):
        in_size = vocab if layer == 0 else hidden
        k = 1.0 / jnp.sqrt(hidden)
        key, k1, k2, k3, k4 = jax.random.split(key, 5)
        w_ih = jax.random.uniform(k1, (4 * hidden, in_size), jnp.float32, -k, k)
        w_hh = jax.random.uniform(k2, (4 * hidden, hidden), jnp.float32, -k, k)
        b_ih = jax.random.uniform(k3, (4 * hidden,), jnp.float32, -k, k)
        b_hh = jax.random.uniform(k4, (4 * hidden,), jnp.float32, -k, k)
        params["lstm"].append(dict(w_ih=w_ih, w_hh=w_hh, b_ih=b_ih, b_hh=b_hh))
    kl = 1.0 / jnp.sqrt(hidden)
    key, k1, k2 = jax.random.split(key, 3)
    params["lin_w"] = jax.random.uniform(k1, (vocab, hidden), jnp.float32, -kl, kl)
    params["lin_b"] = jax.random.uniform(k2, (vocab,), jnp.float32, -kl, kl)
    return params


def pack_params(params, vocab, hidden, num_layers):
    """Pre-transpose / gate-reorder / pre-pad weights into the kernel layout."""
    Hp = _round_up(hidden, 128)
    Vp = _round_up(vocab, 128)
    Vr = _round_up(vocab, 8)
    packed = {"Hp": Hp, "Vp": Vp, "Vr": Vr}

    p0 = params["lstm"][0]
    packed["w_ih0_T"] = _pad_rows(_pack_gate_cols(p0["w_ih"].T, hidden, Hp), Vr)  # (Vr, 4Hp)
    packed["w_hh0_T"] = _pad_rows(_pack_gate_cols(p0["w_hh"].T, hidden, Hp), Hp)  # (Hp, 4Hp)
    packed["b0"] = _pack_gate_cols((p0["b_ih"] + p0["b_hh"]).reshape(1, -1),
                                   hidden, Hp)                                    # (1, 4Hp)

    packed["w_ih_T"], packed["w_hh_T"], packed["b"] = [], [], []
    for l in range(1, num_layers):
        p = params["lstm"][l]
        packed["w_ih_T"].append(_pad_rows(_pack_gate_cols(p["w_ih"].T, hidden, Hp), Hp))
        packed["w_hh_T"].append(_pad_rows(_pack_gate_cols(p["w_hh"].T, hidden, Hp), Hp))
        packed["b"].append(_pack_gate_cols((p["b_ih"] + p["b_hh"]).reshape(1, -1),
                                           hidden, Hp))

    packed["w_lin_T"] = jnp.pad(params["lin_w"].T,
                                ((0, Hp - hidden), (0, Vp - vocab)))              # (Hp, Vp)
    packed["b_lin"] = jnp.pad(params["lin_b"].reshape(1, -1),
                              ((0, 0), (0, Vp - vocab)))                          # (1, Vp)
    return packed


# -----------------------------------------------------------------------------
# Forward (Pallas)
# -----------------------------------------------------------------------------
def forward_pallas(packed, x_tokens, vocab, hidden, num_layers, h0c0=None,
                   t_chunk=32):
    S, B = x_tokens.shape
    Hp, Vp = packed["Hp"], packed["Vp"]
    Bp = max(8, _round_up(B, 8))

    t_chunk = min(t_chunk, S)
    S_pad = _round_up(S, t_chunk)
    num_chunks = S_pad // t_chunk

    # Token ids: pad (token 0) to (S_pad, Bp), flatten for SMEM prefetch.
    tok = jnp.zeros((S_pad, Bp), jnp.int32)
    tok = tok.at[:S, :B].set(x_tokens.astype(jnp.int32))
    tok_flat = tok.reshape(-1)

    if h0c0 is None:
        h_init = jnp.zeros((num_layers, Bp, Hp), jnp.float32)
        c_init = jnp.zeros((num_layers, Bp, Hp), jnp.float32)
    else:
        h0, c0 = h0c0
        h_init = jnp.pad(h0.astype(jnp.float32),
                         ((0, 0), (0, Bp - B), (0, Hp - hidden)))
        c_init = jnp.pad(c0.astype(jnp.float32),
                         ((0, 0), (0, Bp - B), (0, Hp - hidden)))

    inputs = [h_init, c_init, packed["w_ih0_T"], packed["w_hh0_T"], packed["b0"]]
    for l in range(num_layers - 1):
        inputs += [packed["w_ih_T"][l], packed["w_hh_T"][l], packed["b"][l]]
    inputs += [packed["w_lin_T"], packed["b_lin"]]

    def _const_spec(a):
        nd = a.ndim
        return pl.BlockSpec(a.shape, lambda c, tok_r, _nd=nd: (0,) * _nd)

    in_specs = [_const_spec(a) for a in inputs]

    out_shape = (
        jax.ShapeDtypeStruct((S_pad * Bp, Vp), jnp.float32),        # logits (flat)
        jax.ShapeDtypeStruct((num_layers, Bp, Hp), jnp.float32),    # hn
        jax.ShapeDtypeStruct((num_layers, Bp, Hp), jnp.float32),    # cn
    )
    out_specs = (
        pl.BlockSpec((t_chunk * Bp, Vp), lambda c, tok_r: (c, 0)),
        pl.BlockSpec((num_layers, Bp, Hp), lambda c, tok_r: (0, 0, 0)),
        pl.BlockSpec((num_layers, Bp, Hp), lambda c, tok_r: (0, 0, 0)),
    )

    scratch_shapes = [
        pltpu.VMEM((num_layers, Bp, Hp), jnp.float32),   # h carry across chunks
        pltpu.VMEM((num_layers, Bp, Hp), jnp.float32),   # c carry across chunks
        pltpu.VMEM((t_chunk, Bp, Hp), jnp.float32),      # top-layer h per chunk
    ]

    kernel = functools.partial(
        _fused_lstm_kernel, num_layers=num_layers, t_chunk=t_chunk,
        batch_p=Bp, hidden_p=Hp, seq_len=S, seq_len_pad=S_pad,
        num_chunks=num_chunks)

    # Explicit scoped-VMEM budget: double-buffered blocks + scratch + headroom.
    block_bytes = (sum(_nbytes(a.shape, a.dtype) for a in inputs)
                   + _nbytes((t_chunk * Bp, Vp))
                   + 2 * _nbytes((num_layers, Bp, Hp)))
    scratch_bytes = (2 * _nbytes((num_layers, Bp, Hp))
                     + _nbytes((t_chunk, Bp, Hp)))
    vmem_limit = int(min(96 * 1024 * 1024,
                         2 * block_bytes + scratch_bytes + (8 << 20)))

    logits_flat, hn_p, cn_p = pl.pallas_call(
        kernel,
        out_shape=out_shape,
        grid_spec=pltpu.PrefetchScalarGridSpec(
            num_scalar_prefetch=1,
            grid=(num_chunks,),
            in_specs=in_specs,
            out_specs=out_specs,
            scratch_shapes=scratch_shapes),
        compiler_params=pltpu.CompilerParams(
            dimension_semantics=("arbitrary",),
            vmem_limit_bytes=vmem_limit),
    )(tok_flat, *inputs)

    logits = logits_flat.reshape(S_pad, Bp, Vp)[:S, :B, :vocab]
    hn = hn_p[:, :B, :hidden]
    cn = cn_p[:, :B, :hidden]
    return logits, (hn, cn)


# -----------------------------------------------------------------------------
# Pure-JAX reference (lax.scan) for correctness check
# -----------------------------------------------------------------------------
def forward_ref(params, x_tokens, vocab, hidden, num_layers, h0c0=None):
    S, B = x_tokens.shape
    x = jax.nn.one_hot(x_tokens, vocab, dtype=jnp.float32)
    if h0c0 is None:
        h0_all = jnp.zeros((num_layers, B, hidden), jnp.float32)
        c0_all = jnp.zeros((num_layers, B, hidden), jnp.float32)
    else:
        h0_all, c0_all = h0c0
    layer_in = x
    hns, cns = [], []
    for layer in range(num_layers):
        p = params["lstm"][layer]
        w_ih_t, w_hh_t = p["w_ih"].T, p["w_hh"].T
        b = p["b_ih"] + p["b_hh"]

        def step(carry, x_t):
            h, c = carry
            gates = x_t @ w_ih_t + h @ w_hh_t + b
            i, f, g, o = jnp.split(gates, 4, axis=-1)
            c = jax.nn.sigmoid(f) * c + jax.nn.sigmoid(i) * jnp.tanh(g)
            h = jax.nn.sigmoid(o) * jnp.tanh(c)
            return (h, c), h

        (hn, cn), ys = jax.lax.scan(step, (h0_all[layer], c0_all[layer]), layer_in)
        layer_in = ys
        hns.append(hn)
        cns.append(cn)
    logits = layer_in @ params["lin_w"].T + params["lin_b"]
    return logits, (jnp.stack(hns), jnp.stack(cns))


if __name__ == "__main__":
    batch_size = 2
    seq_length = 8
    vocabulary_size = 32
    lstm_num_hidden = 32
    lstm_num_layers = 2

    key = jax.random.PRNGKey(0)
    key, pk, xk, hk, ck = jax.random.split(key, 5)
    params = init_params(pk, vocabulary_size, lstm_num_hidden, lstm_num_layers)
    packed = pack_params(params, vocabulary_size, lstm_num_hidden, lstm_num_layers)
    x_tokens = jax.random.randint(xk, (seq_length, batch_size), 0,
                                  vocabulary_size, dtype=jnp.int32)

    # Default (zero) initial state.
    logits, (hn, cn) = forward_pallas(packed, x_tokens, vocabulary_size,
                                      lstm_num_hidden, lstm_num_layers)
    jax.block_until_ready((logits, hn, cn))

    ref_logits, (ref_hn, ref_cn) = forward_ref(params, x_tokens, vocabulary_size,
                                               lstm_num_hidden, lstm_num_layers)
    assert logits.shape == (seq_length, batch_size, vocabulary_size)
    assert hn.shape == (lstm_num_layers, batch_size, lstm_num_hidden)
    assert cn.shape == (lstm_num_layers, batch_size, lstm_num_hidden)
    assert jnp.allclose(logits, ref_logits, atol=1e-4, rtol=1e-4)
    assert jnp.allclose(hn, ref_hn, atol=1e-4, rtol=1e-4)
    assert jnp.allclose(cn, ref_cn, atol=1e-4, rtol=1e-4)

    # Provided (h0, c0) initial state.
    h0 = 0.1 * jax.random.normal(
        hk, (lstm_num_layers, batch_size, lstm_num_hidden), jnp.float32)
    c0 = 0.1 * jax.random.normal(
        ck, (lstm_num_layers, batch_size, lstm_num_hidden), jnp.float32)
    logits2, (hn2, cn2) = forward_pallas(packed, x_tokens, vocabulary_size,
                                         lstm_num_hidden, lstm_num_layers,
                                         h0c0=(h0, c0))
    jax.block_until_ready((logits2, hn2, cn2))
    ref_logits2, (ref_hn2, ref_cn2) = forward_ref(params, x_tokens,
                                                  vocabulary_size,
                                                  lstm_num_hidden,
                                                  lstm_num_layers,
                                                  h0c0=(h0, c0))
    assert jnp.allclose(logits2, ref_logits2, atol=1e-4, rtol=1e-4)
    assert jnp.allclose(hn2, ref_hn2, atol=1e-4, rtol=1e-4)
    assert jnp.allclose(cn2, ref_cn2, atol=1e-4, rtol=1e-4)

    print("KERNEL_OK")
</pallas_src>

<mosaic_0001>
module attributes {stable_mosaic.version = 11 : i64} {
  func.func @_fused_lstm_kernel(%arg0: i32, %arg1: memref<64xi32, #tpu.memory_space<smem>>, %arg2: memref<2x8x128xf32, #tpu.memory_space<vmem>>, %arg3: memref<2x8x128xf32, #tpu.memory_space<vmem>>, %arg4: memref<32x512xf32, #tpu.memory_space<vmem>>, %arg5: memref<128x512xf32, #tpu.memory_space<vmem>>, %arg6: memref<1x512xf32, #tpu.memory_space<vmem>>, %arg7: memref<128x512xf32, #tpu.memory_space<vmem>>, %arg8: memref<128x512xf32, #tpu.memory_space<vmem>>, %arg9: memref<1x512xf32, #tpu.memory_space<vmem>>, %arg10: memref<128x128xf32, #tpu.memory_space<vmem>>, %arg11: memref<1x128xf32, #tpu.memory_space<vmem>>, %arg12: memref<64x128xf32, #tpu.memory_space<vmem>>, %arg13: memref<2x8x128xf32, #tpu.memory_space<vmem>>, %arg14: memref<2x8x128xf32, #tpu.memory_space<vmem>>, %arg15: memref<2x8x128xf32, #tpu.memory_space<vmem>>, %arg16: memref<2x8x128xf32, #tpu.memory_space<vmem>>, %arg17: memref<8x8x128xf32, #tpu.memory_space<vmem>>) attributes {dimension_semantics = [#tpu.dimension_semantics<arbitrary>], iteration_bounds = array<i64: 1>, scalar_prefetch = 1 : i64, scratch_operands = 3 : i64, tpu.core_type = #tpu.core_type<tc>, window_params = [{pipeline_mode = #tpu.pipeline_mode<synchronous>, transform_indices = @transform_0, window_bounds = array<i64: 2, 8, 128>}, {pipeline_mode = #tpu.pipeline_mode<synchronous>, transform_indices = @transform_1, window_bounds = array<i64: 2, 8, 128>}, {pipeline_mode = #tpu.pipeline_mode<synchronous>, transform_indices = @transform_2, window_bounds = array<i64: 32, 512>}, {pipeline_mode = #tpu.pipeline_mode<synchronous>, transform_indices = @transform_3, window_bounds = array<i64: 128, 512>}, {pipeline_mode = #tpu.pipeline_mode<synchronous>, transform_indices = @transform_4, window_bounds = array<i64: 1, 512>}, {pipeline_mode = #tpu.pipeline_mode<synchronous>, transform_indices = @transform_5, window_bounds = array<i64: 128, 512>}, {pipeline_mode = #tpu.pipeline_mode<synchronous>, transform_indices = @transform_6, window_bounds = array<i64: 128, 512>}, {pipeline_mode = #tpu.pipeline_mode<synchronous>, transform_indices = @transform_7, window_bounds = array<i64: 1, 512>}, {pipeline_mode = #tpu.pipeline_mode<synchronous>, transform_indices = @transform_8, window_bounds = array<i64: 128, 128>}, {pipeline_mode = #tpu.pipeline_mode<synchronous>, transform_indices = @transform_9, window_bounds = array<i64: 1, 128>}, {transform_indices = @transform_10, window_bounds = array<i64: 64, 128>}, {pipeline_mode = #tpu.pipeline_mode<synchronous>, transform_indices = @transform_11, window_bounds = array<i64: 2, 8, 128>}, {pipeline_mode = #tpu.pipeline_mode<synchronous>, transform_indices = @transform_12, window_bounds = array<i64: 2, 8, 128>}]} {
    %c0_i32 = arith.constant 0 : i32
    %0 = arith.cmpi eq, %arg0, %c0_i32 : i32
    %1 = arith.extui %0 : i1 to i32
    %c0_i32_0 = arith.constant 0 : i32
    %2 = arith.cmpi ne, %1, %c0_i32_0 : i32
    scf.if %2 {
      %c0_287 = arith.constant 0 : index
      %c0_288 = arith.constant 0 : index
      %c0_289 = arith.constant 0 : index
      %760 = vector.load %arg2[%c0_287, %c0_288, %c0_289] : memref<2x8x128xf32, #tpu.memory_space<vmem>>, vector<2x8x128xf32>
      %c0_290 = arith.constant 0 : index
      %c0_291 = arith.constant 0 : index
      %c0_292 = arith.constant 0 : index
      %761 = vector.load %arg15[%c0_290, %c0_291, %c0_292] : memref<2x8x128xf32, #tpu.memory_space<vmem>>, vector<2x8x128xf32>
      tpu.vector_store %arg15[%c0_290, %c0_291, %c0_292], %760 {strides = array<i32>} : memref<2x8x128xf32, #tpu.memory_space<vmem>>, vector<2x8x128xf32>,
      %c0_293 = arith.constant 0 : index
      %c0_294 = arith.constant 0 : index
      %c0_295 = arith.constant 0 : index
      %762 = vector.load %arg3[%c0_293, %c0_294, %c0_295] : memref<2x8x128xf32, #tpu.memory_space<vmem>>, vector<2x8x128xf32>
      %c0_296 = arith.constant 0 : index
      %c0_297 = arith.constant 0 : index
      %c0_298 = arith.constant 0 : index
      %763 = vector.load %arg16[%c0_296, %c0_297, %c0_298] : memref<2x8x128xf32, #tpu.memory_space<vmem>>, vector<2x8x128xf32>
      tpu.vector_store %arg16[%c0_296, %c0_297, %c0_298], %762 {strides = array<i32>} : memref<2x8x128xf32, #tpu.memory_space<vmem>>, vector<2x8x128xf32>,
    } else {
    }
    %c0 = arith.constant 0 : index
    %c0_1 = arith.constant 0 : index
    %3 = vector.load %arg6[%c0, %c0_1] : memref<1x512xf32, #tpu.memory_space<vmem>>, vector<1x512xf32>
    %4 = vector.shape_cast %3 : vector<1x512xf32> to vector<1x512xf32>
    %5 = vector.broadcast %4 : vector<1x512xf32> to vector<8x512xf32>
    %c0_2 = arith.constant 0 : index
    %c0_3 = arith.constant 0 : index
    %6 = vector.load %arg9[%c0_2, %c0_3] : memref<1x512xf32, #tpu.memory_space<vmem>>, vector<1x512xf32>
    %7 = vector.shape_cast %6 : vector<1x512xf32> to vector<1x512xf32>
    %8 = vector.broadcast %7 : vector<1x512xf32> to vector<8x512xf32>
    %c0_4 = arith.constant 0 : index
    %c0_5 = arith.constant 0 : index
    %c0_6 = arith.constant 0 : index
    %9 = vector.load %arg15[%c0_4, %c0_5, %c0_6] : memref<2x8x128xf32, #tpu.memory_space<vmem>>, vector<1x8x128xf32>
    %10 = vector.shape_cast %9 : vector<1x8x128xf32> to vector<8x128xf32>
    %c1 = arith.constant 1 : index
    %c0_7 = arith.constant 0 : index
    %c0_8 = arith.constant 0 : index
    %11 = vector.load %arg15[%c1, %c0_7, %c0_8] : memref<2x8x128xf32, #tpu.memory_space<vmem>>, vector<1x8x128xf32>
    %12 = vector.shape_cast %11 : vector<1x8x128xf32> to vector<8x128xf32>
    %c0_9 = arith.constant 0 : index
    %c0_10 = arith.constant 0 : index
    %c0_11 = arith.constant 0 : index
    %13 = vector.load %arg16[%c0_9, %c0_10, %c0_11] : memref<2x8x128xf32, #tpu.memory_space<vmem>>, vector<1x8x128xf32>
    %14 = vector.shape_cast %13 : vector<1x8x128xf32> to vector<8x128xf32>
    %c1_12 = arith.constant 1 : index
    %c0_13 = arith.constant 0 : index
    %c0_14 = arith.constant 0 : index
    %15 = vector.load %arg16[%c1_12, %c0_13, %c0_14] : memref<2x8x128xf32, #tpu.memory_space<vmem>>, vector<1x8x128xf32>
    %16 = vector.shape_cast %15 : vector<1x8x128xf32> to vector<8x128xf32>
    %c0_i32_15 = arith.constant 0 : i32
    %c8_i32 = arith.constant 8 : i32
    %17 = arith.muli %arg0, %c8_i32 : i32
    %18 = arith.addi %17, %c0_i32_15 : i32
    %c8_i32_16 = arith.constant 8 : i32
    %19 = arith.muli %18, %c8_i32_16 : i32
    %c0_i32_17 = arith.constant 0 : i32
    %20 = arith.addi %19, %c0_i32_17 : i32
    %21 = arith.index_cast %20 : i32 to index
    %22 = memref.load %arg1[%21] : memref<64xi32, #tpu.memory_space<smem>>
    %23 = arith.index_cast %22 : i32 to index
    %c0_18 = arith.constant 0 : index
    %24 = vector.load %arg4[%23, %c0_18] : memref<32x512xf32, #tpu.memory_space<vmem>>, vector<1x512xf32>
    %c1_i32 = arith.constant 1 : i32
    %25 = arith.addi %19, %c1_i32 : i32
    %26 = arith.index_cast %25 : i32 to index
    %27 = memref.load %arg1[%26] : memref<64xi32, #tpu.memory_space<smem>>
    %28 = arith.index_cast %27 : i32 to index
    %c0_19 = arith.constant 0 : index
    %29 = vector.load %arg4[%28, %c0_19] : memref<32x512xf32, #tpu.memory_space<vmem>>, vector<1x512xf32>
    %c2_i32 = arith.constant 2 : i32
    %30 = arith.addi %19, %c2_i32 : i32
    %31 = arith.index_cast %30 : i32 to index
    %32 = memref.load %arg1[%31] : memref<64xi32, #tpu.memory_space<smem>>
    %33 = arith.index_cast %32 : i32 to index
    %c0_20 = arith.constant 0 : index
    %34 = vector.load %arg4[%33, %c0_20] : memref<32x512xf32, #tpu.memory_space<vmem>>, vector<1x512xf32>
    %c3_i32 = arith.constant 3 : i32
    %35 = arith.addi %19, %c3_i32 : i32
    %36 = arith.index_cast %35 : i32 to index
    %37 = memref.load %arg1[%36] : memref<64xi32, #tpu.memory_space<smem>>
    %38 = arith.index_cast %37 : i32 to index
    %c0_21 = arith.constant 0 : index
    %39 = vector.load %arg4[%38, %c0_21] : memref<32x512xf32, #tpu.memory_space<vmem>>, vector<1x512xf32>
    %c4_i32 = arith.constant 4 : i32
    %40 = arith.addi %19, %c4_i32 : i32
    %41 = arith.index_cast %40 : i32 to index
    %42 = memref.load %arg1[%41] : memref<64xi32, #tpu.memory_space<smem>>
    %43 = arith.index_cast %42 : i32 to index
    %c0_22 = arith.constant 0 : index
    %44 = vector.load %arg4[%43, %c0_22] : memref<32x512xf32, #tpu.memory_space<vmem>>, vector<1x512xf32>
    %c5_i32 = arith.constant 5 : i32
    %45 = arith.addi %19, %c5_i32 : i32
    %46 = arith.index_cast %45 : i32 to index
    %47 = memref.load %arg1[%46] : memref<64xi32, #tpu.memory_space<smem>>
    %48 = arith.index_cast %47 : i32 to index
    %c0_23 = arith.constant 0 : index
    %49 = vector.load %arg4[%48, %c0_23] : memref<32x512xf32, #tpu.memory_space<vmem>>, vector<1x512xf32>
    %c6_i32 = arith.constant 6 : i32
    %50 = arith.addi %19, %c6_i32 : i32
    %51 = arith.index_cast %50 : i32 to index
    %52 = memref.load %arg1[%51] : memref<64xi32, #tpu.memory_space<smem>>
    %53 = arith.index_cast %52 : i32 to index
    %c0_24 = arith.constant 0 : index
    %54 = vector.load %arg4[%53, %c0_24] : memref<32x512xf32, #tpu.memory_space<vmem>>, vector<1x512xf32>
    %c7_i32 = arith.constant 7 : i32
    %55 = arith.addi %19, %c7_i32 : i32
    %56 = arith.index_cast %55 : i32 to index
    %57 = memref.load %arg1[%56] : memref<64xi32, #tpu.memory_space<smem>>
    %58 = arith.index_cast %57 : i32 to index
    %c0_25 = arith.constant 0 : index
    %59 = vector.load %arg4[%58, %c0_25] : memref<32x512xf32, #tpu.memory_space<vmem>>, vector<1x512xf32>
    %60 = tpu.concatenate %24, %29, %34, %39, %44, %49, %54, %59 in 0 : vector<1x512xf32>, vector<1x512xf32>, vector<1x512xf32>, vector<1x512xf32>, vector<1x512xf32>, vector<1x512xf32>, vector<1x512xf32>, vector<1x512xf32> -> vector<8x512xf32>
    %c0_26 = arith.constant 0 : index
    %c0_27 = arith.constant 0 : index
    %61 = vector.load %arg5[%c0_26, %c0_27] : memref<128x512xf32, #tpu.memory_space<vmem>>, vector<128x512xf32>
    %cst = arith.constant dense<0.000000e+00> : vector<8x512xf32>
    %62 = tpu.matmul %10, %61, %cst {dimension_numbers = #tpu.dot_dimension_numbers<[1], [0], [0], [1], [0, 0, 1, 1], [], []>} : vector<8x128xf32>, vector<128x512xf32>, vector<8x512xf32> -> vector<8x512xf32>
    %63 = arith.addf %60, %62 : vector<8x512xf32>
    %64 = arith.addf %63, %5 : vector<8x512xf32>
    %65 = vector.extract_strided_slice %64 {offsets = [0, 0], sizes = [8, 384], strides = [1, 1]} : vector<8x512xf32> to vector<8x384xf32>
    %66 = arith.negf %65 : vector<8x384xf32>
    %67 = math.exp %66 : vector<8x384xf32>
    %cst_28 = arith.constant 1.000000e+00 : f32
    %68 = vector.broadcast %cst_28 : f32 to vector<8x384xf32>
    %69 = arith.addf %68, %67 : vector<8x384xf32>
    %70 = arith.divf %68, %69 : vector<8x384xf32>
    %71 = vector.extract_strided_slice %70 {offsets = [0, 0], sizes = [8, 128], strides = [1, 1]} : vector<8x384xf32> to vector<8x128xf32>
    %72 = vector.extract_strided_slice %70 {offsets = [0, 128], sizes = [8, 128], strides = [1, 1]} : vector<8x384xf32> to vector<8x128xf32>
    %73 = vector.extract_strided_slice %70 {offsets = [0, 256], sizes = [8, 128], strides = [1, 1]} : vector<8x384xf32> to vector<8x128xf32>
    %74 = vector.extract_strided_slice %64 {offsets = [0, 384], sizes = [8, 128], strides = [1, 1]} : vector<8x512xf32> to vector<8x128xf32>
    %75 = math.tanh %74 : vector<8x128xf32>
    %76 = arith.mulf %72, %14 : vector<8x128xf32>
    %77 = arith.mulf %71, %75 : vector<8x128xf32>
    %78 = arith.addf %76, %77 : vector<8x128xf32>
    %79 = math.tanh %78 : vector<8x128xf32>
    %80 = arith.mulf %73, %79 : vector<8x128xf32>
    %c0_29 = arith.constant 0 : index
    %c0_30 = arith.constant 0 : index
    %81 = vector.load %arg7[%c0_29, %c0_30] : memref<128x512xf32, #tpu.memory_space<vmem>>, vector<128x512xf32>
    %cst_31 = arith.constant dense<0.000000e+00> : vector<8x512xf32>
    %82 = tpu.matmul %80, %81, %cst_31 {dimension_numbers = #tpu.dot_dimension_numbers<[1], [0], [0], [1], [0, 0, 1, 1], [], []>} : vector<8x128xf32>, vector<128x512xf32>, vector<8x512xf32> -> vector<8x512xf32>
    %c0_32 = arith.constant 0 : index
    %c0_33 = arith.constant 0 : index
    %83 = vector.load %arg8[%c0_32, %c0_33] : memref<128x512xf32, #tpu.memory_space<vmem>>, vector<128x512xf32>
    %cst_34 = arith.constant dense<0.000000e+00> : vector<8x512xf32>
    %84 = tpu.matmul %12, %83, %cst_34 {dimension_numbers = #tpu.dot_dimension_numbers<[1], [0], [0], [1], [0, 0, 1, 1], [], []>} : vector<8x128xf32>, vector<128x512xf32>, vector<8x512xf32> -> vector<8x512xf32>
    %85 = arith.addf %82, %84 : vector<8x512xf32>
    %86 = arith.addf %85, %8 : vector<8x512xf32>
    %87 = vector.extract_strided_slice %86 {offsets = [0, 0], sizes = [8, 384], strides = [1, 1]} : vector<8x512xf32> to vector<8x384xf32>
    %88 = arith.negf %87 : vector<8x384xf32>
    %89 = math.exp %88 : vector<8x384xf32>
    %cst_35 = arith.constant 1.000000e+00 : f32
    %90 = vector.broadcast %cst_35 : f32 to vector<8x384xf32>
    %91 = arith.addf %90, %89 : vector<8x384xf32>
    %92 = arith.divf %90, %91 : vector<8x384xf32>
    %93 = vector.extract_strided_slice %92 {offsets = [0, 0], sizes = [8, 128], strides = [1, 1]} : vector<8x384xf32> to vector<8x128xf32>
    %94 = vector.extract_strided_slice %92 {offsets = [0, 128], sizes = [8, 128], strides = [1, 1]} : vector<8x384xf32> to vector<8x128xf32>
    %95 = vector.extract_strided_slice %92 {offsets = [0, 256], sizes = [8, 128], strides = [1, 1]} : vector<8x384xf32> to vector<8x128xf32>
    %96 = vector.extract_strided_slice %86 {offsets = [0, 384], sizes = [8, 128], strides = [1, 1]} : vector<8x512xf32> to vector<8x128xf32>
    %97 = math.tanh %96 : vector<8x128xf32>
    %98 = arith.mulf %94, %16 : vector<8x128xf32>
    %99 = arith.mulf %93, %97 : vector<8x128xf32>
    %100 = arith.addf %98, %99 : vector<8x128xf32>
    %101 = math.tanh %100 : vector<8x128xf32>
    %102 = arith.mulf %95, %101 : vector<8x128xf32>
    %103 = arith.index_cast %c0_i32_15 : i32 to index
    %c0_36 = arith.constant 0 : index
    %c0_37 = arith.constant 0 : index
    %104 = vector.load %arg17[%103, %c0_36, %c0_37] : memref<8x8x128xf32, #tpu.memory_space<vmem>>, vector<1x8x128xf32>
    %105 = vector.shape_cast %104 : vector<1x8x128xf32> to vector<8x128xf32>
    %106 = vector.shape_cast %102 : vector<8x128xf32> to vector<1x8x128xf32>
    tpu.vector_store %arg17[%103, %c0_36, %c0_37], %106 {strides = array<i32>} : memref<8x8x128xf32, #tpu.memory_space<vmem>>, vector<1x8x128xf32>,
    %c1_i32_38 = arith.constant 1 : i32
    %c8_i32_39 = arith.constant 8 : i32
    %107 = arith.muli %arg0, %c8_i32_39 : i32
    %108 = arith.addi %107, %c1_i32_38 : i32
    %c8_i32_40 = arith.constant 8 : i32
    %109 = arith.muli %108, %c8_i32_40 : i32
    %c0_i32_41 = arith.constant 0 : i32
    %110 = arith.addi %109, %c0_i32_41 : i32
    %111 = arith.index_cast %110 : i32 to index
    %112 = memref.load %arg1[%111] : memref<64xi32, #tpu.memory_space<smem>>
    %113 = arith.index_cast %112 : i32 to index
    %c0_42 = arith.constant 0 : index
    %114 = vector.load %arg4[%113, %c0_42] : memref<32x512xf32, #tpu.memory_space<vmem>>, vector<1x512xf32>
    %c1_i32_43 = arith.constant 1 : i32
    %115 = arith.addi %109, %c1_i32_43 : i32
    %116 = arith.index_cast %115 : i32 to index
    %117 = memref.load %arg1[%116] : memref<64xi32, #tpu.memory_space<smem>>
    %118 = arith.index_cast %117 : i32 to index
    %c0_44 = arith.constant 0 : index
    %119 = vector.load %arg4[%118, %c0_44] : memref<32x512xf32, #tpu.memory_space<vmem>>, vector<1x512xf32>
    %c2_i32_45 = arith.constant 2 : i32
    %120 = arith.addi %109, %c2_i32_45 : i32
    %121 = arith.index_cast %120 : i32 to index
    %122 = memref.load %arg1[%121] : memref<64xi32, #tpu.memory_space<smem>>
    %123 = arith.index_cast %122 : i32 to index
    %c0_46 = arith.constant 0 : index
    %124 = vector.load %arg4[%123, %c0_46] : memref<32x512xf32, #tpu.memory_space<vmem>>, vector<1x512xf32>
    %c3_i32_47 = arith.constant 3 : i32
    %125 = arith.addi %109, %c3_i32_47 : i32
    %126 = arith.index_cast %125 : i32 to index
    %127 = memref.load %arg1[%126] : memref<64xi32, #tpu.memory_space<smem>>
    %128 = arith.index_cast %127 : i32 to index
    %c0_48 = arith.constant 0 : index
    %129 = vector.load %arg4[%128, %c0_48] : memref<32x512xf32, #tpu.memory_space<vmem>>, vector<1x512xf32>
    %c4_i32_49 = arith.constant 4 : i32
    %130 = arith.addi %109, %c4_i32_49 : i32
    %131 = arith.index_cast %130 : i32 to index
    %132 = memref.load %arg1[%131] : memref<64xi32, #tpu.memory_space<smem>>
    %133 = arith.index_cast %132 : i32 to index
    %c0_50 = arith.constant 0 : index
    %134 = vector.load %arg4[%133, %c0_50] : memref<32x512xf32, #tpu.memory_space<vmem>>, vector<1x512xf32>
    %c5_i32_51 = arith.constant 5 : i32
    %135 = arith.addi %109, %c5_i32_51 : i32
    %136 = arith.index_cast %135 : i32 to index
    %137 = memref.load %arg1[%136] : memref<64xi32, #tpu.memory_space<smem>>
    %138 = arith.index_cast %137 : i32 to index
    %c0_52 = arith.constant 0 : index
    %139 = vector.load %arg4[%138, %c0_52] : memref<32x512xf32, #tpu.memory_space<vmem>>, vector<1x512xf32>
    %c6_i32_53 = arith.constant 6 : i32
    %140 = arith.addi %109, %c6_i32_53 : i32
    %141 = arith.index_cast %140 : i32 to index
    %142 = memref.load %arg1[%141] : memref<64xi32, #tpu.memory_space<smem>>
    %143 = arith.index_cast %142 : i32 to index
    %c0_54 = arith.constant 0 : index
    %144 = vector.load %arg4[%143, %c0_54] : memref<32x512xf32, #tpu.memory_space<vmem>>, vector<1x512xf32>
    %c7_i32_55 = arith.constant 7 : i32
    %145 = arith.addi %109, %c7_i32_55 : i32
    %146 = arith.index_cast %145 : i32 to index
    %147 = memref.load %arg1[%146] : memref<64xi32, #tpu.memory_space<smem>>
    %148 = arith.index_cast %147 : i32 to index
    %c0_56 = arith.constant 0 : index
    %149 = vector.load %arg4[%148, %c0_56] : memref<32x512xf32, #tpu.memory_space<vmem>>, vector<1x512xf32>
    %150 = tpu.concatenate %114, %119, %124, %129, %134, %139, %144, %149 in 0 : vector<1x512xf32>, vector<1x512xf32>, vector<1x512xf32>, vector<1x512xf32>, vector<1x512xf32>, vector<1x512xf32>, vector<1x512xf32>, vector<1x512xf32> -> vector<8x512xf32>
    %c0_57 = arith.constant 0 : index
    %c0_58 = arith.constant 0 : index
    %151 = vector.load %arg5[%c0_57, %c0_58] : memref<128x512xf32, #tpu.memory_space<vmem>>, vector<128x512xf32>
    %cst_59 = arith.constant dense<0.000000e+00> : vector<8x512xf32>
    %152 = tpu.matmul %80, %151, %cst_59 {dimension_numbers = #tpu.dot_dimension_numbers<[1], [0], [0], [1], [0, 0, 1, 1], [], []>} : vector<8x128xf32>, vector<128x512xf32>, vector<8x512xf32> -> vector<8x512xf32>
    %153 = arith.addf %150, %152 : vector<8x512xf32>
    %154 = arith.addf %153, %5 : vector<8x512xf32>
    %155 = vector.extract_strided_slice %154 {offsets = [0, 0], sizes = [8, 384], strides = [1, 1]} : vector<8x512xf32> to vector<8x384xf32>
    %156 = arith.negf %155 : vector<8x384xf32>
    %157 = math.exp %156 : vector<8x384xf32>
    %cst_60 = arith.constant 1.000000e+00 : f32
    %158 = vector.broadcast %cst_60 : f32 to vector<8x384xf32>
    %159 = arith.addf %158, %157 : vector<8x384xf32>
    %160 = arith.divf %158, %159 : vector<8x384xf32>
    %161 = vector.extract_strided_slice %160 {offsets = [0, 0], sizes = [8, 128], strides = [1, 1]} : vector<8x384xf32> to vector<8x128xf32>
    %162 = vector.extract_strided_slice %160 {offsets = [0, 128], sizes = [8, 128], strides = [1, 1]} : vector<8x384xf32> to vector<8x128xf32>
    %163 = vector.extract_strided_slice %160 {offsets = [0, 256], sizes = [8, 128], strides = [1, 1]} : vector<8x384xf32> to vector<8x128xf32>
    %164 = vector.extract_strided_slice %154 {offsets = [0, 384], sizes = [8, 128], strides = [1, 1]} : vector<8x512xf32> to vector<8x128xf32>
    %165 = math.tanh %164 : vector<8x128xf32>
    %166 = arith.mulf %162, %78 : vector<8x128xf32>
    %167 = arith.mulf %161, %165 : vector<8x128xf32>
    %168 = arith.addf %166, %167 : vector<8x128xf32>
    %169 = math.tanh %168 : vector<8x128xf32>
    %170 = arith.mulf %163, %169 : vector<8x128xf32>
    %c0_61 = arith.constant 0 : index
    %c0_62 = arith.constant 0 : index
    %171 = vector.load %arg7[%c0_61, %c0_62] : memref<128x512xf32, #tpu.memory_space<vmem>>, vector<128x512xf32>
    %cst_63 = arith.constant dense<0.000000e+00> : vector<8x512xf32>
    %172 = tpu.matmul %170, %171, %cst_63 {dimension_numbers = #tpu.dot_dimension_numbers<[1], [0], [0], [1], [0, 0, 1, 1], [], []>} : vector<8x128xf32>, vector<128x512xf32>, vector<8x512xf32> -> vector<8x512xf32>
    %c0_64 = arith.constant 0 : index
    %c0_65 = arith.constant 0 : index
    %173 = vector.load %arg8[%c0_64, %c0_65] : memref<128x512xf32, #tpu.memory_space<vmem>>, vector<128x512xf32>
    %cst_66 = arith.constant dense<0.000000e+00> : vector<8x512xf32>
    %174 = tpu.matmul %102, %173, %cst_66 {dimension_numbers = #tpu.dot_dimension_numbers<[1], [0], [0], [1], [0, 0, 1, 1], [], []>} : vector<8x128xf32>, vector<128x512xf32>, vector<8x512xf32> -> vector<8x512xf32>
    %175 = arith.addf %172, %174 : vector<8x512xf32>
    %176 = arith.addf %175, %8 : vector<8x512xf32>
    %177 = vector.extract_strided_slice %176 {offsets = [0, 0], sizes = [8, 384], strides = [1, 1]} : vector<8x512xf32> to vector<8x384xf32>
    %178 = arith.negf %177 : vector<8x384xf32>
    %179 = math.exp %178 : vector<8x384xf32>
    %cst_67 = arith.constant 1.000000e+00 : f32
    %180 = vector.broadcast %cst_67 : f32 to vector<8x384xf32>
    %181 = arith.addf %180, %179 : vector<8x384xf32>
    %182 = arith.divf %180, %181 : vector<8x384xf32>
    %183 = vector.extract_strided_slice %182 {offsets = [0, 0], sizes = [8, 128], strides = [1, 1]} : vector<8x384xf32> to vector<8x128xf32>
    %184 = vector.extract_strided_slice %182 {offsets = [0, 128], sizes = [8, 128], strides = [1, 1]} : vector<8x384xf32> to vector<8x128xf32>
    %185 = vector.extract_strided_slice %182 {offsets = [0, 256], sizes = [8, 128], strides = [1, 1]} : vector<8x384xf32> to vector<8x128xf32>
    %186 = vector.extract_strided_slice %176 {offsets = [0, 384], sizes = [8, 128], strides = [1, 1]} : vector<8x512xf32> to vector<8x128xf32>
    %187 = math.tanh %186 : vector<8x128xf32>
    %188 = arith.mulf %184, %100 : vector<8x128xf32>
    %189 = arith.mulf %183, %187 : vector<8x128xf32>
    %190 = arith.addf %188, %189 : vector<8x128xf32>
    %191 = math.tanh %190 : vector<8x128xf32>
    %192 = arith.mulf %185, %191 : vector<8x128xf32>
    %193 = arith.index_cast %c1_i32_38 : i32 to index
    %c0_68 = arith.constant 0 : index
    %c0_69 = arith.constant 0 : index
    %194 = vector.load %arg17[%193, %c0_68, %c0_69] : memref<8x8x128xf32, #tpu.memory_space<vmem>>, vector<1x8x128xf32>
    %195 = vector.shape_cast %194 : vector<1x8x128xf32> to vector<8x128xf32>
    %196 = vector.shape_cast %192 : vector<8x128xf32> to vector<1x8x128xf32>
    tpu.vector_store %arg17[%193, %c0_68, %c0_69], %196 {strides = array<i32>} : memref<8x8x128xf32, #tpu.memory_space<vmem>>, vector<1x8x128xf32>,
    %c2_i32_70 = arith.constant 2 : i32
    %c8_i32_71 = arith.constant 8 : i32
    %197 = arith.muli %arg0, %c8_i32_71 : i32
    %198 = arith.addi %197, %c2_i32_70 : i32
    %c8_i32_72 = arith.constant 8 : i32
    %199 = arith.muli %198, %c8_i32_72 : i32
    %c0_i32_73 = arith.constant 0 : i32
    %200 = arith.addi %199, %c0_i32_73 : i32
    %201 = arith.index_cast %200 : i32 to index
    %202 = memref.load %arg1[%201] : memref<64xi32, #tpu.memory_space<smem>>
    %203 = arith.index_cast %202 : i32 to index
    %c0_74 = arith.constant 0 : index
    %204 = vector.load %arg4[%203, %c0_74] : memref<32x512xf32, #tpu.memory_space<vmem>>, vector<1x512xf32>
    %c1_i32_75 = arith.constant 1 : i32
    %205 = arith.addi %199, %c1_i32_75 : i32
    %206 = arith.index_cast %205 : i32 to index
    %207 = memref.load %arg1[%206] : memref<64xi32, #tpu.memory_space<smem>>
    %208 = arith.index_cast %207 : i32 to index
    %c0_76 = arith.constant 0 : index
    %209 = vector.load %arg4[%208, %c0_76] : memref<32x512xf32, #tpu.memory_space<vmem>>, vector<1x512xf32>
    %c2_i32_77 = arith.constant 2 : i32
    %210 = arith.addi %199, %c2_i32_77 : i32
    %211 = arith.index_cast %210 : i32 to index
    %212 = memref.load %arg1[%211] : memref<64xi32, #tpu.memory_space<smem>>
    %213 = arith.index_cast %212 : i32 to index
    %c0_78 = arith.constant 0 : index
    %214 = vector.load %arg4[%213, %c0_78] : memref<32x512xf32, #tpu.memory_space<vmem>>, vector<1x512xf32>
    %c3_i32_79 = arith.constant 3 : i32
    %215 = arith.addi %199, %c3_i32_79 : i32
    %216 = arith.index_cast %215 : i32 to index
    %217 = memref.load %arg1[%216] : memref<64xi32, #tpu.memory_space<smem>>
    %218 = arith.index_cast %217 : i32 to index
    %c0_80 = arith.constant 0 : index
    %219 = vector.load %arg4[%218, %c0_80] : memref<32x512xf32, #tpu.memory_space<vmem>>, vector<1x512xf32>
    %c4_i32_81 = arith.constant 4 : i32
    %220 = arith.addi %199, %c4_i32_81 : i32
    %221 = arith.index_cast %220 : i32 to index
    %222 = memref.load %arg1[%221] : memref<64xi32, #tpu.memory_space<smem>>
    %223 = arith.index_cast %222 : i32 to index
    %c0_82 = arith.constant 0 : index
    %224 = vector.load %arg4[%223, %c0_82] : memref<32x512xf32, #tpu.memory_space<vmem>>, vector<1x512xf32>
    %c5_i32_83 = arith.constant 5 : i32
    %225 = arith.addi %199, %c5_i32_83 : i32
    %226 = arith.index_cast %225 : i32 to index
    %227 = memref.load %arg1[%226] : memref<64xi32, #tpu.memory_space<smem>>
    %228 = arith.index_cast %227 : i32 to index
    %c0_84 = arith.constant 0 : index
    %229 = vector.load %arg4[%228, %c0_84] : memref<32x512xf32, #tpu.memory_space<vmem>>, vector<1x512xf32>
    %c6_i32_85 = arith.constant 6 : i32
    %230 = arith.addi %199, %c6_i32_85 : i32
    %231 = arith.index_cast %230 : i32 to index
    %232 = memref.load %arg1[%231] : memref<64xi32, #tpu.memory_space<smem>>
    %233 = arith.index_cast %232 : i32 to index
    %c0_86 = arith.constant 0 : index
    %234 = vector.load %arg4[%233, %c0_86] : memref<32x512xf32, #tpu.memory_space<vmem>>, vector<1x512xf32>
    %c7_i32_87 = arith.constant 7 : i32
    %235 = arith.addi %199, %c7_i32_87 : i32
    %236 = arith.index_cast %235 : i32 to index
    %237 = memref.load %arg1[%236] : memref<64xi32, #tpu.memory_space<smem>>
    %238 = arith.index_cast %237 : i32 to index
    %c0_88 = arith.constant 0 : index
    %239 = vector.load %arg4[%238, %c0_88] : memref<32x512xf32, #tpu.memory_space<vmem>>, vector<1x512xf32>
    %240 = tpu.concatenate %204, %209, %214, %219, %224, %229, %234, %239 in 0 : vector<1x512xf32>, vector<1x512xf32>, vector<1x512xf32>, vector<1x512xf32>, vector<1x512xf32>, vector<1x512xf32>, vector<1x512xf32>, vector<1x512xf32> -> vector<8x512xf32>
    %c0_89 = arith.constant 0 : index
    %c0_90 = arith.constant 0 : index
    %241 = vector.load %arg5[%c0_89, %c0_90] : memref<128x512xf32, #tpu.memory_space<vmem>>, vector<128x512xf32>
    %cst_91 = arith.constant dense<0.000000e+00> : vector<8x512xf32>
    %242 = tpu.matmul %170, %241, %cst_91 {dimension_numbers = #tpu.dot_dimension_numbers<[1], [0], [0], [1], [0, 0, 1, 1], [], []>} : vector<8x128xf32>, vector<128x512xf32>, vector<8x512xf32> -> vector<8x512xf32>
    %243 = arith.addf %240, %242 : vector<8x512xf32>
    %244 = arith.addf %243, %5 : vector<8x512xf32>
    %245 = vector.extract_strided_slice %244 {offsets = [0, 0], sizes = [8, 384], strides = [1, 1]} : vector<8x512xf32> to vector<8x384xf32>
    %246 = arith.negf %245 : vector<8x384xf32>
    %247 = math.exp %246 : vector<8x384xf32>
    %cst_92 = arith.constant 1.000000e+00 : f32
    %248 = vector.broadcast %cst_92 : f32 to vector<8x384xf32>
    %249 = arith.addf %248, %247 : vector<8x384xf32>
    %250 = arith.divf %248, %249 : vector<8x384xf32>
    %251 = vector.extract_strided_slice %250 {offsets = [0, 0], sizes = [8, 128], strides = [1, 1]} : vector<8x384xf32> to vector<8x128xf32>
    %252 = vector.extract_strided_slice %250 {offsets = [0, 128], sizes = [8, 128], strides = [1, 1]} : vector<8x384xf32> to vector<8x128xf32>
    %253 = vector.extract_strided_slice %250 {offsets = [0, 256], sizes = [8, 128], strides = [1, 1]} : vector<8x384xf32> to vector<8x128xf32>
    %254 = vector.extract_strided_slice %244 {offsets = [0, 384], sizes = [8, 128], strides = [1, 1]} : vector<8x512xf32> to vector<8x128xf32>
    %255 = math.tanh %254 : vector<8x128xf32>
    %256 = arith.mulf %252, %168 : vector<8x128xf32>
    %257 = arith.mulf %251, %255 : vector<8x128xf32>
    %258 = arith.addf %256, %257 : vector<8x128xf32>
    %259 = math.tanh %258 : vector<8x128xf32>
    %260 = arith.mulf %253, %259 : vector<8x128xf32>
    %c0_93 = arith.constant 0 : index
    %c0_94 = arith.constant 0 : index
    %261 = vector.load %arg7[%c0_93, %c0_94] : memref<128x512xf32, #tpu.memory_space<vmem>>, vector<128x512xf32>
    %cst_95 = arith.constant dense<0.000000e+00> : vector<8x512xf32>
    %262 = tpu.matmul %260, %261, %cst_95 {dimension_numbers = #tpu.dot_dimension_numbers<[1], [0], [0], [1], [0, 0, 1, 1], [], []>} : vector<8x128xf32>, vector<128x512xf32>, vector<8x512xf32> -> vector<8x512xf32>
    %c0_96 = arith.constant 0 : index
    %c0_97 = arith.constant 0 : index
    %263 = vector.load %arg8[%c0_96, %c0_97] : memref<128x512xf32, #tpu.memory_space<vmem>>, vector<128x512xf32>
    %cst_98 = arith.constant dense<0.000000e+00> : vector<8x512xf32>
    %264 = tpu.matmul %192, %263, %cst_98 {dimension_numbers = #tpu.dot_dimension_numbers<[1], [0], [0], [1], [0, 0, 1, 1], [], []>} : vector<8x128xf32>, vector<128x512xf32>, vector<8x512xf32> -> vector<8x512xf32>
    %265 = arith.addf %262, %264 : vector<8x512xf32>
    %266 = arith.addf %265, %8 : vector<8x512xf32>
    %267 = vector.extract_strided_slice %266 {offsets = [0, 0], sizes = [8, 384], strides = [1, 1]} : vector<8x512xf32> to vector<8x384xf32>
    %268 = arith.negf %267 : vector<8x384xf32>
    %269 = math.exp %268 : vector<8x384xf32>
    %cst_99 = arith.constant 1.000000e+00 : f32
    %270 = vector.broadcast %cst_99 : f32 to vector<8x384xf32>
    %271 = arith.addf %270, %269 : vector<8x384xf32>
    %272 = arith.divf %270, %271 : vector<8x384xf32>
    %273 = vector.extract_strided_slice %272 {offsets = [0, 0], sizes = [8, 128], strides = [1, 1]} : vector<8x384xf32> to vector<8x128xf32>
    %274 = vector.extract_strided_slice %272 {offsets = [0, 128], sizes = [8, 128], strides = [1, 1]} : vector<8x384xf32> to vector<8x128xf32>
    %275 = vector.extract_strided_slice %272 {offsets = [0, 256], sizes = [8, 128], strides = [1, 1]} : vector<8x384xf32> to vector<8x128xf32>
    %276 = vector.extract_strided_slice %266 {offsets = [0, 384], sizes = [8, 128], strides = [1, 1]} : vector<8x512xf32> to vector<8x128xf32>
    %277 = math.tanh %276 : vector<8x128xf32>
    %278 = arith.mulf %274, %190 : vector<8x128xf32>
    %279 = arith.mulf %273, %277 : vector<8x128xf32>
    %280 = arith.addf %278, %279 : vector<8x128xf32>
    %281 = math.tanh %280 : vector<8x128xf32>
    %282 = arith.mulf %275, %281 : vector<8x128xf32>
    %283 = arith.index_cast %c2_i32_70 : i32 to index
    %c0_100 = arith.constant 0 : index
    %c0_101 = arith.constant 0 : index
    %284 = vector.load %arg17[%283, %c0_100, %c0_101] : memref<8x8x128xf32, #tpu.memory_space<vmem>>, vector<1x8x128xf32>
    %285 = vector.shape_cast %284 : vector<1x8x128xf32> to vector<8x128xf32>
    %286 = vector.shape_cast %282 : vector<8x128xf32> to vector<1x8x128xf32>
    tpu.vector_store %arg17[%283, %c0_100, %c0_101], %286 {strides = array<i32>} : memref<8x8x128xf32, #tpu.memory_space<vmem>>, vector<1x8x128xf32>,
    %c3_i32_102 = arith.constant 3 : i32
    %c8_i32_103 = arith.constant 8 : i32
    %287 = arith.muli %arg0, %c8_i32_103 : i32
    %288 = arith.addi %287, %c3_i32_102 : i32
    %c8_i32_104 = arith.constant 8 : i32
    %289 = arith.muli %288, %c8_i32_104 : i32
    %c0_i32_105 = arith.constant 0 : i32
    %290 = arith.addi %289, %c0_i32_105 : i32
    %291 = arith.index_cast %290 : i32 to index
    %292 = memref.load %arg1[%291] : memref<64xi32, #tpu.memory_space<smem>>
    %293 = arith.index_cast %292 : i32 to index
    %c0_106 = arith.constant 0 : index
    %294 = vector.load %arg4[%293, %c0_106] : memref<32x512xf32, #tpu.memory_space<vmem>>, vector<1x512xf32>
    %c1_i32_107 = arith.constant 1 : i32
    %295 = arith.addi %289, %c1_i32_107 : i32
    %296 = arith.index_cast %295 : i32 to index
    %297 = memref.load %arg1[%296] : memref<64xi32, #tpu.memory_space<smem>>
    %298 = arith.index_cast %297 : i32 to index
    %c0_108 = arith.constant 0 : index
    %299 = vector.load %arg4[%298, %c0_108] : memref<32x512xf32, #tpu.memory_space<vmem>>, vector<1x512xf32>
    %c2_i32_109 = arith.constant 2 : i32
    %300 = arith.addi %289, %c2_i32_109 : i32
    %301 = arith.index_cast %300 : i32 to index
    %302 = memref.load %arg1[%301] : memref<64xi32, #tpu.memory_space<smem>>
    %303 = arith.index_cast %302 : i32 to index
    %c0_110 = arith.constant 0 : index
    %304 = vector.load %arg4[%303, %c0_110] : memref<32x512xf32, #tpu.memory_space<vmem>>, vector<1x512xf32>
    %c3_i32_111 = arith.constant 3 : i32
    %305 = arith.addi %289, %c3_i32_111 : i32
    %306 = arith.index_cast %305 : i32 to index
    %307 = memref.load %arg1[%306] : memref<64xi32, #tpu.memory_space<smem>>
    %308 = arith.index_cast %307 : i32 to index
    %c0_112 = arith.constant 0 : index
    %309 = vector.load %arg4[%308, %c0_112] : memref<32x512xf32, #tpu.memory_space<vmem>>, vector<1x512xf32>
    %c4_i32_113 = arith.constant 4 : i32
    %310 = arith.addi %289, %c4_i32_113 : i32
    %311 = arith.index_cast %310 : i32 to index
    %312 = memref.load %arg1[%311] : memref<64xi32, #tpu.memory_space<smem>>
    %313 = arith.index_cast %312 : i32 to index
    %c0_114 = arith.constant 0 : index
    %314 = vector.load %arg4[%313, %c0_114] : memref<32x512xf32, #tpu.memory_space<vmem>>, vector<1x512xf32>
    %c5_i32_115 = arith.constant 5 : i32
    %315 = arith.addi %289, %c5_i32_115 : i32
    %316 = arith.index_cast %315 : i32 to index
    %317 = memref.load %arg1[%316] : memref<64xi32, #tpu.memory_space<smem>>
    %318 = arith.index_cast %317 : i32 to index
    %c0_116 = arith.constant 0 : index
    %319 = vector.load %arg4[%318, %c0_116] : memref<32x512xf32, #tpu.memory_space<vmem>>, vector<1x512xf32>
    %c6_i32_117 = arith.constant 6 : i32
    %320 = arith.addi %289, %c6_i32_117 : i32
    %321 = arith.index_cast %320 : i32 to index
    %322 = memref.load %arg1[%321] : memref<64xi32, #tpu.memory_space<smem>>
    %323 = arith.index_cast %322 : i32 to index
    %c0_118 = arith.constant 0 : index
    %324 = vector.load %arg4[%323, %c0_118] : memref<32x512xf32, #tpu.memory_space<vmem>>, vector<1x512xf32>
    %c7_i32_119 = arith.constant 7 : i32
    %325 = arith.addi %289, %c7_i32_119 : i32
    %326 = arith.index_cast %325 : i32 to index
    %327 = memref.load %arg1[%326] : memref<64xi32, #tpu.memory_space<smem>>
    %328 = arith.index_cast %327 : i32 to index
    %c0_120 = arith.constant 0 : index
    %329 = vector.load %arg4[%328, %c0_120] : memref<32x512xf32, #tpu.memory_space<vmem>>, vector<1x512xf32>
    %330 = tpu.concatenate %294, %299, %304, %309, %314, %319, %324, %329 in 0 : vector<1x512xf32>, vector<1x512xf32>, vector<1x512xf32>, vector<1x512xf32>, vector<1x512xf32>, vector<1x512xf32>, vector<1x512xf32>, vector<1x512xf32> -> vector<8x512xf32>
    %c0_121 = arith.constant 0 : index
    %c0_122 = arith.constant 0 : index
    %331 = vector.load %arg5[%c0_121, %c0_122] : memref<128x512xf32, #tpu.memory_space<vmem>>, vector<128x512xf32>
    %cst_123 = arith.constant dense<0.000000e+00> : vector<8x512xf32>
    %332 = tpu.matmul %260, %331, %cst_123 {dimension_numbers = #tpu.dot_dimension_numbers<[1], [0], [0], [1], [0, 0, 1, 1], [], []>} : vector<8x128xf32>, vector<128x512xf32>, vector<8x512xf32> -> vector<8x512xf32>
    %333 = arith.addf %330, %332 : vector<8x512xf32>
    %334 = arith.addf %333, %5 : vector<8x512xf32>
    %335 = vector.extract_strided_slice %334 {offsets = [0, 0], sizes = [8, 384], strides = [1, 1]} : vector<8x512xf32> to vector<8x384xf32>
    %336 = arith.negf %335 : vector<8x384xf32>
    %337 = math.exp %336 : vector<8x384xf32>
    %cst_124 = arith.constant 1.000000e+00 : f32
    %338 = vector.broadcast %cst_124 : f32 to vector<8x384xf32>
    %339 = arith.addf %338, %337 : vector<8x384xf32>
    %340 = arith.divf %338, %339 : vector<8x384xf32>
    %341 = vector.extract_strided_slice %340 {offsets = [0, 0], sizes = [8, 128], strides = [1, 1]} : vector<8x384xf32> to vector<8x128xf32>
    %342 = vector.extract_strided_slice %340 {offsets = [0, 128], sizes = [8, 128], strides = [1, 1]} : vector<8x384xf32> to vector<8x128xf32>
    %343 = vector.extract_strided_slice %340 {offsets = [0, 256], sizes = [8, 128], strides = [1, 1]} : vector<8x384xf32> to vector<8x128xf32>
    %344 = vector.extract_strided_slice %334 {offsets = [0, 384], sizes = [8, 128], strides = [1, 1]} : vector<8x512xf32> to vector<8x128xf32>
    %345 = math.tanh %344 : vector<8x128xf32>
    %346 = arith.mulf %342, %258 : vector<8x128xf32>
    %347 = arith.mulf %341, %345 : vector<8x128xf32>
    %348 = arith.addf %346, %347 : vector<8x128xf32>
    %349 = math.tanh %348 : vector<8x128xf32>
    %350 = arith.mulf %343, %349 : vector<8x128xf32>
    %c0_125 = arith.constant 0 : index
    %c0_126 = arith.constant 0 : index
    %351 = vector.load %arg7[%c0_125, %c0_126] : memref<128x512xf32, #tpu.memory_space<vmem>>, vector<128x512xf32>
    %cst_127 = arith.constant dense<0.000000e+00> : vector<8x512xf32>
    %352 = tpu.matmul %350, %351, %cst_127 {dimension_numbers = #tpu.dot_dimension_numbers<[1], [0], [0], [1], [0, 0, 1, 1], [], []>} : vector<8x128xf32>, vector<128x512xf32>, vector<8x512xf32> -> vector<8x512xf32>
    %c0_128 = arith.constant 0 : index
    %c0_129 = arith.constant 0 : index
    %353 = vector.load %arg8[%c0_128, %c0_129] : memref<128x512xf32, #tpu.memory_space<vmem>>, vector<128x512xf32>
    %cst_130 = arith.constant dense<0.000000e+00> : vector<8x512xf32>
    %354 = tpu.matmul %282, %353, %cst_130 {dimension_numbers = #tpu.dot_dimension_numbers<[1], [0], [0], [1], [0, 0, 1, 1], [], []>} : vector<8x128xf32>, vector<128x512xf32>, vector<8x512xf32> -> vector<8x512xf32>
    %355 = arith.addf %352, %354 : vector<8x512xf32>
    %356 = arith.addf %355, %8 : vector<8x512xf32>
    %357 = vector.extract_strided_slice %356 {offsets = [0, 0], sizes = [8, 384], strides = [1, 1]} : vector<8x512xf32> to vector<8x384xf32>
    %358 = arith.negf %357 : vector<8x384xf32>
    %359 = math.exp %358 : vector<8x384xf32>
    %cst_131 = arith.constant 1.000000e+00 : f32
    %360 = vector.broadcast %cst_131 : f32 to vector<8x384xf32>
    %361 = arith.addf %360, %359 : vector<8x384xf32>
    %362 = arith.divf %360, %361 : vector<8x384xf32>
    %363 = vector.extract_strided_slice %362 {offsets = [0, 0], sizes = [8, 128], strides = [1, 1]} : vector<8x384xf32> to vector<8x128xf32>
    %364 = vector.extract_strided_slice %362 {offsets = [0, 128], sizes = [8, 128], strides = [1, 1]} : vector<8x384xf32> to vector<8x128xf32>
    %365 = vector.extract_strided_slice %362 {offsets = [0, 256], sizes = [8, 128], strides = [1, 1]} : vector<8x384xf32> to vector<8x128xf32>
    %366 = vector.extract_strided_slice %356 {offsets = [0, 384], sizes = [8, 128], strides = [1, 1]} : vector<8x512xf32> to vector<8x128xf32>
    %367 = math.tanh %366 : vector<8x128xf32>
    %368 = arith.mulf %364, %280 : vector<8x128xf32>
    %369 = arith.mulf %363, %367 : vector<8x128xf32>
    %370 = arith.addf %368, %369 : vector<8x128xf32>
    %371 = math.tanh %370 : vector<8x128xf32>
    %372 = arith.mulf %365, %371 : vector<8x128xf32>
    %373 = arith.index_cast %c3_i32_102 : i32 to index
    %c0_132 = arith.constant 0 : index
    %c0_133 = arith.constant 0 : index
    %374 = vector.load %arg17[%373, %c0_132, %c0_133] : memref<8x8x128xf32, #tpu.memory_space<vmem>>, vector<1x8x128xf32>
    %375 = vector.shape_cast %374 : vector<1x8x128xf32> to vector<8x128xf32>
    %376 = vector.shape_cast %372 : vector<8x128xf32> to vector<1x8x128xf32>
    tpu.vector_store %arg17[%373, %c0_132, %c0_133], %376 {strides = array<i32>} : memref<8x8x128xf32, #tpu.memory_space<vmem>>, vector<1x8x128xf32>,
    %c4_i32_134 = arith.constant 4 : i32
    %c8_i32_135 = arith.constant 8 : i32
    %377 = arith.muli %arg0, %c8_i32_135 : i32
    %378 = arith.addi %377, %c4_i32_134 : i32
    %c8_i32_136 = arith.constant 8 : i32
    %379 = arith.muli %378, %c8_i32_136 : i32
    %c0_i32_137 = arith.constant 0 : i32
    %380 = arith.addi %379, %c0_i32_137 : i32
    %381 = arith.index_cast %380 : i32 to index
    %382 = memref.load %arg1[%381] : memref<64xi32, #tpu.memory_space<smem>>
    %383 = arith.index_cast %382 : i32 to index
    %c0_138 = arith.constant 0 : index
    %384 = vector.load %arg4[%383, %c0_138] : memref<32x512xf32, #tpu.memory_space<vmem>>, vector<1x512xf32>
    %c1_i32_139 = arith.constant 1 : i32
    %385 = arith.addi %379, %c1_i32_139 : i32
    %386 = arith.index_cast %385 : i32 to index
    %387 = memref.load %arg1[%386] : memref<64xi32, #tpu.memory_space<smem>>
    %388 = arith.index_cast %387 : i32 to index
    %c0_140 = arith.constant 0 : index
    %389 = vector.load %arg4[%388, %c0_140] : memref<32x512xf32, #tpu.memory_space<vmem>>, vector<1x512xf32>
    %c2_i32_141 = arith.constant 2 : i32
    %390 = arith.addi %379, %c2_i32_141 : i32
    %391 = arith.index_cast %390 : i32 to index
    %392 = memref.load %arg1[%391] : memref<64xi32, #tpu.memory_space<smem>>
    %393 = arith.index_cast %392 : i32 to index
    %c0_142 = arith.constant 0 : index
    %394 = vector.load %arg4[%393, %c0_142] : memref<32x512xf32, #tpu.memory_space<vmem>>, vector<1x512xf32>
    %c3_i32_143 = arith.constant 3 : i32
    %395 = arith.addi %379, %c3_i32_143 : i32
    %396 = arith.index_cast %395 : i32 to index
    %397 = memref.load %arg1[%396] : memref<64xi32, #tpu.memory_space<smem>>
    %398 = arith.index_cast %397 : i32 to index
    %c0_144 = arith.constant 0 : index
    %399 = vector.load %arg4[%398, %c0_144] : memref<32x512xf32, #tpu.memory_space<vmem>>, vector<1x512xf32>
    %c4_i32_145 = arith.constant 4 : i32
    %400 = arith.addi %379, %c4_i32_145 : i32
    %401 = arith.index_cast %400 : i32 to index
    %402 = memref.load %arg1[%401] : memref<64xi32, #tpu.memory_space<smem>>
    %403 = arith.index_cast %402 : i32 to index
    %c0_146 = arith.constant 0 : index
    %404 = vector.load %arg4[%403, %c0_146] : memref<32x512xf32, #tpu.memory_space<vmem>>, vector<1x512xf32>
    %c5_i32_147 = arith.constant 5 : i32
    %405 = arith.addi %379, %c5_i32_147 : i32
    %406 = arith.index_cast %405 : i32 to index
    %407 = memref.load %arg1[%406] : memref<64xi32, #tpu.memory_space<smem>>
    %408 = arith.index_cast %407 : i32 to index
    %c0_148 = arith.constant 0 : index
    %409 = vector.load %arg4[%408, %c0_148] : memref<32x512xf32, #tpu.memory_space<vmem>>, vector<1x512xf32>
    %c6_i32_149 = arith.constant 6 : i32
    %410 = arith.addi %379, %c6_i32_149 : i32
    %411 = arith.index_cast %410 : i32 to index
    %412 = memref.load %arg1[%411] : memref<64xi32, #tpu.memory_space<smem>>
    %413 = arith.index_cast %412 : i32 to index
    %c0_150 = arith.constant 0 : index
    %414 = vector.load %arg4[%413, %c0_150] : memref<32x512xf32, #tpu.memory_space<vmem>>, vector<1x512xf32>
    %c7_i32_151 = arith.constant 7 : i32
    %415 = arith.addi %379, %c7_i32_151 : i32
    %416 = arith.index_cast %415 : i32 to index
    %417 = memref.load %arg1[%416] : memref<64xi32, #tpu.memory_space<smem>>
    %418 = arith.index_cast %417 : i32 to index
    %c0_152 = arith.constant 0 : index
    %419 = vector.load %arg4[%418, %c0_152] : memref<32x512xf32, #tpu.memory_space<vmem>>, vector<1x512xf32>
    %420 = tpu.concatenate %384, %389, %394, %399, %404, %409, %414, %419 in 0 : vector<1x512xf32>, vector<1x512xf32>, vector<1x512xf32>, vector<1x512xf32>, vector<1x512xf32>, vector<1x512xf32>, vector<1x512xf32>, vector<1x512xf32> -> vector<8x512xf32>
    %c0_153 = arith.constant 0 : index
    %c0_154 = arith.constant 0 : index
    %421 = vector.load %arg5[%c0_153, %c0_154] : memref<128x512xf32, #tpu.memory_space<vmem>>, vector<128x512xf32>
    %cst_155 = arith.constant dense<0.000000e+00> : vector<8x512xf32>
    %422 = tpu.matmul %350, %421, %cst_155 {dimension_numbers = #tpu.dot_dimension_numbers<[1], [0], [0], [1], [0, 0, 1, 1], [], []>} : vector<8x128xf32>, vector<128x512xf32>, vector<8x512xf32> -> vector<8x512xf32>
    %423 = arith.addf %420, %422 : vector<8x512xf32>
    %424 = arith.addf %423, %5 : vector<8x512xf32>
    %425 = vector.extract_strided_slice %424 {offsets = [0, 0], sizes = [8, 384], strides = [1, 1]} : vector<8x512xf32> to vector<8x384xf32>
    %426 = arith.negf %425 : vector<8x384xf32>
    %427 = math.exp %426 : vector<8x384xf32>
    %cst_156 = arith.constant 1.000000e+00 : f32
    %428 = vector.broadcast %cst_156 : f32 to vector<8x384xf32>
    %429 = arith.addf %428, %427 : vector<8x384xf32>
    %430 = arith.divf %428, %429 : vector<8x384xf32>
    %431 = vector.extract_strided_slice %430 {offsets = [0, 0], sizes = [8, 128], strides = [1, 1]} : vector<8x384xf32> to vector<8x128xf32>
    %432 = vector.extract_strided_slice %430 {offsets = [0, 128], sizes = [8, 128], strides = [1, 1]} : vector<8x384xf32> to vector<8x128xf32>
    %433 = vector.extract_strided_slice %430 {offsets = [0, 256], sizes = [8, 128], strides = [1, 1]} : vector<8x384xf32> to vector<8x128xf32>
    %434 = vector.extract_strided_slice %424 {offsets = [0, 384], sizes = [8, 128], strides = [1, 1]} : vector<8x512xf32> to vector<8x128xf32>
    %435 = math.tanh %434 : vector<8x128xf32>
    %436 = arith.mulf %432, %348 : vector<8x128xf32>
    %437 = arith.mulf %431, %435 : vector<8x128xf32>
    %438 = arith.addf %436, %437 : vector<8x128xf32>
    %439 = math.tanh %438 : vector<8x128xf32>
    %440 = arith.mulf %433, %439 : vector<8x128xf32>
    %c0_157 = arith.constant 0 : index
    %c0_158 = arith.constant 0 : index
    %441 = vector.load %arg7[%c0_157, %c0_158] : memref<128x512xf32, #tpu.memory_space<vmem>>, vector<128x512xf32>
    %cst_159 = arith.constant dense<0.000000e+00> : vector<8x512xf32>
    %442 = tpu.matmul %440, %441, %cst_159 {dimension_numbers = #tpu.dot_dimension_numbers<[1], [0], [0], [1], [0, 0, 1, 1], [], []>} : vector<8x128xf32>, vector<128x512xf32>, vector<8x512xf32> -> vector<8x512xf32>
    %c0_160 = arith.constant 0 : index
    %c0_161 = arith.constant 0 : index
    %443 = vector.load %arg8[%c0_160, %c0_161] : memref<128x512xf32, #tpu.memory_space<vmem>>, vector<128x512xf32>
    %cst_162 = arith.constant dense<0.000000e+00> : vector<8x512xf32>
    %444 = tpu.matmul %372, %443, %cst_162 {dimension_numbers = #tpu.dot_dimension_numbers<[1], [0], [0], [1], [0, 0, 1, 1], [], []>} : vector<8x128xf32>, vector<128x512xf32>, vector<8x512xf32> -> vector<8x512xf32>
    %445 = arith.addf %442, %444 : vector<8x512xf32>
    %446 = arith.addf %445, %8 : vector<8x512xf32>
    %447 = vector.extract_strided_slice %446 {offsets = [0, 0], sizes = [8, 384], strides = [1, 1]} : vector<8x512xf32> to vector<8x384xf32>
    %448 = arith.negf %447 : vector<8x384xf32>
    %449 = math.exp %448 : vector<8x384xf32>
    %cst_163 = arith.constant 1.000000e+00 : f32
    %450 = vector.broadcast %cst_163 : f32 to vector<8x384xf32>
    %451 = arith.addf %450, %449 : vector<8x384xf32>
    %452 = arith.divf %450, %451 : vector<8x384xf32>
    %453 = vector.extract_strided_slice %452 {offsets = [0, 0], sizes = [8, 128], strides = [1, 1]} : vector<8x384xf32> to vector<8x128xf32>
    %454 = vector.extract_strided_slice %452 {offsets = [0, 128], sizes = [8, 128], strides = [1, 1]} : vector<8x384xf32> to vector<8x128xf32>
    %455 = vector.extract_strided_slice %452 {offsets = [0, 256], sizes = [8, 128], strides = [1, 1]} : vector<8x384xf32> to vector<8x128xf32>
    %456 = vector.extract_strided_slice %446 {offsets = [0, 384], sizes = [8, 128], strides = [1, 1]} : vector<8x512xf32> to vector<8x128xf32>
    %457 = math.tanh %456 : vector<8x128xf32>
    %458 = arith.mulf %454, %370 : vector<8x128xf32>
    %459 = arith.mulf %453, %457 : vector<8x128xf32>
    %460 = arith.addf %458, %459 : vector<8x128xf32>
    %461 = math.tanh %460 : vector<8x128xf32>
    %462 = arith.mulf %455, %461 : vector<8x128xf32>
    %463 = arith.index_cast %c4_i32_134 : i32 to index
    %c0_164 = arith.constant 0 : index
    %c0_165 = arith.constant 0 : index
    %464 = vector.load %arg17[%463, %c0_164, %c0_165] : memref<8x8x128xf32, #tpu.memory_space<vmem>>, vector<1x8x128xf32>
    %465 = vector.shape_cast %464 : vector<1x8x128xf32> to vector<8x128xf32>
    %466 = vector.shape_cast %462 : vector<8x128xf32> to vector<1x8x128xf32>
    tpu.vector_store %arg17[%463, %c0_164, %c0_165], %466 {strides = array<i32>} : memref<8x8x128xf32, #tpu.memory_space<vmem>>, vector<1x8x128xf32>,
    %c5_i32_166 = arith.constant 5 : i32
    %c8_i32_167 = arith.constant 8 : i32
    %467 = arith.muli %arg0, %c8_i32_167 : i32
    %468 = arith.addi %467, %c5_i32_166 : i32
    %c8_i32_168 = arith.constant 8 : i32
    %469 = arith.muli %468, %c8_i32_168 : i32
    %c0_i32_169 = arith.constant 0 : i32
    %470 = arith.addi %469, %c0_i32_169 : i32
    %471 = arith.index_cast %470 : i32 to index
    %472 = memref.load %arg1[%471] : memref<64xi32, #tpu.memory_space<smem>>
    %473 = arith.index_cast %472 : i32 to index
    %c0_170 = arith.constant 0 : index
    %474 = vector.load %arg4[%473, %c0_170] : memref<32x512xf32, #tpu.memory_space<vmem>>, vector<1x512xf32>
    %c1_i32_171 = arith.constant 1 : i32
    %475 = arith.addi %469, %c1_i32_171 : i32
    %476 = arith.index_cast %475 : i32 to index
    %477 = memref.load %arg1[%476] : memref<64xi32, #tpu.memory_space<smem>>
    %478 = arith.index_cast %477 : i32 to index
    %c0_172 = arith.constant 0 : index
    %479 = vector.load %arg4[%478, %c0_172] : memref<32x512xf32, #tpu.memory_space<vmem>>, vector<1x512xf32>
    %c2_i32_173 = arith.constant 2 : i32
    %480 = arith.addi %469, %c2_i32_173 : i32
    %481 = arith.index_cast %480 : i32 to index
    %482 = memref.load %arg1[%481] : memref<64xi32, #tpu.memory_space<smem>>
    %483 = arith.index_cast %482 : i32 to index
    %c0_174 = arith.constant 0 : index
    %484 = vector.load %arg4[%483, %c0_174] : memref<32x512xf32, #tpu.memory_space<vmem>>, vector<1x512xf32>
    %c3_i32_175 = arith.constant 3 : i32
    %485 = arith.addi %469, %c3_i32_175 : i32
    %486 = arith.index_cast %485 : i32 to index
    %487 = memref.load %arg1[%486] : memref<64xi32, #tpu.memory_space<smem>>
    %488 = arith.index_cast %487 : i32 to index
    %c0_176 = arith.constant 0 : index
    %489 = vector.load %arg4[%488, %c0_176] : memref<32x512xf32, #tpu.memory_space<vmem>>, vector<1x512xf32>
    %c4_i32_177 = arith.constant 4 : i32
    %490 = arith.addi %469, %c4_i32_177 : i32
    %491 = arith.index_cast %490 : i32 to index
    %492 = memref.load %arg1[%491] : memref<64xi32, #tpu.memory_space<smem>>
    %493 = arith.index_cast %492 : i32 to index
    %c0_178 = arith.constant 0 : index
    %494 = vector.load %arg4[%493, %c0_178] : memref<32x512xf32, #tpu.memory_space<vmem>>, vector<1x512xf32>
    %c5_i32_179 = arith.constant 5 : i32
    %495 = arith.addi %469, %c5_i32_179 : i32
    %496 = arith.index_cast %495 : i32 to index
    %497 = memref.load %arg1[%496] : memref<64xi32, #tpu.memory_space<smem>>
    %498 = arith.index_cast %497 : i32 to index
    %c0_180 = arith.constant 0 : index
    %499 = vector.load %arg4[%498, %c0_180] : memref<32x512xf32, #tpu.memory_space<vmem>>, vector<1x512xf32>
    %c6_i32_181 = arith.constant 6 : i32
    %500 = arith.addi %469, %c6_i32_181 : i32
    %501 = arith.index_cast %500 : i32 to index
    %502 = memref.load %arg1[%501] : memref<64xi32, #tpu.memory_space<smem>>
    %503 = arith.index_cast %502 : i32 to index
    %c0_182 = arith.constant 0 : index
    %504 = vector.load %arg4[%503, %c0_182] : memref<32x512xf32, #tpu.memory_space<vmem>>, vector<1x512xf32>
    %c7_i32_183 = arith.constant 7 : i32
    %505 = arith.addi %469, %c7_i32_183 : i32
    %506 = arith.index_cast %505 : i32 to index
    %507 = memref.load %arg1[%506] : memref<64xi32, #tpu.memory_space<smem>>
    %508 = arith.index_cast %507 : i32 to index
    %c0_184 = arith.constant 0 : index
    %509 = vector.load %arg4[%508, %c0_184] : memref<32x512xf32, #tpu.memory_space<vmem>>, vector<1x512xf32>
    %510 = tpu.concatenate %474, %479, %484, %489, %494, %499, %504, %509 in 0 : vector<1x512xf32>, vector<1x512xf32>, vector<1x512xf32>, vector<1x512xf32>, vector<1x512xf32>, vector<1x512xf32>, vector<1x512xf32>, vector<1x512xf32> -> vector<8x512xf32>
    %c0_185 = arith.constant 0 : index
    %c0_186 = arith.constant 0 : index
    %511 = vector.load %arg5[%c0_185, %c0_186] : memref<128x512xf32, #tpu.memory_space<vmem>>, vector<128x512xf32>
    %cst_187 = arith.constant dense<0.000000e+00> : vector<8x512xf32>
    %512 = tpu.matmul %440, %511, %cst_187 {dimension_numbers = #tpu.dot_dimension_numbers<[1], [0], [0], [1], [0, 0, 1, 1], [], []>} : vector<8x128xf32>, vector<128x512xf32>, vector<8x512xf32> -> vector<8x512xf32>
    %513 = arith.addf %510, %512 : vector<8x512xf32>
    %514 = arith.addf %513, %5 : vector<8x512xf32>
    %515 = vector.extract_strided_slice %514 {offsets = [0, 0], sizes = [8, 384], strides = [1, 1]} : vector<8x512xf32> to vector<8x384xf32>
    %516 = arith.negf %515 : vector<8x384xf32>
    %517 = math.exp %516 : vector<8x384xf32>
    %cst_188 = arith.constant 1.000000e+00 : f32
    %518 = vector.broadcast %cst_188 : f32 to vector<8x384xf32>
    %519 = arith.addf %518, %517 : vector<8x384xf32>
    %520 = arith.divf %518, %519 : vector<8x384xf32>
    %521 = vector.extract_strided_slice %520 {offsets = [0, 0], sizes = [8, 128], strides = [1, 1]} : vector<8x384xf32> to vector<8x128xf32>
    %522 = vector.extract_strided_slice %520 {offsets = [0, 128], sizes = [8, 128], strides = [1, 1]} : vector<8x384xf32> to vector<8x128xf32>
    %523 = vector.extract_strided_slice %520 {offsets = [0, 256], sizes = [8, 128], strides = [1, 1]} : vector<8x384xf32> to vector<8x128xf32>
    %524 = vector.extract_strided_slice %514 {offsets = [0, 384], sizes = [8, 128], strides = [1, 1]} : vector<8x512xf32> to vector<8x128xf32>
    %525 = math.tanh %524 : vector<8x128xf32>
    %526 = arith.mulf %522, %438 : vector<8x128xf32>
    %527 = arith.mulf %521, %525 : vector<8x128xf32>
    %528 = arith.addf %526, %527 : vector<8x128xf32>
    %529 = math.tanh %528 : vector<8x128xf32>
    %530 = arith.mulf %523, %529 : vector<8x128xf32>
    %c0_189 = arith.constant 0 : index
    %c0_190 = arith.constant 0 : index
    %531 = vector.load %arg7[%c0_189, %c0_190] : memref<128x512xf32, #tpu.memory_space<vmem>>, vector<128x512xf32>
    %cst_191 = arith.constant dense<0.000000e+00> : vector<8x512xf32>
    %532 = tpu.matmul %530, %531, %cst_191 {dimension_numbers = #tpu.dot_dimension_numbers<[1], [0], [0], [1], [0, 0, 1, 1], [], []>} : vector<8x128xf32>, vector<128x512xf32>, vector<8x512xf32> -> vector<8x512xf32>
    %c0_192 = arith.constant 0 : index
    %c0_193 = arith.constant 0 : index
    %533 = vector.load %arg8[%c0_192, %c0_193] : memref<128x512xf32, #tpu.memory_space<vmem>>, vector<128x512xf32>
    %cst_194 = arith.constant dense<0.000000e+00> : vector<8x512xf32>
    %534 = tpu.matmul %462, %533, %cst_194 {dimension_numbers = #tpu.dot_dimension_numbers<[1], [0], [0], [1], [0, 0, 1, 1], [], []>} : vector<8x128xf32>, vector<128x512xf32>, vector<8x512xf32> -> vector<8x512xf32>
    %535 = arith.addf %532, %534 : vector<8x512xf32>
    %536 = arith.addf %535, %8 : vector<8x512xf32>
    %537 = vector.extract_strided_slice %536 {offsets = [0, 0], sizes = [8, 384], strides = [1, 1]} : vector<8x512xf32> to vector<8x384xf32>
    %538 = arith.negf %537 : vector<8x384xf32>
    %539 = math.exp %538 : vector<8x384xf32>
    %cst_195 = arith.constant 1.000000e+00 : f32
    %540 = vector.broadcast %cst_195 : f32 to vector<8x384xf32>
    %541 = arith.addf %540, %539 : vector<8x384xf32>
    %542 = arith.divf %540, %541 : vector<8x384xf32>
    %543 = vector.extract_strided_slice %542 {offsets = [0, 0], sizes = [8, 128], strides = [1, 1]} : vector<8x384xf32> to vector<8x128xf32>
    %544 = vector.extract_strided_slice %542 {offsets = [0, 128], sizes = [8, 128], strides = [1, 1]} : vector<8x384xf32> to vector<8x128xf32>
    %545 = vector.extract_strided_slice %542 {offsets = [0, 256], sizes = [8, 128], strides = [1, 1]} : vector<8x384xf32> to vector<8x128xf32>
    %546 = vector.extract_strided_slice %536 {offsets = [0, 384], sizes = [8, 128], strides = [1, 1]} : vector<8x512xf32> to vector<8x128xf32>
    %547 = math.tanh %546 : vector<8x128xf32>
    %548 = arith.mulf %544, %460 : vector<8x128xf32>
    %549 = arith.mulf %543, %547 : vector<8x128xf32>
    %550 = arith.addf %548, %549 : vector<8x128xf32>
    %551 = math.tanh %550 : vector<8x128xf32>
    %552 = arith.mulf %545, %551 : vector<8x128xf32>
    %553 = arith.index_cast %c5_i32_166 : i32 to index
    %c0_196 = arith.constant 0 : index
    %c0_197 = arith.constant 0 : index
    %554 = vector.load %arg17[%553, %c0_196, %c0_197] : memref<8x8x128xf32, #tpu.memory_space<vmem>>, vector<1x8x128xf32>
    %555 = vector.shape_cast %554 : vector<1x8x128xf32> to vector<8x128xf32>
    %556 = vector.shape_cast %552 : vector<8x128xf32> to vector<1x8x128xf32>
    tpu.vector_store %arg17[%553, %c0_196, %c0_197], %556 {strides = array<i32>} : memref<8x8x128xf32, #tpu.memory_space<vmem>>, vector<1x8x128xf32>,
    %c6_i32_198 = arith.constant 6 : i32
    %c8_i32_199 = arith.constant 8 : i32
    %557 = arith.muli %arg0, %c8_i32_199 : i32
    %558 = arith.addi %557, %c6_i32_198 : i32
    %c8_i32_200 = arith.constant 8 : i32
    %559 = arith.muli %558, %c8_i32_200 : i32
    %c0_i32_201 = arith.constant 0 : i32
    %560 = arith.addi %559, %c0_i32_201 : i32
    %561 = arith.index_cast %560 : i32 to index
    %562 = memref.load %arg1[%561] : memref<64xi32, #tpu.memory_space<smem>>
    %563 = arith.index_cast %562 : i32 to index
    %c0_202 = arith.constant 0 : index
    %564 = vector.load %arg4[%563, %c0_202] : memref<32x512xf32, #tpu.memory_space<vmem>>, vector<1x512xf32>
    %c1_i32_203 = arith.constant 1 : i32
    %565 = arith.addi %559, %c1_i32_203 : i32
    %566 = arith.index_cast %565 : i32 to index
    %567 = memref.load %arg1[%566] : memref<64xi32, #tpu.memory_space<smem>>
    %568 = arith.index_cast %567 : i32 to index
    %c0_204 = arith.constant 0 : index
    %569 = vector.load %arg4[%568, %c0_204] : memref<32x512xf32, #tpu.memory_space<vmem>>, vector<1x512xf32>
    %c2_i32_205 = arith.constant 2 : i32
    %570 = arith.addi %559, %c2_i32_205 : i32
    %571 = arith.index_cast %570 : i32 to index
    %572 = memref.load %arg1[%571] : memref<64xi32, #tpu.memory_space<smem>>
    %573 = arith.index_cast %572 : i32 to index
    %c0_206 = arith.constant 0 : index
    %574 = vector.load %arg4[%573, %c0_206] : memref<32x512xf32, #tpu.memory_space<vmem>>, vector<1x512xf32>
    %c3_i32_207 = arith.constant 3 : i32
    %575 = arith.addi %559, %c3_i32_207 : i32
    %576 = arith.index_cast %575 : i32 to index
    %577 = memref.load %arg1[%576] : memref<64xi32, #tpu.memory_space<smem>>
    %578 = arith.index_cast %577 : i32 to index
    %c0_208 = arith.constant 0 : index
    %579 = vector.load %arg4[%578, %c0_208] : memref<32x512xf32, #tpu.memory_space<vmem>>, vector<1x512xf32>
    %c4_i32_209 = arith.constant 4 : i32
    %580 = arith.addi %559, %c4_i32_209 : i32
    %581 = arith.index_cast %580 : i32 to index
    %582 = memref.load %arg1[%581] : memref<64xi32, #tpu.memory_space<smem>>
    %583 = arith.index_cast %582 : i32 to index
    %c0_210 = arith.constant 0 : index
    %584 = vector.load %arg4[%583, %c0_210] : memref<32x512xf32, #tpu.memory_space<vmem>>, vector<1x512xf32>
    %c5_i32_211 = arith.constant 5 : i32
    %585 = arith.addi %559, %c5_i32_211 : i32
    %586 = arith.index_cast %585 : i32 to index
    %587 = memref.load %arg1[%586] : memref<64xi32, #tpu.memory_space<smem>>
    %588 = arith.index_cast %587 : i32 to index
    %c0_212 = arith.constant 0 : index
    %589 = vector.load %arg4[%588, %c0_212] : memref<32x512xf32, #tpu.memory_space<vmem>>, vector<1x512xf32>
    %c6_i32_213 = arith.constant 6 : i32
    %590 = arith.addi %559, %c6_i32_213 : i32
    %591 = arith.index_cast %590 : i32 to index
    %592 = memref.load %arg1[%591] : memref<64xi32, #tpu.memory_space<smem>>
    %593 = arith.index_cast %592 : i32 to index
    %c0_214 = arith.constant 0 : index
    %594 = vector.load %arg4[%593, %c0_214] : memref<32x512xf32, #tpu.memory_space<vmem>>, vector<1x512xf32>
    %c7_i32_215 = arith.constant 7 : i32
    %595 = arith.addi %559, %c7_i32_215 : i32
    %596 = arith.index_cast %595 : i32 to index
    %597 = memref.load %arg1[%596] : memref<64xi32, #tpu.memory_space<smem>>
    %598 = arith.index_cast %597 : i32 to index
    %c0_216 = arith.constant 0 : index
    %599 = vector.load %arg4[%598, %c0_216] : memref<32x512xf32, #tpu.memory_space<vmem>>, vector<1x512xf32>
    %600 = tpu.concatenate %564, %569, %574, %579, %584, %589, %594, %599 in 0 : vector<1x512xf32>, vector<1x512xf32>, vector<1x512xf32>, vector<1x512xf32>, vector<1x512xf32>, vector<1x512xf32>, vector<1x512xf32>, vector<1x512xf32> -> vector<8x512xf32>
    %c0_217 = arith.constant 0 : index
    %c0_218 = arith.constant 0 : index
    %601 = vector.load %arg5[%c0_217, %c0_218] : memref<128x512xf32, #tpu.memory_space<vmem>>, vector<128x512xf32>
    %cst_219 = arith.constant dense<0.000000e+00> : vector<8x512xf32>
    %602 = tpu.matmul %530, %601, %cst_219 {dimension_numbers = #tpu.dot_dimension_numbers<[1], [0], [0], [1], [0, 0, 1, 1], [], []>} : vector<8x128xf32>, vector<128x512xf32>, vector<8x512xf32> -> vector<8x512xf32>
    %603 = arith.addf %600, %602 : vector<8x512xf32>
    %604 = arith.addf %603, %5 : vector<8x512xf32>
    %605 = vector.extract_strided_slice %604 {offsets = [0, 0], sizes = [8, 384], strides = [1, 1]} : vector<8x512xf32> to vector<8x384xf32>
    %606 = arith.negf %605 : vector<8x384xf32>
    %607 = math.exp %606 : vector<8x384xf32>
    %cst_220 = arith.constant 1.000000e+00 : f32
    %608 = vector.broadcast %cst_220 : f32 to vector<8x384xf32>
    %609 = arith.addf %608, %607 : vector<8x384xf32>
    %610 = arith.divf %608, %609 : vector<8x384xf32>
    %611 = vector.extract_strided_slice %610 {offsets = [0, 0], sizes = [8, 128], strides = [1, 1]} : vector<8x384xf32> to vector<8x128xf32>
    %612 = vector.extract_strided_slice %610 {offsets = [0, 128], sizes = [8, 128], strides = [1, 1]} : vector<8x384xf32> to vector<8x128xf32>
    %613 = vector.extract_strided_slice %610 {offsets = [0, 256], sizes = [8, 128], strides = [1, 1]} : vector<8x384xf32> to vector<8x128xf32>
    %614 = vector.extract_strided_slice %604 {offsets = [0, 384], sizes = [8, 128], strides = [1, 1]} : vector<8x512xf32> to vector<8x128xf32>
    %615 = math.tanh %614 : vector<8x128xf32>
    %616 = arith.mulf %612, %528 : vector<8x128xf32>
    %617 = arith.mulf %611, %615 : vector<8x128xf32>
    %618 = arith.addf %616, %617 : vector<8x128xf32>
    %619 = math.tanh %618 : vector<8x128xf32>
    %620 = arith.mulf %613, %619 : vector<8x128xf32>
    %c0_221 = arith.constant 0 : index
    %c0_222 = arith.constant 0 : index
    %621 = vector.load %arg7[%c0_221, %c0_222] : memref<128x512xf32, #tpu.memory_space<vmem>>, vector<128x512xf32>
    %cst_223 = arith.constant dense<0.000000e+00> : vector<8x512xf32>
    %622 = tpu.matmul %620, %621, %cst_223 {dimension_numbers = #tpu.dot_dimension_numbers<[1], [0], [0], [1], [0, 0, 1, 1], [], []>} : vector<8x128xf32>, vector<128x512xf32>, vector<8x512xf32> -> vector<8x512xf32>
    %c0_224 = arith.constant 0 : index
    %c0_225 = arith.constant 0 : index
    %623 = vector.load %arg8[%c0_224, %c0_225] : memref<128x512xf32, #tpu.memory_space<vmem>>, vector<128x512xf32>
    %cst_226 = arith.constant dense<0.000000e+00> : vector<8x512xf32>
    %624 = tpu.matmul %552, %623, %cst_226 {dimension_numbers = #tpu.dot_dimension_numbers<[1], [0], [0], [1], [0, 0, 1, 1], [], []>} : vector<8x128xf32>, vector<128x512xf32>, vector<8x512xf32> -> vector<8x512xf32>
    %625 = arith.addf %622, %624 : vector<8x512xf32>
    %626 = arith.addf %625, %8 : vector<8x512xf32>
    %627 = vector.extract_strided_slice %626 {offsets = [0, 0], sizes = [8, 384], strides = [1, 1]} : vector<8x512xf32> to vector<8x384xf32>
    %628 = arith.negf %627 : vector<8x384xf32>
    %629 = math.exp %628 : vector<8x384xf32>
    %cst_227 = arith.constant 1.000000e+00 : f32
    %630 = vector.broadcast %cst_227 : f32 to vector<8x384xf32>
    %631 = arith.addf %630, %629 : vector<8x384xf32>
    %632 = arith.divf %630, %631 : vector<8x384xf32>
    %633 = vector.extract_strided_slice %632 {offsets = [0, 0], sizes = [8, 128], strides = [1, 1]} : vector<8x384xf32> to vector<8x128xf32>
    %634 = vector.extract_strided_slice %632 {offsets = [0, 128], sizes = [8, 128], strides = [1, 1]} : vector<8x384xf32> to vector<8x128xf32>
    %635 = vector.extract_strided_slice %632 {offsets = [0, 256], sizes = [8, 128], strides = [1, 1]} : vector<8x384xf32> to vector<8x128xf32>
    %636 = vector.extract_strided_slice %626 {offsets = [0, 384], sizes = [8, 128], strides = [1, 1]} : vector<8x512xf32> to vector<8x128xf32>
    %637 = math.tanh %636 : vector<8x128xf32>
    %638 = arith.mulf %634, %550 : vector<8x128xf32>
    %639 = arith.mulf %633, %637 : vector<8x128xf32>
    %640 = arith.addf %638, %639 : vector<8x128xf32>
    %641 = math.tanh %640 : vector<8x128xf32>
    %642 = arith.mulf %635, %641 : vector<8x128xf32>
    %643 = arith.index_cast %c6_i32_198 : i32 to index
    %c0_228 = arith.constant 0 : index
    %c0_229 = arith.constant 0 : index
    %644 = vector.load %arg17[%643, %c0_228, %c0_229] : memref<8x8x128xf32, #tpu.memory_space<vmem>>, vector<1x8x128xf32>
    %645 = vector.shape_cast %644 : vector<1x8x128xf32> to vector<8x128xf32>
    %646 = vector.shape_cast %642 : vector<8x128xf32> to vector<1x8x128xf32>
    tpu.vector_store %arg17[%643, %c0_228, %c0_229], %646 {strides = array<i32>} : memref<8x8x128xf32, #tpu.memory_space<vmem>>, vector<1x8x128xf32>,
    %c7_i32_230 = arith.constant 7 : i32
    %c8_i32_231 = arith.constant 8 : i32
    %647 = arith.muli %arg0, %c8_i32_231 : i32
    %648 = arith.addi %647, %c7_i32_230 : i32
    %c8_i32_232 = arith.constant 8 : i32
    %649 = arith.muli %648, %c8_i32_232 : i32
    %c0_i32_233 = arith.constant 0 : i32
    %650 = arith.addi %649, %c0_i32_233 : i32
    %651 = arith.index_cast %650 : i32 to index
    %652 = memref.load %arg1[%651] : memref<64xi32, #tpu.memory_space<smem>>
    %653 = arith.index_cast %652 : i32 to index
    %c0_234 = arith.constant 0 : index
    %654 = vector.load %arg4[%653, %c0_234] : memref<32x512xf32, #tpu.memory_space<vmem>>, vector<1x512xf32>
    %c1_i32_235 = arith.constant 1 : i32
    %655 = arith.addi %649, %c1_i32_235 : i32
    %656 = arith.index_cast %655 : i32 to index
    %657 = memref.load %arg1[%656] : memref<64xi32, #tpu.memory_space<smem>>
    %658 = arith.index_cast %657 : i32 to index
    %c0_236 = arith.constant 0 : index
    %659 = vector.load %arg4[%658, %c0_236] : memref<32x512xf32, #tpu.memory_space<vmem>>, vector<1x512xf32>
    %c2_i32_237 = arith.constant 2 : i32
    %660 = arith.addi %649, %c2_i32_237 : i32
    %661 = arith.index_cast %660 : i32 to index
    %662 = memref.load %arg1[%661] : memref<64xi32, #tpu.memory_space<smem>>
    %663 = arith.index_cast %662 : i32 to index
    %c0_238 = arith.constant 0 : index
    %664 = vector.load %arg4[%663, %c0_238] : memref<32x512xf32, #tpu.memory_space<vmem>>, vector<1x512xf32>
    %c3_i32_239 = arith.constant 3 : i32
    %665 = arith.addi %649, %c3_i32_239 : i32
    %666 = arith.index_cast %665 : i32 to index
    %667 = memref.load %arg1[%666] : memref<64xi32, #tpu.memory_space<smem>>
    %668 = arith.index_cast %667 : i32 to index
    %c0_240 = arith.constant 0 : index
    %669 = vector.load %arg4[%668, %c0_240] : memref<32x512xf32, #tpu.memory_space<vmem>>, vector<1x512xf32>
    %c4_i32_241 = arith.constant 4 : i32
    %670 = arith.addi %649, %c4_i32_241 : i32
    %671 = arith.index_cast %670 : i32 to index
    %672 = memref.load %arg1[%671] : memref<64xi32, #tpu.memory_space<smem>>
    %673 = arith.index_cast %672 : i32 to index
    %c0_242 = arith.constant 0 : index
    %674 = vector.load %arg4[%673, %c0_242] : memref<32x512xf32, #tpu.memory_space<vmem>>, vector<1x512xf32>
    %c5_i32_243 = arith.constant 5 : i32
    %675 = arith.addi %649, %c5_i32_243 : i32
    %676 = arith.index_cast %675 : i32 to index
    %677 = memref.load %arg1[%676] : memref<64xi32, #tpu.memory_space<smem>>
    %678 = arith.index_cast %677 : i32 to index
    %c0_244 = arith.constant 0 : index
    %679 = vector.load %arg4[%678, %c0_244] : memref<32x512xf32, #tpu.memory_space<vmem>>, vector<1x512xf32>
    %c6_i32_245 = arith.constant 6 : i32
    %680 = arith.addi %649, %c6_i32_245 : i32
    %681 = arith.index_cast %680 : i32 to index
    %682 = memref.load %arg1[%681] : memref<64xi32, #tpu.memory_space<smem>>
    %683 = arith.index_cast %682 : i32 to index
    %c0_246 = arith.constant 0 : index
    %684 = vector.load %arg4[%683, %c0_246] : memref<32x512xf32, #tpu.memory_space<vmem>>, vector<1x512xf32>
    %c7_i32_247 = arith.constant 7 : i32
    %685 = arith.addi %649, %c7_i32_247 : i32
    %686 = arith.index_cast %685 : i32 to index
    %687 = memref.load %arg1[%686] : memref<64xi32, #tpu.memory_space<smem>>
    %688 = arith.index_cast %687 : i32 to index
    %c0_248 = arith.constant 0 : index
    %689 = vector.load %arg4[%688, %c0_248] : memref<32x512xf32, #tpu.memory_space<vmem>>, vector<1x512xf32>
    %690 = tpu.concatenate %654, %659, %664, %669, %674, %679, %684, %689 in 0 : vector<1x512xf32>, vector<1x512xf32>, vector<1x512xf32>, vector<1x512xf32>, vector<1x512xf32>, vector<1x512xf32>, vector<1x512xf32>, vector<1x512xf32> -> vector<8x512xf32>
    %c0_249 = arith.constant 0 : index
    %c0_250 = arith.constant 0 : index
    %691 = vector.load %arg5[%c0_249, %c0_250] : memref<128x512xf32, #tpu.memory_space<vmem>>, vector<128x512xf32>
    %cst_251 = arith.constant dense<0.000000e+00> : vector<8x512xf32>
    %692 = tpu.matmul %620, %691, %cst_251 {dimension_numbers = #tpu.dot_dimension_numbers<[1], [0], [0], [1], [0, 0, 1, 1], [], []>} : vector<8x128xf32>, vector<128x512xf32>, vector<8x512xf32> -> vector<8x512xf32>
    %693 = arith.addf %690, %692 : vector<8x512xf32>
    %694 = arith.addf %693, %5 : vector<8x512xf32>
    %695 = vector.extract_strided_slice %694 {offsets = [0, 0], sizes = [8, 384], strides = [1, 1]} : vector<8x512xf32> to vector<8x384xf32>
    %696 = arith.negf %695 : vector<8x384xf32>
    %697 = math.exp %696 : vector<8x384xf32>
    %cst_252 = arith.constant 1.000000e+00 : f32
    %698 = vector.broadcast %cst_252 : f32 to vector<8x384xf32>
    %699 = arith.addf %698, %697 : vector<8x384xf32>
    %700 = arith.divf %698, %699 : vector<8x384xf32>
    %701 = vector.extract_strided_slice %700 {offsets = [0, 0], sizes = [8, 128], strides = [1, 1]} : vector<8x384xf32> to vector<8x128xf32>
    %702 = vector.extract_strided_slice %700 {offsets = [0, 128], sizes = [8, 128], strides = [1, 1]} : vector<8x384xf32> to vector<8x128xf32>
    %703 = vector.extract_strided_slice %700 {offsets = [0, 256], sizes = [8, 128], strides = [1, 1]} : vector<8x384xf32> to vector<8x128xf32>
    %704 = vector.extract_strided_slice %694 {offsets = [0, 384], sizes = [8, 128], strides = [1, 1]} : vector<8x512xf32> to vector<8x128xf32>
    %705 = math.tanh %704 : vector<8x128xf32>
    %706 = arith.mulf %702, %618 : vector<8x128xf32>
    %707 = arith.mulf %701, %705 : vector<8x128xf32>
    %708 = arith.addf %706, %707 : vector<8x128xf32>
    %709 = math.tanh %708 : vector<8x128xf32>
    %710 = arith.mulf %703, %709 : vector<8x128xf32>
    %c0_253 = arith.constant 0 : index
    %c0_254 = arith.constant 0 : index
    %711 = vector.load %arg7[%c0_253, %c0_254] : memref<128x512xf32, #tpu.memory_space<vmem>>, vector<128x512xf32>
    %cst_255 = arith.constant dense<0.000000e+00> : vector<8x512xf32>
    %712 = tpu.matmul %710, %711, %cst_255 {dimension_numbers = #tpu.dot_dimension_numbers<[1], [0], [0], [1], [0, 0, 1, 1], [], []>} : vector<8x128xf32>, vector<128x512xf32>, vector<8x512xf32> -> vector<8x512xf32>
    %c0_256 = arith.constant 0 : index
    %c0_257 = arith.constant 0 : index
    %713 = vector.load %arg8[%c0_256, %c0_257] : memref<128x512xf32, #tpu.memory_space<vmem>>, vector<128x512xf32>
    %cst_258 = arith.constant dense<0.000000e+00> : vector<8x512xf32>
    %714 = tpu.matmul %642, %713, %cst_258 {dimension_numbers = #tpu.dot_dimension_numbers<[1], [0], [0], [1], [0, 0, 1, 1], [], []>} : vector<8x128xf32>, vector<128x512xf32>, vector<8x512xf32> -> vector<8x512xf32>
    %715 = arith.addf %712, %714 : vector<8x512xf32>
    %716 = arith.addf %715, %8 : vector<8x512xf32>
    %717 = vector.extract_strided_slice %716 {offsets = [0, 0], sizes = [8, 384], strides = [1, 1]} : vector<8x512xf32> to vector<8x384xf32>
    %718 = arith.negf %717 : vector<8x384xf32>
    %719 = math.exp %718 : vector<8x384xf32>
    %cst_259 = arith.constant 1.000000e+00 : f32
    %720 = vector.broadcast %cst_259 : f32 to vector<8x384xf32>
    %721 = arith.addf %720, %719 : vector<8x384xf32>
    %722 = arith.divf %720, %721 : vector<8x384xf32>
    %723 = vector.extract_strided_slice %722 {offsets = [0, 0], sizes = [8, 128], strides = [1, 1]} : vector<8x384xf32> to vector<8x128xf32>
    %724 = vector.extract_strided_slice %722 {offsets = [0, 128], sizes = [8, 128], strides = [1, 1]} : vector<8x384xf32> to vector<8x128xf32>
    %725 = vector.extract_strided_slice %722 {offsets = [0, 256], sizes = [8, 128], strides = [1, 1]} : vector<8x384xf32> to vector<8x128xf32>
    %726 = vector.extract_strided_slice %716 {offsets = [0, 384], sizes = [8, 128], strides = [1, 1]} : vector<8x512xf32> to vector<8x128xf32>
    %727 = math.tanh %726 : vector<8x128xf32>
    %728 = arith.mulf %724, %640 : vector<8x128xf32>
    %729 = arith.mulf %723, %727 : vector<8x128xf32>
    %730 = arith.addf %728, %729 : vector<8x128xf32>
    %731 = math.tanh %730 : vector<8x128xf32>
    %732 = arith.mulf %725, %731 : vector<8x128xf32>
    %733 = arith.index_cast %c7_i32_230 : i32 to index
    %c0_260 = arith.constant 0 : index
    %c0_261 = arith.constant 0 : index
    %734 = vector.load %arg17[%733, %c0_260, %c0_261] : memref<8x8x128xf32, #tpu.memory_space<vmem>>, vector<1x8x128xf32>
    %735 = vector.shape_cast %734 : vector<1x8x128xf32> to vector<8x128xf32>
    %736 = vector.shape_cast %732 : vector<8x128xf32> to vector<1x8x128xf32>
    tpu.vector_store %arg17[%733, %c0_260, %c0_261], %736 {strides = array<i32>} : memref<8x8x128xf32, #tpu.memory_space<vmem>>, vector<1x8x128xf32>,
    %c8_i32_262 = arith.constant 8 : i32
    %c0_263 = arith.constant 0 : index
    %c0_264 = arith.constant 0 : index
    %c0_265 = arith.constant 0 : index
    %737 = vector.load %arg15[%c0_263, %c0_264, %c0_265] : memref<2x8x128xf32, #tpu.memory_space<vmem>>, vector<1x8x128xf32>
    %738 = vector.shape_cast %737 : vector<1x8x128xf32> to vector<8x128xf32>
    %739 = vector.shape_cast %710 : vector<8x128xf32> to vector<1x8x128xf32>
    tpu.vector_store %arg15[%c0_263, %c0_264, %c0_265], %739 {strides = array<i32>} : memref<2x8x128xf32, #tpu.memory_space<vmem>>, vector<1x8x128xf32>,
    %c0_266 = arith.constant 0 : index
    %c0_267 = arith.constant 0 : index
    %c0_268 = arith.constant 0 : index
    %740 = vector.load %arg16[%c0_266, %c0_267, %c0_268] : memref<2x8x128xf32, #tpu.memory_space<vmem>>, vector<1x8x128xf32>
    %741 = vector.shape_cast %740 : vector<1x8x128xf32> to vector<8x128xf32>
    %742 = vector.shape_cast %708 : vector<8x128xf32> to vector<1x8x128xf32>
    tpu.vector_store %arg16[%c0_266, %c0_267, %c0_268], %742 {strides = array<i32>} : memref<2x8x128xf32, #tpu.memory_space<vmem>>, vector<1x8x128xf32>,
    %c1_269 = arith.constant 1 : index
    %c0_270 = arith.constant 0 : index
    %c0_271 = arith.constant 0 : index
    %743 = vector.load %arg15[%c1_269, %c0_270, %c0_271] : memref<2x8x128xf32, #tpu.memory_space<vmem>>, vector<1x8x128xf32>
    %744 = vector.shape_cast %743 : vector<1x8x128xf32> to vector<8x128xf32>
    %745 = vector.shape_cast %732 : vector<8x128xf32> to vector<1x8x128xf32>
    tpu.vector_store %arg15[%c1_269, %c0_270, %c0_271], %745 {strides = array<i32>} : memref<2x8x128xf32, #tpu.memory_space<vmem>>, vector<1x8x128xf32>,
    %c1_272 = arith.constant 1 : index
    %c0_273 = arith.constant 0 : index
    %c0_274 = arith.constant 0 : index
    %746 = vector.load %arg16[%c1_272, %c0_273, %c0_274] : memref<2x8x128xf32, #tpu.memory_space<vmem>>, vector<1x8x128xf32>
    %747 = vector.shape_cast %746 : vector<1x8x128xf32> to vector<8x128xf32>
    %748 = vector.shape_cast %730 : vector<8x128xf32> to vector<1x8x128xf32>
    tpu.vector_store %arg16[%c1_272, %c0_273, %c0_274], %748 {strides = array<i32>} : memref<2x8x128xf32, #tpu.memory_space<vmem>>, vector<1x8x128xf32>,
    %c0_275 = arith.constant 0 : index
    %c0_276 = arith.constant 0 : index
    %c0_277 = arith.constant 0 : index
    %749 = vector.load %arg17[%c0_275, %c0_276, %c0_277] : memref<8x8x128xf32, #tpu.memory_space<vmem>>, vector<8x8x128xf32>
    %750 = vector.shape_cast %749 : vector<8x8x128xf32> to vector<64x128xf32>
    %c0_278 = arith.constant 0 : index
    %c0_279 = arith.constant 0 : index
    %751 = vector.load %arg10[%c0_278, %c0_279] : memref<128x128xf32, #tpu.memory_space<vmem>>, vector<128x128xf32>
    %cst_280 = arith.constant dense<0.000000e+00> : vector<64x128xf32>
    %752 = tpu.matmul %750, %751, %cst_280 {dimension_numbers = #tpu.dot_dimension_numbers<[1], [0], [0], [1], [0, 0, 1, 1], [], []>} : vector<64x128xf32>, vector<128x128xf32>, vector<64x128xf32> -> vector<64x128xf32>
    %c0_281 = arith.constant 0 : index
    %c0_282 = arith.constant 0 : index
    %753 = vector.load %arg11[%c0_281, %c0_282] : memref<1x128xf32, #tpu.memory_space<vmem>>, vector<1x128xf32>
    %754 = vector.broadcast %753 : vector<1x128xf32> to vector<64x128xf32>
    %755 = arith.addf %752, %754 : vector<64x128xf32>
    %c0_283 = arith.constant 0 : index
    %c0_284 = arith.constant 0 : index
    %756 = vector.load %arg12[%c0_283, %c0_284] : memref<64x128xf32, #tpu.memory_space<vmem>>, vector<64x128xf32>
    tpu.vector_store %arg12[%c0_283, %c0_284], %755 {strides = array<i32>} : memref<64x128xf32, #tpu.memory_space<vmem>>, vector<64x128xf32>,
    %c0_i32_285 = arith.constant 0 : i32
    %757 = arith.cmpi eq, %arg0, %c0_i32_285 : i32
    %758 = arith.extui %757 : i1 to i32
    %c0_i32_286 = arith.constant 0 : i32
    %759 = arith.cmpi ne, %758, %c0_i32_286 : i32
    scf.if %759 {
      %c0_287 = arith.constant 0 : index
      %c0_288 = arith.constant 0 : index
      %c0_289 = arith.constant 0 : index
      %760 = vector.load %arg13[%c0_287, %c0_288, %c0_289] : memref<2x8x128xf32, #tpu.memory_space<vmem>>, vector<1x8x128xf32>
      %761 = vector.shape_cast %760 : vector<1x8x128xf32> to vector<8x128xf32>
      %762 = vector.shape_cast %710 : vector<8x128xf32> to vector<1x8x128xf32>
      tpu.vector_store %arg13[%c0_287, %c0_288, %c0_289], %762 {strides = array<i32>} : memref<2x8x128xf32, #tpu.memory_space<vmem>>, vector<1x8x128xf32>,
      %c0_290 = arith.constant 0 : index
      %c0_291 = arith.constant 0 : index
      %c0_292 = arith.constant 0 : index
      %763 = vector.load %arg14[%c0_290, %c0_291, %c0_292] : memref<2x8x128xf32, #tpu.memory_space<vmem>>, vector<1x8x128xf32>
      %764 = vector.shape_cast %763 : vector<1x8x128xf32> to vector<8x128xf32>
      %765 = vector.shape_cast %708 : vector<8x128xf32> to vector<1x8x128xf32>
      tpu.vector_store %arg14[%c0_290, %c0_291, %c0_292], %765 {strides = array<i32>} : memref<2x8x128xf32, #tpu.memory_space<vmem>>, vector<1x8x128xf32>,
      %c1_293 = arith.constant 1 : index
      %c0_294 = arith.constant 0 : index
      %c0_295 = arith.constant 0 : index
      %766 = vector.load %arg13[%c1_293, %c0_294, %c0_295] : memref<2x8x128xf32, #tpu.memory_space<vmem>>, vector<1x8x128xf32>
      %767 = vector.shape_cast %766 : vector<1x8x128xf32> to vector<8x128xf32>
      %768 = vector.shape_cast %732 : vector<8x128xf32> to vector<1x8x128xf32>
      tpu.vector_store %arg13[%c1_293, %c0_294, %c0_295], %768 {strides = array<i32>} : memref<2x8x128xf32, #tpu.memory_space<vmem>>, vector<1x8x128xf32>,
      %c1_296 = arith.constant 1 : index
      %c0_297 = arith.constant 0 : index
      %c0_298 = arith.constant 0 : index
      %769 = vector.load %arg14[%c1_296, %c0_297, %c0_298] : memref<2x8x128xf32, #tpu.memory_space<vmem>>, vector<1x8x128xf32>
      %770 = vector.shape_cast %769 : vector<1x8x128xf32> to vector<8x128xf32>
      %771 = vector.shape_cast %730 : vector<8x128xf32> to vector<1x8x128xf32>
      tpu.vector_store %arg14[%c1_296, %c0_297, %c0_298], %771 {strides = array<i32>} : memref<2x8x128xf32, #tpu.memory_space<vmem>>, vector<1x8x128xf32>,
    } else {
    }
    return
  }
  func.func @transform_0(%arg0: i32, %arg1: memref<64xi32, #tpu.memory_space<smem>>) -> (i32, i32, i32) {
    %c0_i32 = arith.constant 0 : i32
    %c0_i32_0 = arith.constant 0 : i32
    %c0_i32_1 = arith.constant 0 : i32
    %c0_i32_2 = arith.constant 0 : i32
    return %c0_i32, %c0_i32_0, %c0_i32_1 : i32, i32, i32
  }
  func.func @transform_1(%arg0: i32, %arg1: memref<64xi32, #tpu.memory_space<smem>>) -> (i32, i32, i32) {
    %c0_i32 = arith.constant 0 : i32
    %c0_i32_0 = arith.constant 0 : i32
    %c0_i32_1 = arith.constant 0 : i32
    %c0_i32_2 = arith.constant 0 : i32
    return %c0_i32, %c0_i32_0, %c0_i32_1 : i32, i32, i32
  }
  func.func @transform_2(%arg0: i32, %arg1: memref<64xi32, #tpu.memory_space<smem>>) -> (i32, i32) {
    %c0_i32 = arith.constant 0 : i32
    %c0_i32_0 = arith.constant 0 : i32
    %c0_i32_1 = arith.constant 0 : i32
    return %c0_i32, %c0_i32_0 : i32, i32
  }
  func.func @transform_3(%arg0: i32, %arg1: memref<64xi32, #tpu.memory_space<smem>>) -> (i32, i32) {
    %c0_i32 = arith.constant 0 : i32
    %c0_i32_0 = arith.constant 0 : i32
    %c0_i32_1 = arith.constant 0 : i32
    return %c0_i32, %c0_i32_0 : i32, i32
  }
  func.func @transform_4(%arg0: i32, %arg1: memref<64xi32, #tpu.memory_space<smem>>) -> (i32, i32) {
    %c0_i32 = arith.constant 0 : i32
    %c0_i32_0 = arith.constant 0 : i32
    %c0_i32_1 = arith.constant 0 : i32
    return %c0_i32, %c0_i32_0 : i32, i32
  }
  func.func @transform_5(%arg0: i32, %arg1: memref<64xi32, #tpu.memory_space<smem>>) -> (i32, i32) {
    %c0_i32 = arith.constant 0 : i32
    %c0_i32_0 = arith.constant 0 : i32
    %c0_i32_1 = arith.constant 0 : i32
    return %c0_i32, %c0_i32_0 : i32, i32
  }
  func.func @transform_6(%arg0: i32, %arg1: memref<64xi32, #tpu.memory_space<smem>>) -> (i32, i32) {
    %c0_i32 = arith.constant 0 : i32
    %c0_i32_0 = arith.constant 0 : i32
    %c0_i32_1 = arith.constant 0 : i32
    return %c0_i32, %c0_i32_0 : i32, i32
  }
  func.func @transform_7(%arg0: i32, %arg1: memref<64xi32, #tpu.memory_space<smem>>) -> (i32, i32) {
    %c0_i32 = arith.constant 0 : i32
    %c0_i32_0 = arith.constant 0 : i32
    %c0_i32_1 = arith.constant 0 : i32
    return %c0_i32, %c0_i32_0 : i32, i32
  }
  func.func @transform_8(%arg0: i32, %arg1: memref<64xi32, #tpu.memory_space<smem>>) -> (i32, i32) {
    %c0_i32 = arith.constant 0 : i32
    %c0_i32_0 = arith.constant 0 : i32
    %c0_i32_1 = arith.constant 0 : i32
    return %c0_i32, %c0_i32_0 : i32, i32
  }
  func.func @transform_9(%arg0: i32, %arg1: memref<64xi32, #tpu.memory_space<smem>>) -> (i32, i32) {
    %c0_i32 = arith.constant 0 : i32
    %c0_i32_0 = arith.constant 0 : i32
    %c0_i32_1 = arith.constant 0 : i32
    return %c0_i32, %c0_i32_0 : i32, i32
  }
  func.func @transform_10(%arg0: i32, %arg1: memref<64xi32, #tpu.memory_space<smem>>) -> (i32, i32) {
    %c0_i32 = arith.constant 0 : i32
    %c0_i32_0 = arith.constant 0 : i32
    return %arg0, %c0_i32 : i32, i32
  }
  func.func @transform_11(%arg0: i32, %arg1: memref<64xi32, #tpu.memory_space<smem>>) -> (i32, i32, i32) {
    %c0_i32 = arith.constant 0 : i32
    %c0_i32_0 = arith.constant 0 : i32
    %c0_i32_1 = arith.constant 0 : i32
    %c0_i32_2 = arith.constant 0 : i32
    return %c0_i32, %c0_i32_0, %c0_i32_1 : i32, i32, i32
  }
  func.func @transform_12(%arg0: i32, %arg1: memref<64xi32, #tpu.memory_space<smem>>) -> (i32, i32, i32) {
    %c0_i32 = arith.constant 0 : i32
    %c0_i32_0 = arith.constant 0 : i32
    %c0_i32_1 = arith.constant 0 : i32
    %c0_i32_2 = arith.constant 0 : i32
    return %c0_i32, %c0_i32_0, %c0_i32_1 : i32, i32, i32
  }
}

</mosaic_0001>

<llo_original>
// kernel: tpu_custom_call.1
$region0: #{tpu_custom_call.1}
  #allocation0 [shape = 'u32[]', space=smem, size = 0x4, offset = 0x4, fixed_abs, tag = 'smem constant byte address 0x4 - core index']
  #allocation1 [shape = 'u32[144,128]{1,0:T(1,128)}', space=vmem, size = 0x12000, scoped, tag = 'internal scratch']
  #allocation2 [shape = 'f32[2,8,128]{2,1,0:T(8,128)}', space=vmem, size = 0x2000, scoped, tag = 'scratch operand']
  #allocation3 [shape = 'f32[2,8,128]{2,1,0:T(8,128)}', space=vmem, size = 0x2000, scoped, tag = 'scratch operand']
  #allocation4 [shape = 'f32[8,8,128]{2,1,0:T(8,128)}', space=vmem, size = 0x8000, scoped, tag = 'scratch operand']
  #allocation5 [shape = 's32[1]{0}', space=sflag, size = 0x4, scoped, tag = 'scoped memory for tpu_custom_call.1']
  #allocation6 [shape = 'u8[512]{0}', space=smem, size = 0x200, scoped, tag = 'prefetched SMEM operand 0']
  %s0 = inlined_call_operand.hbm [shape: s32[64], index: 0, kind: input, shape index: {}]
  %s1 = inlined_call_operand.hbm [shape: f32[2,8,128], index: 1, kind: input, shape index: {}]
  %s2 = inlined_call_operand.hbm [shape: f32[2,8,128], index: 2, kind: input, shape index: {}]
  %s3 = inlined_call_operand.hbm [shape: f32[32,512], index: 3, kind: input, shape index: {}]
  %s4 = inlined_call_operand.hbm [shape: f32[128,512], index: 4, kind: input, shape index: {}]
  %s5 = inlined_call_operand.vmem [shape: f32[1,512], index: 5, kind: input, shape index: {}]
  %s6 = inlined_call_operand.hbm [shape: f32[128,512], index: 6, kind: input, shape index: {}]
  %s7 = inlined_call_operand.hbm [shape: f32[128,512], index: 7, kind: input, shape index: {}]
  %s8 = inlined_call_operand.vmem [shape: f32[1,512], index: 8, kind: input, shape index: {}]
  %s9 = inlined_call_operand.hbm [shape: f32[128,128], index: 9, kind: input, shape index: {}]
  %s10 = inlined_call_operand.vmem [shape: f32[1,128], index: 10, kind: input, shape index: {}]
  %s11 = inlined_call_operand.hbm [shape: f32[64,128], index: 11, kind: output, shape index: {0}]
  %s12 = inlined_call_operand.hbm [shape: f32[2,8,128], index: 12, kind: output, shape index: {1}]
  %s13 = inlined_call_operand.hbm [shape: f32[2,8,128], index: 13, kind: output, shape index: {2}]
  %14 = xla_tuple %s11, %s12, %s13
  %s15 = sld [smem:[#allocation0]]
  $region102: #{tpu_custom_call.1} parent=0
    _
  %s17 = ssub.s32 1, %s15
  %s18 = scalar_select 0, %s17, %s15
  %20 = dma.hbm_to_smem %s0, 16, [#allocation6], [#allocation5]
  %21 = dma.done [#allocation5], 16
  %22 = sfence
  $region1: #{tpu_custom_call.1} parent=0
    #allocation7 [shape = 'u8[8192]{0}', space=vmem, size = 0x2000, scoped, tag = 'input window, operand 1, single buffered']
    #allocation8 [shape = 's32[1]{0}', space=sflag, size = 0x4, scoped, tag = 'scoped memory for tpu_custom_call.1']
    #allocation9 [shape = 's32[1]{0}', space=sflag, size = 0x4, scoped, tag = 'scoped memory for tpu_custom_call.1']
    #allocation10 [shape = 'u8[8192]{0}', space=vmem, size = 0x2000, scoped, tag = 'input window, operand 2, single buffered']
    #allocation11 [shape = 's32[1]{0}', space=sflag, size = 0x4, scoped, tag = 'scoped memory for tpu_custom_call.1']
    #allocation12 [shape = 'u8[65536]{0}', space=vmem, size = 0x10000, scoped, tag = 'input window, operand 3, single buffered']
    #allocation13 [shape = 'u8[262144]{0}', space=vmem, size = 0x40000, scoped, tag = 'input window, operand 4, single buffered']
    #allocation14 [shape = 's32[1]{0}', space=sflag, size = 0x4, scoped, tag = 'scoped memory for tpu_custom_call.1']
    #allocation15 [shape = 'u8[262144]{0}', space=vmem, size = 0x40000, scoped, tag = 'input window, operand 6, single buffered']
    #allocation16 [shape = 'u8[262144]{0}', space=vmem, size = 0x40000, scoped, tag = 'input window, operand 7, single buffered']
    #allocation17 [shape = 's32[1]{0}', space=sflag, size = 0x4, scoped, tag = 'scoped memory for tpu_custom_call.1']
    #allocation18 [shape = 'u8[65536]{0}', space=vmem, size = 0x10000, scoped, tag = 'input window, operand 9, single buffered']
    #allocation19 [shape = 'u8[32768]{0}', space=vmem, size = 0x8000, scoped, tag = 'output window, operand 0, single buffered']
    #allocation20 [shape = 'u8[8192]{0}', space=vmem, size = 0x2000, scoped, tag = 'output window, operand 1, single buffered']
    #allocation21 [shape = 's32[1]{0}', space=sflag, size = 0x4, scoped, tag = 'scoped memory for tpu_custom_call.1']
    #allocation22 [shape = 'u8[8192]{0}', space=vmem, size = 0x2000, scoped, tag = 'output window, operand 2, single buffered']
    %23 = vsyncpa [#allocation8], 0
    %24 = vsyncpa [#allocation11], 0
    %25 = vsyncpa [#allocation14], 0
    %26 = vsyncpa [#allocation17], 0
    %27 = vsyncpa [#allocation9], 0
    %28 = vsyncpa [#allocation21], 0
    // Predicated region
    $region2: #{tpu_custom_call.1} parent=1 // pred_check
      _
    $region3: #{tpu_custom_call.1} parent=1 // pred_check_branch
      %30 = sbr.rel (0) target = $region5
    $region4: #{tpu_custom_call.1} parent=1 // pred_region
      %s32 = ssub.s32 256, 256
      %33 = vsyncadd [#allocation8], %s32
      %s34 = sshll.u32 [#allocation7], 4
      %s35 = int_to_ptr.vmem [resolvable:$true] %s34
      %40 = dma.hbm_to_vmem [thread:$0]  %s1, 256, %s35, [#allocation8], 128, 128, 8
    $region5: #{tpu_custom_call.1} parent=1 // pred_fallthru
      _
    // Predicated region
    $region6: #{tpu_custom_call.1} parent=1 // pred_check
      _
    $region7: #{tpu_custom_call.1} parent=1 // pred_check_branch
      %42 = sbr.rel (0) target = $region9
    $region8: #{tpu_custom_call.1} parent=1 // pred_region
      %s44 = ssub.s32 256, 256
      %45 = vsyncadd [#allocation11], %s44
      %s46 = sshll.u32 [#allocation10], 4
      %s47 = int_to_ptr.vmem [resolvable:$true] %s46
      %52 = dma.hbm_to_vmem [thread:$0]  %s2, 256, %s47, [#allocation11], 128, 128, 8
    $region9: #{tpu_custom_call.1} parent=1 // pred_fallthru
      _
    // Predicated region
    $region10: #{tpu_custom_call.1} parent=1 // pred_check
      _
    $region11: #{tpu_custom_call.1} parent=1 // pred_check_branch
      %54 = sbr.rel (0) target = $region13
    $region12: #{tpu_custom_call.1} parent=1 // pred_region
      %s56 = ssub.s32 2048, 2048
      %57 = vsyncadd [#allocation11], %s56
      %s58 = sshll.u32 [#allocation12], 4
      %s59 = int_to_ptr.vmem [resolvable:$true] %s58
      %64 = dma.hbm_to_vmem [thread:$0]  %s3, 2048, %s59, [#allocation11], 512, 512, 32
    $region13: #{tpu_custom_call.1} parent=1 // pred_fallthru
      _
    // Predicated region
    $region14: #{tpu_custom_call.1} parent=1 // pred_check
      _
    $region15: #{tpu_custom_call.1} parent=1 // pred_check_branch
      %66 = sbr.rel (0) target = $region17
    $region16: #{tpu_custom_call.1} parent=1 // pred_region
      %s68 = ssub.s32 8192, 8192
      %69 = vsyncadd [#allocation14], %s68
      %s70 = sshll.u32 [#allocation13], 4
      %s71 = int_to_ptr.vmem [resolvable:$true] %s70
      %76 = dma.hbm_to_vmem [thread:$0]  %s4, 8192, %s71, [#allocation14], 512, 512, 32
    $region17: #{tpu_custom_call.1} parent=1 // pred_fallthru
      _
    // Predicated region
    $region18: #{tpu_custom_call.1} parent=1 // pred_check
      _
    $region19: #{tpu_custom_call.1} parent=1 // pred_check_branch
      %78 = sbr.rel (0) target = $region21
    $region20: #{tpu_custom_call.1} parent=1 // pred_region
      _
    $region21: #{tpu_custom_call.1} parent=1 // pred_fallthru
      _
    // Predicated region
    $region22: #{tpu_custom_call.1} parent=1 // pred_check
      _
    $region23: #{tpu_custom_call.1} parent=1 // pred_check_branch
      %80 = sbr.rel (0) target = $region25
    $region24: #{tpu_custom_call.1} parent=1 // pred_region
      %s82 = ssub.s32 8192, 8192
      %83 = vsyncadd [#allocation14], %s82
      %s84 = sshll.u32 [#allocation15], 4
      %s85 = int_to_ptr.vmem [resolvable:$true] %s84
      %90 = dma.hbm_to_vmem [thread:$0]  %s6, 8192, %s85, [#allocation14], 512, 512, 32
    $region25: #{tpu_custom_call.1} parent=1 // pred_fallthru
      _
    // Predicated region
    $region26: #{tpu_custom_call.1} parent=1 // pred_check
      _
    $region27: #{tpu_custom_call.1} parent=1 // pred_check_branch
      %92 = sbr.rel (0) target = $region29
    $region28: #{tpu_custom_call.1} parent=1 // pred_region
      %s94 = ssub.s32 8192, 8192
      %95 = vsyncadd [#allocation17], %s94
      %s96 = sshll.u32 [#allocation16], 4
      %s97 = int_to_ptr.vmem [resolvable:$true] %s96
      %102 = dma.hbm_to_vmem [thread:$0]  %s7, 8192, %s97, [#allocation17], 512, 512, 32
    $region29: #{tpu_custom_call.1} parent=1 // pred_fallthru
      _
    // Predicated region
    $region30: #{tpu_custom_call.1} parent=1 // pred_check
      _
    $region31: #{tpu_custom_call.1} parent=1 // pred_check_branch
      %104 = sbr.rel (0) target = $region33
    $region32: #{tpu_custom_call.1} parent=1 // pred_region
      _
    $region33: #{tpu_custom_call.1} parent=1 // pred_fallthru
      _
    // Predicated region
    $region34: #{tpu_custom_call.1} parent=1 // pred_check
      _
    $region35: #{tpu_custom_call.1} parent=1 // pred_check_branch
      %106 = sbr.rel (0) target = $region37
    $region36: #{tpu_custom_call.1} parent=1 // pred_region
      %s108 = ssub.s32 2048, 2048
      %109 = vsyncadd [#allocation17], %s108
      %s110 = sshll.u32 [#allocation18], 4
      %s111 = int_to_ptr.vmem [resolvable:$true] %s110
      %116 = dma.hbm_to_vmem [thread:$0]  %s9, 2048, %s111, [#allocation17], 128, 128, 8
    $region37: #{tpu_custom_call.1} parent=1 // pred_fallthru
      _
    // Predicated region
    $region38: #{tpu_custom_call.1} parent=1 // pred_check
      _
    $region39: #{tpu_custom_call.1} parent=1 // pred_check_branch
      %118 = sbr.rel (0) target = $region41
    $region40: #{tpu_custom_call.1} parent=1 // pred_region
      _
    $region41: #{tpu_custom_call.1} parent=1 // pred_fallthru
      _
    // Predicated region
    $region42: #{tpu_custom_call.1} parent=1 // pred_check
      _
    $region43: #{tpu_custom_call.1} parent=1 // pred_check_branch
      %120 = sbr.rel (0) target = $region45
    $region44: #{tpu_custom_call.1} parent=1 // pred_region
      %121 = dma.done [#allocation8], 256
    $region45: #{tpu_custom_call.1} parent=1 // pred_fallthru
      _
    // Predicated region
    $region46: #{tpu_custom_call.1} parent=1 // pred_check
      _
    $region47: #{tpu_custom_call.1} parent=1 // pred_check_branch
      %123 = sbr.rel (0) target = $region49
    $region48: #{tpu_custom_call.1} parent=1 // pred_region
      %124 = dma.done [#allocation11], 256
    $region49: #{tpu_custom_call.1} parent=1 // pred_fallthru
      _
    // Predicated region
    $region50: #{tpu_custom_call.1} parent=1 // pred_check
      _
    $region51: #{tpu_custom_call.1} parent=1 // pred_check_branch
      %126 = sbr.rel (0) target = $region53
    $region52: #{tpu_custom_call.1} parent=1 // pred_region
      %127 = dma.done [#allocation11], 2048
    $region53: #{tpu_custom_call.1} parent=1 // pred_fallthru
      _
    // Predicated region
    $region54: #{tpu_custom_call.1} parent=1 // pred_check
      _
    $region55: #{tpu_custom_call.1} parent=1 // pred_check_branch
      %129 = sbr.rel (0) target = $region57
    $region56: #{tpu_custom_call.1} parent=1 // pred_region
      %130 = dma.done [#allocation14], 8192
    $region57: #{tpu_custom_call.1} parent=1 // pred_fallthru
      _
    // Predicated region
    $region58: #{tpu_custom_call.1} parent=1 // pred_check
      _
    $region59: #{tpu_custom_call.1} parent=1 // pred_check_branch
      %132 = sbr.rel (0) target = $region61
    $region60: #{tpu_custom_call.1} parent=1 // pred_region
      %133 = dma.done [#allocation14], 8192
    $region61: #{tpu_custom_call.1} parent=1 // pred_fallthru
      _
    // Predicated region
    $region62: #{tpu_custom_call.1} parent=1 // pred_check
      _
    $region63: #{tpu_custom_call.1} parent=1 // pred_check_branch
      %135 = sbr.rel (0) target = $region65
    $region64: #{tpu_custom_call.1} parent=1 // pred_region
      %136 = dma.done [#allocation17], 8192
    $region65: #{tpu_custom_call.1} parent=1 // pred_fallthru
      _
    // Predicated region
    $region66: #{tpu_custom_call.1} parent=1 // pred_check
      _
    $region67: #{tpu_custom_call.1} parent=1 // pred_check_branch
      %138 = sbr.rel (0) target = $region69
    $region68: #{tpu_custom_call.1} parent=1 // pred_region
      %139 = dma.done [#allocation17], 2048
    $region69: #{tpu_custom_call.1} parent=1 // pred_fallthru
      _
    %p140 = scmp.eq.s32.totalorder 0, 0
    // Predicated region
    $region70: #{tpu_custom_call.1} parent=1 // pred_check
      %p141 = pneg %p140
    $region71: #{tpu_custom_call.1} parent=1 // pred_check_branch
      %143 = sbr.rel (%p141) target = $region73
    $region72: #{tpu_custom_call.1} parent=1 // pred_region
      %v144 = vld [vmem:[#allocation7] sm:$0xff]
      %v145 = vld [vmem:[#allocation7 + $0x8] sm:$0xff]
      %146 = vst [vmem:[#allocation2] sm:$0xff] %v144
      %147 = vst [vmem:[#allocation2 + $0x8] sm:$0xff] %v145
      %v148 = vld [vmem:[#allocation10] sm:$0xff]
      %v149 = vld [vmem:[#allocation10 + $0x8] sm:$0xff]
      %150 = vst [vmem:[#allocation3] sm:$0xff] %v148
      %151 = vst [vmem:[#allocation3 + $0x8] sm:$0xff] %v149
    $region73: #{tpu_custom_call.1} parent=1 // pred_fallthru
      _
    %v152 = vld [vmem:[%s5] sm:$0xf]
    %v154 = vlaneseq
    %v155 = vshrl.u32 %v154, 7
    %v156 = vsub.s32 0, %v155
    %v157 = vrot.slane %v152, %v156
    %v158 = vlaneseq
    %v159 = vshrl.u32 %v158, 7
    %v160 = vsub.s32 1, %v159
    %v161 = vrot.slane %v152, %v160
    %v162 = vlaneseq
    %v163 = vshrl.u32 %v162, 7
    %v164 = vsub.s32 2, %v163
    %v165 = vrot.slane %v152, %v164
    %v166 = vlaneseq
    %v167 = vshrl.u32 %v166, 7
    %v168 = vsub.s32 3, %v167
    %v169 = vrot.slane %v152, %v168
    %v174 = vld [vmem:[%s8] sm:$0xf]
    %v176 = vlaneseq
    %v177 = vshrl.u32 %v176, 7
    %v178 = vsub.s32 0, %v177
    %v179 = vrot.slane %v174, %v178
    %v180 = vlaneseq
    %v181 = vshrl.u32 %v180, 7
    %v182 = vsub.s32 1, %v181
    %v183 = vrot.slane %v174, %v182
    %v184 = vlaneseq
    %v185 = vshrl.u32 %v184, 7
    %v186 = vsub.s32 2, %v185
    %v187 = vrot.slane %v174, %v186
    %v188 = vlaneseq
    %v189 = vshrl.u32 %v188, 7
    %v190 = vsub.s32 3, %v189
    %v191 = vrot.slane %v174, %v190
    %v196 = vld [vmem:[#allocation2] sm:$0xff]
    %s197 = scalar_lea.vmem [#allocation2], 8
    %v198 = vld [vmem:[%s197] sm:$0xff]
    %v199 = vld [vmem:[#allocation3] sm:$0xff]
    %s200 = scalar_lea.vmem [#allocation3], 8
    %v201 = vld [vmem:[%s200] sm:$0xff]
    %s202 = smul.u32 0, 64
    %s203 = sld [smem:[#allocation6 + %s202]]
    %s204 = sshra.s32 %s203, 3
    %s205 = sand.u32 %s203, 7
    %s206 = sshra.s32 %s203, 3
    %s207 = sand.u32 %s203, 7
    %s208 = smul.u32 %s204, 4
    %s209 = smul.u32 %s208, 8
    %s210 = sadd.s32 %s209, %s207
    %s211 = scalar_lea.vmem [#allocation12], %s210
    %v212 = vld [vmem:[%s211] ss:$8 sm:$0xf]
    %s213 = sadd.s32 %s202, 1
    %s214 = sld [smem:[#allocation6 + %s213]]
    %s215 = sshra.s32 %s214, 3
    %s216 = sand.u32 %s214, 7
    %s217 = sshra.s32 %s214, 3
    %s218 = sand.u32 %s214, 7
    %s219 = smul.u32 %s215, 4
    %s220 = smul.u32 %s219, 8
    %s221 = sadd.s32 %s220, %s218
    %s222 = scalar_lea.vmem [#allocation12], %s221
    %v223 = vld [vmem:[%s222] ss:$8 sm:$0xf]
    %s224 = sadd.s32 %s202, 2
    %s225 = sld [smem:[#allocation6 + %s224]]
    %s226 = sshra.s32 %s225, 3
    %s227 = sand.u32 %s225, 7
    %s228 = sshra.s32 %s225, 3
    %s229 = sand.u32 %s225, 7
    %s230 = smul.u32 %s226, 4
    %s231 = smul.u32 %s230, 8
    %s232 = sadd.s32 %s231, %s229
    %s233 = scalar_lea.vmem [#allocation12], %s232
    %v234 = vld [vmem:[%s233] ss:$8 sm:$0xf]
    %s235 = sadd.s32 %s202, 3
    %s236 = sld [smem:[#allocation6 + %s235]]
    %s237 = sshra.s32 %s236, 3
    %s238 = sand.u32 %s236, 7
    %s239 = sshra.s32 %s236, 3
    %s240 = sand.u32 %s236, 7
    %s241 = smul.u32 %s237, 4
    %s242 = smul.u32 %s241, 8
    %s243 = sadd.s32 %s242, %s240
    %s244 = scalar_lea.vmem [#allocation12], %s243
    %v245 = vld [vmem:[%s244] ss:$8 sm:$0xf]
    %s246 = sadd.s32 %s202, 4
    %s247 = sld [smem:[#allocation6 + %s246]]
    %s248 = sshra.s32 %s247, 3
    %s249 = sand.u32 %s247, 7
    %s250 = sshra.s32 %s247, 3
    %s251 = sand.u32 %s247, 7
    %s252 = smul.u32 %s248, 4
    %s253 = smul.u32 %s252, 8
    %s254 = sadd.s32 %s253, %s251
    %s255 = scalar_lea.vmem [#allocation12], %s254
    %v256 = vld [vmem:[%s255] ss:$8 sm:$0xf]
    %s257 = sadd.s32 %s202, 5
    %s258 = sld [smem:[#allocation6 + %s257]]
    %s259 = sshra.s32 %s258, 3
    %s260 = sand.u32 %s258, 7
    %s261 = sshra.s32 %s258, 3
    %s262 = sand.u32 %s258, 7
    %s263 = smul.u32 %s259, 4
    %s264 = smul.u32 %s263, 8
    %s265 = sadd.s32 %s264, %s262
    %s266 = scalar_lea.vmem [#allocation12], %s265
    %v267 = vld [vmem:[%s266] ss:$8 sm:$0xf]
    %s268 = sadd.s32 %s202, 6
    %s269 = sld [smem:[#allocation6 + %s268]]
    %s270 = sshra.s32 %s269, 3
    %s271 = sand.u32 %s269, 7
    %s272 = sshra.s32 %s269, 3
    %s273 = sand.u32 %s269, 7
    %s274 = smul.u32 %s270, 4
    %s275 = smul.u32 %s274, 8
    %s276 = sadd.s32 %s275, %s273
    %s277 = scalar_lea.vmem [#allocation12], %s276
    %v278 = vld [vmem:[%s277] ss:$8 sm:$0xf]
    %s279 = sadd.s32 %s202, 7
    %s280 = sld [smem:[#allocation6 + %s279]]
    %s281 = sshra.s32 %s280, 3
    %s282 = sand.u32 %s280, 7
    %s283 = sshra.s32 %s280, 3
    %s284 = sand.u32 %s280, 7
    %s285 = smul.u32 %s281, 4
    %s286 = smul.u32 %s285, 8
    %s287 = sadd.s32 %s286, %s284
    %s288 = scalar_lea.vmem [#allocation12], %s287
    %v289 = vld [vmem:[%s288] ss:$8 sm:$0xf]
    %v291 = vlaneseq
    %v292 = vshrl.u32 %v291, 7
    %v293 = vsub.s32 0, %v292
    %v294 = vrot.slane %v212, %v293
    %v295 = vlaneseq
    %v296 = vshrl.u32 %v295, 7
    %v297 = vsub.s32 1, %v296
    %v298 = vrot.slane %v212, %v297
    %v299 = vlaneseq
    %v300 = vshrl.u32 %v299, 7
    %v301 = vsub.s32 2, %v300
    %v302 = vrot.slane %v212, %v301
    %v303 = vlaneseq
    %v304 = vshrl.u32 %v303, 7
    %v305 = vsub.s32 3, %v304
    %v306 = vrot.slane %v212, %v305
    %v312 = vlaneseq
    %v313 = vshrl.u32 %v312, 7
    %v314 = vsub.s32 0, %v313
    %v315 = vrot.slane %v223, %v314
    %v316 = vlaneseq
    %v317 = vshrl.u32 %v316, 7
    %v318 = vsub.s32 1, %v317
    %v319 = vrot.slane %v223, %v318
    %v320 = vlaneseq
    %v321 = vshrl.u32 %v320, 7
    %v322 = vsub.s32 2, %v321
    %v323 = vrot.slane %v223, %v322
    %v324 = vlaneseq
    %v325 = vshrl.u32 %v324, 7
    %v326 = vsub.s32 3, %v325
    %v327 = vrot.slane %v223, %v326
    %v333 = vlaneseq
    %v334 = vshrl.u32 %v333, 7
    %v335 = vsub.s32 0, %v334
    %v336 = vrot.slane %v234, %v335
    %v337 = vlaneseq
    %v338 = vshrl.u32 %v337, 7
    %v339 = vsub.s32 1, %v338
    %v340 = vrot.slane %v234, %v339
    %v341 = vlaneseq
    %v342 = vshrl.u32 %v341, 7
    %v343 = vsub.s32 2, %v342
    %v344 = vrot.slane %v234, %v343
    %v345 = vlaneseq
    %v346 = vshrl.u32 %v345, 7
    %v347 = vsub.s32 3, %v346
    %v348 = vrot.slane %v234, %v347
    %v354 = vlaneseq
    %v355 = vshrl.u32 %v354, 7
    %v356 = vsub.s32 0, %v355
    %v357 = vrot.slane %v245, %v356
    %v358 = vlaneseq
    %v359 = vshrl.u32 %v358, 7
    %v360 = vsub.s32 1, %v359
    %v361 = vrot.slane %v245, %v360
    %v362 = vlaneseq
    %v363 = vshrl.u32 %v362, 7
    %v364 = vsub.s32 2, %v363
    %v365 = vrot.slane %v245, %v364
    %v366 = vlaneseq
    %v367 = vshrl.u32 %v366, 7
    %v368 = vsub.s32 3, %v367
    %v369 = vrot.slane %v245, %v368
    %v375 = vlaneseq
    %v376 = vshrl.u32 %v375, 7
    %v377 = vsub.s32 0, %v376
    %v378 = vrot.slane %v256, %v377
    %v379 = vlaneseq
    %v380 = vshrl.u32 %v379, 7
    %v381 = vsub.s32 1, %v380
    %v382 = vrot.slane %v256, %v381
    %v383 = vlaneseq
    %v384 = vshrl.u32 %v383, 7
    %v385 = vsub.s32 2, %v384
    %v386 = vrot.slane %v256, %v385
    %v387 = vlaneseq
    %v388 = vshrl.u32 %v387, 7
    %v389 = vsub.s32 3, %v388
    %v390 = vrot.slane %v256, %v389
    %v396 = vlaneseq
    %v397 = vshrl.u32 %v396, 7
    %v398 = vsub.s32 0, %v397
    %v399 = vrot.slane %v267, %v398
    %v400 = vlaneseq
    %v401 = vshrl.u32 %v400, 7
    %v402 = vsub.s32 1, %v401
    %v403 = vrot.slane %v267, %v402
    %v404 = vlaneseq
    %v405 = vshrl.u32 %v404, 7
    %v406 = vsub.s32 2, %v405
    %v407 = vrot.slane %v267, %v406
    %v408 = vlaneseq
    %v409 = vshrl.u32 %v408, 7
    %v410 = vsub.s32 3, %v409
    %v411 = vrot.slane %v267, %v410
    %v417 = vlaneseq
    %v418 = vshrl.u32 %v417, 7
    %v419 = vsub.s32 0, %v418
    %v420 = vrot.slane %v278, %v419
    %v421 = vlaneseq
    %v422 = vshrl.u32 %v421, 7
    %v423 = vsub.s32 1, %v422
    %v424 = vrot.slane %v278, %v423
    %v425 = vlaneseq
    %v426 = vshrl.u32 %v425, 7
    %v427 = vsub.s32 2, %v426
    %v428 = vrot.slane %v278, %v427
    %v429 = vlaneseq
    %v430 = vshrl.u32 %v429, 7
    %v431 = vsub.s32 3, %v430
    %v432 = vrot.slane %v278, %v431
    %v438 = vlaneseq
    %v439 = vshrl.u32 %v438, 7
    %v440 = vsub.s32 0, %v439
    %v441 = vrot.slane %v289, %v440
    %v442 = vlaneseq
    %v443 = vshrl.u32 %v442, 7
    %v444 = vsub.s32 1, %v443
    %v445 = vrot.slane %v289, %v444
    %v446 = vlaneseq
    %v447 = vshrl.u32 %v446, 7
    %v448 = vsub.s32 2, %v447
    %v449 = vrot.slane %v289, %v448
    %v450 = vlaneseq
    %v451 = vshrl.u32 %v450, 7
    %v452 = vsub.s32 3, %v451
    %v453 = vrot.slane %v289, %v452
    %vm458 = vcmask 1040384
    %v459 = vsel %vm458, %v294, %v315
    %v460 = vsel %vm458, %v298, %v319
    %v461 = vsel %vm458, %v302, %v323
    %v462 = vsel %vm458, %v306, %v327
    %vm463 = vcmask 1041408
    %v464 = vsel %vm463, %v459, %v336
    %v465 = vsel %vm463, %v460, %v340
    %v466 = vsel %vm463, %v461, %v344
    %v467 = vsel %vm463, %v462, %v348
    %vm468 = vcmask 1042432
    %v469 = vsel %vm468, %v464, %v357
    %v470 = vsel %vm468, %v465, %v361
    %v471 = vsel %vm468, %v466, %v365
    %v472 = vsel %vm468, %v467, %v369
    %vm473 = vcmask 1043456
    %v474 = vsel %vm473, %v469, %v378
    %v475 = vsel %vm473, %v470, %v382
    %v476 = vsel %vm473, %v471, %v386
    %v477 = vsel %vm473, %v472, %v390
    %vm478 = vcmask 1044480
    %v479 = vsel %vm478, %v474, %v399
    %v480 = vsel %vm478, %v475, %v403
    %v481 = vsel %vm478, %v476, %v407
    %v482 = vsel %vm478, %v477, %v411
    %vm483 = vcmask 1045504
    %v484 = vsel %vm483, %v479, %v420
    %v485 = vsel %vm483, %v480, %v424
    %v486 = vsel %vm483, %v481, %v428
    %v487 = vsel %vm483, %v482, %v432
    %vm488 = vcmask 1046528
    %v489 = vsel %vm488, %v484, %v441
    %v490 = vsel %vm488, %v485, %v445
    %v491 = vsel %vm488, %v486, %v449
    %v492 = vsel %vm488, %v487, %v453
    %v493 = vld [vmem:[#allocation13] sm:$0xff]
    %v494 = vld [vmem:[#allocation13 + $0x8] sm:$0xff]
    %v495 = vld [vmem:[#allocation13 + $0x10] sm:$0xff]
    %v496 = vld [vmem:[#allocation13 + $0x18] sm:$0xff]
    %v497 = vld [vmem:[#allocation13 + $0x20] sm:$0xff]
    %v498 = vld [vmem:[#allocation13 + $0x28] sm:$0xff]
    %v499 = vld [vmem:[#allocation13 + $0x30] sm:$0xff]
    %v500 = vld [vmem:[#allocation13 + $0x38] sm:$0xff]
    %v501 = vld [vmem:[#allocation13 + $0x40] sm:$0xff]
    %v502 = vld [vmem:[#allocation13 + $0x48] sm:$0xff]
    %v503 = vld [vmem:[#allocation13 + $0x50] sm:$0xff]
    %v504 = vld [vmem:[#allocation13 + $0x58] sm:$0xff]
    %v505 = vld [vmem:[#allocation13 + $0x60] sm:$0xff]
    %v506 = vld [vmem:[#allocation13 + $0x68] sm:$0xff]
    %v507 = vld [vmem:[#allocation13 + $0x70] sm:$0xff]
    %v508 = vld [vmem:[#allocation13 + $0x78] sm:$0xff]
    %v509 = vld [vmem:[#allocation13 + $0x80] sm:$0xff]
    %v510 = vld [vmem:[#allocation13 + $0x88] sm:$0xff]
    %v511 = vld [vmem:[#allocation13 + $0x90] sm:$0xff]
    %v512 = vld [vmem:[#allocation13 + $0x98] sm:$0xff]
    %v513 = vld [vmem:[#allocation13 + $0xa0] sm:$0xff]
    %v514 = vld [vmem:[#allocation13 + $0xa8] sm:$0xff]
    %v515 = vld [vmem:[#allocation13 + $0xb0] sm:$0xff]
    %v516 = vld [vmem:[#allocation13 + $0xb8] sm:$0xff]
    %v517 = vld [vmem:[#allocation13 + $0xc0] sm:$0xff]
    %v518 = vld [vmem:[#allocation13 + $0xc8] sm:$0xff]
    %v519 = vld [vmem:[#allocation13 + $0xd0] sm:$0xff]
    %v520 = vld [vmem:[#allocation13 + $0xd8] sm:$0xff]
    %v521 = vld [vmem:[#allocation13 + $0xe0] sm:$0xff]
    %v522 = vld [vmem:[#allocation13 + $0xe8] sm:$0xff]
    %v523 = vld [vmem:[#allocation13 + $0xf0] sm:$0xff]
    %v524 = vld [vmem:[#allocation13 + $0xf8] sm:$0xff]
    %v525 = vld [vmem:[#allocation13 + $0x100] sm:$0xff]
    %v526 = vld [vmem:[#allocation13 + $0x108] sm:$0xff]
    %v527 = vld [vmem:[#allocation13 + $0x110] sm:$0xff]
    %v528 = vld [vmem:[#allocation13 + $0x118] sm:$0xff]
    %v529 = vld [vmem:[#allocation13 + $0x120] sm:$0xff]
    %v530 = vld [vmem:[#allocation13 + $0x128] sm:$0xff]
    %v531 = vld [vmem:[#allocation13 + $0x130] sm:$0xff]
    %v532 = vld [vmem:[#allocation13 + $0x138] sm:$0xff]
    %v533 = vld [vmem:[#allocation13 + $0x140] sm:$0xff]
    %v534 = vld [vmem:[#allocation13 + $0x148] sm:$0xff]
    %v535 = vld [vmem:[#allocation13 + $0x150] sm:$0xff]
    %v536 = vld [vmem:[#allocation13 + $0x158] sm:$0xff]
    %v537 = vld [vmem:[#allocation13 + $0x160] sm:$0xff]
    %v538 = vld [vmem:[#allocation13 + $0x168] sm:$0xff]
    %v539 = vld [vmem:[#allocation13 + $0x170] sm:$0xff]
    %v540 = vld [vmem:[#allocation13 + $0x178] sm:$0xff]
    %v541 = vld [vmem:[#allocation13 + $0x180] sm:$0xff]
    %v542 = vld [vmem:[#allocation13 + $0x188] sm:$0xff]
    %v543 = vld [vmem:[#allocation13 + $0x190] sm:$0xff]
    %v544 = vld [vmem:[#allocation13 + $0x198] sm:$0xff]
    %v545 = vld [vmem:[#allocation13 + $0x1a0] sm:$0xff]
    %v546 = vld [vmem:[#allocation13 + $0x1a8] sm:$0xff]
    %v547 = vld [vmem:[#allocation13 + $0x1b0] sm:$0xff]
    %v548 = vld [vmem:[#allocation13 + $0x1b8] sm:$0xff]
    %v549 = vld [vmem:[#allocation13 + $0x1c0] sm:$0xff]
    %v550 = vld [vmem:[#allocation13 + $0x1c8] sm:$0xff]
    %v551 = vld [vmem:[#allocation13 + $0x1d0] sm:$0xff]
    %v552 = vld [vmem:[#allocation13 + $0x1d8] sm:$0xff]
    %v553 = vld [vmem:[#allocation13 + $0x1e0] sm:$0xff]
    %v554 = vld [vmem:[#allocation13 + $0x1e8] sm:$0xff]
    %v555 = vld [vmem:[#allocation13 + $0x1f0] sm:$0xff]
    %v556 = vld [vmem:[#allocation13 + $0x1f8] sm:$0xff]
    %557 = vmatprep.subr.mxu0 %v494
    %558 = vmatpush1.msra.mxu0 %v493
    %559 = vmatprep.subr.mxu0 %v498
    %560 = vmatpush1.msra.mxu0 %v497
    %561 = vmatprep.subr.mxu0 %v502
    %562 = vmatpush1.msra.mxu0 %v501
    %563 = vmatprep.subr.mxu0 %v506
    %564 = vmatpush1.msra.mxu0 %v505
    %565 = vmatprep.subr.mxu0 %v510
    %566 = vmatpush1.msra.mxu0 %v509
    %567 = vmatprep.subr.mxu0 %v514
    %568 = vmatpush1.msra.mxu0 %v513
    %569 = vmatprep.subr.mxu0 %v518
    %570 = vmatpush1.msra.mxu0 %v517
    %571 = vmatprep.subr.mxu0 %v522
    %572 = vmatpush1.msra.mxu0 %v521
    %573 = vmatprep.subr.mxu0 %v526
    %574 = vmatpush1.msra.mxu0 %v525
    %575 = vmatprep.subr.mxu0 %v530
    %576 = vmatpush1.msra.mxu0 %v529
    %577 = vmatprep.subr.mxu0 %v534
    %578 = vmatpush1.msra.mxu0 %v533
    %579 = vmatprep.subr.mxu0 %v538
    %580 = vmatpush1.msra.mxu0 %v537
    %581 = vmatprep.subr.mxu0 %v542
    %582 = vmatpush1.msra.mxu0 %v541
    %583 = vmatprep.subr.mxu0 %v546
    %584 = vmatpush1.msra.mxu0 %v545
    %585 = vmatprep.subr.mxu0 %v550
    %586 = vmatpush1.msra.mxu0 %v549
    %587 = vmatprep.subr.mxu0 %v554
    %588 = vmatpush1.msra.mxu0 %v553
    %589 = vmatprep.subr.mxu0 0.0
    %590 = vmatpush1.msra.mxu0 0.0
    %591 = vmatprep.subr.mxu0 0.0
    %592 = vmatpush1.msra.mxu0 0.0
    %593 = vmatprep.subr.mxu0 0.0
    %594 = vmatpush1.msra.mxu0 0.0
    %595 = vmatprep.subr.mxu0 0.0
    %596 = vmatpush1.msra.mxu0 0.0
    %597 = vmatprep.subr.mxu0 0.0
    %598 = vmatpush1.msra.mxu0 0.0
    %599 = vmatprep.subr.mxu0 0.0
    %600 = vmatpush1.msra.mxu0 0.0
    %601 = vmatprep.subr.mxu0 0.0
    %602 = vmatpush1.msra.mxu0 0.0
    %603 = vmatprep.subr.mxu0 0.0
    %604 = vmatpush1.msra.mxu0 0.0
    %605 = vmatprep.subr.mxu0 0.0
    %606 = vmatpush1.msra.mxu0 0.0
    %607 = vmatprep.subr.mxu0 0.0
    %608 = vmatpush1.msra.mxu0 0.0
    %609 = vmatprep.subr.mxu0 0.0
    %610 = vmatpush1.msra.mxu0 0.0
    %611 = vmatprep.subr.mxu0 0.0
    %612 = vmatpush1.msra.mxu0 0.0
    %613 = vmatprep.subr.mxu0 0.0
    %614 = vmatpush1.msra.mxu0 0.0
    %615 = vmatprep.subr.mxu0 0.0
    %616 = vmatpush1.msra.mxu0 0.0
    %617 = vmatprep.subr.mxu0 0.0
    %618 = vmatpush1.msra.mxu0 0.0
    %619 = vmatprep.subr.mxu0 0.0
    %620 = vmatpush1.msra.mxu0 0.0
    %621 = vmatprep.mubr.f32.mxu0 0.0
    %622 = vmatmul.mubr.f32.gmra.mrb[0].mxu0 %v196
    %v623 = vpop.f32.mrb[0].mxu0
    %v624 = vadd.f32 0.0, %v623
    %v625 = vpop.f32.mrb[0].mxu0
    %v626 = vadd.f32 0.0, %v625
    %627 = vdwg.mxu0
    %628 = vmatprep.subr.mxu0 %v496
    %629 = vmatpush1.msra.mxu0 %v495
    %630 = vmatprep.subr.mxu0 %v500
    %631 = vmatpush1.msra.mxu0 %v499
    %632 = vmatprep.subr.mxu0 %v504
    %633 = vmatpush1.msra.mxu0 %v503
    %634 = vmatprep.subr.mxu0 %v508
    %635 = vmatpush1.msra.mxu0 %v507
    %636 = vmatprep.subr.mxu0 %v512
    %637 = vmatpush1.msra.mxu0 %v511
    %638 = vmatprep.subr.mxu0 %v516
    %639 = vmatpush1.msra.mxu0 %v515
    %640 = vmatprep.subr.mxu0 %v520
    %641 = vmatpush1.msra.mxu0 %v519
    %642 = vmatprep.subr.mxu0 %v524
    %643 = vmatpush1.msra.mxu0 %v523
    %644 = vmatprep.subr.mxu0 %v528
    %645 = vmatpush1.msra.mxu0 %v527
    %646 = vmatprep.subr.mxu0 %v532
    %647 = vmatpush1.msra.mxu0 %v531
    %648 = vmatprep.subr.mxu0 %v536
    %649 = vmatpush1.msra.mxu0 %v535
    %650 = vmatprep.subr.mxu0 %v540
    %651 = vmatpush1.msra.mxu0 %v539
    %652 = vmatprep.subr.mxu0 %v544
    %653 = vmatpush1.msra.mxu0 %v543
    %654 = vmatprep.subr.mxu0 %v548
    %655 = vmatpush1.msra.mxu0 %v547
    %656 = vmatprep.subr.mxu0 %v552
    %657 = vmatpush1.msra.mxu0 %v551
    %658 = vmatprep.subr.mxu0 %v556
    %659 = vmatpush1.msra.mxu0 %v555
    %660 = vmatprep.subr.mxu0 0.0
    %661 = vmatpush1.msra.mxu0 0.0
    %662 = vmatprep.subr.mxu0 0.0
    %663 = vmatpush1.msra.mxu0 0.0
    %664 = vmatprep.subr.mxu0 0.0
    %665 = vmatpush1.msra.mxu0 0.0
    %666 = vmatprep.subr.mxu0 0.0
    %667 = vmatpush1.msra.mxu0 0.0
    %668 = vmatprep.subr.mxu0 0.0
    %669 = vmatpush1.msra.mxu0 0.0
    %670 = vmatprep.subr.mxu0 0.0
    %671 = vmatpush1.msra.mxu0 0.0
    %672 = vmatprep.subr.mxu0 0.0
    %673 = vmatpush1.msra.mxu0 0.0
    %674 = vmatprep.subr.mxu0 0.0
    %675 = vmatpush1.msra.mxu0 0.0
    %676 = vmatprep.subr.mxu0 0.0
    %677 = vmatpush1.msra.mxu0 0.0
    %678 = vmatprep.subr.mxu0 0.0
    %679 = vmatpush1.msra.mxu0 0.0
    %680 = vmatprep.subr.mxu0 0.0
    %681 = vmatpush1.msra.mxu0 0.0
    %682 = vmatprep.subr.mxu0 0.0
    %683 = vmatpush1.msra.mxu0 0.0
    %684 = vmatprep.subr.mxu0 0.0
    %685 = vmatpush1.msra.mxu0 0.0
    %686 = vmatprep.subr.mxu0 0.0
    %687 = vmatpush1.msra.mxu0 0.0
    %688 = vmatprep.subr.mxu0 0.0
    %689 = vmatpush1.msra.mxu0 0.0
    %690 = vmatprep.subr.mxu0 0.0
    %691 = vmatpush1.msra.mxu0 0.0
    %692 = vmatprep.mubr.f32.mxu0 0.0
    %693 = vmatmul.mubr.f32.gmra.mrb[0].mxu0 %v196
    %v694 = vpop.f32.mrb[0].mxu0
    %v695 = vadd.f32 0.0, %v694
    %v696 = vpop.f32.mrb[0].mxu0
    %v697 = vadd.f32 0.0, %v696
    %698 = vdwg.mxu0
    %v699 = vadd.f32 %v489, %v624
    %v700 = vadd.f32 %v490, %v626
    %v701 = vadd.f32 %v491, %v695
    %v702 = vadd.f32 %v492, %v697
    %v703 = vadd.f32 %v699, %v157
    %v704 = vadd.f32 %v700, %v161
    %v705 = vadd.f32 %v701, %v165
    %v706 = vadd.f32 %v702, %v169
    %v707 = vxor.u32 %v703, 2147483648
    %v708 = vxor.u32 %v704, 2147483648
    %v709 = vxor.u32 %v705, 2147483648
    %v710 = vmul.f32 %v707, 1.442695
    %v711 = vpow.pop %v710
    %v712 = vmul.f32 %v708, 1.442695
    %v713 = vpow.pop %v712
    %v714 = vmul.f32 %v709, 1.442695
    %v715 = vpow.pop %v714
    %v716 = vadd.f32 %v711, 1.0
    %v717 = vadd.f32 %v713, 1.0
    %v718 = vadd.f32 %v715, 1.0
    %v719 = vrcp.pop %v716
    %v720 = vmul.f32 1.0, %v719
    %v721 = vrcp.pop %v717
    %v722 = vmul.f32 1.0, %v721
    %v723 = vrcp.pop %v718
    %v724 = vmul.f32 1.0, %v723
    %v725 = vtanh.pop %v706
    %v726 = vmul.f32 %v722, %v199
    %v727 = vmul.f32 %v720, %v725
    %v728 = vadd.f32 %v726, %v727
    %v729 = vtanh.pop %v728
    %v730 = vmul.f32 %v724, %v729
    %v731 = vld [vmem:[#allocation15] sm:$0xff]
    %v732 = vld [vmem:[#allocation15 + $0x8] sm:$0xff]
    %v733 = vld [vmem:[#allocation15 + $0x10] sm:$0xff]
    %v734 = vld [vmem:[#allocation15 + $0x18] sm:$0xff]
    %v735 = vld [vmem:[#allocation15 + $0x20] sm:$0xff]
    %v736 = vld [vmem:[#allocation15 + $0x28] sm:$0xff]
    %v737 = vld [vmem:[#allocation15 + $0x30] sm:$0xff]
    %v738 = vld [vmem:[#allocation15 + $0x38] sm:$0xff]
    %v739 = vld [vmem:[#allocation15 + $0x40] sm:$0xff]
    %v740 = vld [vmem:[#allocation15 + $0x48] sm:$0xff]
    %v741 = vld [vmem:[#allocation15 + $0x50] sm:$0xff]
    %v742 = vld [vmem:[#allocation15 + $0x58] sm:$0xff]
    %v743 = vld [vmem:[#allocation15 + $0x60] sm:$0xff]
    %v744 = vld [vmem:[#allocation15 + $0x68] sm:$0xff]
    %v745 = vld [vmem:[#allocation15 + $0x70] sm:$0xff]
    %v746 = vld [vmem:[#allocation15 + $0x78] sm:$0xff]
    %v747 = vld [vmem:[#allocation15 + $0x80] sm:$0xff]
    %v748 = vld [vmem:[#allocation15 + $0x88] sm:$0xff]
    %v749 = vld [vmem:[#allocation15 + $0x90] sm:$0xff]
    %v750 = vld [vmem:[#allocation15 + $0x98] sm:$0xff]
    %v751 = vld [vmem:[#allocation15 + $0xa0] sm:$0xff]
    %v752 = vld [vmem:[#allocation15 + $0xa8] sm:$0xff]
    %v753 = vld [vmem:[#allocation15 + $0xb0] sm:$0xff]
    %v754 = vld [vmem:[#allocation15 + $0xb8] sm:$0xff]
    %v755 = vld [vmem:[#allocation15 + $0xc0] sm:$0xff]
    %v756 = vld [vmem:[#allocation15 + $0xc8] sm:$0xff]
    %v757 = vld [vmem:[#allocation15 + $0xd0] sm:$0xff]
    %v758 = vld [vmem:[#allocation15 + $0xd8] sm:$0xff]
    %v759 = vld [vmem:[#allocation15 + $0xe0] sm:$0xff]
    %v760 = vld [vmem:[#allocation15 + $0xe8] sm:$0xff]
    %v761 = vld [vmem:[#allocation15 + $0xf0] sm:$0xff]
    %v762 = vld [vmem:[#allocation15 + $0xf8] sm:$0xff]
    %v763 = vld [vmem:[#allocation15 + $0x100] sm:$0xff]
    %v764 = vld [vmem:[#allocation15 + $0x108] sm:$0xff]
    %v765 = vld [vmem:[#allocation15 + $0x110] sm:$0xff]
    %v766 = vld [vmem:[#allocation15 + $0x118] sm:$0xff]
    %v767 = vld [vmem:[#allocation15 + $0x120] sm:$0xff]
    %v768 = vld [vmem:[#allocation15 + $0x128] sm:$0xff]
    %v769 = vld [vmem:[#allocation15 + $0x130] sm:$0xff]
    %v770 = vld [vmem:[#allocation15 + $0x138] sm:$0xff]
    %v771 = vld [vmem:[#allocation15 + $0x140] sm:$0xff]
    %v772 = vld [vmem:[#allocation15 + $0x148] sm:$0xff]
    %v773 = vld [vmem:[#allocation15 + $0x150] sm:$0xff]
    %v774 = vld [vmem:[#allocation15 + $0x158] sm:$0xff]
    %v775 = vld [vmem:[#allocation15 + $0x160] sm:$0xff]
    %v776 = vld [vmem:[#allocation15 + $0x168] sm:$0xff]
    %v777 = vld [vmem:[#allocation15 + $0x170] sm:$0xff]
    %v778 = vld [vmem:[#allocation15 + $0x178] sm:$0xff]
    %v779 = vld [vmem:[#allocation15 + $0x180] sm:$0xff]
    %v780 = vld [vmem:[#allocation15 + $0x188] sm:$0xff]
    %v781 = vld [vmem:[#allocation15 + $0x190] sm:$0xff]
    %v782 = vld [vmem:[#allocation15 + $0x198] sm:$0xff]
    %v783 = vld [vmem:[#allocation15 + $0x1a0] sm:$0xff]
    %v784 = vld [vmem:[#allocation15 + $0x1a8] sm:$0xff]
    %v785 = vld [vmem:[#allocation15 + $0x1b0] sm:$0xff]
    %v786 = vld [vmem:[#allocation15 + $0x1b8] sm:$0xff]
    %v787 = vld [vmem:[#allocation15 + $0x1c0] sm:$0xff]
    %v788 = vld [vmem:[#allocation15 + $0x1c8] sm:$0xff]
    %v789 = vld [vmem:[#allocation15 + $0x1d0] sm:$0xff]
    %v790 = vld [vmem:[#allocation15 + $0x1d8] sm:$0xff]
    %v791 = vld [vmem:[#allocation15 + $0x1e0] sm:$0xff]
    %v792 = vld [vmem:[#allocation15 + $0x1e8] sm:$0xff]
    %v793 = vld [vmem:[#allocation15 + $0x1f0] sm:$0xff]
    %v794 = vld [vmem:[#allocation15 + $0x1f8] sm:$0xff]
    %v795 = vld [vmem:[#allocation16] sm:$0xff]
    %v796 = vld [vmem:[#allocation16 + $0x8] sm:$0xff]
    %v797 = vld [vmem:[#allocation16 + $0x10] sm:$0xff]
    %v798 = vld [vmem:[#allocation16 + $0x18] sm:$0xff]
    %v799 = vld [vmem:[#allocation16 + $0x20] sm:$0xff]
    %v800 = vld [vmem:[#allocation16 + $0x28] sm:$0xff]
    %v801 = vld [vmem:[#allocation16 + $0x30] sm:$0xff]
    %v802 = vld [vmem:[#allocation16 + $0x38] sm:$0xff]
    %v803 = vld [vmem:[#allocation16 + $0x40] sm:$0xff]
    %v804 = vld [vmem:[#allocation16 + $0x48] sm:$0xff]
    %v805 = vld [vmem:[#allocation16 + $0x50] sm:$0xff]
    %v806 = vld [vmem:[#allocation16 + $0x58] sm:$0xff]
    %v807 = vld [vmem:[#allocation16 + $0x60] sm:$0xff]
    %v808 = vld [vmem:[#allocation16 + $0x68] sm:$0xff]
    %v809 = vld [vmem:[#allocation16 + $0x70] sm:$0xff]
    %v810 = vld [vmem:[#allocation16 + $0x78] sm:$0xff]
    %v811 = vld [vmem:[#allocation16 + $0x80] sm:$0xff]
    %v812 = vld [vmem:[#allocation16 + $0x88] sm:$0xff]
    %v813 = vld [vmem:[#allocation16 + $0x90] sm:$0xff]
    %v814 = vld [vmem:[#allocation16 + $0x98] sm:$0xff]
    %v815 = vld [vmem:[#allocation16 + $0xa0] sm:$0xff]
    %v816 = vld [vmem:[#allocation16 + $0xa8] sm:$0xff]
    %v817 = vld [vmem:[#allocation16 + $0xb0] sm:$0xff]
    %v818 = vld [vmem:[#allocation16 + $0xb8] sm:$0xff]
    %v819 = vld [vmem:[#allocation16 + $0xc0] sm:$0xff]
    %v820 = vld [vmem:[#allocation16 + $0xc8] sm:$0xff]
    %v821 = vld [vmem:[#allocation16 + $0xd0] sm:$0xff]
    %v822 = vld [vmem:[#allocation16 + $0xd8] sm:$0xff]
    %v823 = vld [vmem:[#allocation16 + $0xe0] sm:$0xff]
    %v824 = vld [vmem:[#allocation16 + $0xe8] sm:$0xff]
    %v825 = vld [vmem:[#allocation16 + $0xf0] sm:$0xff]
    %v826 = vld [vmem:[#allocation16 + $0xf8] sm:$0xff]
    %v827 = vld [vmem:[#allocation16 + $0x100] sm:$0xff]
    %v828 = vld [vmem:[#allocation16 + $0x108] sm:$0xff]
    %v829 = vld [vmem:[#allocation16 + $0x110] sm:$0xff]
    %v830 = vld [vmem:[#allocation16 + $0x118] sm:$0xff]
    %v831 = vld [vmem:[#allocation16 + $0x120] sm:$0xff]
    %v832 = vld [vmem:[#allocation16 + $0x128] sm:$0xff]
    %v833 = vld [vmem:[#allocation16 + $0x130] sm:$0xff]
    %v834 = vld [vmem:[#allocation16 + $0x138] sm:$0xff]
    %v835 = vld [vmem:[#allocation16 + $0x140] sm:$0xff]
    %v836 = vld [vmem:[#allocation16 + $0x148] sm:$0xff]
    %v837 = vld [vmem:[#allocation16 + $0x150] sm:$0xff]
    %v838 = vld [vmem:[#allocation16 + $0x158] sm:$0xff]
    %v839 = vld [vmem:[#allocation16 + $0x160] sm:$0xff]
    %v840 = vld [vmem:[#allocation16 + $0x168] sm:$0xff]
    %v841 = vld [vmem:[#allocation16 + $0x170] sm:$0xff]
    %v842 = vld [vmem:[#allocation16 + $0x178] sm:$0xff]
    %v843 = vld [vmem:[#allocation16 + $0x180] sm:$0xff]
    %v844 = vld [vmem:[#allocation16 + $0x188] sm:$0xff]
    %v845 = vld [vmem:[#allocation16 + $0x190] sm:$0xff]
    %v846 = vld [vmem:[#allocation16 + $0x198] sm:$0xff]
    %v847 = vld [vmem:[#allocation16 + $0x1a0] sm:$0xff]
    %v848 = vld [vmem:[#allocation16 + $0x1a8] sm:$0xff]
    %v849 = vld [vmem:[#allocation16 + $0x1b0] sm:$0xff]
    %v850 = vld [vmem:[#allocation16 + $0x1b8] sm:$0xff]
    %v851 = vld [vmem:[#allocation16 + $0x1c0] sm:$0xff]
    %v852 = vld [vmem:[#allocation16 + $0x1c8] sm:$0xff]
    %v853 = vld [vmem:[#allocation16 + $0x1d0] sm:$0xff]
    %v854 = vld [vmem:[#allocation16 + $0x1d8] sm:$0xff]
    %v855 = vld [vmem:[#allocation16 + $0x1e0] sm:$0xff]
    %v856 = vld [vmem:[#allocation16 + $0x1e8] sm:$0xff]
    %v857 = vld [vmem:[#allocation16 + $0x1f0] sm:$0xff]
    %v858 = vld [vmem:[#allocation16 + $0x1f8] sm:$0xff]
    %859 = vmatprep.subr.mxu0 %v796
    %860 = vmatpush1.msra.mxu0 %v795
    %861 = vmatprep.subr.mxu0 %v800
    %862 = vmatpush1.msra.mxu0 %v799
    %863 = vmatprep.subr.mxu0 %v804
    %864 = vmatpush1.msra.mxu0 %v803
    %865 = vmatprep.subr.mxu0 %v808
    %866 = vmatpush1.msra.mxu0 %v807
    %867 = vmatprep.subr.mxu0 %v812
    %868 = vmatpush1.msra.mxu0 %v811
    %869 = vmatprep.subr.mxu0 %v816
    %870 = vmatpush1.msra.mxu0 %v815
    %871 = vmatprep.subr.mxu0 %v820
    %872 = vmatpush1.msra.mxu0 %v819
    %873 = vmatprep.subr.mxu0 %v824
    %874 = vmatpush1.msra.mxu0 %v823
    %875 = vmatprep.subr.mxu0 %v828
    %876 = vmatpush1.msra.mxu0 %v827
    %877 = vmatprep.subr.mxu0 %v832
    %878 = vmatpush1.msra.mxu0 %v831
    %879 = vmatprep.subr.mxu0 %v836
    %880 = vmatpush1.msra.mxu0 %v835
    %881 = vmatprep.subr.mxu0 %v840
    %882 = vmatpush1.msra.mxu0 %v839
    %883 = vmatprep.subr.mxu0 %v844
    %884 = vmatpush1.msra.mxu0 %v843
    %885 = vmatprep.subr.mxu0 %v848
    %886 = vmatpush1.msra.mxu0 %v847
    %887 = vmatprep.subr.mxu0 %v852
    %888 = vmatpush1.msra.mxu0 %v851
    %889 = vmatprep.subr.mxu0 %v856
    %890 = vmatpush1.msra.mxu0 %v855
    %891 = vmatprep.subr.mxu0 0.0
    %892 = vmatpush1.msra.mxu0 0.0
    %893 = vmatprep.subr.mxu0 0.0
    %894 = vmatpush1.msra.mxu0 0.0
    %895 = vmatprep.subr.mxu0 0.0
    %896 = vmatpush1.msra.mxu0 0.0
    %897 = vmatprep.subr.mxu0 0.0
    %898 = vmatpush1.msra.mxu0 0.0
    %899 = vmatprep.subr.mxu0 0.0
    %900 = vmatpush1.msra.mxu0 0.0
    %901 = vmatprep.subr.mxu0 0.0
    %902 = vmatpush1.msra.mxu0 0.0
    %903 = vmatprep.subr.mxu0 0.0
    %904 = vmatpush1.msra.mxu0 0.0
    %905 = vmatprep.subr.mxu0 0.0
    %906 = vmatpush1.msra.mxu0 0.0
    %907 = vmatprep.subr.mxu0 0.0
    %908 = vmatpush1.msra.mxu0 0.0
    %909 = vmatprep.subr.mxu0 0.0
    %910 = vmatpush1.msra.mxu0 0.0
    %911 = vmatprep.subr.mxu0 0.0
    %912 = vmatpush1.msra.mxu0 0.0
    %913 = vmatprep.subr.mxu0 0.0
    %914 = vmatpush1.msra.mxu0 0.0
    %915 = vmatprep.subr.mxu0 0.0
    %916 = vmatpush1.msra.mxu0 0.0
    %917 = vmatprep.subr.mxu0 0.0
    %918 = vmatpush1.msra.mxu0 0.0
    %919 = vmatprep.subr.mxu0 0.0
    %920 = vmatpush1.msra.mxu0 0.0
    %921 = vmatprep.subr.mxu0 0.0
    %922 = vmatpush1.msra.mxu0 0.0
    %923 = vmatprep.mubr.f32.mxu0 0.0
    %924 = vmatmul.mubr.f32.gmra.mrb[0].mxu0 %v198
    %v925 = vpop.f32.mrb[0].mxu0
    %v926 = vadd.f32 0.0, %v925
    %v927 = vpop.f32.mrb[0].mxu0
    %v928 = vadd.f32 0.0, %v927
    %929 = vdwg.mxu0
    %930 = vmatprep.subr.mxu0 %v798
    %931 = vmatpush1.msra.mxu0 %v797
    %932 = vmatprep.subr.mxu0 %v802
    %933 = vmatpush1.msra.mxu0 %v801
    %934 = vmatprep.subr.mxu0 %v806
    %935 = vmatpush1.msra.mxu0 %v805
    %936 = vmatprep.subr.mxu0 %v810
    %937 = vmatpush1.msra.mxu0 %v809
    %938 = vmatprep.subr.mxu0 %v814
    %939 = vmatpush1.msra.mxu0 %v813
    %940 = vmatprep.subr.mxu0 %v818
    %941 = vmatpush1.msra.mxu0 %v817
    %942 = vmatprep.subr.mxu0 %v822
    %943 = vmatpush1.msra.mxu0 %v821
    %944 = vmatprep.subr.mxu0 %v826
    %945 = vmatpush1.msra.mxu0 %v825
    %946 = vmatprep.subr.mxu0 %v830
    %947 = vmatpush1.msra.mxu0 %v829
    %948 = vmatprep.subr.mxu0 %v834
    %949 = vmatpush1.msra.mxu0 %v833
    %950 = vmatprep.subr.mxu0 %v838
    %951 = vmatpush1.msra.mxu0 %v837
    %952 = vmatprep.subr.mxu0 %v842
    %953 = vmatpush1.msra.mxu0 %v841
    %954 = vmatprep.subr.mxu0 %v846
    %955 = vmatpush1.msra.mxu0 %v845
    %956 = vmatprep.subr.mxu0 %v850
    %957 = vmatpush1.msra.mxu0 %v849
    %958 = vmatprep.subr.mxu0 %v854
    %959 = vmatpush1.msra.mxu0 %v853
    %960 = vmatprep.subr.mxu0 %v858
    %961 = vmatpush1.msra.mxu0 %v857
    %962 = vmatprep.subr.mxu0 0.0
    %963 = vmatpush1.msra.mxu0 0.0
    %964 = vmatprep.subr.mxu0 0.0
    %965 = vmatpush1.msra.mxu0 0.0
    %966 = vmatprep.subr.mxu0 0.0
    %967 = vmatpush1.msra.mxu0 0.0
    %968 = vmatprep.subr.mxu0 0.0
    %969 = vmatpush1.msra.mxu0 0.0
    %970 = vmatprep.subr.mxu0 0.0
    %971 = vmatpush1.msra.mxu0 0.0
    %972 = vmatprep.subr.mxu0 0.0
    %973 = vmatpush1.msra.mxu0 0.0
    %974 = vmatprep.subr.mxu0 0.0
    %975 = vmatpush1.msra.mxu0 0.0
    %976 = vmatprep.subr.mxu0 0.0
    %977 = vmatpush1.msra.mxu0 0.0
    %978 = vmatprep.subr.mxu0 0.0
    %979 = vmatpush1.msra.mxu0 0.0
    %980 = vmatprep.subr.mxu0 0.0
    %981 = vmatpush1.msra.mxu0 0.0
    %982 = vmatprep.subr.mxu0 0.0
    %983 = vmatpush1.msra.mxu0 0.0
    %984 = vmatprep.subr.mxu0 0.0
    %985 = vmatpush1.msra.mxu0 0.0
    %986 = vmatprep.subr.mxu0 0.0
    %987 = vmatpush1.msra.mxu0 0.0
    %988 = vmatprep.subr.mxu0 0.0
    %989 = vmatpush1.msra.mxu0 0.0
    %990 = vmatprep.subr.mxu0 0.0
    %991 = vmatpush1.msra.mxu0 0.0
    %992 = vmatprep.subr.mxu0 0.0
    %993 = vmatpush1.msra.mxu0 0.0
    %994 = vmatprep.mubr.f32.mxu0 0.0
    %995 = vmatmul.mubr.f32.gmra.mrb[0].mxu0 %v198
    %v996 = vpop.f32.mrb[0].mxu0
    %v997 = vadd.f32 0.0, %v996
    %v998 = vpop.f32.mrb[0].mxu0
    %v999 = vadd.f32 0.0, %v998
    %1000 = vdwg.mxu0
    %1001 = vmatprep.subr.mxu0 %v732
    %1002 = vmatpush1.msra.mxu0 %v731
    %1003 = vmatprep.subr.mxu0 %v736
    %1004 = vmatpush1.msra.mxu0 %v735
    %1005 = vmatprep.subr.mxu0 %v740
    %1006 = vmatpush1.msra.mxu0 %v739
    %1007 = vmatprep.subr.mxu0 %v744
    %1008 = vmatpush1.msra.mxu0 %v743
    %1009 = vmatprep.subr.mxu0 %v748
    %1010 = vmatpush1.msra.mxu0 %v747
    %1011 = vmatprep.subr.mxu0 %v752
    %1012 = vmatpush1.msra.mxu0 %v751
    %1013 = vmatprep.subr.mxu0 %v756
    %1014 = vmatpush1.msra.mxu0 %v755
    %1015 = vmatprep.subr.mxu0 %v760
    %1016 = vmatpush1.msra.mxu0 %v759
    %1017 = vmatprep.subr.mxu0 %v764
    %1018 = vmatpush1.msra.mxu0 %v763
    %1019 = vmatprep.subr.mxu0 %v768
    %1020 = vmatpush1.msra.mxu0 %v767
    %1021 = vmatprep.subr.mxu0 %v772
    %1022 = vmatpush1.msra.mxu0 %v771
    %1023 = vmatprep.subr.mxu0 %v776
    %1024 = vmatpush1.msra.mxu0 %v775
    %1025 = vmatprep.subr.mxu0 %v780
    %1026 = vmatpush1.msra.mxu0 %v779
    %1027 = vmatprep.subr.mxu0 %v784
    %1028 = vmatpush1.msra.mxu0 %v783
    %1029 = vmatprep.subr.mxu0 %v788
    %1030 = vmatpush1.msra.mxu0 %v787
    %1031 = vmatprep.subr.mxu0 %v792
    %1032 = vmatpush1.msra.mxu0 %v791
    %1033 = vmatprep.subr.mxu0 0.0
    %1034 = vmatpush1.msra.mxu0 0.0
    %1035 = vmatprep.subr.mxu0 0.0
    %1036 = vmatpush1.msra.mxu0 0.0
    %1037 = vmatprep.subr.mxu0 0.0
    %1038 = vmatpush1.msra.mxu0 0.0
    %1039 = vmatprep.subr.mxu0 0.0
    %1040 = vmatpush1.msra.mxu0 0.0
    %1041 = vmatprep.subr.mxu0 0.0
    %1042 = vmatpush1.msra.mxu0 0.0
    %1043 = vmatprep.subr.mxu0 0.0
    %1044 = vmatpush1.msra.mxu0 0.0
    %1045 = vmatprep.subr.mxu0 0.0
    %1046 = vmatpush1.msra.mxu0 0.0
    %1047 = vmatprep.subr.mxu0 0.0
    %1048 = vmatpush1.msra.mxu0 0.0
    %1049 = vmatprep.subr.mxu0 0.0
    %1050 = vmatpush1.msra.mxu0 0.0
    %1051 = vmatprep.subr.mxu0 0.0
    %1052 = vmatpush1.msra.mxu0 0.0
    %1053 = vmatprep.subr.mxu0 0.0
    %1054 = vmatpush1.msra.mxu0 0.0
    %1055 = vmatprep.subr.mxu0 0.0
    %1056 = vmatpush1.msra.mxu0 0.0
    %1057 = vmatprep.subr.mxu0 0.0
    %1058 = vmatpush1.msra.mxu0 0.0
    %1059 = vmatprep.subr.mxu0 0.0
    %1060 = vmatpush1.msra.mxu0 0.0
    %1061 = vmatprep.subr.mxu0 0.0
    %1062 = vmatpush1.msra.mxu0 0.0
    %1063 = vmatprep.subr.mxu0 0.0
    %1064 = vmatpush1.msra.mxu0 0.0
    %1065 = vmatprep.mubr.f32.mxu0 0.0
    %1066 = vmatmul.mubr.f32.gmra.mrb[0].mxu0 %v730
    %v1067 = vpop.f32.mrb[0].mxu0
    %v1068 = vadd.f32 %v926, %v1067
    %v1069 = vpop.f32.mrb[0].mxu0
    %v1070 = vadd.f32 %v928, %v1069
    %1071 = vdwg.mxu0
    %1072 = vmatprep.subr.mxu0 %v734
    %1073 = vmatpush1.msra.mxu0 %v733
    %1074 = vmatprep.subr.mxu0 %v738
    %1075 = vmatpush1.msra.mxu0 %v737
    %1076 = vmatprep.subr.mxu0 %v742
    %1077 = vmatpush1.msra.mxu0 %v741
    %1078 = vmatprep.subr.mxu0 %v746
    %1079 = vmatpush1.msra.mxu0 %v745
    %1080 = vmatprep.subr.mxu0 %v750
    %1081 = vmatpush1.msra.mxu0 %v749
    %1082 = vmatprep.subr.mxu0 %v754
    %1083 = vmatpush1.msra.mxu0 %v753
    %1084 = vmatprep.subr.mxu0 %v758
    %1085 = vmatpush1.msra.mxu0 %v757
    %1086 = vmatprep.subr.mxu0 %v762
    %1087 = vmatpush1.msra.mxu0 %v761
    %1088 = vmatprep.subr.mxu0 %v766
    %1089 = vmatpush1.msra.mxu0 %v765
    %1090 = vmatprep.subr.mxu0 %v770
    %1091 = vmatpush1.msra.mxu0 %v769
    %1092 = vmatprep.subr.mxu0 %v774
    %1093 = vmatpush1.msra.mxu0 %v773
    %1094 = vmatprep.subr.mxu0 %v778
    %1095 = vmatpush1.msra.mxu0 %v777
    %1096 = vmatprep.subr.mxu0 %v782
    %1097 = vmatpush1.msra.mxu0 %v781
    %1098 = vmatprep.subr.mxu0 %v786
    %1099 = vmatpush1.msra.mxu0 %v785
    %1100 = vmatprep.subr.mxu0 %v790
    %1101 = vmatpush1.msra.mxu0 %v789
    %1102 = vmatprep.subr.mxu0 %v794
    %1103 = vmatpush1.msra.mxu0 %v793
    %1104 = vmatprep.subr.mxu0 0.0
    %1105 = vmatpush1.msra.mxu0 0.0
    %1106 = vmatprep.subr.mxu0 0.0
    %1107 = vmatpush1.msra.mxu0 0.0
    %1108 = vmatprep.subr.mxu0 0.0
    %1109 = vmatpush1.msra.mxu0 0.0
    %1110 = vmatprep.subr.mxu0 0.0
    %1111 = vmatpush1.msra.mxu0 0.0
    %1112 = vmatprep.subr.mxu0 0.0
    %1113 = vmatpush1.msra.mxu0 0.0
    %1114 = vmatprep.subr.mxu0 0.0
    %1115 = vmatpush1.msra.mxu0 0.0
    %1116 = vmatprep.subr.mxu0 0.0
    %1117 = vmatpush1.msra.mxu0 0.0
    %1118 = vmatprep.subr.mxu0 0.0
    %1119 = vmatpush1.msra.mxu0 0.0
    %1120 = vmatprep.subr.mxu0 0.0
    %1121 = vmatpush1.msra.mxu0 0.0
    %1122 = vmatprep.subr.mxu0 0.0
    %1123 = vmatpush1.msra.mxu0 0.0
    %1124 = vmatprep.subr.mxu0 0.0
    %1125 = vmatpush1.msra.mxu0 0.0
    %1126 = vmatprep.subr.mxu0 0.0
    %1127 = vmatpush1.msra.mxu0 0.0
    %1128 = vmatprep.subr.mxu0 0.0
    %1129 = vmatpush1.msra.mxu0 0.0
    %1130 = vmatprep.subr.mxu0 0.0
    %1131 = vmatpush1.msra.mxu0 0.0
    %1132 = vmatprep.subr.mxu0 0.0
    %1133 = vmatpush1.msra.mxu0 0.0
    %1134 = vmatprep.subr.mxu0 0.0
    %1135 = vmatpush1.msra.mxu0 0.0
    %1136 = vmatprep.mubr.f32.mxu0 0.0
    %1137 = vmatmul.mubr.f32.gmra.mrb[0].mxu0 %v730
    %v1138 = vpop.f32.mrb[0].mxu0
    %v1139 = vadd.f32 %v997, %v1138
    %v1140 = vpop.f32.mrb[0].mxu0
    %v1141 = vadd.f32 %v999, %v1140
    %1142 = vdwg.mxu0
    %v1143 = vadd.f32 %v1068, %v179
    %v1144 = vadd.f32 %v1070, %v183
    %v1145 = vadd.f32 %v1139, %v187
    %v1146 = vadd.f32 %v1141, %v191
    %v1147 = vxor.u32 %v1143, 2147483648
    %v1148 = vxor.u32 %v1144, 2147483648
    %v1149 = vxor.u32 %v1145, 2147483648
    %v1150 = vmul.f32 %v1147, 1.442695
    %v1151 = vpow.pop %v1150
    %v1152 = vmul.f32 %v1148, 1.442695
    %v1153 = vpow.pop %v1152
    %v1154 = vmul.f32 %v1149, 1.442695
    %v1155 = vpow.pop %v1154
    %v1156 = vadd.f32 %v1151, 1.0
    %v1157 = vadd.f32 %v1153, 1.0
    %v1158 = vadd.f32 %v1155, 1.0
    %v1159 = vrcp.pop %v1156
    %v1160 = vmul.f32 1.0, %v1159
    %v1161 = vrcp.pop %v1157
    %v1162 = vmul.f32 1.0, %v1161
    %v1163 = vrcp.pop %v1158
    %v1164 = vmul.f32 1.0, %v1163
    %v1165 = vtanh.pop %v1146
    %v1166 = vmul.f32 %v1162, %v201
    %v1167 = vmul.f32 %v1160, %v1165
    %v1168 = vadd.f32 %v1166, %v1167
    %v1169 = vtanh.pop %v1168
    %v1170 = vmul.f32 %v1164, %v1169
    %1171 = vst [vmem:[#allocation4] sm:$0xff] %v1170
    %s1172 = smul.u32 0, 8
    %s1173 = sadd.s32 %s1172, 1
    %s1174 = smul.u32 %s1173, 8
    %s1175 = sld [smem:[#allocation6 + %s1174]]
    %s1176 = sshra.s32 %s1175, 3
    %s1177 = sand.u32 %s1175, 7
    %s1178 = sshra.s32 %s1175, 3
    %s1179 = sand.u32 %s1175, 7
    %s1180 = smul.u32 %s1176, 4
    %s1181 = smul.u32 %s1180, 8
    %s1182 = sadd.s32 %s1181, %s1179
    %s1183 = scalar_lea.vmem [#allocation12], %s1182
    %v1184 = vld [vmem:[%s1183] ss:$8 sm:$0xf]
    %s1185 = sadd.s32 %s1174, 1
    %s1186 = sld [smem:[#allocation6 + %s1185]]
    %s1187 = sshra.s32 %s1186, 3
    %s1188 = sand.u32 %s1186, 7
    %s1189 = sshra.s32 %s1186, 3
    %s1190 = sand.u32 %s1186, 7
    %s1191 = smul.u32 %s1187, 4
    %s1192 = smul.u32 %s1191, 8
    %s1193 = sadd.s32 %s1192, %s1190
    %s1194 = scalar_lea.vmem [#allocation12], %s1193
    %v1195 = vld [vmem:[%s1194] ss:$8 sm:$0xf]
    %s1196 = sadd.s32 %s1174, 2
    %s1197 = sld [smem:[#allocation6 + %s1196]]
    %s1198 = sshra.s32 %s1197, 3
    %s1199 = sand.u32 %s1197, 7
    %s1200 = sshra.s32 %s1197, 3
    %s1201 = sand.u32 %s1197, 7
    %s1202 = smul.u32 %s1198, 4
    %s1203 = smul.u32 %s1202, 8
    %s1204 = sadd.s32 %s1203, %s1201
    %s1205 = scalar_lea.vmem [#allocation12], %s1204
    %v1206 = vld [vmem:[%s1205] ss:$8 sm:$0xf]
    %s1207 = sadd.s32 %s1174, 3
    %s1208 = sld [smem:[#allocation6 + %s1207]]
    %s1209 = sshra.s32 %s1208, 3
    %s1210 = sand.u32 %s1208, 7
    %s1211 = sshra.s32 %s1208, 3
    %s1212 = sand.u32 %s1208, 7
    %s1213 = smul.u32 %s1209, 4
    %s1214 = smul.u32 %s1213, 8
    %s1215 = sadd.s32 %s1214, %s1212
    %s1216 = scalar_lea.vmem [#allocation12], %s1215
    %v1217 = vld [vmem:[%s1216] ss:$8 sm:$0xf]
    %s1218 = sadd.s32 %s1174, 4
    %s1219 = sld [smem:[#allocation6 + %s1218]]
    %s1220 = sshra.s32 %s1219, 3
    %s1221 = sand.u32 %s1219, 7
    %s1222 = sshra.s32 %s1219, 3
    %s1223 = sand.u32 %s1219, 7
    %s1224 = smul.u32 %s1220, 4
    %s1225 = smul.u32 %s1224, 8
    %s1226 = sadd.s32 %s1225, %s1223
    %s1227 = scalar_lea.vmem [#allocation12], %s1226
    %v1228 = vld [vmem:[%s1227] ss:$8 sm:$0xf]
    %s1229 = sadd.s32 %s1174, 5
    %s1230 = sld [smem:[#allocation6 + %s1229]]
    %s1231 = sshra.s32 %s1230, 3
    %s1232 = sand.u32 %s1230, 7
    %s1233 = sshra.s32 %s1230, 3
    %s1234 = sand.u32 %s1230, 7
    %s1235 = smul.u32 %s1231, 4
    %s1236 = smul.u32 %s1235, 8
    %s1237 = sadd.s32 %s1236, %s1234
    %s1238 = scalar_lea.vmem [#allocation12], %s1237
    %v1239 = vld [vmem:[%s1238] ss:$8 sm:$0xf]
    %s1240 = sadd.s32 %s1174, 6
    %s1241 = sld [smem:[#allocation6 + %s1240]]
    %s1242 = sshra.s32 %s1241, 3
    %s1243 = sand.u32 %s1241, 7
    %s1244 = sshra.s32 %s1241, 3
    %s1245 = sand.u32 %s1241, 7
    %s1246 = smul.u32 %s1242, 4
    %s1247 = smul.u32 %s1246, 8
    %s1248 = sadd.s32 %s1247, %s1245
    %s1249 = scalar_lea.vmem [#allocation12], %s1248
    %v1250 = vld [vmem:[%s1249] ss:$8 sm:$0xf]
    %s1251 = sadd.s32 %s1174, 7
    %s1252 = sld [smem:[#allocation6 + %s1251]]
    %s1253 = sshra.s32 %s1252, 3
    %s1254 = sand.u32 %s1252, 7
    %s1255 = sshra.s32 %s1252, 3
    %s1256 = sand.u32 %s1252, 7
    %s1257 = smul.u32 %s1253, 4
    %s1258 = smul.u32 %s1257, 8
    %s1259 = sadd.s32 %s1258, %s1256
    %s1260 = scalar_lea.vmem [#allocation12], %s1259
    %v1261 = vld [vmem:[%s1260] ss:$8 sm:$0xf]
    %v1263 = vlaneseq
    %v1264 = vshrl.u32 %v1263, 7
    %v1265 = vsub.s32 0, %v1264
    %v1266 = vrot.slane %v1184, %v1265
    %v1267 = vlaneseq
    %v1268 = vshrl.u32 %v1267, 7
    %v1269 = vsub.s32 1, %v1268
    %v1270 = vrot.slane %v1184, %v1269
    %v1271 = vlaneseq
    %v1272 = vshrl.u32 %v1271, 7
    %v1273 = vsub.s32 2, %v1272
    %v1274 = vrot.slane %v1184, %v1273
    %v1275 = vlaneseq
    %v1276 = vshrl.u32 %v1275, 7
    %v1277 = vsub.s32 3, %v1276
    %v1278 = vrot.slane %v1184, %v1277
    %v1284 = vlaneseq
    %v1285 = vshrl.u32 %v1284, 7
    %v1286 = vsub.s32 0, %v1285
    %v1287 = vrot.slane %v1195, %v1286
    %v1288 = vlaneseq
    %v1289 = vshrl.u32 %v1288, 7
    %v1290 = vsub.s32 1, %v1289
    %v1291 = vrot.slane %v1195, %v1290
    %v1292 = vlaneseq
    %v1293 = vshrl.u32 %v1292, 7
    %v1294 = vsub.s32 2, %v1293
    %v1295 = vrot.slane %v1195, %v1294
    %v1296 = vlaneseq
    %v1297 = vshrl.u32 %v1296, 7
    %v1298 = vsub.s32 3, %v1297
    %v1299 = vrot.slane %v1195, %v1298
    %v1305 = vlaneseq
    %v1306 = vshrl.u32 %v1305, 7
    %v1307 = vsub.s32 0, %v1306
    %v1308 = vrot.slane %v1206, %v1307
    %v1309 = vlaneseq
    %v1310 = vshrl.u32 %v1309, 7
    %v1311 = vsub.s32 1, %v1310
    %v1312 = vrot.slane %v1206, %v1311
    %v1313 = vlaneseq
    %v1314 = vshrl.u32 %v1313, 7
    %v1315 = vsub.s32 2, %v1314
    %v1316 = vrot.slane %v1206, %v1315
    %v1317 = vlaneseq
    %v1318 = vshrl.u32 %v1317, 7
    %v1319 = vsub.s32 3, %v1318
    %v1320 = vrot.slane %v1206, %v1319
    %v1326 = vlaneseq
    %v1327 = vshrl.u32 %v1326, 7
    %v1328 = vsub.s32 0, %v1327
    %v1329 = vrot.slane %v1217, %v1328
    %v1330 = vlaneseq
    %v1331 = vshrl.u32 %v1330, 7
    %v1332 = vsub.s32 1, %v1331
    %v1333 = vrot.slane %v1217, %v1332
    %v1334 = vlaneseq
    %v1335 = vshrl.u32 %v1334, 7
    %v1336 = vsub.s32 2, %v1335
    %v1337 = vrot.slane %v1217, %v1336
    %v1338 = vlaneseq
    %v1339 = vshrl.u32 %v1338, 7
    %v1340 = vsub.s32 3, %v1339
    %v1341 = vrot.slane %v1217, %v1340
    %v1347 = vlaneseq
    %v1348 = vshrl.u32 %v1347, 7
    %v1349 = vsub.s32 0, %v1348
    %v1350 = vrot.slane %v1228, %v1349
    %v1351 = vlaneseq
    %v1352 = vshrl.u32 %v1351, 7
    %v1353 = vsub.s32 1, %v1352
    %v1354 = vrot.slane %v1228, %v1353
    %v1355 = vlaneseq
    %v1356 = vshrl.u32 %v1355, 7
    %v1357 = vsub.s32 2, %v1356
    %v1358 = vrot.slane %v1228, %v1357
    %v1359 = vlaneseq
    %v1360 = vshrl.u32 %v1359, 7
    %v1361 = vsub.s32 3, %v1360
    %v1362 = vrot.slane %v1228, %v1361
    %v1368 = vlaneseq
    %v1369 = vshrl.u32 %v1368, 7
    %v1370 = vsub.s32 0, %v1369
    %v1371 = vrot.slane %v1239, %v1370
    %v1372 = vlaneseq
    %v1373 = vshrl.u32 %v1372, 7
    %v1374 = vsub.s32 1, %v1373
    %v1375 = vrot.slane %v1239, %v1374
    %v1376 = vlaneseq
    %v1377 = vshrl.u32 %v1376, 7
    %v1378 = vsub.s32 2, %v1377
    %v1379 = vrot.slane %v1239, %v1378
    %v1380 = vlaneseq
    %v1381 = vshrl.u32 %v1380, 7
    %v1382 = vsub.s32 3, %v1381
    %v1383 = vrot.slane %v1239, %v1382
    %v1389 = vlaneseq
    %v1390 = vshrl.u32 %v1389, 7
    %v1391 = vsub.s32 0, %v1390
    %v1392 = vrot.slane %v1250, %v1391
    %v1393 = vlaneseq
    %v1394 = vshrl.u32 %v1393, 7
    %v1395 = vsub.s32 1, %v1394
    %v1396 = vrot.slane %v1250, %v1395
    %v1397 = vlaneseq
    %v1398 = vshrl.u32 %v1397, 7
    %v1399 = vsub.s32 2, %v1398
    %v1400 = vrot.slane %v1250, %v1399
    %v1401 = vlaneseq
    %v1402 = vshrl.u32 %v1401, 7
    %v1403 = vsub.s32 3, %v1402
    %v1404 = vrot.slane %v1250, %v1403
    %v1410 = vlaneseq
    %v1411 = vshrl.u32 %v1410, 7
    %v1412 = vsub.s32 0, %v1411
    %v1413 = vrot.slane %v1261, %v1412
    %v1414 = vlaneseq
    %v1415 = vshrl.u32 %v1414, 7
    %v1416 = vsub.s32 1, %v1415
    %v1417 = vrot.slane %v1261, %v1416
    %v1418 = vlaneseq
    %v1419 = vshrl.u32 %v1418, 7
    %v1420 = vsub.s32 2, %v1419
    %v1421 = vrot.slane %v1261, %v1420
    %v1422 = vlaneseq
    %v1423 = vshrl.u32 %v1422, 7
    %v1424 = vsub.s32 3, %v1423
    %v1425 = vrot.slane %v1261, %v1424
    %v1430 = vsel %vm458, %v1266, %v1287
    %v1431 = vsel %vm458, %v1270, %v1291
    %v1432 = vsel %vm458, %v1274, %v1295
    %v1433 = vsel %vm458, %v1278, %v1299
    %v1434 = vsel %vm463, %v1430, %v1308
    %v1435 = vsel %vm463, %v1431, %v1312
    %v1436 = vsel %vm463, %v1432, %v1316
    %v1437 = vsel %vm463, %v1433, %v1320
    %v1438 = vsel %vm468, %v1434, %v1329
    %v1439 = vsel %vm468, %v1435, %v1333
    %v1440 = vsel %vm468, %v1436, %v1337
    %v1441 = vsel %vm468, %v1437, %v1341
    %v1442 = vsel %vm473, %v1438, %v1350
    %v1443 = vsel %vm473, %v1439, %v1354
    %v1444 = vsel %vm473, %v1440, %v1358
    %v1445 = vsel %vm473, %v1441, %v1362
    %v1446 = vsel %vm478, %v1442, %v1371
    %v1447 = vsel %vm478, %v1443, %v1375
    %v1448 = vsel %vm478, %v1444, %v1379
    %v1449 = vsel %vm478, %v1445, %v1383
    %v1450 = vsel %vm483, %v1446, %v1392
    %v1451 = vsel %vm483, %v1447, %v1396
    %v1452 = vsel %vm483, %v1448, %v1400
    %v1453 = vsel %vm483, %v1449, %v1404
    %v1454 = vsel %vm488, %v1450, %v1413
    %v1455 = vsel %vm488, %v1451, %v1417
    %v1456 = vsel %vm488, %v1452, %v1421
    %v1457 = vsel %vm488, %v1453, %v1425
    %v1458 = vld [vmem:[#allocation13] sm:$0xff]
    %v1459 = vld [vmem:[#allocation13 + $0x8] sm:$0xff]
    %v1460 = vld [vmem:[#allocation13 + $0x10] sm:$0xff]
    %v1461 = vld [vmem:[#allocation13 + $0x18] sm:$0xff]
    %v1462 = vld [vmem:[#allocation13 + $0x20] sm:$0xff]
    %v1463 = vld [vmem:[#allocation13 + $0x28] sm:$0xff]
    %v1464 = vld [vmem:[#allocation13 + $0x30] sm:$0xff]
    %v1465 = vld [vmem:[#allocation13 + $0x38] sm:$0xff]
    %v1466 = vld [vmem:[#allocation13 + $0x40] sm:$0xff]
    %v1467 = vld [vmem:[#allocation13 + $0x48] sm:$0xff]
    %v1468 = vld [vmem:[#allocation13 + $0x50] sm:$0xff]
    %v1469 = vld [vmem:[#allocation13 + $0x58] sm:$0xff]
    %v1470 = vld [vmem:[#allocation13 + $0x60] sm:$0xff]
    %v1471 = vld [vmem:[#allocation13 + $0x68] sm:$0xff]
    %v1472 = vld [vmem:[#allocation13 + $0x70] sm:$0xff]
    %v1473 = vld [vmem:[#allocation13 + $0x78] sm:$0xff]
    %v1474 = vld [vmem:[#allocation13 + $0x80] sm:$0xff]
    %v1475 = vld [vmem:[#allocation13 + $0x88] sm:$0xff]
    %v1476 = vld [vmem:[#allocation13 + $0x90] sm:$0xff]
    %v1477 = vld [vmem:[#allocation13 + $0x98] sm:$0xff]
    %v1478 = vld [vmem:[#allocation13 + $0xa0] sm:$0xff]
    %v1479 = vld [vmem:[#allocation13 + $0xa8] sm:$0xff]
    %v1480 = vld [vmem:[#allocation13 + $0xb0] sm:$0xff]
    %v1481 = vld [vmem:[#allocation13 + $0xb8] sm:$0xff]
    %v1482 = vld [vmem:[#allocation13 + $0xc0] sm:$0xff]
    %v1483 = vld [vmem:[#allocation13 + $0xc8] sm:$0xff]
    %v1484 = vld [vmem:[#allocation13 + $0xd0] sm:$0xff]
    %v1485 = vld [vmem:[#allocation13 + $0xd8] sm:$0xff]
    %v1486 = vld [vmem:[#allocation13 + $0xe0] sm:$0xff]
    %v1487 = vld [vmem:[#allocation13 + $0xe8] sm:$0xff]
    %v1488 = vld [vmem:[#allocation13 + $0xf0] sm:$0xff]
    %v1489 = vld [vmem:[#allocation13 + $0xf8] sm:$0xff]
    %v1490 = vld [vmem:[#allocation13 + $0x100] sm:$0xff]
    %v1491 = vld [vmem:[#allocation13 + $0x108] sm:$0xff]
    %v1492 = vld [vmem:[#allocation13 + $0x110] sm:$0xff]
    %v1493 = vld [vmem:[#allocation13 + $0x118] sm:$0xff]
    %v1494 = vld [vmem:[#allocation13 + $0x120] sm:$0xff]
    %v1495 = vld [vmem:[#allocation13 + $0x128] sm:$0xff]
    %v1496 = vld [vmem:[#allocation13 + $0x130] sm:$0xff]
    %v1497 = vld [vmem:[#allocation13 + $0x138] sm:$0xff]
    %v1498 = vld [vmem:[#allocation13 + $0x140] sm:$0xff]
    %v1499 = vld [vmem:[#allocation13 + $0x148] sm:$0xff]
    %v1500 = vld [vmem:[#allocation13 + $0x150] sm:$0xff]
    %v1501 = vld [vmem:[#allocation13 + $0x158] sm:$0xff]
    %v1502 = vld [vmem:[#allocation13 + $0x160] sm:$0xff]
    %v1503 = vld [vmem:[#allocation13 + $0x168] sm:$0xff]
    %v1504 = vld [vmem:[#allocation13 + $0x170] sm:$0xff]
    %v1505 = vld [vmem:[#allocation13 + $0x178] sm:$0xff]
    %v1506 = vld [vmem:[#allocation13 + $0x180] sm:$0xff]
    %v1507 = vld [vmem:[#allocation13 + $0x188] sm:$0xff]
    %v1508 = vld [vmem:[#allocation13 + $0x190] sm:$0xff]
    %v1509 = vld [vmem:[#allocation13 + $0x198] sm:$0xff]
    %v1510 = vld [vmem:[#allocation13 + $0x1a0] sm:$0xff]
    %v1511 = vld [vmem:[#allocation13 + $0x1a8] sm:$0xff]
    %v1512 = vld [vmem:[#allocation13 + $0x1b0] sm:$0xff]
    %v1513 = vld [vmem:[#allocation13 + $0x1b8] sm:$0xff]
    %v1514 = vld [vmem:[#allocation13 + $0x1c0] sm:$0xff]
    %v1515 = vld [vmem:[#allocation13 + $0x1c8] sm:$0xff]
    %v1516 = vld [vmem:[#allocation13 + $0x1d0] sm:$0xff]
    %v1517 = vld [vmem:[#allocation13 + $0x1d8] sm:$0xff]
    %v1518 = vld [vmem:[#allocation13 + $0x1e0] sm:$0xff]
    %v1519 = vld [vmem:[#allocation13 + $0x1e8] sm:$0xff]
    %v1520 = vld [vmem:[#allocation13 + $0x1f0] sm:$0xff]
    %v1521 = vld [vmem:[#allocation13 + $0x1f8] sm:$0xff]
    %1522 = vmatprep.subr.mxu0 %v1459
    %1523 = vmatpush1.msra.mxu0 %v1458
    %1524 = vmatprep.subr.mxu0 %v1463
    %1525 = vmatpush1.msra.mxu0 %v1462
    %1526 = vmatprep.subr.mxu0 %v1467
    %1527 = vmatpush1.msra.mxu0 %v1466
    %1528 = vmatprep.subr.mxu0 %v1471
    %1529 = vmatpush1.msra.mxu0 %v1470
    %1530 = vmatprep.subr.mxu0 %v1475
    %1531 = vmatpush1.msra.mxu0 %v1474
    %1532 = vmatprep.subr.mxu0 %v1479
    %1533 = vmatpush1.msra.mxu0 %v1478
    %1534 = vmatprep.subr.mxu0 %v1483
    %1535 = vmatpush1.msra.mxu0 %v1482
    %1536 = vmatprep.subr.mxu0 %v1487
    %1537 = vmatpush1.msra.mxu0 %v1486
    %1538 = vmatprep.subr.mxu0 %v1491
    %1539 = vmatpush1.msra.mxu0 %v1490
    %1540 = vmatprep.subr.mxu0 %v1495
    %1541 = vmatpush1.msra.mxu0 %v1494
    %1542 = vmatprep.subr.mxu0 %v1499
    %1543 = vmatpush1.msra.mxu0 %v1498
    %1544 = vmatprep.subr.mxu0 %v1503
    %1545 = vmatpush1.msra.mxu0 %v1502
    %1546 = vmatprep.subr.mxu0 %v1507
    %1547 = vmatpush1.msra.mxu0 %v1506
    %1548 = vmatprep.subr.mxu0 %v1511
    %1549 = vmatpush1.msra.mxu0 %v1510
    %1550 = vmatprep.subr.mxu0 %v1515
    %1551 = vmatpush1.msra.mxu0 %v1514
    %1552 = vmatprep.subr.mxu0 %v1519
    %1553 = vmatpush1.msra.mxu0 %v1518
    %1554 = vmatprep.subr.mxu0 0.0
    %1555 = vmatpush1.msra.mxu0 0.0
    %1556 = vmatprep.subr.mxu0 0.0
    %1557 = vmatpush1.msra.mxu0 0.0
    %1558 = vmatprep.subr.mxu0 0.0
    %1559 = vmatpush1.msra.mxu0 0.0
    %1560 = vmatprep.subr.mxu0 0.0
    %1561 = vmatpush1.msra.mxu0 0.0
    %1562 = vmatprep.subr.mxu0 0.0
    %1563 = vmatpush1.msra.mxu0 0.0
    %1564 = vmatprep.subr.mxu0 0.0
    %1565 = vmatpush1.msra.mxu0 0.0
    %1566 = vmatprep.subr.mxu0 0.0
    %1567 = vmatpush1.msra.mxu0 0.0
    %1568 = vmatprep.subr.mxu0 0.0
    %1569 = vmatpush1.msra.mxu0 0.0
    %1570 = vmatprep.subr.mxu0 0.0
    %1571 = vmatpush1.msra.mxu0 0.0
    %1572 = vmatprep.subr.mxu0 0.0
    %1573 = vmatpush1.msra.mxu0 0.0
    %1574 = vmatprep.subr.mxu0 0.0
    %1575 = vmatpush1.msra.mxu0 0.0
    %1576 = vmatprep.subr.mxu0 0.0
    %1577 = vmatpush1.msra.mxu0 0.0
    %1578 = vmatprep.subr.mxu0 0.0
    %1579 = vmatpush1.msra.mxu0 0.0
    %1580 = vmatprep.subr.mxu0 0.0
    %1581 = vmatpush1.msra.mxu0 0.0
    %1582 = vmatprep.subr.mxu0 0.0
    %1583 = vmatpush1.msra.mxu0 0.0
    %1584 = vmatprep.subr.mxu0 0.0
    %1585 = vmatpush1.msra.mxu0 0.0
    %1586 = vmatprep.mubr.f32.mxu0 0.0
    %1587 = vmatmul.mubr.f32.gmra.mrb[0].mxu0 %v730
    %v1588 = vpop.f32.mrb[0].mxu0
    %v1589 = vadd.f32 0.0, %v1588
    %v1590 = vpop.f32.mrb[0].mxu0
    %v1591 = vadd.f32 0.0, %v1590
    %1592 = vdwg.mxu0
    %1593 = vmatprep.subr.mxu0 %v1461
    %1594 = vmatpush1.msra.mxu0 %v1460
    %1595 = vmatprep.subr.mxu0 %v1465
    %1596 = vmatpush1.msra.mxu0 %v1464
    %1597 = vmatprep.subr.mxu0 %v1469
    %1598 = vmatpush1.msra.mxu0 %v1468
    %1599 = vmatprep.subr.mxu0 %v1473
    %1600 = vmatpush1.msra.mxu0 %v1472
    %1601 = vmatprep.subr.mxu0 %v1477
    %1602 = vmatpush1.msra.mxu0 %v1476
    %1603 = vmatprep.subr.mxu0 %v1481
    %1604 = vmatpush1.msra.mxu0 %v1480
    %1605 = vmatprep.subr.mxu0 %v1485
    %1606 = vmatpush1.msra.mxu0 %v1484
    %1607 = vmatprep.subr.mxu0 %v1489
    %1608 = vmatpush1.msra.mxu0 %v1488
    %1609 = vmatprep.subr.mxu0 %v1493
    %1610 = vmatpush1.msra.mxu0 %v1492
    %1611 = vmatprep.subr.mxu0 %v1497
    %1612 = vmatpush1.msra.mxu0 %v1496
    %1613 = vmatprep.subr.mxu0 %v1501
    %1614 = vmatpush1.msra.mxu0 %v1500
    %1615 = vmatprep.subr.mxu0 %v1505
    %1616 = vmatpush1.msra.mxu0 %v1504
    %1617 = vmatprep.subr.mxu0 %v1509
    %1618 = vmatpush1.msra.mxu0 %v1508
    %1619 = vmatprep.subr.mxu0 %v1513
    %1620 = vmatpush1.msra.mxu0 %v1512
    %1621 = vmatprep.subr.mxu0 %v1517
    %1622 = vmatpush1.msra.mxu0 %v1516
    %1623 = vmatprep.subr.mxu0 %v1521
    %1624 = vmatpush1.msra.mxu0 %v1520
    %1625 = vmatprep.subr.mxu0 0.0
    %1626 = vmatpush1.msra.mxu0 0.0
    %1627 = vmatprep.subr.mxu0 0.0
    %1628 = vmatpush1.msra.mxu0 0.0
    %1629 = vmatprep.subr.mxu0 0.0
    %1630 = vmatpush1.msra.mxu0 0.0
    %1631 = vmatprep.subr.mxu0 0.0
    %1632 = vmatpush1.msra.mxu0 0.0
    %1633 = vmatprep.subr.mxu0 0.0
    %1634 = vmatpush1.msra.mxu0 0.0
    %1635 = vmatprep.subr.mxu0 0.0
    %1636 = vmatpush1.msra.mxu0 0.0
    %1637 = vmatprep.subr.mxu0 0.0
    %1638 = vmatpush1.msra.mxu0 0.0
    %1639 = vmatprep.subr.mxu0 0.0
    %1640 = vmatpush1.msra.mxu0 0.0
    %1641 = vmatprep.subr.mxu0 0.0
    %1642 = vmatpush1.msra.mxu0 0.0
    %1643 = vmatprep.subr.mxu0 0.0
    %1644 = vmatpush1.msra.mxu0 0.0
    %1645 = vmatprep.subr.mxu0 0.0
    %1646 = vmatpush1.msra.mxu0 0.0
    %1647 = vmatprep.subr.mxu0 0.0
    %1648 = vmatpush1.msra.mxu0 0.0
    %1649 = vmatprep.subr.mxu0 0.0
    %1650 = vmatpush1.msra.mxu0 0.0
    %1651 = vmatprep.subr.mxu0 0.0
    %1652 = vmatpush1.msra.mxu0 0.0
    %1653 = vmatprep.subr.mxu0 0.0
    %1654 = vmatpush1.msra.mxu0 0.0
    %1655 = vmatprep.subr.mxu0 0.0
    %1656 = vmatpush1.msra.mxu0 0.0
    %1657 = vmatprep.mubr.f32.mxu0 0.0
    %1658 = vmatmul.mubr.f32.gmra.mrb[0].mxu0 %v730
    %v1659 = vpop.f32.mrb[0].mxu0
    %v1660 = vadd.f32 0.0, %v1659
    %v1661 = vpop.f32.mrb[0].mxu0
    %v1662 = vadd.f32 0.0, %v1661
    %1663 = vdwg.mxu0
    %v1664 = vadd.f32 %v1454, %v1589
    %v1665 = vadd.f32 %v1455, %v1591
    %v1666 = vadd.f32 %v1456, %v1660
    %v1667 = vadd.f32 %v1457, %v1662
    %v1668 = vadd.f32 %v1664, %v157
    %v1669 = vadd.f32 %v1665, %v161
    %v1670 = vadd.f32 %v1666, %v165
    %v1671 = vadd.f32 %v1667, %v169
    %v1672 = vxor.u32 %v1668, 2147483648
    %v1673 = vxor.u32 %v1669, 2147483648
    %v1674 = vxor.u32 %v1670, 2147483648
    %v1675 = vmul.f32 %v1672, 1.442695
    %v1676 = vpow.pop %v1675
    %v1677 = vmul.f32 %v1673, 1.442695
    %v1678 = vpow.pop %v1677
    %v1679 = vmul.f32 %v1674, 1.442695
    %v1680 = vpow.pop %v1679
    %v1681 = vadd.f32 %v1676, 1.0
    %v1682 = vadd.f32 %v1678, 1.0
    %v1683 = vadd.f32 %v1680, 1.0
    %v1684 = vrcp.pop %v1681
    %v1685 = vmul.f32 1.0, %v1684
    %v1686 = vrcp.pop %v1682
    %v1687 = vmul.f32 1.0, %v1686
    %v1688 = vrcp.pop %v1683
    %v1689 = vmul.f32 1.0, %v1688
    %v1690 = vtanh.pop %v1671
    %v1691 = vmul.f32 %v1687, %v728
    %v1692 = vmul.f32 %v1685, %v1690
    %v1693 = vadd.f32 %v1691, %v1692
    %v1694 = vtanh.pop %v1693
    %v1695 = vmul.f32 %v1689, %v1694
    %v1696 = vld [vmem:[#allocation15] sm:$0xff]
    %v1697 = vld [vmem:[#allocation15 + $0x8] sm:$0xff]
    %v1698 = vld [vmem:[#allocation15 + $0x10] sm:$0xff]
    %v1699 = vld [vmem:[#allocation15 + $0x18] sm:$0xff]
    %v1700 = vld [vmem:[#allocation15 + $0x20] sm:$0xff]
    %v1701 = vld [vmem:[#allocation15 + $0x28] sm:$0xff]
    %v1702 = vld [vmem:[#allocation15 + $0x30] sm:$0xff]
    %v1703 = vld [vmem:[#allocation15 + $0x38] sm:$0xff]
    %v1704 = vld [vmem:[#allocation15 + $0x40] sm:$0xff]
    %v1705 = vld [vmem:[#allocation15 + $0x48] sm:$0xff]
    %v1706 = vld [vmem:[#allocation15 + $0x50] sm:$0xff]
    %v1707 = vld [vmem:[#allocation15 + $0x58] sm:$0xff]
    %v1708 = vld [vmem:[#allocation15 + $0x60] sm:$0xff]
    %v1709 = vld [vmem:[#allocation15 + $0x68] sm:$0xff]
    %v1710 = vld [vmem:[#allocation15 + $0x70] sm:$0xff]
    %v1711 = vld [vmem:[#allocation15 + $0x78] sm:$0xff]
    %v1712 = vld [vmem:[#allocation15 + $0x80] sm:$0xff]
    %v1713 = vld [vmem:[#allocation15 + $0x88] sm:$0xff]
    %v1714 = vld [vmem:[#allocation15 + $0x90] sm:$0xff]
    %v1715 = vld [vmem:[#allocation15 + $0x98] sm:$0xff]
    %v1716 = vld [vmem:[#allocation15 + $0xa0] sm:$0xff]
    %v1717 = vld [vmem:[#allocation15 + $0xa8] sm:$0xff]
    %v1718 = vld [vmem:[#allocation15 + $0xb0] sm:$0xff]
    %v1719 = vld [vmem:[#allocation15 + $0xb8] sm:$0xff]
    %v1720 = vld [vmem:[#allocation15 + $0xc0] sm:$0xff]
    %v1721 = vld [vmem:[#allocation15 + $0xc8] sm:$0xff]
    %v1722 = vld [vmem:[#allocation15 + $0xd0] sm:$0xff]
    %v1723 = vld [vmem:[#allocation15 + $0xd8] sm:$0xff]
    %v1724 = vld [vmem:[#allocation15 + $0xe0] sm:$0xff]
    %v1725 = vld [vmem:[#allocation15 + $0xe8] sm:$0xff]
    %v1726 = vld [vmem:[#allocation15 + $0xf0] sm:$0xff]
    %v1727 = vld [vmem:[#allocation15 + $0xf8] sm:$0xff]
    %v1728 = vld [vmem:[#allocation15 + $0x100] sm:$0xff]
    %v1729 = vld [vmem:[#allocation15 + $0x108] sm:$0xff]
    %v1730 = vld [vmem:[#allocation15 + $0x110] sm:$0xff]
    %v1731 = vld [vmem:[#allocation15 + $0x118] sm:$0xff]
    %v1732 = vld [vmem:[#allocation15 + $0x120] sm:$0xff]
    %v1733 = vld [vmem:[#allocation15 + $0x128] sm:$0xff]
    %v1734 = vld [vmem:[#allocation15 + $0x130] sm:$0xff]
    %v1735 = vld [vmem:[#allocation15 + $0x138] sm:$0xff]
    %v1736 = vld [vmem:[#allocation15 + $0x140] sm:$0xff]
    %v1737 = vld [vmem:[#allocation15 + $0x148] sm:$0xff]
    %v1738 = vld [vmem:[#allocation15 + $0x150] sm:$0xff]
    %v1739 = vld [vmem:[#allocation15 + $0x158] sm:$0xff]
    %v1740 = vld [vmem:[#allocation15 + $0x160] sm:$0xff]
    %v1741 = vld [vmem:[#allocation15 + $0x168] sm:$0xff]
    %v1742 = vld [vmem:[#allocation15 + $0x170] sm:$0xff]
    %v1743 = vld [vmem:[#allocation15 + $0x178] sm:$0xff]
    %v1744 = vld [vmem:[#allocation15 + $0x180] sm:$0xff]
    %v1745 = vld [vmem:[#allocation15 + $0x188] sm:$0xff]
    %v1746 = vld [vmem:[#allocation15 + $0x190] sm:$0xff]
    %v1747 = vld [vmem:[#allocation15 + $0x198] sm:$0xff]
    %v1748 = vld [vmem:[#allocation15 + $0x1a0] sm:$0xff]
    %v1749 = vld [vmem:[#allocation15 + $0x1a8] sm:$0xff]
    %v1750 = vld [vmem:[#allocation15 + $0x1b0] sm:$0xff]
    %v1751 = vld [vmem:[#allocation15 + $0x1b8] sm:$0xff]
    %v1752 = vld [vmem:[#allocation15 + $0x1c0] sm:$0xff]
    %v1753 = vld [vmem:[#allocation15 + $0x1c8] sm:$0xff]
    %v1754 = vld [vmem:[#allocation15 + $0x1d0] sm:$0xff]
    %v1755 = vld [vmem:[#allocation15 + $0x1d8] sm:$0xff]
    %v1756 = vld [vmem:[#allocation15 + $0x1e0] sm:$0xff]
    %v1757 = vld [vmem:[#allocation15 + $0x1e8] sm:$0xff]
    %v1758 = vld [vmem:[#allocation15 + $0x1f0] sm:$0xff]
    %v1759 = vld [vmem:[#allocation15 + $0x1f8] sm:$0xff]
    %v1760 = vld [vmem:[#allocation16] sm:$0xff]
    %v1761 = vld [vmem:[#allocation16 + $0x8] sm:$0xff]
    %v1762 = vld [vmem:[#allocation16 + $0x10] sm:$0xff]
    %v1763 = vld [vmem:[#allocation16 + $0x18] sm:$0xff]
    %v1764 = vld [vmem:[#allocation16 + $0x20] sm:$0xff]
    %v1765 = vld [vmem:[#allocation16 + $0x28] sm:$0xff]
    %v1766 = vld [vmem:[#allocation16 + $0x30] sm:$0xff]
    %v1767 = vld [vmem:[#allocation16 + $0x38] sm:$0xff]
    %v1768 = vld [vmem:[#allocation16 + $0x40] sm:$0xff]
    %v1769 = vld [vmem:[#allocation16 + $0x48] sm:$0xff]
    %v1770 = vld [vmem:[#allocation16 + $0x50] sm:$0xff]
    %v1771 = vld [vmem:[#allocation16 + $0x58] sm:$0xff]
    %v1772 = vld [vmem:[#allocation16 + $0x60] sm:$0xff]
    %v1773 = vld [vmem:[#allocation16 + $0x68] sm:$0xff]
    %v1774 = vld [vmem:[#allocation16 + $0x70] sm:$0xff]
    %v1775 = vld [vmem:[#allocation16 + $0x78] sm:$0xff]
    %v1776 = vld [vmem:[#allocation16 + $0x80] sm:$0xff]
    %v1777 = vld [vmem:[#allocation16 + $0x88] sm:$0xff]
    %v1778 = vld [vmem:[#allocation16 + $0x90] sm:$0xff]
    %v1779 = vld [vmem:[#allocation16 + $0x98] sm:$0xff]
    %v1780 = vld [vmem:[#allocation16 + $0xa0] sm:$0xff]
    %v1781 = vld [vmem:[#allocation16 + $0xa8] sm:$0xff]
    %v1782 = vld [vmem:[#allocation16 + $0xb0] sm:$0xff]
    %v1783 = vld [vmem:[#allocation16 + $0xb8] sm:$0xff]
    %v1784 = vld [vmem:[#allocation16 + $0xc0] sm:$0xff]
    %v1785 = vld [vmem:[#allocation16 + $0xc8] sm:$0xff]
    %v1786 = vld [vmem:[#allocation16 + $0xd0] sm:$0xff]
    %v1787 = vld [vmem:[#allocation16 + $0xd8] sm:$0xff]
    %v1788 = vld [vmem:[#allocation16 + $0xe0] sm:$0xff]
    %v1789 = vld [vmem:[#allocation16 + $0xe8] sm:$0xff]
    %v1790 = vld [vmem:[#allocation16 + $0xf0] sm:$0xff]
    %v1791 = vld [vmem:[#allocation16 + $0xf8] sm:$0xff]
    %v1792 = vld [vmem:[#allocation16 + $0x100] sm:$0xff]
    %v1793 = vld [vmem:[#allocation16 + $0x108] sm:$0xff]
    %v1794 = vld [vmem:[#allocation16 + $0x110] sm:$0xff]
    %v1795 = vld [vmem:[#allocation16 + $0x118] sm:$0xff]
    %v1796 = vld [vmem:[#allocation16 + $0x120] sm:$0xff]
    %v1797 = vld [vmem:[#allocation16 + $0x128] sm:$0xff]
    %v1798 = vld [vmem:[#allocation16 + $0x130] sm:$0xff]
    %v1799 = vld [vmem:[#allocation16 + $0x138] sm:$0xff]
    %v1800 = vld [vmem:[#allocation16 + $0x140] sm:$0xff]
    %v1801 = vld [vmem:[#allocation16 + $0x148] sm:$0xff]
    %v1802 = vld [vmem:[#allocation16 + $0x150] sm:$0xff]
    %v1803 = vld [vmem:[#allocation16 + $0x158] sm:$0xff]
    %v1804 = vld [vmem:[#allocation16 + $0x160] sm:$0xff]
    %v1805 = vld [vmem:[#allocation16 + $0x168] sm:$0xff]
    %v1806 = vld [vmem:[#allocation16 + $0x170] sm:$0xff]
    %v1807 = vld [vmem:[#allocation16 + $0x178] sm:$0xff]
    %v1808 = vld [vmem:[#allocation16 + $0x180] sm:$0xff]
    %v1809 = vld [vmem:[#allocation16 + $0x188] sm:$0xff]
    %v1810 = vld [vmem:[#allocation16 + $0x190] sm:$0xff]
    %v1811 = vld [vmem:[#allocation16 + $0x198] sm:$0xff]
    %v1812 = vld [vmem:[#allocation16 + $0x1a0] sm:$0xff]
    %v1813 = vld [vmem:[#allocation16 + $0x1a8] sm:$0xff]
    %v1814 = vld [vmem:[#allocation16 + $0x1b0] sm:$0xff]
    %v1815 = vld [vmem:[#allocation16 + $0x1b8] sm:$0xff]
    %v1816 = vld [vmem:[#allocation16 + $0x1c0] sm:$0xff]
    %v1817 = vld [vmem:[#allocation16 + $0x1c8] sm:$0xff]
    %v1818 = vld [vmem:[#allocation16 + $0x1d0] sm:$0xff]
    %v1819 = vld [vmem:[#allocation16 + $0x1d8] sm:$0xff]
    %v1820 = vld [vmem:[#allocation16 + $0x1e0] sm:$0xff]
    %v1821 = vld [vmem:[#allocation16 + $0x1e8] sm:$0xff]
    %v1822 = vld [vmem:[#allocation16 + $0x1f0] sm:$0xff]
    %v1823 = vld [vmem:[#allocation16 + $0x1f8] sm:$0xff]
    %1824 = vmatprep.subr.mxu0 %v1761
    %1825 = vmatpush1.msra.mxu0 %v1760
    %1826 = vmatprep.subr.mxu0 %v1765
    %1827 = vmatpush1.msra.mxu0 %v1764
    %1828 = vmatprep.subr.mxu0 %v1769
    %1829 = vmatpush1.msra.mxu0 %v1768
    %1830 = vmatprep.subr.mxu0 %v1773
    %1831 = vmatpush1.msra.mxu0 %v1772
    %1832 = vmatprep.subr.mxu0 %v1777
    %1833 = vmatpush1.msra.mxu0 %v1776
    %1834 = vmatprep.subr.mxu0 %v1781
    %1835 = vmatpush1.msra.mxu0 %v1780
    %1836 = vmatprep.subr.mxu0 %v1785
    %1837 = vmatpush1.msra.mxu0 %v1784
    %1838 = vmatprep.subr.mxu0 %v1789
    %1839 = vmatpush1.msra.mxu0 %v1788
    %1840 = vmatprep.subr.mxu0 %v1793
    %1841 = vmatpush1.msra.mxu0 %v1792
    %1842 = vmatprep.subr.mxu0 %v1797
    %1843 = vmatpush1.msra.mxu0 %v1796
    %1844 = vmatprep.subr.mxu0 %v1801
    %1845 = vmatpush1.msra.mxu0 %v1800
    %1846 = vmatprep.subr.mxu0 %v1805
    %1847 = vmatpush1.msra.mxu0 %v1804
    %1848 = vmatprep.subr.mxu0 %v1809
    %1849 = vmatpush1.msra.mxu0 %v1808
    %1850 = vmatprep.subr.mxu0 %v1813
    %1851 = vmatpush1.msra.mxu0 %v1812
    %1852 = vmatprep.subr.mxu0 %v1817
    %1853 = vmatpush1.msra.mxu0 %v1816
    %1854 = vmatprep.subr.mxu0 %v1821
    %1855 = vmatpush1.msra.mxu0 %v1820
    %1856 = vmatprep.subr.mxu0 0.0
    %1857 = vmatpush1.msra.mxu0 0.0
    %1858 = vmatprep.subr.mxu0 0.0
    %1859 = vmatpush1.msra.mxu0 0.0
    %1860 = vmatprep.subr.mxu0 0.0
    %1861 = vmatpush1.msra.mxu0 0.0
    %1862 = vmatprep.subr.mxu0 0.0
    %1863 = vmatpush1.msra.mxu0 0.0
    %1864 = vmatprep.subr.mxu0 0.0
    %1865 = vmatpush1.msra.mxu0 0.0
    %1866 = vmatprep.subr.mxu0 0.0
    %1867 = vmatpush1.msra.mxu0 0.0
    %1868 = vmatprep.subr.mxu0 0.0
    %1869 = vmatpush1.msra.mxu0 0.0
    %1870 = vmatprep.subr.mxu0 0.0
    %1871 = vmatpush1.msra.mxu0 0.0
    %1872 = vmatprep.subr.mxu0 0.0
    %1873 = vmatpush1.msra.mxu0 0.0
    %1874 = vmatprep.subr.mxu0 0.0
    %1875 = vmatpush1.msra.mxu0 0.0
    %1876 = vmatprep.subr.mxu0 0.0
    %1877 = vmatpush1.msra.mxu0 0.0
    %1878 = vmatprep.subr.mxu0 0.0
    %1879 = vmatpush1.msra.mxu0 0.0
    %1880 = vmatprep.subr.mxu0 0.0
    %1881 = vmatpush1.msra.mxu0 0.0
    %1882 = vmatprep.subr.mxu0 0.0
    %1883 = vmatpush1.msra.mxu0 0.0
    %1884 = vmatprep.subr.mxu0 0.0
    %1885 = vmatpush1.msra.mxu0 0.0
    %1886 = vmatprep.subr.mxu0 0.0
    %1887 = vmatpush1.msra.mxu0 0.0
    %1888 = vmatprep.mubr.f32.mxu0 0.0
    %1889 = vmatmul.mubr.f32.gmra.mrb[0].mxu0 %v1170
    %v1890 = vpop.f32.mrb[0].mxu0
    %v1891 = vadd.f32 0.0, %v1890
    %v1892 = vpop.f32.mrb[0].mxu0
    %v1893 = vadd.f32 0.0, %v1892
    %1894 = vdwg.mxu0
    %1895 = vmatprep.subr.mxu0 %v1763
    %1896 = vmatpush1.msra.mxu0 %v1762
    %1897 = vmatprep.subr.mxu0 %v1767
    %1898 = vmatpush1.msra.mxu0 %v1766
    %1899 = vmatprep.subr.mxu0 %v1771
    %1900 = vmatpush1.msra.mxu0 %v1770
    %1901 = vmatprep.subr.mxu0 %v1775
    %1902 = vmatpush1.msra.mxu0 %v1774
    %1903 = vmatprep.subr.mxu0 %v1779
    %1904 = vmatpush1.msra.mxu0 %v1778
    %1905 = vmatprep.subr.mxu0 %v1783
    %1906 = vmatpush1.msra.mxu0 %v1782
    %1907 = vmatprep.subr.mxu0 %v1787
    %1908 = vmatpush1.msra.mxu0 %v1786
    %1909 = vmatprep.subr.mxu0 %v1791
    %1910 = vmatpush1.msra.mxu0 %v1790
    %1911 = vmatprep.subr.mxu0 %v1795
    %1912 = vmatpush1.msra.mxu0 %v1794
    %1913 = vmatprep.subr.mxu0 %v1799
    %1914 = vmatpush1.msra.mxu0 %v1798
    %1915 = vmatprep.subr.mxu0 %v1803
    %1916 = vmatpush1.msra.mxu0 %v1802
    %1917 = vmatprep.subr.mxu0 %v1807
    %1918 = vmatpush1.msra.mxu0 %v1806
    %1919 = vmatprep.subr.mxu0 %v1811
    %1920 = vmatpush1.msra.mxu0 %v1810
    %1921 = vmatprep.subr.mxu0 %v1815
    %1922 = vmatpush1.msra.mxu0 %v1814
    %1923 = vmatprep.subr.mxu0 %v1819
    %1924 = vmatpush1.msra.mxu0 %v1818
    %1925 = vmatprep.subr.mxu0 %v1823
    %1926 = vmatpush1.msra.mxu0 %v1822
    %1927 = vmatprep.subr.mxu0 0.0
    %1928 = vmatpush1.msra.mxu0 0.0
    %1929 = vmatprep.subr.mxu0 0.0
    %1930 = vmatpush1.msra.mxu0 0.0
    %1931 = vmatprep.subr.mxu0 0.0
    %1932 = vmatpush1.msra.mxu0 0.0
    %1933 = vmatprep.subr.mxu0 0.0
    %1934 = vmatpush1.msra.mxu0 0.0
    %1935 = vmatprep.subr.mxu0 0.0
    %1936 = vmatpush1.msra.mxu0 0.0
    %1937 = vmatprep.subr.mxu0 0.0
    %1938 = vmatpush1.msra.mxu0 0.0
    %1939 = vmatprep.subr.mxu0 0.0
    %1940 = vmatpush1.msra.mxu0 0.0
    %1941 = vmatprep.subr.mxu0 0.0
    %1942 = vmatpush1.msra.mxu0 0.0
    %1943 = vmatprep.subr.mxu0 0.0
    %1944 = vmatpush1.msra.mxu0 0.0
    %1945 = vmatprep.subr.mxu0 0.0
    %1946 = vmatpush1.msra.mxu0 0.0
    %1947 = vmatprep.subr.mxu0 0.0
    %1948 = vmatpush1.msra.mxu0 0.0
    %1949 = vmatprep.subr.mxu0 0.0
    %1950 = vmatpush1.msra.mxu0 0.0
    %1951 = vmatprep.subr.mxu0 0.0
    %1952 = vmatpush1.msra.mxu0 0.0
    %1953 = vmatprep.subr.mxu0 0.0
    %1954 = vmatpush1.msra.mxu0 0.0
    %1955 = vmatprep.subr.mxu0 0.0
    %1956 = vmatpush1.msra.mxu0 0.0
    %1957 = vmatprep.subr.mxu0 0.0
    %1958 = vmatpush1.msra.mxu0 0.0
    %1959 = vmatprep.mubr.f32.mxu0 0.0
    %1960 = vmatmul.mubr.f32.gmra.mrb[0].mxu0 %v1170
    %v1961 = vpop.f32.mrb[0].mxu0
    %v1962 = vadd.f32 0.0, %v1961
    %v1963 = vpop.f32.mrb[0].mxu0
    %v1964 = vadd.f32 0.0, %v1963
    %1965 = vdwg.mxu0
    %1966 = vmatprep.subr.mxu0 %v1697
    %1967 = vmatpush1.msra.mxu0 %v1696
    %1968 = vmatprep.subr.mxu0 %v1701
    %1969 = vmatpush1.msra.mxu0 %v1700
    %1970 = vmatprep.subr.mxu0 %v1705
    %1971 = vmatpush1.msra.mxu0 %v1704
    %1972 = vmatprep.subr.mxu0 %v1709
    %1973 = vmatpush1.msra.mxu0 %v1708
    %1974 = vmatprep.subr.mxu0 %v1713
    %1975 = vmatpush1.msra.mxu0 %v1712
    %1976 = vmatprep.subr.mxu0 %v1717
    %1977 = vmatpush1.msra.mxu0 %v1716
    %1978 = vmatprep.subr.mxu0 %v1721
    %1979 = vmatpush1.msra.mxu0 %v1720
    %1980 = vmatprep.subr.mxu0 %v1725
    %1981 = vmatpush1.msra.mxu0 %v1724
    %1982 = vmatprep.subr.mxu0 %v1729
    %1983 = vmatpush1.msra.mxu0 %v1728
    %1984 = vmatprep.subr.mxu0 %v1733
    %1985 = vmatpush1.msra.mxu0 %v1732
    %1986 = vmatprep.subr.mxu0 %v1737
    %1987 = vmatpush1.msra.mxu0 %v1736
    %1988 = vmatprep.subr.mxu0 %v1741
    %1989 = vmatpush1.msra.mxu0 %v1740
    %1990 = vmatprep.subr.mxu0 %v1745
    %1991 = vmatpush1.msra.mxu0 %v1744
    %1992 = vmatprep.subr.mxu0 %v1749
    %1993 = vmatpush1.msra.mxu0 %v1748
    %1994 = vmatprep.subr.mxu0 %v1753
    %1995 = vmatpush1.msra.mxu0 %v1752
    %1996 = vmatprep.subr.mxu0 %v1757
    %1997 = vmatpush1.msra.mxu0 %v1756
    %1998 = vmatprep.subr.mxu0 0.0
    %1999 = vmatpush1.msra.mxu0 0.0
    %2000 = vmatprep.subr.mxu0 0.0
    %2001 = vmatpush1.msra.mxu0 0.0
    %2002 = vmatprep.subr.mxu0 0.0
    %2003 = vmatpush1.msra.mxu0 0.0
    %2004 = vmatprep.subr.mxu0 0.0
    %2005 = vmatpush1.msra.mxu0 0.0
    %2006 = vmatprep.subr.mxu0 0.0
    %2007 = vmatpush1.msra.mxu0 0.0
    %2008 = vmatprep.subr.mxu0 0.0
    %2009 = vmatpush1.msra.mxu0 0.0
    %2010 = vmatprep.subr.mxu0 0.0
    %2011 = vmatpush1.msra.mxu0 0.0
    %2012 = vmatprep.subr.mxu0 0.0
    %2013 = vmatpush1.msra.mxu0 0.0
    %2014 = vmatprep.subr.mxu0 0.0
    %2015 = vmatpush1.msra.mxu0 0.0
    %2016 = vmatprep.subr.mxu0 0.0
    %2017 = vmatpush1.msra.mxu0 0.0
    %2018 = vmatprep.subr.mxu0 0.0
    %2019 = vmatpush1.msra.mxu0 0.0
    %2020 = vmatprep.subr.mxu0 0.0
    %2021 = vmatpush1.msra.mxu0 0.0
    %2022 = vmatprep.subr.mxu0 0.0
    %2023 = vmatpush1.msra.mxu0 0.0
    %2024 = vmatprep.subr.mxu0 0.0
    %2025 = vmatpush1.msra.mxu0 0.0
    %2026 = vmatprep.subr.mxu0 0.0
    %2027 = vmatpush1.msra.mxu0 0.0
    %2028 = vmatprep.subr.mxu0 0.0
    %2029 = vmatpush1.msra.mxu0 0.0
    %2030 = vmatprep.mubr.f32.mxu0 0.0
    %2031 = vmatmul.mubr.f32.gmra.mrb[0].mxu0 %v1695
    %v2032 = vpop.f32.mrb[0].mxu0
    %v2033 = vadd.f32 %v1891, %v2032
    %v2034 = vpop.f32.mrb[0].mxu0
    %v2035 = vadd.f32 %v1893, %v2034
    %2036 = vdwg.mxu0
    %2037 = vmatprep.subr.mxu0 %v1699
    %2038 = vmatpush1.msra.mxu0 %v1698
    %2039 = vmatprep.subr.mxu0 %v1703
    %2040 = vmatpush1.msra.mxu0 %v1702
    %2041 = vmatprep.subr.mxu0 %v1707
    %2042 = vmatpush1.msra.mxu0 %v1706
    %2043 = vmatprep.subr.mxu0 %v1711
    %2044 = vmatpush1.msra.mxu0 %v1710
    %2045 = vmatprep.subr.mxu0 %v1715
    %2046 = vmatpush1.msra.mxu0 %v1714
    %2047 = vmatprep.subr.mxu0 %v1719
    %2048 = vmatpush1.msra.mxu0 %v1718
    %2049 = vmatprep.subr.mxu0 %v1723
    %2050 = vmatpush1.msra.mxu0 %v1722
    %2051 = vmatprep.subr.mxu0 %v1727
    %2052 = vmatpush1.msra.mxu0 %v1726
    %2053 = vmatprep.subr.mxu0 %v1731
    %2054 = vmatpush1.msra.mxu0 %v1730
    %2055 = vmatprep.subr.mxu0 %v1735
    %2056 = vmatpush1.msra.mxu0 %v1734
    %2057 = vmatprep.subr.mxu0 %v1739
    %2058 = vmatpush1.msra.mxu0 %v1738
    %2059 = vmatprep.subr.mxu0 %v1743
    %2060 = vmatpush1.msra.mxu0 %v1742
    %2061 = vmatprep.subr.mxu0 %v1747
    %2062 = vmatpush1.msra.mxu0 %v1746
    %2063 = vmatprep.subr.mxu0 %v1751
    %2064 = vmatpush1.msra.mxu0 %v1750
    %2065 = vmatprep.subr.mxu0 %v1755
    %2066 = vmatpush1.msra.mxu0 %v1754
    %2067 = vmatprep.subr.mxu0 %v1759
    %2068 = vmatpush1.msra.mxu0 %v1758
    %2069 = vmatprep.subr.mxu0 0.0
    %2070 = vmatpush1.msra.mxu0 0.0
    %2071 = vmatprep.subr.mxu0 0.0
    %2072 = vmatpush1.msra.mxu0 0.0
    %2073 = vmatprep.subr.mxu0 0.0
    %2074 = vmatpush1.msra.mxu0 0.0
    %2075 = vmatprep.subr.mxu0 0.0
    %2076 = vmatpush1.msra.mxu0 0.0
    %2077 = vmatprep.subr.mxu0 0.0
    %2078 = vmatpush1.msra.mxu0 0.0
    %2079 = vmatprep.subr.mxu0 0.0
    %2080 = vmatpush1.msra.mxu0 0.0
    %2081 = vmatprep.subr.mxu0 0.0
    %2082 = vmatpush1.msra.mxu0 0.0
    %2083 = vmatprep.subr.mxu0 0.0
    %2084 = vmatpush1.msra.mxu0 0.0
    %2085 = vmatprep.subr.mxu0 0.0
    %2086 = vmatpush1.msra.mxu0 0.0
    %2087 = vmatprep.subr.mxu0 0.0
    %2088 = vmatpush1.msra.mxu0 0.0
    %2089 = vmatprep.subr.mxu0 0.0
    %2090 = vmatpush1.msra.mxu0 0.0
    %2091 = vmatprep.subr.mxu0 0.0
    %2092 = vmatpush1.msra.mxu0 0.0
    %2093 = vmatprep.subr.mxu0 0.0
    %2094 = vmatpush1.msra.mxu0 0.0
    %2095 = vmatprep.subr.mxu0 0.0
    %2096 = vmatpush1.msra.mxu0 0.0
    %2097 = vmatprep.subr.mxu0 0.0
    %2098 = vmatpush1.msra.mxu0 0.0
    %2099 = vmatprep.subr.mxu0 0.0
    %2100 = vmatpush1.msra.mxu0 0.0
    %2101 = vmatprep.mubr.f32.mxu0 0.0
    %2102 = vmatmul.mubr.f32.gmra.mrb[0].mxu0 %v1695
    %v2103 = vpop.f32.mrb[0].mxu0
    %v2104 = vadd.f32 %v1962, %v2103
    %v2105 = vpop.f32.mrb[0].mxu0
    %v2106 = vadd.f32 %v1964, %v2105
    %2107 = vdwg.mxu0
    %v2108 = vadd.f32 %v2033, %v179
    %v2109 = vadd.f32 %v2035, %v183
    %v2110 = vadd.f32 %v2104, %v187
    %v2111 = vadd.f32 %v2106, %v191
    %v2112 = vxor.u32 %v2108, 2147483648
    %v2113 = vxor.u32 %v2109, 2147483648
    %v2114 = vxor.u32 %v2110, 2147483648
    %v2115 = vmul.f32 %v2112, 1.442695
    %v2116 = vpow.pop %v2115
    %v2117 = vmul.f32 %v2113, 1.442695
    %v2118 = vpow.pop %v2117
    %v2119 = vmul.f32 %v2114, 1.442695
    %v2120 = vpow.pop %v2119
    %v2121 = vadd.f32 %v2116, 1.0
    %v2122 = vadd.f32 %v2118, 1.0
    %v2123 = vadd.f32 %v2120, 1.0
    %v2124 = vrcp.pop %v2121
    %v2125 = vmul.f32 1.0, %v2124
    %v2126 = vrcp.pop %v2122
    %v2127 = vmul.f32 1.0, %v2126
    %v2128 = vrcp.pop %v2123
    %v2129 = vmul.f32 1.0, %v2128
    %v2130 = vtanh.pop %v2111
    %v2131 = vmul.f32 %v2127, %v1168
    %v2132 = vmul.f32 %v2125, %v2130
    %v2133 = vadd.f32 %v2131, %v2132
    %v2134 = vtanh.pop %v2133
    %v2135 = vmul.f32 %v2129, %v2134
    %s2136 = scalar_lea.vmem [#allocation4], 8
    %2137 = vst [vmem:[%s2136] sm:$0xff] %v2135
    %s2138 = sadd.s32 %s1172, 2
    %s2139 = smul.u32 %s2138, 8
    %s2140 = sld [smem:[#allocation6 + %s2139]]
    %s2141 = sshra.s32 %s2140, 3
    %s2142 = sand.u32 %s2140, 7
    %s2143 = sshra.s32 %s2140, 3
    %s2144 = sand.u32 %s2140, 7
    %s2145 = smul.u32 %s2141, 4
    %s2146 = smul.u32 %s2145, 8
    %s2147 = sadd.s32 %s2146, %s2144
    %s2148 = scalar_lea.vmem [#allocation12], %s2147
    %v2149 = vld [vmem:[%s2148] ss:$8 sm:$0xf]
    %s2150 = sadd.s32 %s2139, 1
    %s2151 = sld [smem:[#allocation6 + %s2150]]
    %s2152 = sshra.s32 %s2151, 3
    %s2153 = sand.u32 %s2151, 7
    %s2154 = sshra.s32 %s2151, 3
    %s2155 = sand.u32 %s2151, 7
    %s2156 = smul.u32 %s2152, 4
    %s2157 = smul.u32 %s2156, 8
    %s2158 = sadd.s32 %s2157, %s2155
    %s2159 = scalar_lea.vmem [#allocation12], %s2158
    %v2160 = vld [vmem:[%s2159] ss:$8 sm:$0xf]
    %s2161 = sadd.s32 %s2139, 2
    %s2162 = sld [smem:[#allocation6 + %s2161]]
    %s2163 = sshra.s32 %s2162, 3
    %s2164 = sand.u32 %s2162, 7
    %s2165 = sshra.s32 %s2162, 3
    %s2166 = sand.u32 %s2162, 7
    %s2167 = smul.u32 %s2163, 4
    %s2168 = smul.u32 %s2167, 8
    %s2169 = sadd.s32 %s2168, %s2166
    %s2170 = scalar_lea.vmem [#allocation12], %s2169
    %v2171 = vld [vmem:[%s2170] ss:$8 sm:$0xf]
    %s2172 = sadd.s32 %s2139, 3
    %s2173 = sld [smem:[#allocation6 + %s2172]]
    %s2174 = sshra.s32 %s2173, 3
    %s2175 = sand.u32 %s2173, 7
    %s2176 = sshra.s32 %s2173, 3
    %s2177 = sand.u32 %s2173, 7
    %s2178 = smul.u32 %s2174, 4
    %s2179 = smul.u32 %s2178, 8
    %s2180 = sadd.s32 %s2179, %s2177
    %s2181 = scalar_lea.vmem [#allocation12], %s2180
    %v2182 = vld [vmem:[%s2181] ss:$8 sm:$0xf]
    %s2183 = sadd.s32 %s2139, 4
    %s2184 = sld [smem:[#allocation6 + %s2183]]
    %s2185 = sshra.s32 %s2184, 3
    %s2186 = sand.u32 %s2184, 7
    %s2187 = sshra.s32 %s2184, 3
    %s2188 = sand.u32 %s2184, 7
    %s2189 = smul.u32 %s2185, 4
    %s2190 = smul.u32 %s2189, 8
    %s2191 = sadd.s32 %s2190, %s2188
    %s2192 = scalar_lea.vmem [#allocation12], %s2191
    %v2193 = vld [vmem:[%s2192] ss:$8 sm:$0xf]
    %s2194 = sadd.s32 %s2139, 5
    %s2195 = sld [smem:[#allocation6 + %s2194]]
    %s2196 = sshra.s32 %s2195, 3
    %s2197 = sand.u32 %s2195, 7
    %s2198 = sshra.s32 %s2195, 3
    %s2199 = sand.u32 %s2195, 7
    %s2200 = smul.u32 %s2196, 4
    %s2201 = smul.u32 %s2200, 8
    %s2202 = sadd.s32 %s2201, %s2199
    %s2203 = scalar_lea.vmem [#allocation12], %s2202
    %v2204 = vld [vmem:[%s2203] ss:$8 sm:$0xf]
    %s2205 = sadd.s32 %s2139, 6
    %s2206 = sld [smem:[#allocation6 + %s2205]]
    %s2207 = sshra.s32 %s2206, 3
    %s2208 = sand.u32 %s2206, 7
    %s2209 = sshra.s32 %s2206, 3
    %s2210 = sand.u32 %s2206, 7
    %s2211 = smul.u32 %s2207, 4
    %s2212 = smul.u32 %s2211, 8
    %s2213 = sadd.s32 %s2212, %s2210
    %s2214 = scalar_lea.vmem [#allocation12], %s2213
    %v2215 = vld [vmem:[%s2214] ss:$8 sm:$0xf]
    %s2216 = sadd.s32 %s2139, 7
    %s2217 = sld [smem:[#allocation6 + %s2216]]
    %s2218 = sshra.s32 %s2217, 3
    %s2219 = sand.u32 %s2217, 7
    %s2220 = sshra.s32 %s2217, 3
    %s2221 = sand.u32 %s2217, 7
    %s2222 = smul.u32 %s2218, 4
    %s2223 = smul.u32 %s2222, 8
    %s2224 = sadd.s32 %s2223, %s2221
    %s2225 = scalar_lea.vmem [#allocation12], %s2224
    %v2226 = vld [vmem:[%s2225] ss:$8 sm:$0xf]
    %v2228 = vlaneseq
    %v2229 = vshrl.u32 %v2228, 7
    %v2230 = vsub.s32 0, %v2229
    %v2231 = vrot.slane %v2149, %v2230
    %v2232 = vlaneseq
    %v2233 = vshrl.u32 %v2232, 7
    %v2234 = vsub.s32 1, %v2233
    %v2235 = vrot.slane %v2149, %v2234
    %v2236 = vlaneseq
    %v2237 = vshrl.u32 %v2236, 7
    %v2238 = vsub.s32 2, %v2237
    %v2239 = vrot.slane %v2149, %v2238
    %v2240 = vlaneseq
    %v2241 = vshrl.u32 %v2240, 7
    %v2242 = vsub.s32 3, %v2241
    %v2243 = vrot.slane %v2149, %v2242
    %v2249 = vlaneseq
    %v2250 = vshrl.u32 %v2249, 7
    %v2251 = vsub.s32 0, %v2250
    %v2252 = vrot.slane %v2160, %v2251
    %v2253 = vlaneseq
    %v2254 = vshrl.u32 %v2253, 7
    %v2255 = vsub.s32 1, %v2254
    %v2256 = vrot.slane %v2160, %v2255
    %v2257 = vlaneseq
    %v2258 = vshrl.u32 %v2257, 7
    %v2259 = vsub.s32 2, %v2258
    %v2260 = vrot.slane %v2160, %v2259
    %v2261 = vlaneseq
    %v2262 = vshrl.u32 %v2261, 7
    %v2263 = vsub.s32 3, %v2262
    %v2264 = vrot.slane %v2160, %v2263
    %v2270 = vlaneseq
    %v2271 = vshrl.u32 %v2270, 7
    %v2272 = vsub.s32 0, %v2271
    %v2273 = vrot.slane %v2171, %v2272
    %v2274 = vlaneseq
    %v2275 = vshrl.u32 %v2274, 7
    %v2276 = vsub.s32 1, %v2275
    %v2277 = vrot.slane %v2171, %v2276
    %v2278 = vlaneseq
    %v2279 = vshrl.u32 %v2278, 7
    %v2280 = vsub.s32 2, %v2279
    %v2281 = vrot.slane %v2171, %v2280
    %v2282 = vlaneseq
    %v2283 = vshrl.u32 %v2282, 7
    %v2284 = vsub.s32 3, %v2283
    %v2285 = vrot.slane %v2171, %v2284
    %v2291 = vlaneseq
    %v2292 = vshrl.u32 %v2291, 7
    %v2293 = vsub.s32 0, %v2292
    %v2294 = vrot.slane %v2182, %v2293
    %v2295 = vlaneseq
    %v2296 = vshrl.u32 %v2295, 7
    %v2297 = vsub.s32 1, %v2296
    %v2298 = vrot.slane %v2182, %v2297
    %v2299 = vlaneseq
    %v2300 = vshrl.u32 %v2299, 7
    %v2301 = vsub.s32 2, %v2300
    %v2302 = vrot.slane %v2182, %v2301
    %v2303 = vlaneseq
    %v2304 = vshrl.u32 %v2303, 7
    %v2305 = vsub.s32 3, %v2304
    %v2306 = vrot.slane %v2182, %v2305
    %v2312 = vlaneseq
    %v2313 = vshrl.u32 %v2312, 7
    %v2314 = vsub.s32 0, %v2313
    %v2315 = vrot.slane %v2193, %v2314
    %v2316 = vlaneseq
    %v2317 = vshrl.u32 %v2316, 7
    %v2318 = vsub.s32 1, %v2317
    %v2319 = vrot.slane %v2193, %v2318
    %v2320 = vlaneseq
    %v2321 = vshrl.u32 %v2320, 7
    %v2322 = vsub.s32 2, %v2321
    %v2323 = vrot.slane %v2193, %v2322
    %v2324 = vlaneseq
    %v2325 = vshrl.u32 %v2324, 7
    %v2326 = vsub.s32 3, %v2325
    %v2327 = vrot.slane %v2193, %v2326
    %v2333 = vlaneseq
    %v2334 = vshrl.u32 %v2333, 7
    %v2335 = vsub.s32 0, %v2334
    %v2336 = vrot.slane %v2204, %v2335
    %v2337 = vlaneseq
    %v2338 = vshrl.u32 %v2337, 7
    %v2339 = vsub.s32 1, %v2338
    %v2340 = vrot.slane %v2204, %v2339
    %v2341 = vlaneseq
    %v2342 = vshrl.u32 %v2341, 7
    %v2343 = vsub.s32 2, %v2342
    %v2344 = vrot.slane %v2204, %v2343
    %v2345 = vlaneseq
    %v2346 = vshrl.u32 %v2345, 7
    %v2347 = vsub.s32 3, %v2346
    %v2348 = vrot.slane %v2204, %v2347
    %v2354 = vlaneseq
    %v2355 = vshrl.u32 %v2354, 7
    %v2356 = vsub.s32 0, %v2355
    %v2357 = vrot.slane %v2215, %v2356
    %v2358 = vlaneseq
    %v2359 = vshrl.u32 %v2358, 7
    %v2360 = vsub.s32 1, %v2359
    %v2361 = vrot.slane %v2215, %v2360
    %v2362 = vlaneseq
    %v2363 = vshrl.u32 %v2362, 7
    %v2364 = vsub.s32 2, %v2363
    %v2365 = vrot.slane %v2215, %v2364
    %v2366 = vlaneseq
    %v2367 = vshrl.u32 %v2366, 7
    %v2368 = vsub.s32 3, %v2367
    %v2369 = vrot.slane %v2215, %v2368
    %v2375 = vlaneseq
    %v2376 = vshrl.u32 %v2375, 7
    %v2377 = vsub.s32 0, %v2376
    %v2378 = vrot.slane %v2226, %v2377
    %v2379 = vlaneseq
    %v2380 = vshrl.u32 %v2379, 7
    %v2381 = vsub.s32 1, %v2380
    %v2382 = vrot.slane %v2226, %v2381
    %v2383 = vlaneseq
    %v2384 = vshrl.u32 %v2383, 7
    %v2385 = vsub.s32 2, %v2384
    %v2386 = vrot.slane %v2226, %v2385
    %v2387 = vlaneseq
    %v2388 = vshrl.u32 %v2387, 7
    %v2389 = vsub.s32 3, %v2388
    %v2390 = vrot.slane %v2226, %v2389
    %v2395 = vsel %vm458, %v2231, %v2252
    %v2396 = vsel %vm458, %v2235, %v2256
    %v2397 = vsel %vm458, %v2239, %v2260
    %v2398 = vsel %vm458, %v2243, %v2264
    %v2399 = vsel %vm463, %v2395, %v2273
    %v2400 = vsel %vm463, %v2396, %v2277
    %v2401 = vsel %vm463, %v2397, %v2281
    %v2402 = vsel %vm463, %v2398, %v2285
    %v2403 = vsel %vm468, %v2399, %v2294
    %v2404 = vsel %vm468, %v2400, %v2298
    %v2405 = vsel %vm468, %v2401, %v2302
    %v2406 = vsel %vm468, %v2402, %v2306
    %v2407 = vsel %vm473, %v2403, %v2315
    %v2408 = vsel %vm473, %v2404, %v2319
    %v2409 = vsel %vm473, %v2405, %v2323
    %v2410 = vsel %vm473, %v2406, %v2327
    %v2411 = vsel %vm478, %v2407, %v2336
    %v2412 = vsel %vm478, %v2408, %v2340
    %v2413 = vsel %vm478, %v2409, %v2344
    %v2414 = vsel %vm478, %v2410, %v2348
    %v2415 = vsel %vm483, %v2411, %v2357
    %v2416 = vsel %vm483, %v2412, %v2361
    %v2417 = vsel %vm483, %v2413, %v2365
    %v2418 = vsel %vm483, %v2414, %v2369
    %v2419 = vsel %vm488, %v2415, %v2378
    %v2420 = vsel %vm488, %v2416, %v2382
    %v2421 = vsel %vm488, %v2417, %v2386
    %v2422 = vsel %vm488, %v2418, %v2390
    %v2423 = vld [vmem:[#allocation13] sm:$0xff]
    %v2424 = vld [vmem:[#allocation13 + $0x8] sm:$0xff]
    %v2425 = vld [vmem:[#allocation13 + $0x10] sm:$0xff]
    %v2426 = vld [vmem:[#allocation13 + $0x18] sm:$0xff]
    %v2427 = vld [vmem:[#allocation13 + $0x20] sm:$0xff]
    %v2428 = vld [vmem:[#allocation13 + $0x28] sm:$0xff]
    %v2429 = vld [vmem:[#allocation13 + $0x30] sm:$0xff]
    %v2430 = vld [vmem:[#allocation13 + $0x38] sm:$0xff]
    %v2431 = vld [vmem:[#allocation13 + $0x40] sm:$0xff]
    %v2432 = vld [vmem:[#allocation13 + $0x48] sm:$0xff]
    %v2433 = vld [vmem:[#allocation13 + $0x50] sm:$0xff]
    %v2434 = vld [vmem:[#allocation13 + $0x58] sm:$0xff]
    %v2435 = vld [vmem:[#allocation13 + $0x60] sm:$0xff]
    %v2436 = vld [vmem:[#allocation13 + $0x68] sm:$0xff]
    %v2437 = vld [vmem:[#allocation13 + $0x70] sm:$0xff]
    %v2438 = vld [vmem:[#allocation13 + $0x78] sm:$0xff]
    %v2439 = vld [vmem:[#allocation13 + $0x80] sm:$0xff]
    %v2440 = vld [vmem:[#allocation13 + $0x88] sm:$0xff]
    %v2441 = vld [vmem:[#allocation13 + $0x90] sm:$0xff]
    %v2442 = vld [vmem:[#allocation13 + $0x98] sm:$0xff]
    %v2443 = vld [vmem:[#allocation13 + $0xa0] sm:$0xff]
    %v2444 = vld [vmem:[#allocation13 + $0xa8] sm:$0xff]
    %v2445 = vld [vmem:[#allocation13 + $0xb0] sm:$0xff]
    %v2446 = vld [vmem:[#allocation13 + $0xb8] sm:$0xff]
    %v2447 = vld [vmem:[#allocation13 + $0xc0] sm:$0xff]
    %v2448 = vld [vmem:[#allocation13 + $0xc8] sm:$0xff]
    %v2449 = vld [vmem:[#allocation13 + $0xd0] sm:$0xff]
    %v2450 = vld [vmem:[#allocation13 + $0xd8] sm:$0xff]
    %v2451 = vld [vmem:[#allocation13 + $0xe0] sm:$0xff]
    %v2452 = vld [vmem:[#allocation13 + $0xe8] sm:$0xff]
    %v2453 = vld [vmem:[#allocation13 + $0xf0] sm:$0xff]
    %v2454 = vld [vmem:[#allocation13 + $0xf8] sm:$0xff]
    %v2455 = vld [vmem:[#allocation13 + $0x100] sm:$0xff]
    %v2456 = vld [vmem:[#allocation13 + $0x108] sm:$0xff]
    %v2457 = vld [vmem:[#allocation13 + $0x110] sm:$0xff]
    %v2458 = vld [vmem:[#allocation13 + $0x118] sm:$0xff]
    %v2459 = vld [vmem:[#allocation13 + $0x120] sm:$0xff]
    %v2460 = vld [vmem:[#allocation13 + $0x128] sm:$0xff]
    %v2461 = vld [vmem:[#allocation13 + $0x130] sm:$0xff]
    %v2462 = vld [vmem:[#allocation13 + $0x138] sm:$0xff]
    %v2463 = vld [vmem:[#allocation13 + $0x140] sm:$0xff]
    %v2464 = vld [vmem:[#allocation13 + $0x148] sm:$0xff]
    %v2465 = vld [vmem:[#allocation13 + $0x150] sm:$0xff]
    %v2466 = vld [vmem:[#allocation13 + $0x158] sm:$0xff]
    %v2467 = vld [vmem:[#allocation13 + $0x160] sm:$0xff]
    %v2468 = vld [vmem:[#allocation13 + $0x168] sm:$0xff]
    %v2469 = vld [vmem:[#allocation13 + $0x170] sm:$0xff]
    %v2470 = vld [vmem:[#allocation13 + $0x178] sm:$0xff]
    %v2471 = vld [vmem:[#allocation13 + $0x180] sm:$0xff]
    %v2472 = vld [vmem:[#allocation13 + $0x188] sm:$0xff]
    %v2473 = vld [vmem:[#allocation13 + $0x190] sm:$0xff]
    %v2474 = vld [vmem:[#allocation13 + $0x198] sm:$0xff]
    %v2475 = vld [vmem:[#allocation13 + $0x1a0] sm:$0xff]
    %v2476 = vld [vmem:[#allocation13 + $0x1a8] sm:$0xff]
    %v2477 = vld [vmem:[#allocation13 + $0x1b0] sm:$0xff]
    %v2478 = vld [vmem:[#allocation13 + $0x1b8] sm:$0xff]
    %v2479 = vld [vmem:[#allocation13 + $0x1c0] sm:$0xff]
    %v2480 = vld [vmem:[#allocation13 + $0x1c8] sm:$0xff]
    %v2481 = vld [vmem:[#allocation13 + $0x1d0] sm:$0xff]
    %v2482 = vld [vmem:[#allocation13 + $0x1d8] sm:$0xff]
    %v2483 = vld [vmem:[#allocation13 + $0x1e0] sm:$0xff]
    %v2484 = vld [vmem:[#allocation13 + $0x1e8] sm:$0xff]
    %v2485 = vld [vmem:[#allocation13 + $0x1f0] sm:$0xff]
    %v2486 = vld [vmem:[#allocation13 + $0x1f8] sm:$0xff]
    %2487 = vmatprep.subr.mxu0 %v2424
    %2488 = vmatpush1.msra.mxu0 %v2423
    %2489 = vmatprep.subr.mxu0 %v2428
    %2490 = vmatpush1.msra.mxu0 %v2427
    %2491 = vmatprep.subr.mxu0 %v2432
    %2492 = vmatpush1.msra.mxu0 %v2431
    %2493 = vmatprep.subr.mxu0 %v2436
    %2494 = vmatpush1.msra.mxu0 %v2435
    %2495 = vmatprep.subr.mxu0 %v2440
    %2496 = vmatpush1.msra.mxu0 %v2439
    %2497 = vmatprep.subr.mxu0 %v2444
    %2498 = vmatpush1.msra.mxu0 %v2443
    %2499 = vmatprep.subr.mxu0 %v2448
    %2500 = vmatpush1.msra.mxu0 %v2447
    %2501 = vmatprep.subr.mxu0 %v2452
    %2502 = vmatpush1.msra.mxu0 %v2451
    %2503 = vmatprep.subr.mxu0 %v2456
    %2504 = vmatpush1.msra.mxu0 %v2455
    %2505 = vmatprep.subr.mxu0 %v2460
    %2506 = vmatpush1.msra.mxu0 %v2459
    %2507 = vmatprep.subr.mxu0 %v2464
    %2508 = vmatpush1.msra.mxu0 %v2463
    %2509 = vmatprep.subr.mxu0 %v2468
    %2510 = vmatpush1.msra.mxu0 %v2467
    %2511 = vmatprep.subr.mxu0 %v2472
    %2512 = vmatpush1.msra.mxu0 %v2471
    %2513 = vmatprep.subr.mxu0 %v2476
    %2514 = vmatpush1.msra.mxu0 %v2475
    %2515 = vmatprep.subr.mxu0 %v2480
    %2516 = vmatpush1.msra.mxu0 %v2479
    %2517 = vmatprep.subr.mxu0 %v2484
    %2518 = vmatpush1.msra.mxu0 %v2483
    %2519 = vmatprep.subr.mxu0 0.0
    %2520 = vmatpush1.msra.mxu0 0.0
    %2521 = vmatprep.subr.mxu0 0.0
    %2522 = vmatpush1.msra.mxu0 0.0
    %2523 = vmatprep.subr.mxu0 0.0
    %2524 = vmatpush1.msra.mxu0 0.0
    %2525 = vmatprep.subr.mxu0 0.0
    %2526 = vmatpush1.msra.mxu0 0.0
    %2527 = vmatprep.subr.mxu0 0.0
    %2528 = vmatpush1.msra.mxu0 0.0
    %2529 = vmatprep.subr.mxu0 0.0
    %2530 = vmatpush1.msra.mxu0 0.0
    %2531 = vmatprep.subr.mxu0 0.0
    %2532 = vmatpush1.msra.mxu0 0.0
    %2533 = vmatprep.subr.mxu0 0.0
    %2534 = vmatpush1.msra.mxu0 0.0
    %2535 = vmatprep.subr.mxu0 0.0
    %2536 = vmatpush1.msra.mxu0 0.0
    %2537 = vmatprep.subr.mxu0 0.0
    %2538 = vmatpush1.msra.mxu0 0.0
    %2539 = vmatprep.subr.mxu0 0.0
    %2540 = vmatpush1.msra.mxu0 0.0
    %2541 = vmatprep.subr.mxu0 0.0
    %2542 = vmatpush1.msra.mxu0 0.0
    %2543 = vmatprep.subr.mxu0 0.0
    %2544 = vmatpush1.msra.mxu0 0.0
    %2545 = vmatprep.subr.mxu0 0.0
    %2546 = vmatpush1.msra.mxu0 0.0
    %2547 = vmatprep.subr.mxu0 0.0
    %2548 = vmatpush1.msra.mxu0 0.0
    %2549 = vmatprep.subr.mxu0 0.0
    %2550 = vmatpush1.msra.mxu0 0.0
    %2551 = vmatprep.mubr.f32.mxu0 0.0
    %2552 = vmatmul.mubr.f32.gmra.mrb[0].mxu0 %v1695
    %v2553 = vpop.f32.mrb[0].mxu0
    %v2554 = vadd.f32 0.0, %v2553
    %v2555 = vpop.f32.mrb[0].mxu0
    %v2556 = vadd.f32 0.0, %v2555
    %2557 = vdwg.mxu0
    %2558 = vmatprep.subr.mxu0 %v2426
    %2559 = vmatpush1.msra.mxu0 %v2425
    %2560 = vmatprep.subr.mxu0 %v2430
    %2561 = vmatpush1.msra.mxu0 %v2429
    %2562 = vmatprep.subr.mxu0 %v2434
    %2563 = vmatpush1.msra.mxu0 %v2433
    %2564 = vmatprep.subr.mxu0 %v2438
    %2565 = vmatpush1.msra.mxu0 %v2437
    %2566 = vmatprep.subr.mxu0 %v2442
    %2567 = vmatpush1.msra.mxu0 %v2441
    %2568 = vmatprep.subr.mxu0 %v2446
    %2569 = vmatpush1.msra.mxu0 %v2445
    %2570 = vmatprep.subr.mxu0 %v2450
    %2571 = vmatpush1.msra.mxu0 %v2449
    %2572 = vmatprep.subr.mxu0 %v2454
    %2573 = vmatpush1.msra.mxu0 %v2453
    %2574 = vmatprep.subr.mxu0 %v2458
    %2575 = vmatpush1.msra.mxu0 %v2457
    %2576 = vmatprep.subr.mxu0 %v2462
    %2577 = vmatpush1.msra.mxu0 %v2461
    %2578 = vmatprep.subr.mxu0 %v2466
    %2579 = vmatpush1.msra.mxu0 %v2465
    %2580 = vmatprep.subr.mxu0 %v2470
    %2581 = vmatpush1.msra.mxu0 %v2469
    %2582 = vmatprep.subr.mxu0 %v2474
    %2583 = vmatpush1.msra.mxu0 %v2473
    %2584 = vmatprep.subr.mxu0 %v2478
    %2585 = vmatpush1.msra.mxu0 %v2477
    %2586 = vmatprep.subr.mxu0 %v2482
    %2587 = vmatpush1.msra.mxu0 %v2481
    %2588 = vmatprep.subr.mxu0 %v2486
    %2589 = vmatpush1.msra.mxu0 %v2485
    %2590 = vmatprep.subr.mxu0 0.0
    %2591 = vmatpush1.msra.mxu0 0.0
    %2592 = vmatprep.subr.mxu0 0.0
    %2593 = vmatpush1.msra.mxu0 0.0
    %2594 = vmatprep.subr.mxu0 0.0
    %2595 = vmatpush1.msra.mxu0 0.0
    %2596 = vmatprep.subr.mxu0 0.0
    %2597 = vmatpush1.msra.mxu0 0.0
    %2598 = vmatprep.subr.mxu0 0.0
    %2599 = vmatpush1.msra.mxu0 0.0
    %2600 = vmatprep.subr.mxu0 0.0
    %2601 = vmatpush1.msra.mxu0 0.0
    %2602 = vmatprep.subr.mxu0 0.0
    %2603 = vmatpush1.msra.mxu0 0.0
    %2604 = vmatprep.subr.mxu0 0.0
    %2605 = vmatpush1.msra.mxu0 0.0
    %2606 = vmatprep.subr.mxu0 0.0
    %2607 = vmatpush1.msra.mxu0 0.0
    %2608 = vmatprep.subr.mxu0 0.0
    %2609 = vmatpush1.msra.mxu0 0.0
    %2610 = vmatprep.subr.mxu0 0.0
    %2611 = vmatpush1.msra.mxu0 0.0
    %2612 = vmatprep.subr.mxu0 0.0
    %2613 = vmatpush1.msra.mxu0 0.0
    %2614 = vmatprep.subr.mxu0 0.0
    %2615 = vmatpush1.msra.mxu0 0.0
    %2616 = vmatprep.subr.mxu0 0.0
    %2617 = vmatpush1.msra.mxu0 0.0
    %2618 = vmatprep.subr.mxu0 0.0
    %2619 = vmatpush1.msra.mxu0 0.0
    %2620 = vmatprep.subr.mxu0 0.0
    %2621 = vmatpush1.msra.mxu0 0.0
    %2622 = vmatprep.mubr.f32.mxu0 0.0
    %2623 = vmatmul.mubr.f32.gmra.mrb[0].mxu0 %v1695
    %v2624 = vpop.f32.mrb[0].mxu0
    %v2625 = vadd.f32 0.0, %v2624
    %v2626 = vpop.f32.mrb[0].mxu0
    %v2627 = vadd.f32 0.0, %v2626
    %2628 = vdwg.mxu0
    %v2629 = vadd.f32 %v2419, %v2554
    %v2630 = vadd.f32 %v2420, %v2556
    %v2631 = vadd.f32 %v2421, %v2625
    %v2632 = vadd.f32 %v2422, %v2627
    %v2633 = vadd.f32 %v2629, %v157
    %v2634 = vadd.f32 %v2630, %v161
    %v2635 = vadd.f32 %v2631, %v165
    %v2636 = vadd.f32 %v2632, %v169
    %v2637 = vxor.u32 %v2633, 2147483648
    %v2638 = vxor.u32 %v2634, 2147483648
    %v2639 = vxor.u32 %v2635, 2147483648
    %v2640 = vmul.f32 %v2637, 1.442695
    %v2641 = vpow.pop %v2640
    %v2642 = vmul.f32 %v2638, 1.442695
    %v2643 = vpow.pop %v2642
    %v2644 = vmul.f32 %v2639, 1.442695
    %v2645 = vpow.pop %v2644
    %v2646 = vadd.f32 %v2641, 1.0
    %v2647 = vadd.f32 %v2643, 1.0
    %v2648 = vadd.f32 %v2645, 1.0
    %v2649 = vrcp.pop %v2646
    %v2650 = vmul.f32 1.0, %v2649
    %v2651 = vrcp.pop %v2647
    %v2652 = vmul.f32 1.0, %v2651
    %v2653 = vrcp.pop %v2648
    %v2654 = vmul.f32 1.0, %v2653
    %v2655 = vtanh.pop %v2636
    %v2656 = vmul.f32 %v2652, %v1693
    %v2657 = vmul.f32 %v2650, %v2655
    %v2658 = vadd.f32 %v2656, %v2657
    %v2659 = vtanh.pop %v2658
    %v2660 = vmul.f32 %v2654, %v2659
    %v2661 = vld [vmem:[#allocation15] sm:$0xff]
    %v2662 = vld [vmem:[#allocation15 + $0x8] sm:$0xff]
    %v2663 = vld [vmem:[#allocation15 + $0x10] sm:$0xff]
    %v2664 = vld [vmem:[#allocation15 + $0x18] sm:$0xff]
    %v2665 = vld [vmem:[#allocation15 + $0x20] sm:$0xff]
    %v2666 = vld [vmem:[#allocation15 + $0x28] sm:$0xff]
    %v2667 = vld [vmem:[#allocation15 + $0x30] sm:$0xff]
    %v2668 = vld [vmem:[#allocation15 + $0x38] sm:$0xff]
    %v2669 = vld [vmem:[#allocation15 + $0x40] sm:$0xff]
    %v2670 = vld [vmem:[#allocation15 + $0x48] sm:$0xff]
    %v2671 = vld [vmem:[#allocation15 + $0x50] sm:$0xff]
    %v2672 = vld [vmem:[#allocation15 + $0x58] sm:$0xff]
    %v2673 = vld [vmem:[#allocation15 + $0x60] sm:$0xff]
    %v2674 = vld [vmem:[#allocation15 + $0x68] sm:$0xff]
    %v2675 = vld [vmem:[#allocation15 + $0x70] sm:$0xff]
    %v2676 = vld [vmem:[#allocation15 + $0x78] sm:$0xff]
    %v2677 = vld [vmem:[#allocation15 + $0x80] sm:$0xff]
    %v2678 = vld [vmem:[#allocation15 + $0x88] sm:$0xff]
    %v2679 = vld [vmem:[#allocation15 + $0x90] sm:$0xff]
    %v2680 = vld [vmem:[#allocation15 + $0x98] sm:$0xff]
    %v2681 = vld [vmem:[#allocation15 + $0xa0] sm:$0xff]
    %v2682 = vld [vmem:[#allocation15 + $0xa8] sm:$0xff]
    %v2683 = vld [vmem:[#allocation15 + $0xb0] sm:$0xff]
    %v2684 = vld [vmem:[#allocation15 + $0xb8] sm:$0xff]
    %v2685 = vld [vmem:[#allocation15 + $0xc0] sm:$0xff]
    %v2686 = vld [vmem:[#allocation15 + $0xc8] sm:$0xff]
    %v2687 = vld [vmem:[#allocation15 + $0xd0] sm:$0xff]
    %v2688 = vld [vmem:[#allocation15 + $0xd8] sm:$0xff]
    %v2689 = vld [vmem:[#allocation15 + $0xe0] sm:$0xff]
    %v2690 = vld [vmem:[#allocation15 + $0xe8] sm:$0xff]
    %v2691 = vld [vmem:[#allocation15 + $0xf0] sm:$0xff]
    %v2692 = vld [vmem:[#allocation15 + $0xf8] sm:$0xff]
    %v2693 = vld [vmem:[#allocation15 + $0x100] sm:$0xff]
    %v2694 = vld [vmem:[#allocation15 + $0x108] sm:$0xff]
    %v2695 = vld [vmem:[#allocation15 + $0x110] sm:$0xff]
    %v2696 = vld [vmem:[#allocation15 + $0x118] sm:$0xff]
    %v2697 = vld [vmem:[#allocation15 + $0x120] sm:$0xff]
    %v2698 = vld [vmem:[#allocation15 + $0x128] sm:$0xff]
    %v2699 = vld [vmem:[#allocation15 + $0x130] sm:$0xff]
    %v2700 = vld [vmem:[#allocation15 + $0x138] sm:$0xff]
    %v2701 = vld [vmem:[#allocation15 + $0x140] sm:$0xff]
    %v2702 = vld [vmem:[#allocation15 + $0x148] sm:$0xff]
    %v2703 = vld [vmem:[#allocation15 + $0x150] sm:$0xff]
    %v2704 = vld [vmem:[#allocation15 + $0x158] sm:$0xff]
    %v2705 = vld [vmem:[#allocation15 + $0x160] sm:$0xff]
    %v2706 = vld [vmem:[#allocation15 + $0x168] sm:$0xff]
    %v2707 = vld [vmem:[#allocation15 + $0x170] sm:$0xff]
    %v2708 = vld [vmem:[#allocation15 + $0x178] sm:$0xff]
    %v2709 = vld [vmem:[#allocation15 + $0x180] sm:$0xff]
    %v2710 = vld [vmem:[#allocation15 + $0x188] sm:$0xff]
    %v2711 = vld [vmem:[#allocation15 + $0x190] sm:$0xff]
    %v2712 = vld [vmem:[#allocation15 + $0x198] sm:$0xff]
    %v2713 = vld [vmem:[#allocation15 + $0x1a0] sm:$0xff]
    %v2714 = vld [vmem:[#allocation15 + $0x1a8] sm:$0xff]
    %v2715 = vld [vmem:[#allocation15 + $0x1b0] sm:$0xff]
    %v2716 = vld [vmem:[#allocation15 + $0x1b8] sm:$0xff]
    %v2717 = vld [vmem:[#allocation15 + $0x1c0] sm:$0xff]
    %v2718 = vld [vmem:[#allocation15 + $0x1c8] sm:$0xff]
    %v2719 = vld [vmem:[#allocation15 + $0x1d0] sm:$0xff]
    %v2720 = vld [vmem:[#allocation15 + $0x1d8] sm:$0xff]
    %v2721 = vld [vmem:[#allocation15 + $0x1e0] sm:$0xff]
    %v2722 = vld [vmem:[#allocation15 + $0x1e8] sm:$0xff]
    %v2723 = vld [vmem:[#allocation15 + $0x1f0] sm:$0xff]
    %v2724 = vld [vmem:[#allocation15 + $0x1f8] sm:$0xff]
    %v2725 = vld [vmem:[#allocation16] sm:$0xff]
    %v2726 = vld [vmem:[#allocation16 + $0x8] sm:$0xff]
    %v2727 = vld [vmem:[#allocation16 + $0x10] sm:$0xff]
    %v2728 = vld [vmem:[#allocation16 + $0x18] sm:$0xff]
    %v2729 = vld [vmem:[#allocation16 + $0x20] sm:$0xff]
    %v2730 = vld [vmem:[#allocation16 + $0x28] sm:$0xff]
    %v2731 = vld [vmem:[#allocation16 + $0x30] sm:$0xff]
    %v2732 = vld [vmem:[#allocation16 + $0x38] sm:$0xff]
    %v2733 = vld [vmem:[#allocation16 + $0x40] sm:$0xff]
    %v2734 = vld [vmem:[#allocation16 + $0x48] sm:$0xff]
    %v2735 = vld [vmem:[#allocation16 + $0x50] sm:$0xff]
    %v2736 = vld [vmem:[#allocation16 + $0x58] sm:$0xff]
    %v2737 = vld [vmem:[#allocation16 + $0x60] sm:$0xff]
    %v2738 = vld [vmem:[#allocation16 + $0x68] sm:$0xff]
    %v2739 = vld [vmem:[#allocation16 + $0x70] sm:$0xff]
    %v2740 = vld [vmem:[#allocation16 + $0x78] sm:$0xff]
    %v2741 = vld [vmem:[#allocation16 + $0x80] sm:$0xff]
    %v2742 = vld [vmem:[#allocation16 + $0x88] sm:$0xff]
    %v2743 = vld [vmem:[#allocation16 + $0x90] sm:$0xff]
    %v2744 = vld [vmem:[#allocation16 + $0x98] sm:$0xff]
    %v2745 = vld [vmem:[#allocation16 + $0xa0] sm:$0xff]
    %v2746 = vld [vmem:[#allocation16 + $0xa8] sm:$0xff]
    %v2747 = vld [vmem:[#allocation16 + $0xb0] sm:$0xff]
    %v2748 = vld [vmem:[#allocation16 + $0xb8] sm:$0xff]
    %v2749 = vld [vmem:[#allocation16 + $0xc0] sm:$0xff]
    %v2750 = vld [vmem:[#allocation16 + $0xc8] sm:$0xff]
    %v2751 = vld [vmem:[#allocation16 + $0xd0] sm:$0xff]
    %v2752 = vld [vmem:[#allocation16 + $0xd8] sm:$0xff]
    %v2753 = vld [vmem:[#allocation16 + $0xe0] sm:$0xff]
    %v2754 = vld [vmem:[#allocation16 + $0xe8] sm:$0xff]
    %v2755 = vld [vmem:[#allocation16 + $0xf0] sm:$0xff]
    %v2756 = vld [vmem:[#allocation16 + $0xf8] sm:$0xff]
    %v2757 = vld [vmem:[#allocation16 + $0x100] sm:$0xff]
    %v2758 = vld [vmem:[#allocation16 + $0x108] sm:$0xff]
    %v2759 = vld [vmem:[#allocation16 + $0x110] sm:$0xff]
    %v2760 = vld [vmem:[#allocation16 + $0x118] sm:$0xff]
    %v2761 = vld [vmem:[#allocation16 + $0x120] sm:$0xff]
    %v2762 = vld [vmem:[#allocation16 + $0x128] sm:$0xff]
    %v2763 = vld [vmem:[#allocation16 + $0x130] sm:$0xff]
    %v2764 = vld [vmem:[#allocation16 + $0x138] sm:$0xff]
    %v2765 = vld [vmem:[#allocation16 + $0x140] sm:$0xff]
    %v2766 = vld [vmem:[#allocation16 + $0x148] sm:$0xff]
    %v2767 = vld [vmem:[#allocation16 + $0x150] sm:$0xff]
    %v2768 = vld [vmem:[#allocation16 + $0x158] sm:$0xff]
    %v2769 = vld [vmem:[#allocation16 + $0x160] sm:$0xff]
    %v2770 = vld [vmem:[#allocation16 + $0x168] sm:$0xff]
    %v2771 = vld [vmem:[#allocation16 + $0x170] sm:$0xff]
    %v2772 = vld [vmem:[#allocation16 + $0x178] sm:$0xff]
    %v2773 = vld [vmem:[#allocation16 + $0x180] sm:$0xff]
    %v2774 = vld [vmem:[#allocation16 + $0x188] sm:$0xff]
    %v2775 = vld [vmem:[#allocation16 + $0x190] sm:$0xff]
    %v2776 = vld [vmem:[#allocation16 + $0x198] sm:$0xff]
    %v2777 = vld [vmem:[#allocation16 + $0x1a0] sm:$0xff]
    %v2778 = vld [vmem:[#allocation16 + $0x1a8] sm:$0xff]
    %v2779 = vld [vmem:[#allocation16 + $0x1b0] sm:$0xff]
    %v2780 = vld [vmem:[#allocation16 + $0x1b8] sm:$0xff]
    %v2781 = vld [vmem:[#allocation16 + $0x1c0] sm:$0xff]
    %v2782 = vld [vmem:[#allocation16 + $0x1c8] sm:$0xff]
    %v2783 = vld [vmem:[#allocation16 + $0x1d0] sm:$0xff]
    %v2784 = vld [vmem:[#allocation16 + $0x1d8] sm:$0xff]
    %v2785 = vld [vmem:[#allocation16 + $0x1e0] sm:$0xff]
    %v2786 = vld [vmem:[#allocation16 + $0x1e8] sm:$0xff]
    %v2787 = vld [vmem:[#allocation16 + $0x1f0] sm:$0xff]
    %v2788 = vld [vmem:[#allocation16 + $0x1f8] sm:$0xff]
    %2789 = vmatprep.subr.mxu0 %v2726
    %2790 = vmatpush1.msra.mxu0 %v2725
    %2791 = vmatprep.subr.mxu0 %v2730
    %2792 = vmatpush1.msra.mxu0 %v2729
    %2793 = vmatprep.subr.mxu0 %v2734
    %2794 = vmatpush1.msra.mxu0 %v2733
    %2795 = vmatprep.subr.mxu0 %v2738
    %2796 = vmatpush1.msra.mxu0 %v2737
    %2797 = vmatprep.subr.mxu0 %v2742
    %2798 = vmatpush1.msra.mxu0 %v2741
    %2799 = vmatprep.subr.mxu0 %v2746
    %2800 = vmatpush1.msra.mxu0 %v2745
    %2801 = vmatprep.subr.mxu0 %v2750
    %2802 = vmatpush1.msra.mxu0 %v2749
    %2803 = vmatprep.subr.mxu0 %v2754
    %2804 = vmatpush1.msra.mxu0 %v2753
    %2805 = vmatprep.subr.mxu0 %v2758
    %2806 = vmatpush1.msra.mxu0 %v2757
    %2807 = vmatprep.subr.mxu0 %v2762
    %2808 = vmatpush1.msra.mxu0 %v2761
    %2809 = vmatprep.subr.mxu0 %v2766
    %2810 = vmatpush1.msra.mxu0 %v2765
    %2811 = vmatprep.subr.mxu0 %v2770
    %2812 = vmatpush1.msra.mxu0 %v2769
    %2813 = vmatprep.subr.mxu0 %v2774
    %2814 = vmatpush1.msra.mxu0 %v2773
    %2815 = vmatprep.subr.mxu0 %v2778
    %2816 = vmatpush1.msra.mxu0 %v2777
    %2817 = vmatprep.subr.mxu0 %v2782
    %2818 = vmatpush1.msra.mxu0 %v2781
    %2819 = vmatprep.subr.mxu0 %v2786
    %2820 = vmatpush1.msra.mxu0 %v2785
    %2821 = vmatprep.subr.mxu0 0.0
    %2822 = vmatpush1.msra.mxu0 0.0
    %2823 = vmatprep.subr.mxu0 0.0
    %2824 = vmatpush1.msra.mxu0 0.0
    %2825 = vmatprep.subr.mxu0 0.0
    %2826 = vmatpush1.msra.mxu0 0.0
    %2827 = vmatprep.subr.mxu0 0.0
    %2828 = vmatpush1.msra.mxu0 0.0
    %2829 = vmatprep.subr.mxu0 0.0
    %2830 = vmatpush1.msra.mxu0 0.0
    %2831 = vmatprep.subr.mxu0 0.0
    %2832 = vmatpush1.msra.mxu0 0.0
    %2833 = vmatprep.subr.mxu0 0.0
    %2834 = vmatpush1.msra.mxu0 0.0
    %2835 = vmatprep.subr.mxu0 0.0
    %2836 = vmatpush1.msra.mxu0 0.0
    %2837 = vmatprep.subr.mxu0 0.0
    %2838 = vmatpush1.msra.mxu0 0.0
    %2839 = vmatprep.subr.mxu0 0.0
    %2840 = vmatpush1.msra.mxu0 0.0
    %2841 = vmatprep.subr.mxu0 0.0
    %2842 = vmatpush1.msra.mxu0 0.0
    %2843 = vmatprep.subr.mxu0 0.0
    %2844 = vmatpush1.msra.mxu0 0.0
    %2845 = vmatprep.subr.mxu0 0.0
    %2846 = vmatpush1.msra.mxu0 0.0
    %2847 = vmatprep.subr.mxu0 0.0
    %2848 = vmatpush1.msra.mxu0 0.0
    %2849 = vmatprep.subr.mxu0 0.0
    %2850 = vmatpush1.msra.mxu0 0.0
    %2851 = vmatprep.subr.mxu0 0.0
    %2852 = vmatpush1.msra.mxu0 0.0
    %2853 = vmatprep.mubr.f32.mxu0 0.0
    %2854 = vmatmul.mubr.f32.gmra.mrb[0].mxu0 %v2135
    %v2855 = vpop.f32.mrb[0].mxu0
    %v2856 = vadd.f32 0.0, %v2855
    %v2857 = vpop.f32.mrb[0].mxu0
    %v2858 = vadd.f32 0.0, %v2857
    %2859 = vdwg.mxu0
    %2860 = vmatprep.subr.mxu0 %v2728
    %2861 = vmatpush1.msra.mxu0 %v2727
    %2862 = vmatprep.subr.mxu0 %v2732
    %2863 = vmatpush1.msra.mxu0 %v2731
    %2864 = vmatprep.subr.mxu0 %v2736
    %2865 = vmatpush1.msra.mxu0 %v2735
    %2866 = vmatprep.subr.mxu0 %v2740
    %2867 = vmatpush1.msra.mxu0 %v2739
    %2868 = vmatprep.subr.mxu0 %v2744
    %2869 = vmatpush1.msra.mxu0 %v2743
    %2870 = vmatprep.subr.mxu0 %v2748
    %2871 = vmatpush1.msra.mxu0 %v2747
    %2872 = vmatprep.subr.mxu0 %v2752
    %2873 = vmatpush1.msra.mxu0 %v2751
    %2874 = vmatprep.subr.mxu0 %v2756
    %2875 = vmatpush1.msra.mxu0 %v2755
    %2876 = vmatprep.subr.mxu0 %v2760
    %2877 = vmatpush1.msra.mxu0 %v2759
    %2878 = vmatprep.subr.mxu0 %v2764
    %2879 = vmatpush1.msra.mxu0 %v2763
    %2880 = vmatprep.subr.mxu0 %v2768
    %2881 = vmatpush1.msra.mxu0 %v2767
    %2882 = vmatprep.subr.mxu0 %v2772
    %2883 = vmatpush1.msra.mxu0 %v2771
    %2884 = vmatprep.subr.mxu0 %v2776
    %2885 = vmatpush1.msra.mxu0 %v2775
    %2886 = vmatprep.subr.mxu0 %v2780
    %2887 = vmatpush1.msra.mxu0 %v2779
    %2888 = vmatprep.subr.mxu0 %v2784
    %2889 = vmatpush1.msra.mxu0 %v2783
    %2890 = vmatprep.subr.mxu0 %v2788
    %2891 = vmatpush1.msra.mxu0 %v2787
    %2892 = vmatprep.subr.mxu0 0.0
    %2893 = vmatpush1.msra.mxu0 0.0
    %2894 = vmatprep.subr.mxu0 0.0
    %2895 = vmatpush1.msra.mxu0 0.0
    %2896 = vmatprep.subr.mxu0 0.0
    %2897 = vmatpush1.msra.mxu0 0.0
    %2898 = vmatprep.subr.mxu0 0.0
    %2899 = vmatpush1.msra.mxu0 0.0
    %2900 = vmatprep.subr.mxu0 0.0
    %2901 = vmatpush1.msra.mxu0 0.0
    %2902 = vmatprep.subr.mxu0 0.0
    %2903 = vmatpush1.msra.mxu0 0.0
    %2904 = vmatprep.subr.mxu0 0.0
    %2905 = vmatpush1.msra.mxu0 0.0
    %2906 = vmatprep.subr.mxu0 0.0
    %2907 = vmatpush1.msra.mxu0 0.0
    %2908 = vmatprep.subr.mxu0 0.0
    %2909 = vmatpush1.msra.mxu0 0.0
    %2910 = vmatprep.subr.mxu0 0.0
    %2911 = vmatpush1.msra.mxu0 0.0
    %2912 = vmatprep.subr.mxu0 0.0
    %2913 = vmatpush1.msra.mxu0 0.0
    %2914 = vmatprep.subr.mxu0 0.0
    %2915 = vmatpush1.msra.mxu0 0.0
    %2916 = vmatprep.subr.mxu0 0.0
    %2917 = vmatpush1.msra.mxu0 0.0
    %2918 = vmatprep.subr.mxu0 0.0
    %2919 = vmatpush1.msra.mxu0 0.0
    %2920 = vmatprep.subr.mxu0 0.0
    %2921 = vmatpush1.msra.mxu0 0.0
    %2922 = vmatprep.subr.mxu0 0.0
    %2923 = vmatpush1.msra.mxu0 0.0
    %2924 = vmatprep.mubr.f32.mxu0 0.0
    %2925 = vmatmul.mubr.f32.gmra.mrb[0].mxu0 %v2135
    %v2926 = vpop.f32.mrb[0].mxu0
    %v2927 = vadd.f32 0.0, %v2926
    %v2928 = vpop.f32.mrb[0].mxu0
    %v2929 = vadd.f32 0.0, %v2928
    %2930 = vdwg.mxu0
    %2931 = vmatprep.subr.mxu0 %v2662
    %2932 = vmatpush1.msra.mxu0 %v2661
    %2933 = vmatprep.subr.mxu0 %v2666
    %2934 = vmatpush1.msra.mxu0 %v2665
    %2935 = vmatprep.subr.mxu0 %v2670
    %2936 = vmatpush1.msra.mxu0 %v2669
    %2937 = vmatprep.subr.mxu0 %v2674
    %2938 = vmatpush1.msra.mxu0 %v2673
    %2939 = vmatprep.subr.mxu0 %v2678
    %2940 = vmatpush1.msra.mxu0 %v2677
    %2941 = vmatprep.subr.mxu0 %v2682
    %2942 = vmatpush1.msra.mxu0 %v2681
    %2943 = vmatprep.subr.mxu0 %v2686
    %2944 = vmatpush1.msra.mxu0 %v2685
    %2945 = vmatprep.subr.mxu0 %v2690
    %2946 = vmatpush1.msra.mxu0 %v2689
    %2947 = vmatprep.subr.mxu0 %v2694
    %2948 = vmatpush1.msra.mxu0 %v2693
    %2949 = vmatprep.subr.mxu0 %v2698
    %2950 = vmatpush1.msra.mxu0 %v2697
    %2951 = vmatprep.subr.mxu0 %v2702
    %2952 = vmatpush1.msra.mxu0 %v2701
    %2953 = vmatprep.subr.mxu0 %v2706
    %2954 = vmatpush1.msra.mxu0 %v2705
    %2955 = vmatprep.subr.mxu0 %v2710
    %2956 = vmatpush1.msra.mxu0 %v2709
    %2957 = vmatprep.subr.mxu0 %v2714
    %2958 = vmatpush1.msra.mxu0 %v2713
    %2959 = vmatprep.subr.mxu0 %v2718
    %2960 = vmatpush1.msra.mxu0 %v2717
    %2961 = vmatprep.subr.mxu0 %v2722
    %2962 = vmatpush1.msra.mxu0 %v2721
    %2963 = vmatprep.subr.mxu0 0.0
    %2964 = vmatpush1.msra.mxu0 0.0
    %2965 = vmatprep.subr.mxu0 0.0
    %2966 = vmatpush1.msra.mxu0 0.0
    %2967 = vmatprep.subr.mxu0 0.0
    %2968 = vmatpush1.msra.mxu0 0.0
    %2969 = vmatprep.subr.mxu0 0.0
    %2970 = vmatpush1.msra.mxu0 0.0
    %2971 = vmatprep.subr.mxu0 0.0
    %2972 = vmatpush1.msra.mxu0 0.0
    %2973 = vmatprep.subr.mxu0 0.0
    %2974 = vmatpush1.msra.mxu0 0.0
    %2975 = vmatprep.subr.mxu0 0.0
    %2976 = vmatpush1.msra.mxu0 0.0
    %2977 = vmatprep.subr.mxu0 0.0
    %2978 = vmatpush1.msra.mxu0 0.0
    %2979 = vmatprep.subr.mxu0 0.0
    %2980 = vmatpush1.msra.mxu0 0.0
    %2981 = vmatprep.subr.mxu0 0.0
    %2982 = vmatpush1.msra.mxu0 0.0
    %2983 = vmatprep.subr.mxu0 0.0
    %2984 = vmatpush1.msra.mxu0 0.0
    %2985 = vmatprep.subr.mxu0 0.0
    %2986 = vmatpush1.msra.mxu0 0.0
    %2987 = vmatprep.subr.mxu0 0.0
    %2988 = vmatpush1.msra.mxu0 0.0
    %2989 = vmatprep.subr.mxu0 0.0
    %2990 = vmatpush1.msra.mxu0 0.0
    %2991 = vmatprep.subr.mxu0 0.0
    %2992 = vmatpush1.msra.mxu0 0.0
    %2993 = vmatprep.subr.mxu0 0.0
    %2994 = vmatpush1.msra.mxu0 0.0
    %2995 = vmatprep.mubr.f32.mxu0 0.0
    %2996 = vmatmul.mubr.f32.gmra.mrb[0].mxu0 %v2660
    %v2997 = vpop.f32.mrb[0].mxu0
    %v2998 = vadd.f32 %v2856, %v2997
    %v2999 = vpop.f32.mrb[0].mxu0
    %v3000 = vadd.f32 %v2858, %v2999
    %3001 = vdwg.mxu0
    %3002 = vmatprep.subr.mxu0 %v2664
    %3003 = vmatpush1.msra.mxu0 %v2663
    %3004 = vmatprep.subr.mxu0 %v2668
    %3005 = vmatpush1.msra.mxu0 %v2667
    %3006 = vmatprep.subr.mxu0 %v2672
    %3007 = vmatpush1.msra.mxu0 %v2671
    %3008 = vmatprep.subr.mxu0 %v2676
    %3009 = vmatpush1.msra.mxu0 %v2675
    %3010 = vmatprep.subr.mxu0 %v2680
    %3011 = vmatpush1.msra.mxu0 %v2679
    %3012 = vmatprep.subr.mxu0 %v2684
    %3013 = vmatpush1.msra.mxu0 %v2683
    %3014 = vmatprep.subr.mxu0 %v2688
    %3015 = vmatpush1.msra.mxu0 %v2687
    %3016 = vmatprep.subr.mxu0 %v2692
    %3017 = vmatpush1.msra.mxu0 %v2691
    %3018 = vmatprep.subr.mxu0 %v2696
    %3019 = vmatpush1.msra.mxu0 %v2695
    %3020 = vmatprep.subr.mxu0 %v2700
    %3021 = vmatpush1.msra.mxu0 %v2699
    %3022 = vmatprep.subr.mxu0 %v2704
    %3023 = vmatpush1.msra.mxu0 %v2703
    %3024 = vmatprep.subr.mxu0 %v2708
    %3025 = vmatpush1.msra.mxu0 %v2707
    %3026 = vmatprep.subr.mxu0 %v2712
    %3027 = vmatpush1.msra.mxu0 %v2711
    %3028 = vmatprep.subr.mxu0 %v2716
    %3029 = vmatpush1.msra.mxu0 %v2715
    %3030 = vmatprep.subr.mxu0 %v2720
    %3031 = vmatpush1.msra.mxu0 %v2719
    %3032 = vmatprep.subr.mxu0 %v2724
    %3033 = vmatpush1.msra.mxu0 %v2723
    %3034 = vmatprep.subr.mxu0 0.0
    %3035 = vmatpush1.msra.mxu0 0.0
    %3036 = vmatprep.subr.mxu0 0.0
    %3037 = vmatpush1.msra.mxu0 0.0
    %3038 = vmatprep.subr.mxu0 0.0
    %3039 = vmatpush1.msra.mxu0 0.0
    %3040 = vmatprep.subr.mxu0 0.0
    %3041 = vmatpush1.msra.mxu0 0.0
    %3042 = vmatprep.subr.mxu0 0.0
    %3043 = vmatpush1.msra.mxu0 0.0
    %3044 = vmatprep.subr.mxu0 0.0
    %3045 = vmatpush1.msra.mxu0 0.0
    %3046 = vmatprep.subr.mxu0 0.0
    %3047 = vmatpush1.msra.mxu0 0.0
    %3048 = vmatprep.subr.mxu0 0.0
    %3049 = vmatpush1.msra.mxu0 0.0
    %3050 = vmatprep.subr.mxu0 0.0
    %3051 = vmatpush1.msra.mxu0 0.0
    %3052 = vmatprep.subr.mxu0 0.0
    %3053 = vmatpush1.msra.mxu0 0.0
    %3054 = vmatprep.subr.mxu0 0.0
    %3055 = vmatpush1.msra.mxu0 0.0
    %3056 = vmatprep.subr.mxu0 0.0
    %3057 = vmatpush1.msra.mxu0 0.0
    %3058 = vmatprep.subr.mxu0 0.0
    %3059 = vmatpush1.msra.mxu0 0.0
    %3060 = vmatprep.subr.mxu0 0.0
    %3061 = vmatpush1.msra.mxu0 0.0
    %3062 = vmatprep.subr.mxu0 0.0
    %3063 = vmatpush1.msra.mxu0 0.0
    %3064 = vmatprep.subr.mxu0 0.0
    %3065 = vmatpush1.msra.mxu0 0.0
    %3066 = vmatprep.mubr.f32.mxu0 0.0
    %3067 = vmatmul.mubr.f32.gmra.mrb[0].mxu0 %v2660
    %v3068 = vpop.f32.mrb[0].mxu0
    %v3069 = vadd.f32 %v2927, %v3068
    %v3070 = vpop.f32.mrb[0].mxu0
    %v3071 = vadd.f32 %v2929, %v3070
    %3072 = vdwg.mxu0
    %v3073 = vadd.f32 %v2998, %v179
    %v3074 = vadd.f32 %v3000, %v183
    %v3075 = vadd.f32 %v3069, %v187
    %v3076 = vadd.f32 %v3071, %v191
    %v3077 = vxor.u32 %v3073, 2147483648
    %v3078 = vxor.u32 %v3074, 2147483648
    %v3079 = vxor.u32 %v3075, 2147483648
    %v3080 = vmul.f32 %v3077, 1.442695
    %v3081 = vpow.pop %v3080
    %v3082 = vmul.f32 %v3078, 1.442695
    %v3083 = vpow.pop %v3082
    %v3084 = vmul.f32 %v3079, 1.442695
    %v3085 = vpow.pop %v3084
    %v3086 = vadd.f32 %v3081, 1.0
    %v3087 = vadd.f32 %v3083, 1.0
    %v3088 = vadd.f32 %v3085, 1.0
    %v3089 = vrcp.pop %v3086
    %v3090 = vmul.f32 1.0, %v3089
    %v3091 = vrcp.pop %v3087
    %v3092 = vmul.f32 1.0, %v3091
    %v3093 = vrcp.pop %v3088
    %v3094 = vmul.f32 1.0, %v3093
    %v3095 = vtanh.pop %v3076
    %v3096 = vmul.f32 %v3092, %v2133
    %v3097 = vmul.f32 %v3090, %v3095
    %v3098 = vadd.f32 %v3096, %v3097
    %v3099 = vtanh.pop %v3098
    %v3100 = vmul.f32 %v3094, %v3099
    %s3101 = scalar_lea.vmem [#allocation4], 16
    %3102 = vst [vmem:[%s3101] sm:$0xff] %v3100
    %s3103 = sadd.s32 %s1172, 3
    %s3104 = smul.u32 %s3103, 8
    %s3105 = sld [smem:[#allocation6 + %s3104]]
    %s3106 = sshra.s32 %s3105, 3
    %s3107 = sand.u32 %s3105, 7
    %s3108 = sshra.s32 %s3105, 3
    %s3109 = sand.u32 %s3105, 7
    %s3110 = smul.u32 %s3106, 4
    %s3111 = smul.u32 %s3110, 8
    %s3112 = sadd.s32 %s3111, %s3109
    %s3113 = scalar_lea.vmem [#allocation12], %s3112
    %v3114 = vld [vmem:[%s3113] ss:$8 sm:$0xf]
    %s3115 = sadd.s32 %s3104, 1
    %s3116 = sld [smem:[#allocation6 + %s3115]]
    %s3117 = sshra.s32 %s3116, 3
    %s3118 = sand.u32 %s3116, 7
    %s3119 = sshra.s32 %s3116, 3
    %s3120 = sand.u32 %s3116, 7
    %s3121 = smul.u32 %s3117, 4
    %s3122 = smul.u32 %s3121, 8
    %s3123 = sadd.s32 %s3122, %s3120
    %s3124 = scalar_lea.vmem [#allocation12], %s3123
    %v3125 = vld [vmem:[%s3124] ss:$8 sm:$0xf]
    %s3126 = sadd.s32 %s3104, 2
    %s3127 = sld [smem:[#allocation6 + %s3126]]
    %s3128 = sshra.s32 %s3127, 3
    %s3129 = sand.u32 %s3127, 7
    %s3130 = sshra.s32 %s3127, 3
    %s3131 = sand.u32 %s3127, 7
    %s3132 = smul.u32 %s3128, 4
    %s3133 = smul.u32 %s3132, 8
    %s3134 = sadd.s32 %s3133, %s3131
    %s3135 = scalar_lea.vmem [#allocation12], %s3134
    %v3136 = vld [vmem:[%s3135] ss:$8 sm:$0xf]
    %s3137 = sadd.s32 %s3104, 3
    %s3138 = sld [smem:[#allocation6 + %s3137]]
    %s3139 = sshra.s32 %s3138, 3
    %s3140 = sand.u32 %s3138, 7
    %s3141 = sshra.s32 %s3138, 3
    %s3142 = sand.u32 %s3138, 7
    %s3143 = smul.u32 %s3139, 4
    %s3144 = smul.u32 %s3143, 8
    %s3145 = sadd.s32 %s3144, %s3142
    %s3146 = scalar_lea.vmem [#allocation12], %s3145
    %v3147 = vld [vmem:[%s3146] ss:$8 sm:$0xf]
    %s3148 = sadd.s32 %s3104, 4
    %s3149 = sld [smem:[#allocation6 + %s3148]]
    %s3150 = sshra.s32 %s3149, 3
    %s3151 = sand.u32 %s3149, 7
    %s3152 = sshra.s32 %s3149, 3
    %s3153 = sand.u32 %s3149, 7
    %s3154 = smul.u32 %s3150, 4
    %s3155 = smul.u32 %s3154, 8
    %s3156 = sadd.s32 %s3155, %s3153
    %s3157 = scalar_lea.vmem [#allocation12], %s3156
    %v3158 = vld [vmem:[%s3157] ss:$8 sm:$0xf]
    %s3159 = sadd.s32 %s3104, 5
    %s3160 = sld [smem:[#allocation6 + %s3159]]
    %s3161 = sshra.s32 %s3160, 3
    %s3162 = sand.u32 %s3160, 7
    %s3163 = sshra.s32 %s3160, 3
    %s3164 = sand.u32 %s3160, 7
    %s3165 = smul.u32 %s3161, 4
    %s3166 = smul.u32 %s3165, 8
    %s3167 = sadd.s32 %s3166, %s3164
    %s3168 = scalar_lea.vmem [#allocation12], %s3167
    %v3169 = vld [vmem:[%s3168] ss:$8 sm:$0xf]
    %s3170 = sadd.s32 %s3104, 6
    %s3171 = sld [smem:[#allocation6 + %s3170]]
    %s3172 = sshra.s32 %s3171, 3
    %s3173 = sand.u32 %s3171, 7
    %s3174 = sshra.s32 %s3171, 3
    %s3175 = sand.u32 %s3171, 7
    %s3176 = smul.u32 %s3172, 4
    %s3177 = smul.u32 %s3176, 8
    %s3178 = sadd.s32 %s3177, %s3175
    %s3179 = scalar_lea.vmem [#allocation12], %s3178
    %v3180 = vld [vmem:[%s3179] ss:$8 sm:$0xf]
    %s3181 = sadd.s32 %s3104, 7
    %s3182 = sld [smem:[#allocation6 + %s3181]]
    %s3183 = sshra.s32 %s3182, 3
    %s3184 = sand.u32 %s3182, 7
    %s3185 = sshra.s32 %s3182, 3
    %s3186 = sand.u32 %s3182, 7
    %s3187 = smul.u32 %s3183, 4
    %s3188 = smul.u32 %s3187, 8
    %s3189 = sadd.s32 %s3188, %s3186
    %s3190 = scalar_lea.vmem [#allocation12], %s3189
    %v3191 = vld [vmem:[%s3190] ss:$8 sm:$0xf]
    %v3193 = vlaneseq
    %v3194 = vshrl.u32 %v3193, 7
    %v3195 = vsub.s32 0, %v3194
    %v3196 = vrot.slane %v3114, %v3195
    %v3197 = vlaneseq
    %v3198 = vshrl.u32 %v3197, 7
    %v3199 = vsub.s32 1, %v3198
    %v3200 = vrot.slane %v3114, %v3199
    %v3201 = vlaneseq
    %v3202 = vshrl.u32 %v3201, 7
    %v3203 = vsub.s32 2, %v3202
    %v3204 = vrot.slane %v3114, %v3203
    %v3205 = vlaneseq
    %v3206 = vshrl.u32 %v3205, 7
    %v3207 = vsub.s32 3, %v3206
    %v3208 = vrot.slane %v3114, %v3207
    %v3214 = vlaneseq
    %v3215 = vshrl.u32 %v3214, 7
    %v3216 = vsub.s32 0, %v3215
    %v3217 = vrot.slane %v3125, %v3216
    %v3218 = vlaneseq
    %v3219 = vshrl.u32 %v3218, 7
    %v3220 = vsub.s32 1, %v3219
    %v3221 = vrot.slane %v3125, %v3220
    %v3222 = vlaneseq
    %v3223 = vshrl.u32 %v3222, 7
    %v3224 = vsub.s32 2, %v3223
    %v3225 = vrot.slane %v3125, %v3224
    %v3226 = vlaneseq
    %v3227 = vshrl.u32 %v3226, 7
    %v3228 = vsub.s32 3, %v3227
    %v3229 = vrot.slane %v3125, %v3228
    %v3235 = vlaneseq
    %v3236 = vshrl.u32 %v3235, 7
    %v3237 = vsub.s32 0, %v3236
    %v3238 = vrot.slane %v3136, %v3237
    %v3239 = vlaneseq
    %v3240 = vshrl.u32 %v3239, 7
    %v3241 = vsub.s32 1, %v3240
    %v3242 = vrot.slane %v3136, %v3241
    %v3243 = vlaneseq
    %v3244 = vshrl.u32 %v3243, 7
    %v3245 = vsub.s32 2, %v3244
    %v3246 = vrot.slane %v3136, %v3245
    %v3247 = vlaneseq
    %v3248 = vshrl.u32 %v3247, 7
    %v3249 = vsub.s32 3, %v3248
    %v3250 = vrot.slane %v3136, %v3249
    %v3256 = vlaneseq
    %v3257 = vshrl.u32 %v3256, 7
    %v3258 = vsub.s32 0, %v3257
    %v3259 = vrot.slane %v3147, %v3258
    %v3260 = vlaneseq
    %v3261 = vshrl.u32 %v3260, 7
    %v3262 = vsub.s32 1, %v3261
    %v3263 = vrot.slane %v3147, %v3262
    %v3264 = vlaneseq
    %v3265 = vshrl.u32 %v3264, 7
    %v3266 = vsub.s32 2, %v3265
    %v3267 = vrot.slane %v3147, %v3266
    %v3268 = vlaneseq
    %v3269 = vshrl.u32 %v3268, 7
    %v3270 = vsub.s32 3, %v3269
    %v3271 = vrot.slane %v3147, %v3270
    %v3277 = vlaneseq
    %v3278 = vshrl.u32 %v3277, 7
    %v3279 = vsub.s32 0, %v3278
    %v3280 = vrot.slane %v3158, %v3279
    %v3281 = vlaneseq
    %v3282 = vshrl.u32 %v3281, 7
    %v3283 = vsub.s32 1, %v3282
    %v3284 = vrot.slane %v3158, %v3283
    %v3285 = vlaneseq
    %v3286 = vshrl.u32 %v3285, 7
    %v3287 = vsub.s32 2, %v3286
    %v3288 = vrot.slane %v3158, %v3287
    %v3289 = vlaneseq
    %v3290 = vshrl.u32 %v3289, 7
    %v3291 = vsub.s32 3, %v3290
    %v3292 = vrot.slane %v3158, %v3291
    %v3298 = vlaneseq
    %v3299 = vshrl.u32 %v3298, 7
    %v3300 = vsub.s32 0, %v3299
    %v3301 = vrot.slane %v3169, %v3300
    %v3302 = vlaneseq
    %v3303 = vshrl.u32 %v3302, 7
    %v3304 = vsub.s32 1, %v3303
    %v3305 = vrot.slane %v3169, %v3304
    %v3306 = vlaneseq
    %v3307 = vshrl.u32 %v3306, 7
    %v3308 = vsub.s32 2, %v3307
    %v3309 = vrot.slane %v3169, %v3308
    %v3310 = vlaneseq
    %v3311 = vshrl.u32 %v3310, 7
    %v3312 = vsub.s32 3, %v3311
    %v3313 = vrot.slane %v3169, %v3312
    %v3319 = vlaneseq
    %v3320 = vshrl.u32 %v3319, 7
    %v3321 = vsub.s32 0, %v3320
    %v3322 = vrot.slane %v3180, %v3321
    %v3323 = vlaneseq
    %v3324 = vshrl.u32 %v3323, 7
    %v3325 = vsub.s32 1, %v3324
    %v3326 = vrot.slane %v3180, %v3325
    %v3327 = vlaneseq
    %v3328 = vshrl.u32 %v3327, 7
    %v3329 = vsub.s32 2, %v3328
    %v3330 = vrot.slane %v3180, %v3329
    %v3331 = vlaneseq
    %v3332 = vshrl.u32 %v3331, 7
    %v3333 = vsub.s32 3, %v3332
    %v3334 = vrot.slane %v3180, %v3333
    %v3340 = vlaneseq
    %v3341 = vshrl.u32 %v3340, 7
    %v3342 = vsub.s32 0, %v3341
    %v3343 = vrot.slane %v3191, %v3342
    %v3344 = vlaneseq
    %v3345 = vshrl.u32 %v3344, 7
    %v3346 = vsub.s32 1, %v3345
    %v3347 = vrot.slane %v3191, %v3346
    %v3348 = vlaneseq
    %v3349 = vshrl.u32 %v3348, 7
    %v3350 = vsub.s32 2, %v3349
    %v3351 = vrot.slane %v3191, %v3350
    %v3352 = vlaneseq
    %v3353 = vshrl.u32 %v3352, 7
    %v3354 = vsub.s32 3, %v3353
    %v3355 = vrot.slane %v3191, %v3354
    %v3360 = vsel %vm458, %v3196, %v3217
    %v3361 = vsel %vm458, %v3200, %v3221
    %v3362 = vsel %vm458, %v3204, %v3225
    %v3363 = vsel %vm458, %v3208, %v3229
    %v3364 = vsel %vm463, %v3360, %v3238
    %v3365 = vsel %vm463, %v3361, %v3242
    %v3366 = vsel %vm463, %v3362, %v3246
    %v3367 = vsel %vm463, %v3363, %v3250
    %v3368 = vsel %vm468, %v3364, %v3259
    %v3369 = vsel %vm468, %v3365, %v3263
    %v3370 = vsel %vm468, %v3366, %v3267
    %v3371 = vsel %vm468, %v3367, %v3271
    %v3372 = vsel %vm473, %v3368, %v3280
    %v3373 = vsel %vm473, %v3369, %v3284
    %v3374 = vsel %vm473, %v3370, %v3288
    %v3375 = vsel %vm473, %v3371, %v3292
    %v3376 = vsel %vm478, %v3372, %v3301
    %v3377 = vsel %vm478, %v3373, %v3305
    %v3378 = vsel %vm478, %v3374, %v3309
    %v3379 = vsel %vm478, %v3375, %v3313
    %v3380 = vsel %vm483, %v3376, %v3322
    %v3381 = vsel %vm483, %v3377, %v3326
    %v3382 = vsel %vm483, %v3378, %v3330
    %v3383 = vsel %vm483, %v3379, %v3334
    %v3384 = vsel %vm488, %v3380, %v3343
    %v3385 = vsel %vm488, %v3381, %v3347
    %v3386 = vsel %vm488, %v3382, %v3351
    %v3387 = vsel %vm488, %v3383, %v3355
    %v3388 = vld [vmem:[#allocation13] sm:$0xff]
    %v3389 = vld [vmem:[#allocation13 + $0x8] sm:$0xff]
    %v3390 = vld [vmem:[#allocation13 + $0x10] sm:$0xff]
    %v3391 = vld [vmem:[#allocation13 + $0x18] sm:$0xff]
    %v3392 = vld [vmem:[#allocation13 + $0x20] sm:$0xff]
    %v3393 = vld [vmem:[#allocation13 + $0x28] sm:$0xff]
    %v3394 = vld [vmem:[#allocation13 + $0x30] sm:$0xff]
    %v3395 = vld [vmem:[#allocation13 + $0x38] sm:$0xff]
    %v3396 = vld [vmem:[#allocation13 + $0x40] sm:$0xff]
    %v3397 = vld [vmem:[#allocation13 + $0x48] sm:$0xff]
    %v3398 = vld [vmem:[#allocation13 + $0x50] sm:$0xff]
    %v3399 = vld [vmem:[#allocation13 + $0x58] sm:$0xff]
    %v3400 = vld [vmem:[#allocation13 + $0x60] sm:$0xff]
    %v3401 = vld [vmem:[#allocation13 + $0x68] sm:$0xff]
    %v3402 = vld [vmem:[#allocation13 + $0x70] sm:$0xff]
    %v3403 = vld [vmem:[#allocation13 + $0x78] sm:$0xff]
    %v3404 = vld [vmem:[#allocation13 + $0x80] sm:$0xff]
    %v3405 = vld [vmem:[#allocation13 + $0x88] sm:$0xff]
    %v3406 = vld [vmem:[#allocation13 + $0x90] sm:$0xff]
    %v3407 = vld [vmem:[#allocation13 + $0x98] sm:$0xff]
    %v3408 = vld [vmem:[#allocation13 + $0xa0] sm:$0xff]
    %v3409 = vld [vmem:[#allocation13 + $0xa8] sm:$0xff]
    %v3410 = vld [vmem:[#allocation13 + $0xb0] sm:$0xff]
    %v3411 = vld [vmem:[#allocation13 + $0xb8] sm:$0xff]
    %v3412 = vld [vmem:[#allocation13 + $0xc0] sm:$0xff]
    %v3413 = vld [vmem:[#allocation13 + $0xc8] sm:$0xff]
    %v3414 = vld [vmem:[#allocation13 + $0xd0] sm:$0xff]
    %v3415 = vld [vmem:[#allocation13 + $0xd8] sm:$0xff]
    %v3416 = vld [vmem:[#allocation13 + $0xe0] sm:$0xff]
    %v3417 = vld [vmem:[#allocation13 + $0xe8] sm:$0xff]
    %v3418 = vld [vmem:[#allocation13 + $0xf0] sm:$0xff]
    %v3419 = vld [vmem:[#allocation13 + $0xf8] sm:$0xff]
    %v3420 = vld [vmem:[#allocation13 + $0x100] sm:$0xff]
    %v3421 = vld [vmem:[#allocation13 + $0x108] sm:$0xff]
    %v3422 = vld [vmem:[#allocation13 + $0x110] sm:$0xff]
    %v3423 = vld [vmem:[#allocation13 + $0x118] sm:$0xff]
    %v3424 = vld [vmem:[#allocation13 + $0x120] sm:$0xff]
    %v3425 = vld [vmem:[#allocation13 + $0x128] sm:$0xff]
    %v3426 = vld [vmem:[#allocation13 + $0x130] sm:$0xff]
    %v3427 = vld [vmem:[#allocation13 + $0x138] sm:$0xff]
    %v3428 = vld [vmem:[#allocation13 + $0x140] sm:$0xff]
    %v3429 = vld [vmem:[#allocation13 + $0x148] sm:$0xff]
    %v3430 = vld [vmem:[#allocation13 + $0x150] sm:$0xff]
    %v3431 = vld [vmem:[#allocation13 + $0x158] sm:$0xff]
    %v3432 = vld [vmem:[#allocation13 + $0x160] sm:$0xff]
    %v3433 = vld [vmem:[#allocation13 + $0x168] sm:$0xff]
    %v3434 = vld [vmem:[#allocation13 + $0x170] sm:$0xff]
    %v3435 = vld [vmem:[#allocation13 + $0x178] sm:$0xff]
    %v3436 = vld [vmem:[#allocation13 + $0x180] sm:$0xff]
    %v3437 = vld [vmem:[#allocation13 + $0x188] sm:$0xff]
    %v3438 = vld [vmem:[#allocation13 + $0x190] sm:$0xff]
    %v3439 = vld [vmem:[#allocation13 + $0x198] sm:$0xff]
    %v3440 = vld [vmem:[#allocation13 + $0x1a0] sm:$0xff]
    %v3441 = vld [vmem:[#allocation13 + $0x1a8] sm:$0xff]
    %v3442 = vld [vmem:[#allocation13 + $0x1b0] sm:$0xff]
    %v3443 = vld [vmem:[#allocation13 + $0x1b8] sm:$0xff]
    %v3444 = vld [vmem:[#allocation13 + $0x1c0] sm:$0xff]
    %v3445 = vld [vmem:[#allocation13 + $0x1c8] sm:$0xff]
    %v3446 = vld [vmem:[#allocation13 + $0x1d0] sm:$0xff]
    %v3447 = vld [vmem:[#allocation13 + $0x1d8] sm:$0xff]
    %v3448 = vld [vmem:[#allocation13 + $0x1e0] sm:$0xff]
    %v3449 = vld [vmem:[#allocation13 + $0x1e8] sm:$0xff]
    %v3450 = vld [vmem:[#allocation13 + $0x1f0] sm:$0xff]
    %v3451 = vld [vmem:[#allocation13 + $0x1f8] sm:$0xff]
    %3452 = vmatprep.subr.mxu0 %v3389
    %3453 = vmatpush1.msra.mxu0 %v3388
    %3454 = vmatprep.subr.mxu0 %v3393
    %3455 = vmatpush1.msra.mxu0 %v3392
    %3456 = vmatprep.subr.mxu0 %v3397
    %3457 = vmatpush1.msra.mxu0 %v3396
    %3458 = vmatprep.subr.mxu0 %v3401
    %3459 = vmatpush1.msra.mxu0 %v3400
    %3460 = vmatprep.subr.mxu0 %v3405
    %3461 = vmatpush1.msra.mxu0 %v3404
    %3462 = vmatprep.subr.mxu0 %v3409
    %3463 = vmatpush1.msra.mxu0 %v3408
    %3464 = vmatprep.subr.mxu0 %v3413
    %3465 = vmatpush1.msra.mxu0 %v3412
    %3466 = vmatprep.subr.mxu0 %v3417
    %3467 = vmatpush1.msra.mxu0 %v3416
    %3468 = vmatprep.subr.mxu0 %v3421
    %3469 = vmatpush1.msra.mxu0 %v3420
    %3470 = vmatprep.subr.mxu0 %v3425
    %3471 = vmatpush1.msra.mxu0 %v3424
    %3472 = vmatprep.subr.mxu0 %v3429
    %3473 = vmatpush1.msra.mxu0 %v3428
    %3474 = vmatprep.subr.mxu0 %v3433
    %3475 = vmatpush1.msra.mxu0 %v3432
    %3476 = vmatprep.subr.mxu0 %v3437
    %3477 = vmatpush1.msra.mxu0 %v3436
    %3478 = vmatprep.subr.mxu0 %v3441
    %3479 = vmatpush1.msra.mxu0 %v3440
    %3480 = vmatprep.subr.mxu0 %v3445
    %3481 = vmatpush1.msra.mxu0 %v3444
    %3482 = vmatprep.subr.mxu0 %v3449
    %3483 = vmatpush1.msra.mxu0 %v3448
    %3484 = vmatprep.subr.mxu0 0.0
    %3485 = vmatpush1.msra.mxu0 0.0
    %3486 = vmatprep.subr.mxu0 0.0
    %3487 = vmatpush1.msra.mxu0 0.0
    %3488 = vmatprep.subr.mxu0 0.0
    %3489 = vmatpush1.msra.mxu0 0.0
    %3490 = vmatprep.subr.mxu0 0.0
    %3491 = vmatpush1.msra.mxu0 0.0
    %3492 = vmatprep.subr.mxu0 0.0
    %3493 = vmatpush1.msra.mxu0 0.0
    %3494 = vmatprep.subr.mxu0 0.0
    %3495 = vmatpush1.msra.mxu0 0.0
    %3496 = vmatprep.subr.mxu0 0.0
    %3497 = vmatpush1.msra.mxu0 0.0
    %3498 = vmatprep.subr.mxu0 0.0
    %3499 = vmatpush1.msra.mxu0 0.0
    %3500 = vmatprep.subr.mxu0 0.0
    %3501 = vmatpush1.msra.mxu0 0.0
    %3502 = vmatprep.subr.mxu0 0.0
    %3503 = vmatpush1.msra.mxu0 0.0
    %3504 = vmatprep.subr.mxu0 0.0
    %3505 = vmatpush1.msra.mxu0 0.0
    %3506 = vmatprep.subr.mxu0 0.0
    %3507 = vmatpush1.msra.mxu0 0.0
    %3508 = vmatprep.subr.mxu0 0.0
    %3509 = vmatpush1.msra.mxu0 0.0
    %3510 = vmatprep.subr.mxu0 0.0
    %3511 = vmatpush1.msra.mxu0 0.0
    %3512 = vmatprep.subr.mxu0 0.0
    %3513 = vmatpush1.msra.mxu0 0.0
    %3514 = vmatprep.subr.mxu0 0.0
    %3515 = vmatpush1.msra.mxu0 0.0
    %3516 = vmatprep.mubr.f32.mxu0 0.0
    %3517 = vmatmul.mubr.f32.gmra.mrb[0].mxu0 %v2660
    %v3518 = vpop.f32.mrb[0].mxu0
    %v3519 = vadd.f32 0.0, %v3518
    %v3520 = vpop.f32.mrb[0].mxu0
    %v3521 = vadd.f32 0.0, %v3520
    %3522 = vdwg.mxu0
    %3523 = vmatprep.subr.mxu0 %v3391
    %3524 = vmatpush1.msra.mxu0 %v3390
    %3525 = vmatprep.subr.mxu0 %v3395
    %3526 = vmatpush1.msra.mxu0 %v3394
    %3527 = vmatprep.subr.mxu0 %v3399
    %3528 = vmatpush1.msra.mxu0 %v3398
    %3529 = vmatprep.subr.mxu0 %v3403
    %3530 = vmatpush1.msra.mxu0 %v3402
    %3531 = vmatprep.subr.mxu0 %v3407
    %3532 = vmatpush1.msra.mxu0 %v3406
    %3533 = vmatprep.subr.mxu0 %v3411
    %3534 = vmatpush1.msra.mxu0 %v3410
    %3535 = vmatprep.subr.mxu0 %v3415
    %3536 = vmatpush1.msra.mxu0 %v3414
    %3537 = vmatprep.subr.mxu0 %v3419
    %3538 = vmatpush1.msra.mxu0 %v3418
    %3539 = vmatprep.subr.mxu0 %v3423
    %3540 = vmatpush1.msra.mxu0 %v3422
    %3541 = vmatprep.subr.mxu0 %v3427
    %3542 = vmatpush1.msra.mxu0 %v3426
    %3543 = vmatprep.subr.mxu0 %v3431
    %3544 = vmatpush1.msra.mxu0 %v3430
    %3545 = vmatprep.subr.mxu0 %v3435
    %3546 = vmatpush1.msra.mxu0 %v3434
    %3547 = vmatprep.subr.mxu0 %v3439
    %3548 = vmatpush1.msra.mxu0 %v3438
    %3549 = vmatprep.subr.mxu0 %v3443
    %3550 = vmatpush1.msra.mxu0 %v3442
    %3551 = vmatprep.subr.mxu0 %v3447
    %3552 = vmatpush1.msra.mxu0 %v3446
    %3553 = vmatprep.subr.mxu0 %v3451
    %3554 = vmatpush1.msra.mxu0 %v3450
    %3555 = vmatprep.subr.mxu0 0.0
    %3556 = vmatpush1.msra.mxu0 0.0
    %3557 = vmatprep.subr.mxu0 0.0
    %3558 = vmatpush1.msra.mxu0 0.0
    %3559 = vmatprep.subr.mxu0 0.0
    %3560 = vmatpush1.msra.mxu0 0.0
    %3561 = vmatprep.subr.mxu0 0.0
    %3562 = vmatpush1.msra.mxu0 0.0
    %3563 = vmatprep.subr.mxu0 0.0
    %3564 = vmatpush1.msra.mxu0 0.0
    %3565 = vmatprep.subr.mxu0 0.0
    %3566 = vmatpush1.msra.mxu0 0.0
    %3567 = vmatprep.subr.mxu0 0.0
    %3568 = vmatpush1.msra.mxu0 0.0
    %3569 = vmatprep.subr.mxu0 0.0
    %3570 = vmatpush1.msra.mxu0 0.0
    %3571 = vmatprep.subr.mxu0 0.0
    %3572 = vmatpush1.msra.mxu0 0.0
    %3573 = vmatprep.subr.mxu0 0.0
    %3574 = vmatpush1.msra.mxu0 0.0
    %3575 = vmatprep.subr.mxu0 0.0
    %3576 = vmatpush1.msra.mxu0 0.0
    %3577 = vmatprep.subr.mxu0 0.0
    %3578 = vmatpush1.msra.mxu0 0.0
    %3579 = vmatprep.subr.mxu0 0.0
    %3580 = vmatpush1.msra.mxu0 0.0
    %3581 = vmatprep.subr.mxu0 0.0
    %3582 = vmatpush1.msra.mxu0 0.0
    %3583 = vmatprep.subr.mxu0 0.0
    %3584 = vmatpush1.msra.mxu0 0.0
    %3585 = vmatprep.subr.mxu0 0.0
    %3586 = vmatpush1.msra.mxu0 0.0
    %3587 = vmatprep.mubr.f32.mxu0 0.0
    %3588 = vmatmul.mubr.f32.gmra.mrb[0].mxu0 %v2660
    %v3589 = vpop.f32.mrb[0].mxu0
    %v3590 = vadd.f32 0.0, %v3589
    %v3591 = vpop.f32.mrb[0].mxu0
    %v3592 = vadd.f32 0.0, %v3591
    %3593 = vdwg.mxu0
    %v3594 = vadd.f32 %v3384, %v3519
    %v3595 = vadd.f32 %v3385, %v3521
    %v3596 = vadd.f32 %v3386, %v3590
    %v3597 = vadd.f32 %v3387, %v3592
    %v3598 = vadd.f32 %v3594, %v157
    %v3599 = vadd.f32 %v3595, %v161
    %v3600 = vadd.f32 %v3596, %v165
    %v3601 = vadd.f32 %v3597, %v169
    %v3602 = vxor.u32 %v3598, 2147483648
    %v3603 = vxor.u32 %v3599, 2147483648
    %v3604 = vxor.u32 %v3600, 2147483648
    %v3605 = vmul.f32 %v3602, 1.442695
    %v3606 = vpow.pop %v3605
    %v3607 = vmul.f32 %v3603, 1.442695
    %v3608 = vpow.pop %v3607
    %v3609 = vmul.f32 %v3604, 1.442695
    %v3610 = vpow.pop %v3609
    %v3611 = vadd.f32 %v3606, 1.0
    %v3612 = vadd.f32 %v3608, 1.0
    %v3613 = vadd.f32 %v3610, 1.0
    %v3614 = vrcp.pop %v3611
    %v3615 = vmul.f32 1.0, %v3614
    %v3616 = vrcp.pop %v3612
    %v3617 = vmul.f32 1.0, %v3616
    %v3618 = vrcp.pop %v3613
    %v3619 = vmul.f32 1.0, %v3618
    %v3620 = vtanh.pop %v3601
    %v3621 = vmul.f32 %v3617, %v2658
    %v3622 = vmul.f32 %v3615, %v3620
    %v3623 = vadd.f32 %v3621, %v3622
    %v3624 = vtanh.pop %v3623
    %v3625 = vmul.f32 %v3619, %v3624
    %v3626 = vld [vmem:[#allocation15] sm:$0xff]
    %v3627 = vld [vmem:[#allocation15 + $0x8] sm:$0xff]
    %v3628 = vld [vmem:[#allocation15 + $0x10] sm:$0xff]
    %v3629 = vld [vmem:[#allocation15 + $0x18] sm:$0xff]
    %v3630 = vld [vmem:[#allocation15 + $0x20] sm:$0xff]
    %v3631 = vld [vmem:[#allocation15 + $0x28] sm:$0xff]
    %v3632 = vld [vmem:[#allocation15 + $0x30] sm:$0xff]
    %v3633 = vld [vmem:[#allocation15 + $0x38] sm:$0xff]
    %v3634 = vld [vmem:[#allocation15 + $0x40] sm:$0xff]
    %v3635 = vld [vmem:[#allocation15 + $0x48] sm:$0xff]
    %v3636 = vld [vmem:[#allocation15 + $0x50] sm:$0xff]
    %v3637 = vld [vmem:[#allocation15 + $0x58] sm:$0xff]
    %v3638 = vld [vmem:[#allocation15 + $0x60] sm:$0xff]
    %v3639 = vld [vmem:[#allocation15 + $0x68] sm:$0xff]
    %v3640 = vld [vmem:[#allocation15 + $0x70] sm:$0xff]
    %v3641 = vld [vmem:[#allocation15 + $0x78] sm:$0xff]
    %v3642 = vld [vmem:[#allocation15 + $0x80] sm:$0xff]
    %v3643 = vld [vmem:[#allocation15 + $0x88] sm:$0xff]
    %v3644 = vld [vmem:[#allocation15 + $0x90] sm:$0xff]
    %v3645 = vld [vmem:[#allocation15 + $0x98] sm:$0xff]
    %v3646 = vld [vmem:[#allocation15 + $0xa0] sm:$0xff]
    %v3647 = vld [vmem:[#allocation15 + $0xa8] sm:$0xff]
    %v3648 = vld [vmem:[#allocation15 + $0xb0] sm:$0xff]
    %v3649 = vld [vmem:[#allocation15 + $0xb8] sm:$0xff]
    %v3650 = vld [vmem:[#allocation15 + $0xc0] sm:$0xff]
    %v3651 = vld [vmem:[#allocation15 + $0xc8] sm:$0xff]
    %v3652 = vld [vmem:[#allocation15 + $0xd0] sm:$0xff]
    %v3653 = vld [vmem:[#allocation15 + $0xd8] sm:$0xff]
    %v3654 = vld [vmem:[#allocation15 + $0xe0] sm:$0xff]
    %v3655 = vld [vmem:[#allocation15 + $0xe8] sm:$0xff]
    %v3656 = vld [vmem:[#allocation15 + $0xf0] sm:$0xff]
    %v3657 = vld [vmem:[#allocation15 + $0xf8] sm:$0xff]
    %v3658 = vld [vmem:[#allocation15 + $0x100] sm:$0xff]
    %v3659 = vld [vmem:[#allocation15 + $0x108] sm:$0xff]
    %v3660 = vld [vmem:[#allocation15 + $0x110] sm:$0xff]
    %v3661 = vld [vmem:[#allocation15 + $0x118] sm:$0xff]
    %v3662 = vld [vmem:[#allocation15 + $0x120] sm:$0xff]
    %v3663 = vld [vmem:[#allocation15 + $0x128] sm:$0xff]
    %v3664 = vld [vmem:[#allocation15 + $0x130] sm:$0xff]
    %v3665 = vld [vmem:[#allocation15 + $0x138] sm:$0xff]
    %v3666 = vld [vmem:[#allocation15 + $0x140] sm:$0xff]
    %v3667 = vld [vmem:[#allocation15 + $0x148] sm:$0xff]
    %v3668 = vld [vmem:[#allocation15 + $0x150] sm:$0xff]
    %v3669 = vld [vmem:[#allocation15 + $0x158] sm:$0xff]
    %v3670 = vld [vmem:[#allocation15 + $0x160] sm:$0xff]
    %v3671 = vld [vmem:[#allocation15 + $0x168] sm:$0xff]
    %v3672 = vld [vmem:[#allocation15 + $0x170] sm:$0xff]
    %v3673 = vld [vmem:[#allocation15 + $0x178] sm:$0xff]
    %v3674 = vld [vmem:[#allocation15 + $0x180] sm:$0xff]
    %v3675 = vld [vmem:[#allocation15 + $0x188] sm:$0xff]
    %v3676 = vld [vmem:[#allocation15 + $0x190] sm:$0xff]
    %v3677 = vld [vmem:[#allocation15 + $0x198] sm:$0xff]
    %v3678 = vld [vmem:[#allocation15 + $0x1a0] sm:$0xff]
    %v3679 = vld [vmem:[#allocation15 + $0x1a8] sm:$0xff]
    %v3680 = vld [vmem:[#allocation15 + $0x1b0] sm:$0xff]
    %v3681 = vld [vmem:[#allocation15 + $0x1b8] sm:$0xff]
    %v3682 = vld [vmem:[#allocation15 + $0x1c0] sm:$0xff]
    %v3683 = vld [vmem:[#allocation15 + $0x1c8] sm:$0xff]
    %v3684 = vld [vmem:[#allocation15 + $0x1d0] sm:$0xff]
    %v3685 = vld [vmem:[#allocation15 + $0x1d8] sm:$0xff]
    %v3686 = vld [vmem:[#allocation15 + $0x1e0] sm:$0xff]
    %v3687 = vld [vmem:[#allocation15 + $0x1e8] sm:$0xff]
    %v3688 = vld [vmem:[#allocation15 + $0x1f0] sm:$0xff]
    %v3689 = vld [vmem:[#allocation15 + $0x1f8] sm:$0xff]
    %v3690 = vld [vmem:[#allocation16] sm:$0xff]
    %v3691 = vld [vmem:[#allocation16 + $0x8] sm:$0xff]
    %v3692 = vld [vmem:[#allocation16 + $0x10] sm:$0xff]
    %v3693 = vld [vmem:[#allocation16 + $0x18] sm:$0xff]
    %v3694 = vld [vmem:[#allocation16 + $0x20] sm:$0xff]
    %v3695 = vld [vmem:[#allocation16 + $0x28] sm:$0xff]
    %v3696 = vld [vmem:[#allocation16 + $0x30] sm:$0xff]
    %v3697 = vld [vmem:[#allocation16 + $0x38] sm:$0xff]
    %v3698 = vld [vmem:[#allocation16 + $0x40] sm:$0xff]
    %v3699 = vld [vmem:[#allocation16 + $0x48] sm:$0xff]
    %v3700 = vld [vmem:[#allocation16 + $0x50] sm:$0xff]
    %v3701 = vld [vmem:[#allocation16 + $0x58] sm:$0xff]
    %v3702 = vld [vmem:[#allocation16 + $0x60] sm:$0xff]
    %v3703 = vld [vmem:[#allocation16 + $0x68] sm:$0xff]
    %v3704 = vld [vmem:[#allocation16 + $0x70] sm:$0xff]
    %v3705 = vld [vmem:[#allocation16 + $0x78] sm:$0xff]
    %v3706 = vld [vmem:[#allocation16 + $0x80] sm:$0xff]
    %v3707 = vld [vmem:[#allocation16 + $0x88] sm:$0xff]
    %v3708 = vld [vmem:[#allocation16 + $0x90] sm:$0xff]
    %v3709 = vld [vmem:[#allocation16 + $0x98] sm:$0xff]
    %v3710 = vld [vmem:[#allocation16 + $0xa0] sm:$0xff]
    %v3711 = vld [vmem:[#allocation16 + $0xa8] sm:$0xff]
    %v3712 = vld [vmem:[#allocation16 + $0xb0] sm:$0xff]
    %v3713 = vld [vmem:[#allocation16 + $0xb8] sm:$0xff]
    %v3714 = vld [vmem:[#allocation16 + $0xc0] sm:$0xff]
    %v3715 = vld [vmem:[#allocation16 + $0xc8] sm:$0xff]
    %v3716 = vld [vmem:[#allocation16 + $0xd0] sm:$0xff]
    %v3717 = vld [vmem:[#allocation16 + $0xd8] sm:$0xff]
    %v3718 = vld [vmem:[#allocation16 + $0xe0] sm:$0xff]
    %v3719 = vld [vmem:[#allocation16 + $0xe8] sm:$0xff]
    %v3720 = vld [vmem:[#allocation16 + $0xf0] sm:$0xff]
    %v3721 = vld [vmem:[#allocation16 + $0xf8] sm:$0xff]
    %v3722 = vld [vmem:[#allocation16 + $0x100] sm:$0xff]
    %v3723 = vld [vmem:[#allocation16 + $0x108] sm:$0xff]
    %v3724 = vld [vmem:[#allocation16 + $0x110] sm:$0xff]
    %v3725 = vld [vmem:[#allocation16 + $0x118] sm:$0xff]
    %v3726 = vld [vmem:[#allocation16 + $0x120] sm:$0xff]
    %v3727 = vld [vmem:[#allocation16 + $0x128] sm:$0xff]
    %v3728 = vld [vmem:[#allocation16 + $0x130] sm:$0xff]
    %v3729 = vld [vmem:[#allocation16 + $0x138] sm:$0xff]
    %v3730 = vld [vmem:[#allocation16 + $0x140] sm:$0xff]
    %v3731 = vld [vmem:[#allocation16 + $0x148] sm:$0xff]
    %v3732 = vld [vmem:[#allocation16 + $0x150] sm:$0xff]
    %v3733 = vld [vmem:[#allocation16 + $0x158] sm:$0xff]
    %v3734 = vld [vmem:[#allocation16 + $0x160] sm:$0xff]
    %v3735 = vld [vmem:[#allocation16 + $0x168] sm:$0xff]
    %v3736 = vld [vmem:[#allocation16 + $0x170] sm:$0xff]
    %v3737 = vld [vmem:[#allocation16 + $0x178] sm:$0xff]
    %v3738 = vld [vmem:[#allocation16 + $0x180] sm:$0xff]
    %v3739 = vld [vmem:[#allocation16 + $0x188] sm:$0xff]
    %v3740 = vld [vmem:[#allocation16 + $0x190] sm:$0xff]
    %v3741 = vld [vmem:[#allocation16 + $0x198] sm:$0xff]
    %v3742 = vld [vmem:[#allocation16 + $0x1a0] sm:$0xff]
    %v3743 = vld [vmem:[#allocation16 + $0x1a8] sm:$0xff]
    %v3744 = vld [vmem:[#allocation16 + $0x1b0] sm:$0xff]
    %v3745 = vld [vmem:[#allocation16 + $0x1b8] sm:$0xff]
    %v3746 = vld [vmem:[#allocation16 + $0x1c0] sm:$0xff]
    %v3747 = vld [vmem:[#allocation16 + $0x1c8] sm:$0xff]
    %v3748 = vld [vmem:[#allocation16 + $0x1d0] sm:$0xff]
    %v3749 = vld [vmem:[#allocation16 + $0x1d8] sm:$0xff]
    %v3750 = vld [vmem:[#allocation16 + $0x1e0] sm:$0xff]
    %v3751 = vld [vmem:[#allocation16 + $0x1e8] sm:$0xff]
    %v3752 = vld [vmem:[#allocation16 + $0x1f0] sm:$0xff]
    %v3753 = vld [vmem:[#allocation16 + $0x1f8] sm:$0xff]
    %3754 = vmatprep.subr.mxu0 %v3691
    %3755 = vmatpush1.msra.mxu0 %v3690
    %3756 = vmatprep.subr.mxu0 %v3695
    %3757 = vmatpush1.msra.mxu0 %v3694
    %3758 = vmatprep.subr.mxu0 %v3699
    %3759 = vmatpush1.msra.mxu0 %v3698
    %3760 = vmatprep.subr.mxu0 %v3703
    %3761 = vmatpush1.msra.mxu0 %v3702
    %3762 = vmatprep.subr.mxu0 %v3707
    %3763 = vmatpush1.msra.mxu0 %v3706
    %3764 = vmatprep.subr.mxu0 %v3711
    %3765 = vmatpush1.msra.mxu0 %v3710
    %3766 = vmatprep.subr.mxu0 %v3715
    %3767 = vmatpush1.msra.mxu0 %v3714
    %3768 = vmatprep.subr.mxu0 %v3719
    %3769 = vmatpush1.msra.mxu0 %v3718
    %3770 = vmatprep.subr.mxu0 %v3723
    %3771 = vmatpush1.msra.mxu0 %v3722
    %3772 = vmatprep.subr.mxu0 %v3727
    %3773 = vmatpush1.msra.mxu0 %v3726
    %3774 = vmatprep.subr.mxu0 %v3731
    %3775 = vmatpush1.msra.mxu0 %v3730
    %3776 = vmatprep.subr.mxu0 %v3735
    %3777 = vmatpush1.msra.mxu0 %v3734
    %3778 = vmatprep.subr.mxu0 %v3739
    %3779 = vmatpush1.msra.mxu0 %v3738
    %3780 = vmatprep.subr.mxu0 %v3743
    %3781 = vmatpush1.msra.mxu0 %v3742
    %3782 = vmatprep.subr.mxu0 %v3747
    %3783 = vmatpush1.msra.mxu0 %v3746
    %3784 = vmatprep.subr.mxu0 %v3751
    %3785 = vmatpush1.msra.mxu0 %v3750
    %3786 = vmatprep.subr.mxu0 0.0
    %3787 = vmatpush1.msra.mxu0 0.0
    %3788 = vmatprep.subr.mxu0 0.0
    %3789 = vmatpush1.msra.mxu0 0.0
    %3790 = vmatprep.subr.mxu0 0.0
    %3791 = vmatpush1.msra.mxu0 0.0
    %3792 = vmatprep.subr.mxu0 0.0
    %3793 = vmatpush1.msra.mxu0 0.0
    %3794 = vmatprep.subr.mxu0 0.0
    %3795 = vmatpush1.msra.mxu0 0.0
    %3796 = vmatprep.subr.mxu0 0.0
    %3797 = vmatpush1.msra.mxu0 0.0
    %3798 = vmatprep.subr.mxu0 0.0
    %3799 = vmatpush1.msra.mxu0 0.0
    %3800 = vmatprep.subr.mxu0 0.0
    %3801 = vmatpush1.msra.mxu0 0.0
    %3802 = vmatprep.subr.mxu0 0.0
    %3803 = vmatpush1.msra.mxu0 0.0
    %3804 = vmatprep.subr.mxu0 0.0
    %3805 = vmatpush1.msra.mxu0 0.0
    %3806 = vmatprep.subr.mxu0 0.0
    %3807 = vmatpush1.msra.mxu0 0.0
    %3808 = vmatprep.subr.mxu0 0.0
    %3809 = vmatpush1.msra.mxu0 0.0
    %3810 = vmatprep.subr.mxu0 0.0
    %3811 = vmatpush1.msra.mxu0 0.0
    %3812 = vmatprep.subr.mxu0 0.0
    %3813 = vmatpush1.msra.mxu0 0.0
    %3814 = vmatprep.subr.mxu0 0.0
    %3815 = vmatpush1.msra.mxu0 0.0
    %3816 = vmatprep.subr.mxu0 0.0
    %3817 = vmatpush1.msra.mxu0 0.0
    %3818 = vmatprep.mubr.f32.mxu0 0.0
    %3819 = vmatmul.mubr.f32.gmra.mrb[0].mxu0 %v3100
    %v3820 = vpop.f32.mrb[0].mxu0
    %v3821 = vadd.f32 0.0, %v3820
    %v3822 = vpop.f32.mrb[0].mxu0
    %v3823 = vadd.f32 0.0, %v3822
    %3824 = vdwg.mxu0
    %3825 = vmatprep.subr.mxu0 %v3693
    %3826 = vmatpush1.msra.mxu0 %v3692
    %3827 = vmatprep.subr.mxu0 %v3697
    %3828 = vmatpush1.msra.mxu0 %v3696
    %3829 = vmatprep.subr.mxu0 %v3701
    %3830 = vmatpush1.msra.mxu0 %v3700
    %3831 = vmatprep.subr.mxu0 %v3705
    %3832 = vmatpush1.msra.mxu0 %v3704
    %3833 = vmatprep.subr.mxu0 %v3709
    %3834 = vmatpush1.msra.mxu0 %v3708
    %3835 = vmatprep.subr.mxu0 %v3713
    %3836 = vmatpush1.msra.mxu0 %v3712
    %3837 = vmatprep.subr.mxu0 %v3717
    %3838 = vmatpush1.msra.mxu0 %v3716
    %3839 = vmatprep.subr.mxu0 %v3721
    %3840 = vmatpush1.msra.mxu0 %v3720
    %3841 = vmatprep.subr.mxu0 %v3725
    %3842 = vmatpush1.msra.mxu0 %v3724
    %3843 = vmatprep.subr.mxu0 %v3729
    %3844 = vmatpush1.msra.mxu0 %v3728
    %3845 = vmatprep.subr.mxu0 %v3733
    %3846 = vmatpush1.msra.mxu0 %v3732
    %3847 = vmatprep.subr.mxu0 %v3737
    %3848 = vmatpush1.msra.mxu0 %v3736
    %3849 = vmatprep.subr.mxu0 %v3741
    %3850 = vmatpush1.msra.mxu0 %v3740
    %3851 = vmatprep.subr.mxu0 %v3745
    %3852 = vmatpush1.msra.mxu0 %v3744
    %3853 = vmatprep.subr.mxu0 %v3749
    %3854 = vmatpush1.msra.mxu0 %v3748
    %3855 = vmatprep.subr.mxu0 %v3753
    %3856 = vmatpush1.msra.mxu0 %v3752
    %3857 = vmatprep.subr.mxu0 0.0
    %3858 = vmatpush1.msra.mxu0 0.0
    %3859 = vmatprep.subr.mxu0 0.0
    %3860 = vmatpush1.msra.mxu0 0.0
    %3861 = vmatprep.subr.mxu0 0.0
    %3862 = vmatpush1.msra.mxu0 0.0
    %3863 = vmatprep.subr.mxu0 0.0
    %3864 = vmatpush1.msra.mxu0 0.0
    %3865 = vmatprep.subr.mxu0 0.0
    %3866 = vmatpush1.msra.mxu0 0.0
    %3867 = vmatprep.subr.mxu0 0.0
    %3868 = vmatpush1.msra.mxu0 0.0
    %3869 = vmatprep.subr.mxu0 0.0
    %3870 = vmatpush1.msra.mxu0 0.0
    %3871 = vmatprep.subr.mxu0 0.0
    %3872 = vmatpush1.msra.mxu0 0.0
    %3873 = vmatprep.subr.mxu0 0.0
    %3874 = vmatpush1.msra.mxu0 0.0
    %3875 = vmatprep.subr.mxu0 0.0
    %3876 = vmatpush1.msra.mxu0 0.0
    %3877 = vmatprep.subr.mxu0 0.0
    %3878 = vmatpush1.msra.mxu0 0.0
    %3879 = vmatprep.subr.mxu0 0.0
    %3880 = vmatpush1.msra.mxu0 0.0
    %3881 = vmatprep.subr.mxu0 0.0
    %3882 = vmatpush1.msra.mxu0 0.0
    %3883 = vmatprep.subr.mxu0 0.0
    %3884 = vmatpush1.msra.mxu0 0.0
    %3885 = vmatprep.subr.mxu0 0.0
    %3886 = vmatpush1.msra.mxu0 0.0
    %3887 = vmatprep.subr.mxu0 0.0
    %3888 = vmatpush1.msra.mxu0 0.0
    %3889 = vmatprep.mubr.f32.mxu0 0.0
    %3890 = vmatmul.mubr.f32.gmra.mrb[0].mxu0 %v3100
    %v3891 = vpop.f32.mrb[0].mxu0
    %v3892 = vadd.f32 0.0, %v3891
    %v3893 = vpop.f32.mrb[0].mxu0
    %v3894 = vadd.f32 0.0, %v3893
    %3895 = vdwg.mxu0
    %3896 = vmatprep.subr.mxu0 %v3627
    %3897 = vmatpush1.msra.mxu0 %v3626
    %3898 = vmatprep.subr.mxu0 %v3631
    %3899 = vmatpush1.msra.mxu0 %v3630
    %3900 = vmatprep.subr.mxu0 %v3635
    %3901 = vmatpush1.msra.mxu0 %v3634
    %3902 = vmatprep.subr.mxu0 %v3639
    %3903 = vmatpush1.msra.mxu0 %v3638
    %3904 = vmatprep.subr.mxu0 %v3643
    %3905 = vmatpush1.msra.mxu0 %v3642
    %3906 = vmatprep.subr.mxu0 %v3647
    %3907 = vmatpush1.msra.mxu0 %v3646
    %3908 = vmatprep.subr.mxu0 %v3651
    %3909 = vmatpush1.msra.mxu0 %v3650
    %3910 = vmatprep.subr.mxu0 %v3655
    %3911 = vmatpush1.msra.mxu0 %v3654
    %3912 = vmatprep.subr.mxu0 %v3659
    %3913 = vmatpush1.msra.mxu0 %v3658
    %3914 = vmatprep.subr.mxu0 %v3663
    %3915 = vmatpush1.msra.mxu0 %v3662
    %3916 = vmatprep.subr.mxu0 %v3667
    %3917 = vmatpush1.msra.mxu0 %v3666
    %3918 = vmatprep.subr.mxu0 %v3671
    %3919 = vmatpush1.msra.mxu0 %v3670
    %3920 = vmatprep.subr.mxu0 %v3675
    %3921 = vmatpush1.msra.mxu0 %v3674
    %3922 = vmatprep.subr.mxu0 %v3679
    %3923 = vmatpush1.msra.mxu0 %v3678
    %3924 = vmatprep.subr.mxu0 %v3683
    %3925 = vmatpush1.msra.mxu0 %v3682
    %3926 = vmatprep.subr.mxu0 %v3687
    %3927 = vmatpush1.msra.mxu0 %v3686
    %3928 = vmatprep.subr.mxu0 0.0
    %3929 = vmatpush1.msra.mxu0 0.0
    %3930 = vmatprep.subr.mxu0 0.0
    %3931 = vmatpush1.msra.mxu0 0.0
    %3932 = vmatprep.subr.mxu0 0.0
    %3933 = vmatpush1.msra.mxu0 0.0
    %3934 = vmatprep.subr.mxu0 0.0
    %3935 = vmatpush1.msra.mxu0 0.0
    %3936 = vmatprep.subr.mxu0 0.0
    %3937 = vmatpush1.msra.mxu0 0.0
    %3938 = vmatprep.subr.mxu0 0.0
    %3939 = vmatpush1.msra.mxu0 0.0
    %3940 = vmatprep.subr.mxu0 0.0
    %3941 = vmatpush1.msra.mxu0 0.0
    %3942 = vmatprep.subr.mxu0 0.0
    %3943 = vmatpush1.msra.mxu0 0.0
    %3944 = vmatprep.subr.mxu0 0.0
    %3945 = vmatpush1.msra.mxu0 0.0
    %3946 = vmatprep.subr.mxu0 0.0
    %3947 = vmatpush1.msra.mxu0 0.0
    %3948 = vmatprep.subr.mxu0 0.0
    %3949 = vmatpush1.msra.mxu0 0.0
    %3950 = vmatprep.subr.mxu0 0.0
    %3951 = vmatpush1.msra.mxu0 0.0
    %3952 = vmatprep.subr.mxu0 0.0
    %3953 = vmatpush1.msra.mxu0 0.0
    %3954 = vmatprep.subr.mxu0 0.0
    %3955 = vmatpush1.msra.mxu0 0.0
    %3956 = vmatprep.subr.mxu0 0.0
    %3957 = vmatpush1.msra.mxu0 0.0
    %3958 = vmatprep.subr.mxu0 0.0
    %3959 = vmatpush1.msra.mxu0 0.0
    %3960 = vmatprep.mubr.f32.mxu0 0.0
    %3961 = vmatmul.mubr.f32.gmra.mrb[0].mxu0 %v3625
    %v3962 = vpop.f32.mrb[0].mxu0
    %v3963 = vadd.f32 %v3821, %v3962
    %v3964 = vpop.f32.mrb[0].mxu0
    %v3965 = vadd.f32 %v3823, %v3964
    %3966 = vdwg.mxu0
    %3967 = vmatprep.subr.mxu0 %v3629
    %3968 = vmatpush1.msra.mxu0 %v3628
    %3969 = vmatprep.subr.mxu0 %v3633
    %3970 = vmatpush1.msra.mxu0 %v3632
    %3971 = vmatprep.subr.mxu0 %v3637
    %3972 = vmatpush1.msra.mxu0 %v3636
    %3973 = vmatprep.subr.mxu0 %v3641
    %3974 = vmatpush1.msra.mxu0 %v3640
    %3975 = vmatprep.subr.mxu0 %v3645
    %3976 = vmatpush1.msra.mxu0 %v3644
    %3977 = vmatprep.subr.mxu0 %v3649
    %3978 = vmatpush1.msra.mxu0 %v3648
    %3979 = vmatprep.subr.mxu0 %v3653
    %3980 = vmatpush1.msra.mxu0 %v3652
    %3981 = vmatprep.subr.mxu0 %v3657
    %3982 = vmatpush1.msra.mxu0 %v3656
    %3983 = vmatprep.subr.mxu0 %v3661
    %3984 = vmatpush1.msra.mxu0 %v3660
    %3985 = vmatprep.subr.mxu0 %v3665
    %3986 = vmatpush1.msra.mxu0 %v3664
    %3987 = vmatprep.subr.mxu0 %v3669
    %3988 = vmatpush1.msra.mxu0 %v3668
    %3989 = vmatprep.subr.mxu0 %v3673
    %3990 = vmatpush1.msra.mxu0 %v3672
    %3991 = vmatprep.subr.mxu0 %v3677
    %3992 = vmatpush1.msra.mxu0 %v3676
    %3993 = vmatprep.subr.mxu0 %v3681
    %3994 = vmatpush1.msra.mxu0 %v3680
    %3995 = vmatprep.subr.mxu0 %v3685
    %3996 = vmatpush1.msra.mxu0 %v3684
    %3997 = vmatprep.subr.mxu0 %v3689
    %3998 = vmatpush1.msra.mxu0 %v3688
    %3999 = vmatprep.subr.mxu0 0.0
    %4000 = vmatpush1.msra.mxu0 0.0
    %4001 = vmatprep.subr.mxu0 0.0
    %4002 = vmatpush1.msra.mxu0 0.0
    %4003 = vmatprep.subr.mxu0 0.0
    %4004 = vmatpush1.msra.mxu0 0.0
    %4005 = vmatprep.subr.mxu0 0.0
    %4006 = vmatpush1.msra.mxu0 0.0
    %4007 = vmatprep.subr.mxu0 0.0
    %4008 = vmatpush1.msra.mxu0 0.0
    %4009 = vmatprep.subr.mxu0 0.0
    %4010 = vmatpush1.msra.mxu0 0.0
    %4011 = vmatprep.subr.mxu0 0.0
    %4012 = vmatpush1.msra.mxu0 0.0
    %4013 = vmatprep.subr.mxu0 0.0
    %4014 = vmatpush1.msra.mxu0 0.0
    %4015 = vmatprep.subr.mxu0 0.0
    %4016 = vmatpush1.msra.mxu0 0.0
    %4017 = vmatprep.subr.mxu0 0.0
    %4018 = vmatpush1.msra.mxu0 0.0
    %4019 = vmatprep.subr.mxu0 0.0
    %4020 = vmatpush1.msra.mxu0 0.0
    %4021 = vmatprep.subr.mxu0 0.0
    %4022 = vmatpush1.msra.mxu0 0.0
    %4023 = vmatprep.subr.mxu0 0.0
    %4024 = vmatpush1.msra.mxu0 0.0
    %4025 = vmatprep.subr.mxu0 0.0
    %4026 = vmatpush1.msra.mxu0 0.0
    %4027 = vmatprep.subr.mxu0 0.0
    %4028 = vmatpush1.msra.mxu0 0.0
    %4029 = vmatprep.subr.mxu0 0.0
    %4030 = vmatpush1.msra.mxu0 0.0
    %4031 = vmatprep.mubr.f32.mxu0 0.0
    %4032 = vmatmul.mubr.f32.gmra.mrb[0].mxu0 %v3625
    %v4033 = vpop.f32.mrb[0].mxu0
    %v4034 = vadd.f32 %v3892, %v4033
    %v4035 = vpop.f32.mrb[0].mxu0
    %v4036 = vadd.f32 %v3894, %v4035
    %4037 = vdwg.mxu0
    %v4038 = vadd.f32 %v3963, %v179
    %v4039 = vadd.f32 %v3965, %v183
    %v4040 = vadd.f32 %v4034, %v187
    %v4041 = vadd.f32 %v4036, %v191
    %v4042 = vxor.u32 %v4038, 2147483648
    %v4043 = vxor.u32 %v4039, 2147483648
    %v4044 = vxor.u32 %v4040, 2147483648
    %v4045 = vmul.f32 %v4042, 1.442695
    %v4046 = vpow.pop %v4045
    %v4047 = vmul.f32 %v4043, 1.442695
    %v4048 = vpow.pop %v4047
    %v4049 = vmul.f32 %v4044, 1.442695
    %v4050 = vpow.pop %v4049
    %v4051 = vadd.f32 %v4046, 1.0
    %v4052 = vadd.f32 %v4048, 1.0
    %v4053 = vadd.f32 %v4050, 1.0
    %v4054 = vrcp.pop %v4051
    %v4055 = vmul.f32 1.0, %v4054
    %v4056 = vrcp.pop %v4052
    %v4057 = vmul.f32 1.0, %v4056
    %v4058 = vrcp.pop %v4053
    %v4059 = vmul.f32 1.0, %v4058
    %v4060 = vtanh.pop %v4041
    %v4061 = vmul.f32 %v4057, %v3098
    %v4062 = vmul.f32 %v4055, %v4060
    %v4063 = vadd.f32 %v4061, %v4062
    %v4064 = vtanh.pop %v4063
    %v4065 = vmul.f32 %v4059, %v4064
    %s4066 = scalar_lea.vmem [#allocation4], 24
    %4067 = vst [vmem:[%s4066] sm:$0xff] %v4065
    %s4068 = sadd.s32 %s1172, 4
    %s4069 = smul.u32 %s4068, 8
    %s4070 = sld [smem:[#allocation6 + %s4069]]
    %s4071 = sshra.s32 %s4070, 3
    %s4072 = sand.u32 %s4070, 7
    %s4073 = sshra.s32 %s4070, 3
    %s4074 = sand.u32 %s4070, 7
    %s4075 = smul.u32 %s4071, 4
    %s4076 = smul.u32 %s4075, 8
    %s4077 = sadd.s32 %s4076, %s4074
    %s4078 = scalar_lea.vmem [#allocation12], %s4077
    %v4079 = vld [vmem:[%s4078] ss:$8 sm:$0xf]
    %s4080 = sadd.s32 %s4069, 1
    %s4081 = sld [smem:[#allocation6 + %s4080]]
    %s4082 = sshra.s32 %s4081, 3
    %s4083 = sand.u32 %s4081, 7
    %s4084 = sshra.s32 %s4081, 3
    %s4085 = sand.u32 %s4081, 7
    %s4086 = smul.u32 %s4082, 4
    %s4087 = smul.u32 %s4086, 8
    %s4088 = sadd.s32 %s4087, %s4085
    %s4089 = scalar_lea.vmem [#allocation12], %s4088
    %v4090 = vld [vmem:[%s4089] ss:$8 sm:$0xf]
    %s4091 = sadd.s32 %s4069, 2
    %s4092 = sld [smem:[#allocation6 + %s4091]]
    %s4093 = sshra.s32 %s4092, 3
    %s4094 = sand.u32 %s4092, 7
    %s4095 = sshra.s32 %s4092, 3
    %s4096 = sand.u32 %s4092, 7
    %s4097 = smul.u32 %s4093, 4
    %s4098 = smul.u32 %s4097, 8
    %s4099 = sadd.s32 %s4098, %s4096
    %s4100 = scalar_lea.vmem [#allocation12], %s4099
    %v4101 = vld [vmem:[%s4100] ss:$8 sm:$0xf]
    %s4102 = sadd.s32 %s4069, 3
    %s4103 = sld [smem:[#allocation6 + %s4102]]
    %s4104 = sshra.s32 %s4103, 3
    %s4105 = sand.u32 %s4103, 7
    %s4106 = sshra.s32 %s4103, 3
    %s4107 = sand.u32 %s4103, 7
    %s4108 = smul.u32 %s4104, 4
    %s4109 = smul.u32 %s4108, 8
    %s4110 = sadd.s32 %s4109, %s4107
    %s4111 = scalar_lea.vmem [#allocation12], %s4110
    %v4112 = vld [vmem:[%s4111] ss:$8 sm:$0xf]
    %s4113 = sadd.s32 %s4069, 4
    %s4114 = sld [smem:[#allocation6 + %s4113]]
    %s4115 = sshra.s32 %s4114, 3
    %s4116 = sand.u32 %s4114, 7
    %s4117 = sshra.s32 %s4114, 3
    %s4118 = sand.u32 %s4114, 7
    %s4119 = smul.u32 %s4115, 4
    %s4120 = smul.u32 %s4119, 8
    %s4121 = sadd.s32 %s4120, %s4118
    %s4122 = scalar_lea.vmem [#allocation12], %s4121
    %v4123 = vld [vmem:[%s4122] ss:$8 sm:$0xf]
    %s4124 = sadd.s32 %s4069, 5
    %s4125 = sld [smem:[#allocation6 + %s4124]]
    %s4126 = sshra.s32 %s4125, 3
    %s4127 = sand.u32 %s4125, 7
    %s4128 = sshra.s32 %s4125, 3
    %s4129 = sand.u32 %s4125, 7
    %s4130 = smul.u32 %s4126, 4
    %s4131 = smul.u32 %s4130, 8
    %s4132 = sadd.s32 %s4131, %s4129
    %s4133 = scalar_lea.vmem [#allocation12], %s4132
    %v4134 = vld [vmem:[%s4133] ss:$8 sm:$0xf]
    %s4135 = sadd.s32 %s4069, 6
    %s4136 = sld [smem:[#allocation6 + %s4135]]
    %s4137 = sshra.s32 %s4136, 3
    %s4138 = sand.u32 %s4136, 7
    %s4139 = sshra.s32 %s4136, 3
    %s4140 = sand.u32 %s4136, 7
    %s4141 = smul.u32 %s4137, 4
    %s4142 = smul.u32 %s4141, 8
    %s4143 = sadd.s32 %s4142, %s4140
    %s4144 = scalar_lea.vmem [#allocation12], %s4143
    %v4145 = vld [vmem:[%s4144] ss:$8 sm:$0xf]
    %s4146 = sadd.s32 %s4069, 7
    %s4147 = sld [smem:[#allocation6 + %s4146]]
    %s4148 = sshra.s32 %s4147, 3
    %s4149 = sand.u32 %s4147, 7
    %s4150 = sshra.s32 %s4147, 3
    %s4151 = sand.u32 %s4147, 7
    %s4152 = smul.u32 %s4148, 4
    %s4153 = smul.u32 %s4152, 8
    %s4154 = sadd.s32 %s4153, %s4151
    %s4155 = scalar_lea.vmem [#allocation12], %s4154
    %v4156 = vld [vmem:[%s4155] ss:$8 sm:$0xf]
    %v4158 = vlaneseq
    %v4159 = vshrl.u32 %v4158, 7
    %v4160 = vsub.s32 0, %v4159
    %v4161 = vrot.slane %v4079, %v4160
    %v4162 = vlaneseq
    %v4163 = vshrl.u32 %v4162, 7
    %v4164 = vsub.s32 1, %v4163
    %v4165 = vrot.slane %v4079, %v4164
    %v4166 = vlaneseq
    %v4167 = vshrl.u32 %v4166, 7
    %v4168 = vsub.s32 2, %v4167
    %v4169 = vrot.slane %v4079, %v4168
    %v4170 = vlaneseq
    %v4171 = vshrl.u32 %v4170, 7
    %v4172 = vsub.s32 3, %v4171
    %v4173 = vrot.slane %v4079, %v4172
    %v4179 = vlaneseq
    %v4180 = vshrl.u32 %v4179, 7
    %v4181 = vsub.s32 0, %v4180
    %v4182 = vrot.slane %v4090, %v4181
    %v4183 = vlaneseq
    %v4184 = vshrl.u32 %v4183, 7
    %v4185 = vsub.s32 1, %v4184
    %v4186 = vrot.slane %v4090, %v4185
    %v4187 = vlaneseq
    %v4188 = vshrl.u32 %v4187, 7
    %v4189 = vsub.s32 2, %v4188
    %v4190 = vrot.slane %v4090, %v4189
    %v4191 = vlaneseq
    %v4192 = vshrl.u32 %v4191, 7
    %v4193 = vsub.s32 3, %v4192
    %v4194 = vrot.slane %v4090, %v4193
    %v4200 = vlaneseq
    %v4201 = vshrl.u32 %v4200, 7
    %v4202 = vsub.s32 0, %v4201
    %v4203 = vrot.slane %v4101, %v4202
    %v4204 = vlaneseq
    %v4205 = vshrl.u32 %v4204, 7
    %v4206 = vsub.s32 1, %v4205
    %v4207 = vrot.slane %v4101, %v4206
    %v4208 = vlaneseq
    %v4209 = vshrl.u32 %v4208, 7
    %v4210 = vsub.s32 2, %v4209
    %v4211 = vrot.slane %v4101, %v4210
    %v4212 = vlaneseq
    %v4213 = vshrl.u32 %v4212, 7
    %v4214 = vsub.s32 3, %v4213
    %v4215 = vrot.slane %v4101, %v4214
    %v4221 = vlaneseq
    %v4222 = vshrl.u32 %v4221, 7
    %v4223 = vsub.s32 0, %v4222
    %v4224 = vrot.slane %v4112, %v4223
    %v4225 = vlaneseq
    %v4226 = vshrl.u32 %v4225, 7
    %v4227 = vsub.s32 1, %v4226
    %v4228 = vrot.slane %v4112, %v4227
    %v4229 = vlaneseq
    %v4230 = vshrl.u32 %v4229, 7
    %v4231 = vsub.s32 2, %v4230
    %v4232 = vrot.slane %v4112, %v4231
    %v4233 = vlaneseq
    %v4234 = vshrl.u32 %v4233, 7
    %v4235 = vsub.s32 3, %v4234
    %v4236 = vrot.slane %v4112, %v4235
    %v4242 = vlaneseq
    %v4243 = vshrl.u32 %v4242, 7
    %v4244 = vsub.s32 0, %v4243
    %v4245 = vrot.slane %v4123, %v4244
    %v4246 = vlaneseq
    %v4247 = vshrl.u32 %v4246, 7
    %v4248 = vsub.s32 1, %v4247
    %v4249 = vrot.slane %v4123, %v4248
    %v4250 = vlaneseq
    %v4251 = vshrl.u32 %v4250, 7
    %v4252 = vsub.s32 2, %v4251
    %v4253 = vrot.slane %v4123, %v4252
    %v4254 = vlaneseq
    %v4255 = vshrl.u32 %v4254, 7
    %v4256 = vsub.s32 3, %v4255
    %v4257 = vrot.slane %v4123, %v4256
    %v4263 = vlaneseq
    %v4264 = vshrl.u32 %v4263, 7
    %v4265 = vsub.s32 0, %v4264
    %v4266 = vrot.slane %v4134, %v4265
    %v4267 = vlaneseq
    %v4268 = vshrl.u32 %v4267, 7
    %v4269 = vsub.s32 1, %v4268
    %v4270 = vrot.slane %v4134, %v4269
    %v4271 = vlaneseq
    %v4272 = vshrl.u32 %v4271, 7
    %v4273 = vsub.s32 2, %v4272
    %v4274 = vrot.slane %v4134, %v4273
    %v4275 = vlaneseq
    %v4276 = vshrl.u32 %v4275, 7
    %v4277 = vsub.s32 3, %v4276
    %v4278 = vrot.slane %v4134, %v4277
    %v4284 = vlaneseq
    %v4285 = vshrl.u32 %v4284, 7
    %v4286 = vsub.s32 0, %v4285
    %v4287 = vrot.slane %v4145, %v4286
    %v4288 = vlaneseq
    %v4289 = vshrl.u32 %v4288, 7
    %v4290 = vsub.s32 1, %v4289
    %v4291 = vrot.slane %v4145, %v4290
    %v4292 = vlaneseq
    %v4293 = vshrl.u32 %v4292, 7
    %v4294 = vsub.s32 2, %v4293
    %v4295 = vrot.slane %v4145, %v4294
    %v4296 = vlaneseq
    %v4297 = vshrl.u32 %v4296, 7
    %v4298 = vsub.s32 3, %v4297
    %v4299 = vrot.slane %v4145, %v4298
    %v4305 = vlaneseq
    %v4306 = vshrl.u32 %v4305, 7
    %v4307 = vsub.s32 0, %v4306
    %v4308 = vrot.slane %v4156, %v4307
    %v4309 = vlaneseq
    %v4310 = vshrl.u32 %v4309, 7
    %v4311 = vsub.s32 1, %v4310
    %v4312 = vrot.slane %v4156, %v4311
    %v4313 = vlaneseq
    %v4314 = vshrl.u32 %v4313, 7
    %v4315 = vsub.s32 2, %v4314
    %v4316 = vrot.slane %v4156, %v4315
    %v4317 = vlaneseq
    %v4318 = vshrl.u32 %v4317, 7
    %v4319 = vsub.s32 3, %v4318
    %v4320 = vrot.slane %v4156, %v4319
    %v4325 = vsel %vm458, %v4161, %v4182
    %v4326 = vsel %vm458, %v4165, %v4186
    %v4327 = vsel %vm458, %v4169, %v4190
    %v4328 = vsel %vm458, %v4173, %v4194
    %v4329 = vsel %vm463, %v4325, %v4203
    %v4330 = vsel %vm463, %v4326, %v4207
    %v4331 = vsel %vm463, %v4327, %v4211
    %v4332 = vsel %vm463, %v4328, %v4215
    %v4333 = vsel %vm468, %v4329, %v4224
    %v4334 = vsel %vm468, %v4330, %v4228
    %v4335 = vsel %vm468, %v4331, %v4232
    %v4336 = vsel %vm468, %v4332, %v4236
    %v4337 = vsel %vm473, %v4333, %v4245
    %v4338 = vsel %vm473, %v4334, %v4249
    %v4339 = vsel %vm473, %v4335, %v4253
    %v4340 = vsel %vm473, %v4336, %v4257
    %v4341 = vsel %vm478, %v4337, %v4266
    %v4342 = vsel %vm478, %v4338, %v4270
    %v4343 = vsel %vm478, %v4339, %v4274
    %v4344 = vsel %vm478, %v4340, %v4278
    %v4345 = vsel %vm483, %v4341, %v4287
    %v4346 = vsel %vm483, %v4342, %v4291
    %v4347 = vsel %vm483, %v4343, %v4295
    %v4348 = vsel %vm483, %v4344, %v4299
    %v4349 = vsel %vm488, %v4345, %v4308
    %v4350 = vsel %vm488, %v4346, %v4312
    %v4351 = vsel %vm488, %v4347, %v4316
    %v4352 = vsel %vm488, %v4348, %v4320
    %v4353 = vld [vmem:[#allocation13] sm:$0xff]
    %v4354 = vld [vmem:[#allocation13 + $0x8] sm:$0xff]
    %v4355 = vld [vmem:[#allocation13 + $0x10] sm:$0xff]
    %v4356 = vld [vmem:[#allocation13 + $0x18] sm:$0xff]
    %v4357 = vld [vmem:[#allocation13 + $0x20] sm:$0xff]
    %v4358 = vld [vmem:[#allocation13 + $0x28] sm:$0xff]
    %v4359 = vld [vmem:[#allocation13 + $0x30] sm:$0xff]
    %v4360 = vld [vmem:[#allocation13 + $0x38] sm:$0xff]
    %v4361 = vld [vmem:[#allocation13 + $0x40] sm:$0xff]
    %v4362 = vld [vmem:[#allocation13 + $0x48] sm:$0xff]
    %v4363 = vld [vmem:[#allocation13 + $0x50] sm:$0xff]
    %v4364 = vld [vmem:[#allocation13 + $0x58] sm:$0xff]
    %v4365 = vld [vmem:[#allocation13 + $0x60] sm:$0xff]
    %v4366 = vld [vmem:[#allocation13 + $0x68] sm:$0xff]
    %v4367 = vld [vmem:[#allocation13 + $0x70] sm:$0xff]
    %v4368 = vld [vmem:[#allocation13 + $0x78] sm:$0xff]
    %v4369 = vld [vmem:[#allocation13 + $0x80] sm:$0xff]
    %v4370 = vld [vmem:[#allocation13 + $0x88] sm:$0xff]
    %v4371 = vld [vmem:[#allocation13 + $0x90] sm:$0xff]
    %v4372 = vld [vmem:[#allocation13 + $0x98] sm:$0xff]
    %v4373 = vld [vmem:[#allocation13 + $0xa0] sm:$0xff]
    %v4374 = vld [vmem:[#allocation13 + $0xa8] sm:$0xff]
    %v4375 = vld [vmem:[#allocation13 + $0xb0] sm:$0xff]
    %v4376 = vld [vmem:[#allocation13 + $0xb8] sm:$0xff]
    %v4377 = vld [vmem:[#allocation13 + $0xc0] sm:$0xff]
    %v4378 = vld [vmem:[#allocation13 + $0xc8] sm:$0xff]
    %v4379 = vld [vmem:[#allocation13 + $0xd0] sm:$0xff]
    %v4380 = vld [vmem:[#allocation13 + $0xd8] sm:$0xff]
    %v4381 = vld [vmem:[#allocation13 + $0xe0] sm:$0xff]
    %v4382 = vld [vmem:[#allocation13 + $0xe8] sm:$0xff]
    %v4383 = vld [vmem:[#allocation13 + $0xf0] sm:$0xff]
    %v4384 = vld [vmem:[#allocation13 + $0xf8] sm:$0xff]
    %v4385 = vld [vmem:[#allocation13 + $0x100] sm:$0xff]
    %v4386 = vld [vmem:[#allocation13 + $0x108] sm:$0xff]
    %v4387 = vld [vmem:[#allocation13 + $0x110] sm:$0xff]
    %v4388 = vld [vmem:[#allocation13 + $0x118] sm:$0xff]
    %v4389 = vld [vmem:[#allocation13 + $0x120] sm:$0xff]
    %v4390 = vld [vmem:[#allocation13 + $0x128] sm:$0xff]
    %v4391 = vld [vmem:[#allocation13 + $0x130] sm:$0xff]
    %v4392 = vld [vmem:[#allocation13 + $0x138] sm:$0xff]
    %v4393 = vld [vmem:[#allocation13 + $0x140] sm:$0xff]
    %v4394 = vld [vmem:[#allocation13 + $0x148] sm:$0xff]
    %v4395 = vld [vmem:[#allocation13 + $0x150] sm:$0xff]
    %v4396 = vld [vmem:[#allocation13 + $0x158] sm:$0xff]
    %v4397 = vld [vmem:[#allocation13 + $0x160] sm:$0xff]
    %v4398 = vld [vmem:[#allocation13 + $0x168] sm:$0xff]
    %v4399 = vld [vmem:[#allocation13 + $0x170] sm:$0xff]
    %v4400 = vld [vmem:[#allocation13 + $0x178] sm:$0xff]
    %v4401 = vld [vmem:[#allocation13 + $0x180] sm:$0xff]
    %v4402 = vld [vmem:[#allocation13 + $0x188] sm:$0xff]
    %v4403 = vld [vmem:[#allocation13 + $0x190] sm:$0xff]
    %v4404 = vld [vmem:[#allocation13 + $0x198] sm:$0xff]
    %v4405 = vld [vmem:[#allocation13 + $0x1a0] sm:$0xff]
    %v4406 = vld [vmem:[#allocation13 + $0x1a8] sm:$0xff]
    %v4407 = vld [vmem:[#allocation13 + $0x1b0] sm:$0xff]
    %v4408 = vld [vmem:[#allocation13 + $0x1b8] sm:$0xff]
    %v4409 = vld [vmem:[#allocation13 + $0x1c0] sm:$0xff]
    %v4410 = vld [vmem:[#allocation13 + $0x1c8] sm:$0xff]
    %v4411 = vld [vmem:[#allocation13 + $0x1d0] sm:$0xff]
    %v4412 = vld [vmem:[#allocation13 + $0x1d8] sm:$0xff]
    %v4413 = vld [vmem:[#allocation13 + $0x1e0] sm:$0xff]
    %v4414 = vld [vmem:[#allocation13 + $0x1e8] sm:$0xff]
    %v4415 = vld [vmem:[#allocation13 + $0x1f0] sm:$0xff]
    %v4416 = vld [vmem:[#allocation13 + $0x1f8] sm:$0xff]
    %4417 = vmatprep.subr.mxu0 %v4354
    %4418 = vmatpush1.msra.mxu0 %v4353
    %4419 = vmatprep.subr.mxu0 %v4358
    %4420 = vmatpush1.msra.mxu0 %v4357
    %4421 = vmatprep.subr.mxu0 %v4362
    %4422 = vmatpush1.msra.mxu0 %v4361
    %4423 = vmatprep.subr.mxu0 %v4366
    %4424 = vmatpush1.msra.mxu0 %v4365
    %4425 = vmatprep.subr.mxu0 %v4370
    %4426 = vmatpush1.msra.mxu0 %v4369
    %4427 = vmatprep.subr.mxu0 %v4374
    %4428 = vmatpush1.msra.mxu0 %v4373
    %4429 = vmatprep.subr.mxu0 %v4378
    %4430 = vmatpush1.msra.mxu0 %v4377
    %4431 = vmatprep.subr.mxu0 %v4382
    %4432 = vmatpush1.msra.mxu0 %v4381
    %4433 = vmatprep.subr.mxu0 %v4386
    %4434 = vmatpush1.msra.mxu0 %v4385
    %4435 = vmatprep.subr.mxu0 %v4390
    %4436 = vmatpush1.msra.mxu0 %v4389
    %4437 = vmatprep.subr.mxu0 %v4394
    %4438 = vmatpush1.msra.mxu0 %v4393
    %4439 = vmatprep.subr.mxu0 %v4398
    %4440 = vmatpush1.msra.mxu0 %v4397
    %4441 = vmatprep.subr.mxu0 %v4402
    %4442 = vmatpush1.msra.mxu0 %v4401
    %4443 = vmatprep.subr.mxu0 %v4406
    %4444 = vmatpush1.msra.mxu0 %v4405
    %4445 = vmatprep.subr.mxu0 %v4410
    %4446 = vmatpush1.msra.mxu0 %v4409
    %4447 = vmatprep.subr.mxu0 %v4414
    %4448 = vmatpush1.msra.mxu0 %v4413
    %4449 = vmatprep.subr.mxu0 0.0
    %4450 = vmatpush1.msra.mxu0 0.0
    %4451 = vmatprep.subr.mxu0 0.0
    %4452 = vmatpush1.msra.mxu0 0.0
    %4453 = vmatprep.subr.mxu0 0.0
    %4454 = vmatpush1.msra.mxu0 0.0
    %4455 = vmatprep.subr.mxu0 0.0
    %4456 = vmatpush1.msra.mxu0 0.0
    %4457 = vmatprep.subr.mxu0 0.0
    %4458 = vmatpush1.msra.mxu0 0.0
    %4459 = vmatprep.subr.mxu0 0.0
    %4460 = vmatpush1.msra.mxu0 0.0
    %4461 = vmatprep.subr.mxu0 0.0
    %4462 = vmatpush1.msra.mxu0 0.0
    %4463 = vmatprep.subr.mxu0 0.0
    %4464 = vmatpush1.msra.mxu0 0.0
    %4465 = vmatprep.subr.mxu0 0.0
    %4466 = vmatpush1.msra.mxu0 0.0
    %4467 = vmatprep.subr.mxu0 0.0
    %4468 = vmatpush1.msra.mxu0 0.0
    %4469 = vmatprep.subr.mxu0 0.0
    %4470 = vmatpush1.msra.mxu0 0.0
    %4471 = vmatprep.subr.mxu0 0.0
    %4472 = vmatpush1.msra.mxu0 0.0
    %4473 = vmatprep.subr.mxu0 0.0
    %4474 = vmatpush1.msra.mxu0 0.0
    %4475 = vmatprep.subr.mxu0 0.0
    %4476 = vmatpush1.msra.mxu0 0.0
    %4477 = vmatprep.subr.mxu0 0.0
    %4478 = vmatpush1.msra.mxu0 0.0
    %4479 = vmatprep.subr.mxu0 0.0
    %4480 = vmatpush1.msra.mxu0 0.0
    %4481 = vmatprep.mubr.f32.mxu0 0.0
    %4482 = vmatmul.mubr.f32.gmra.mrb[0].mxu0 %v3625
    %v4483 = vpop.f32.mrb[0].mxu0
    %v4484 = vadd.f32 0.0, %v4483
    %v4485 = vpop.f32.mrb[0].mxu0
    %v4486 = vadd.f32 0.0, %v4485
    %4487 = vdwg.mxu0
    %4488 = vmatprep.subr.mxu0 %v4356
    %4489 = vmatpush1.msra.mxu0 %v4355
    %4490 = vmatprep.subr.mxu0 %v4360
    %4491 = vmatpush1.msra.mxu0 %v4359
    %4492 = vmatprep.subr.mxu0 %v4364
    %4493 = vmatpush1.msra.mxu0 %v4363
    %4494 = vmatprep.subr.mxu0 %v4368
    %4495 = vmatpush1.msra.mxu0 %v4367
    %4496 = vmatprep.subr.mxu0 %v4372
    %4497 = vmatpush1.msra.mxu0 %v4371
    %4498 = vmatprep.subr.mxu0 %v4376
    %4499 = vmatpush1.msra.mxu0 %v4375
    %4500 = vmatprep.subr.mxu0 %v4380
    %4501 = vmatpush1.msra.mxu0 %v4379
    %4502 = vmatprep.subr.mxu0 %v4384
    %4503 = vmatpush1.msra.mxu0 %v4383
    %4504 = vmatprep.subr.mxu0 %v4388
    %4505 = vmatpush1.msra.mxu0 %v4387
    %4506 = vmatprep.subr.mxu0 %v4392
    %4507 = vmatpush1.msra.mxu0 %v4391
    %4508 = vmatprep.subr.mxu0 %v4396
    %4509 = vmatpush1.msra.mxu0 %v4395
    %4510 = vmatprep.subr.mxu0 %v4400
    %4511 = vmatpush1.msra.mxu0 %v4399
    %4512 = vmatprep.subr.mxu0 %v4404
    %4513 = vmatpush1.msra.mxu0 %v4403
    %4514 = vmatprep.subr.mxu0 %v4408
    %4515 = vmatpush1.msra.mxu0 %v4407
    %4516 = vmatprep.subr.mxu0 %v4412
    %4517 = vmatpush1.msra.mxu0 %v4411
    %4518 = vmatprep.subr.mxu0 %v4416
    %4519 = vmatpush1.msra.mxu0 %v4415
    %4520 = vmatprep.subr.mxu0 0.0
    %4521 = vmatpush1.msra.mxu0 0.0
    %4522 = vmatprep.subr.mxu0 0.0
    %4523 = vmatpush1.msra.mxu0 0.0
    %4524 = vmatprep.subr.mxu0 0.0
    %4525 = vmatpush1.msra.mxu0 0.0
    %4526 = vmatprep.subr.mxu0 0.0
    %4527 = vmatpush1.msra.mxu0 0.0
    %4528 = vmatprep.subr.mxu0 0.0
    %4529 = vmatpush1.msra.mxu0 0.0
    %4530 = vmatprep.subr.mxu0 0.0
    %4531 = vmatpush1.msra.mxu0 0.0
    %4532 = vmatprep.subr.mxu0 0.0
    %4533 = vmatpush1.msra.mxu0 0.0
    %4534 = vmatprep.subr.mxu0 0.0
    %4535 = vmatpush1.msra.mxu0 0.0
    %4536 = vmatprep.subr.mxu0 0.0
    %4537 = vmatpush1.msra.mxu0 0.0
    %4538 = vmatprep.subr.mxu0 0.0
    %4539 = vmatpush1.msra.mxu0 0.0
    %4540 = vmatprep.subr.mxu0 0.0
    %4541 = vmatpush1.msra.mxu0 0.0
    %4542 = vmatprep.subr.mxu0 0.0
    %4543 = vmatpush1.msra.mxu0 0.0
    %4544 = vmatprep.subr.mxu0 0.0
    %4545 = vmatpush1.msra.mxu0 0.0
    %4546 = vmatprep.subr.mxu0 0.0
    %4547 = vmatpush1.msra.mxu0 0.0
    %4548 = vmatprep.subr.mxu0 0.0
    %4549 = vmatpush1.msra.mxu0 0.0
    %4550 = vmatprep.subr.mxu0 0.0
    %4551 = vmatpush1.msra.mxu0 0.0
    %4552 = vmatprep.mubr.f32.mxu0 0.0
    %4553 = vmatmul.mubr.f32.gmra.mrb[0].mxu0 %v3625
    %v4554 = vpop.f32.mrb[0].mxu0
    %v4555 = vadd.f32 0.0, %v4554
    %v4556 = vpop.f32.mrb[0].mxu0
    %v4557 = vadd.f32 0.0, %v4556
    %4558 = vdwg.mxu0
    %v4559 = vadd.f32 %v4349, %v4484
    %v4560 = vadd.f32 %v4350, %v4486
    %v4561 = vadd.f32 %v4351, %v4555
    %v4562 = vadd.f32 %v4352, %v4557
    %v4563 = vadd.f32 %v4559, %v157
    %v4564 = vadd.f32 %v4560, %v161
    %v4565 = vadd.f32 %v4561, %v165
    %v4566 = vadd.f32 %v4562, %v169
    %v4567 = vxor.u32 %v4563, 2147483648
    %v4568 = vxor.u32 %v4564, 2147483648
    %v4569 = vxor.u32 %v4565, 2147483648
    %v4570 = vmul.f32 %v4567, 1.442695
    %v4571 = vpow.pop %v4570
    %v4572 = vmul.f32 %v4568, 1.442695
    %v4573 = vpow.pop %v4572
    %v4574 = vmul.f32 %v4569, 1.442695
    %v4575 = vpow.pop %v4574
    %v4576 = vadd.f32 %v4571, 1.0
    %v4577 = vadd.f32 %v4573, 1.0
    %v4578 = vadd.f32 %v4575, 1.0
    %v4579 = vrcp.pop %v4576
    %v4580 = vmul.f32 1.0, %v4579
    %v4581 = vrcp.pop %v4577
    %v4582 = vmul.f32 1.0, %v4581
    %v4583 = vrcp.pop %v4578
    %v4584 = vmul.f32 1.0, %v4583
    %v4585 = vtanh.pop %v4566
    %v4586 = vmul.f32 %v4582, %v3623
    %v4587 = vmul.f32 %v4580, %v4585
    %v4588 = vadd.f32 %v4586, %v4587
    %v4589 = vtanh.pop %v4588
    %v4590 = vmul.f32 %v4584, %v4589
    %v4591 = vld [vmem:[#allocation15] sm:$0xff]
    %v4592 = vld [vmem:[#allocation15 + $0x8] sm:$0xff]
    %v4593 = vld [vmem:[#allocation15 + $0x10] sm:$0xff]
    %v4594 = vld [vmem:[#allocation15 + $0x18] sm:$0xff]
    %v4595 = vld [vmem:[#allocation15 + $0x20] sm:$0xff]
    %v4596 = vld [vmem:[#allocation15 + $0x28] sm:$0xff]
    %v4597 = vld [vmem:[#allocation15 + $0x30] sm:$0xff]
    %v4598 = vld [vmem:[#allocation15 + $0x38] sm:$0xff]
    %v4599 = vld [vmem:[#allocation15 + $0x40] sm:$0xff]
    %v4600 = vld [vmem:[#allocation15 + $0x48] sm:$0xff]
    %v4601 = vld [vmem:[#allocation15 + $0x50] sm:$0xff]
    %v4602 = vld [vmem:[#allocation15 + $0x58] sm:$0xff]
    %v4603 = vld [vmem:[#allocation15 + $0x60] sm:$0xff]
    %v4604 = vld [vmem:[#allocation15 + $0x68] sm:$0xff]
    %v4605 = vld [vmem:[#allocation15 + $0x70] sm:$0xff]
    %v4606 = vld [vmem:[#allocation15 + $0x78] sm:$0xff]
    %v4607 = vld [vmem:[#allocation15 + $0x80] sm:$0xff]
    %v4608 = vld [vmem:[#allocation15 + $0x88] sm:$0xff]
    %v4609 = vld [vmem:[#allocation15 + $0x90] sm:$0xff]
    %v4610 = vld [vmem:[#allocation15 + $0x98] sm:$0xff]
    %v4611 = vld [vmem:[#allocation15 + $0xa0] sm:$0xff]
    %v4612 = vld [vmem:[#allocation15 + $0xa8] sm:$0xff]
    %v4613 = vld [vmem:[#allocation15 + $0xb0] sm:$0xff]
    %v4614 = vld [vmem:[#allocation15 + $0xb8] sm:$0xff]
    %v4615 = vld [vmem:[#allocation15 + $0xc0] sm:$0xff]
    %v4616 = vld [vmem:[#allocation15 + $0xc8] sm:$0xff]
    %v4617 = vld [vmem:[#allocation15 + $0xd0] sm:$0xff]
    %v4618 = vld [vmem:[#allocation15 + $0xd8] sm:$0xff]
    %v4619 = vld [vmem:[#allocation15 + $0xe0] sm:$0xff]
    %v4620 = vld [vmem:[#allocation15 + $0xe8] sm:$0xff]
    %v4621 = vld [vmem:[#allocation15 + $0xf0] sm:$0xff]
    %v4622 = vld [vmem:[#allocation15 + $0xf8] sm:$0xff]
    %v4623 = vld [vmem:[#allocation15 + $0x100] sm:$0xff]
    %v4624 = vld [vmem:[#allocation15 + $0x108] sm:$0xff]
    %v4625 = vld [vmem:[#allocation15 + $0x110] sm:$0xff]
    %v4626 = vld [vmem:[#allocation15 + $0x118] sm:$0xff]
    %v4627 = vld [vmem:[#allocation15 + $0x120] sm:$0xff]
    %v4628 = vld [vmem:[#allocation15 + $0x128] sm:$0xff]
    %v4629 = vld [vmem:[#allocation15 + $0x130] sm:$0xff]
    %v4630 = vld [vmem:[#allocation15 + $0x138] sm:$0xff]
    %v4631 = vld [vmem:[#allocation15 + $0x140] sm:$0xff]
    %v4632 = vld [vmem:[#allocation15 + $0x148] sm:$0xff]
    %v4633 = vld [vmem:[#allocation15 + $0x150] sm:$0xff]
    %v4634 = vld [vmem:[#allocation15 + $0x158] sm:$0xff]
    %v4635 = vld [vmem:[#allocation15 + $0x160] sm:$0xff]
    %v4636 = vld [vmem:[#allocation15 + $0x168] sm:$0xff]
    %v4637 = vld [vmem:[#allocation15 + $0x170] sm:$0xff]
    %v4638 = vld [vmem:[#allocation15 + $0x178] sm:$0xff]
    %v4639 = vld [vmem:[#allocation15 + $0x180] sm:$0xff]
    %v4640 = vld [vmem:[#allocation15 + $0x188] sm:$0xff]
    %v4641 = vld [vmem:[#allocation15 + $0x190] sm:$0xff]
    %v4642 = vld [vmem:[#allocation15 + $0x198] sm:$0xff]
    %v4643 = vld [vmem:[#allocation15 + $0x1a0] sm:$0xff]
    %v4644 = vld [vmem:[#allocation15 + $0x1a8] sm:$0xff]
    %v4645 = vld [vmem:[#allocation15 + $0x1b0] sm:$0xff]
    %v4646 = vld [vmem:[#allocation15 + $0x1b8] sm:$0xff]
    %v4647 = vld [vmem:[#allocation15 + $0x1c0] sm:$0xff]
    %v4648 = vld [vmem:[#allocation15 + $0x1c8] sm:$0xff]
    %v4649 = vld [vmem:[#allocation15 + $0x1d0] sm:$0xff]
    %v4650 = vld [vmem:[#allocation15 + $0x1d8] sm:$0xff]
    %v4651 = vld [vmem:[#allocation15 + $0x1e0] sm:$0xff]
    %v4652 = vld [vmem:[#allocation15 + $0x1e8] sm:$0xff]
    %v4653 = vld [vmem:[#allocation15 + $0x1f0] sm:$0xff]
    %v4654 = vld [vmem:[#allocation15 + $0x1f8] sm:$0xff]
    %v4655 = vld [vmem:[#allocation16] sm:$0xff]
    %v4656 = vld [vmem:[#allocation16 + $0x8] sm:$0xff]
    %v4657 = vld [vmem:[#allocation16 + $0x10] sm:$0xff]
    %v4658 = vld [vmem:[#allocation16 + $0x18] sm:$0xff]
    %v4659 = vld [vmem:[#allocation16 + $0x20] sm:$0xff]
    %v4660 = vld [vmem:[#allocation16 + $0x28] sm:$0xff]
    %v4661 = vld [vmem:[#allocation16 + $0x30] sm:$0xff]
    %v4662 = vld [vmem:[#allocation16 + $0x38] sm:$0xff]
    %v4663 = vld [vmem:[#allocation16 + $0x40] sm:$0xff]
    %v4664 = vld [vmem:[#allocation16 + $0x48] sm:$0xff]
    %v4665 = vld [vmem:[#allocation16 + $0x50] sm:$0xff]
    %v4666 = vld [vmem:[#allocation16 + $0x58] sm:$0xff]
    %v4667 = vld [vmem:[#allocation16 + $0x60] sm:$0xff]
    %v4668 = vld [vmem:[#allocation16 + $0x68] sm:$0xff]
    %v4669 = vld [vmem:[#allocation16 + $0x70] sm:$0xff]
    %v4670 = vld [vmem:[#allocation16 + $0x78] sm:$0xff]
    %v4671 = vld [vmem:[#allocation16 + $0x80] sm:$0xff]
    %v4672 = vld [vmem:[#allocation16 + $0x88] sm:$0xff]
    %v4673 = vld [vmem:[#allocation16 + $0x90] sm:$0xff]
    %v4674 = vld [vmem:[#allocation16 + $0x98] sm:$0xff]
    %v4675 = vld [vmem:[#allocation16 + $0xa0] sm:$0xff]
    %v4676 = vld [vmem:[#allocation16 + $0xa8] sm:$0xff]
    %v4677 = vld [vmem:[#allocation16 + $0xb0] sm:$0xff]
    %v4678 = vld [vmem:[#allocation16 + $0xb8] sm:$0xff]
    %v4679 = vld [vmem:[#allocation16 + $0xc0] sm:$0xff]
    %v4680 = vld [vmem:[#allocation16 + $0xc8] sm:$0xff]
    %v4681 = vld [vmem:[#allocation16 + $0xd0] sm:$0xff]
    %v4682 = vld [vmem:[#allocation16 + $0xd8] sm:$0xff]
    %v4683 = vld [vmem:[#allocation16 + $0xe0] sm:$0xff]
    %v4684 = vld [vmem:[#allocation16 + $0xe8] sm:$0xff]
    %v4685 = vld [vmem:[#allocation16 + $0xf0] sm:$0xff]
    %v4686 = vld [vmem:[#allocation16 + $0xf8] sm:$0xff]
    %v4687 = vld [vmem:[#allocation16 + $0x100] sm:$0xff]
    %v4688 = vld [vmem:[#allocation16 + $0x108] sm:$0xff]
    %v4689 = vld [vmem:[#allocation16 + $0x110] sm:$0xff]
    %v4690 = vld [vmem:[#allocation16 + $0x118] sm:$0xff]
    %v4691 = vld [vmem:[#allocation16 + $0x120] sm:$0xff]
    %v4692 = vld [vmem:[#allocation16 + $0x128] sm:$0xff]
    %v4693 = vld [vmem:[#allocation16 + $0x130] sm:$0xff]
    %v4694 = vld [vmem:[#allocation16 + $0x138] sm:$0xff]
    %v4695 = vld [vmem:[#allocation16 + $0x140] sm:$0xff]
    %v4696 = vld [vmem:[#allocation16 + $0x148] sm:$0xff]
    %v4697 = vld [vmem:[#allocation16 + $0x150] sm:$0xff]
    %v4698 = vld [vmem:[#allocation16 + $0x158] sm:$0xff]
    %v4699 = vld [vmem:[#allocation16 + $0x160] sm:$0xff]
    %v4700 = vld [vmem:[#allocation16 + $0x168] sm:$0xff]
    %v4701 = vld [vmem:[#allocation16 + $0x170] sm:$0xff]
    %v4702 = vld [vmem:[#allocation16 + $0x178] sm:$0xff]
    %v4703 = vld [vmem:[#allocation16 + $0x180] sm:$0xff]
    %v4704 = vld [vmem:[#allocation16 + $0x188] sm:$0xff]
    %v4705 = vld [vmem:[#allocation16 + $0x190] sm:$0xff]
    %v4706 = vld [vmem:[#allocation16 + $0x198] sm:$0xff]
    %v4707 = vld [vmem:[#allocation16 + $0x1a0] sm:$0xff]
    %v4708 = vld [vmem:[#allocation16 + $0x1a8] sm:$0xff]
    %v4709 = vld [vmem:[#allocation16 + $0x1b0] sm:$0xff]
    %v4710 = vld [vmem:[#allocation16 + $0x1b8] sm:$0xff]
    %v4711 = vld [vmem:[#allocation16 + $0x1c0] sm:$0xff]
    %v4712 = vld [vmem:[#allocation16 + $0x1c8] sm:$0xff]
    %v4713 = vld [vmem:[#allocation16 + $0x1d0] sm:$0xff]
    %v4714 = vld [vmem:[#allocation16 + $0x1d8] sm:$0xff]
    %v4715 = vld [vmem:[#allocation16 + $0x1e0] sm:$0xff]
    %v4716 = vld [vmem:[#allocation16 + $0x1e8] sm:$0xff]
    %v4717 = vld [vmem:[#allocation16 + $0x1f0] sm:$0xff]
    %v4718 = vld [vmem:[#allocation16 + $0x1f8] sm:$0xff]
    %4719 = vmatprep.subr.mxu0 %v4656
    %4720 = vmatpush1.msra.mxu0 %v4655
    %4721 = vmatprep.subr.mxu0 %v4660
    %4722 = vmatpush1.msra.mxu0 %v4659
    %4723 = vmatprep.subr.mxu0 %v4664
    %4724 = vmatpush1.msra.mxu0 %v4663
    %4725 = vmatprep.subr.mxu0 %v4668
    %4726 = vmatpush1.msra.mxu0 %v4667
    %4727 = vmatprep.subr.mxu0 %v4672
    %4728 = vmatpush1.msra.mxu0 %v4671
    %4729 = vmatprep.subr.mxu0 %v4676
    %4730 = vmatpush1.msra.mxu0 %v4675
    %4731 = vmatprep.subr.mxu0 %v4680
    %4732 = vmatpush1.msra.mxu0 %v4679
    %4733 = vmatprep.subr.mxu0 %v4684
    %4734 = vmatpush1.msra.mxu0 %v4683
    %4735 = vmatprep.subr.mxu0 %v4688
    %4736 = vmatpush1.msra.mxu0 %v4687
    %4737 = vmatprep.subr.mxu0 %v4692
    %4738 = vmatpush1.msra.mxu0 %v4691
    %4739 = vmatprep.subr.mxu0 %v4696
    %4740 = vmatpush1.msra.mxu0 %v4695
    %4741 = vmatprep.subr.mxu0 %v4700
    %4742 = vmatpush1.msra.mxu0 %v4699
    %4743 = vmatprep.subr.mxu0 %v4704
    %4744 = vmatpush1.msra.mxu0 %v4703
    %4745 = vmatprep.subr.mxu0 %v4708
    %4746 = vmatpush1.msra.mxu0 %v4707
    %4747 = vmatprep.subr.mxu0 %v4712
    %4748 = vmatpush1.msra.mxu0 %v4711
    %4749 = vmatprep.subr.mxu0 %v4716
    %4750 = vmatpush1.msra.mxu0 %v4715
    %4751 = vmatprep.subr.mxu0 0.0
    %4752 = vmatpush1.msra.mxu0 0.0
    %4753 = vmatprep.subr.mxu0 0.0
    %4754 = vmatpush1.msra.mxu0 0.0
    %4755 = vmatprep.subr.mxu0 0.0
    %4756 = vmatpush1.msra.mxu0 0.0
    %4757 = vmatprep.subr.mxu0 0.0
    %4758 = vmatpush1.msra.mxu0 0.0
    %4759 = vmatprep.subr.mxu0 0.0
    %4760 = vmatpush1.msra.mxu0 0.0
    %4761 = vmatprep.subr.mxu0 0.0
    %4762 = vmatpush1.msra.mxu0 0.0
    %4763 = vmatprep.subr.mxu0 0.0
    %4764 = vmatpush1.msra.mxu0 0.0
    %4765 = vmatprep.subr.mxu0 0.0
    %4766 = vmatpush1.msra.mxu0 0.0
    %4767 = vmatprep.subr.mxu0 0.0
    %4768 = vmatpush1.msra.mxu0 0.0
    %4769 = vmatprep.subr.mxu0 0.0
    %4770 = vmatpush1.msra.mxu0 0.0
    %4771 = vmatprep.subr.mxu0 0.0
    %4772 = vmatpush1.msra.mxu0 0.0
    %4773 = vmatprep.subr.mxu0 0.0
    %4774 = vmatpush1.msra.mxu0 0.0
    %4775 = vmatprep.subr.mxu0 0.0
    %4776 = vmatpush1.msra.mxu0 0.0
    %4777 = vmatprep.subr.mxu0 0.0
    %4778 = vmatpush1.msra.mxu0 0.0
    %4779 = vmatprep.subr.mxu0 0.0
    %4780 = vmatpush1.msra.mxu0 0.0
    %4781 = vmatprep.subr.mxu0 0.0
    %4782 = vmatpush1.msra.mxu0 0.0
    %4783 = vmatprep.mubr.f32.mxu0 0.0
    %4784 = vmatmul.mubr.f32.gmra.mrb[0].mxu0 %v4065
    %v4785 = vpop.f32.mrb[0].mxu0
    %v4786 = vadd.f32 0.0, %v4785
    %v4787 = vpop.f32.mrb[0].mxu0
    %v4788 = vadd.f32 0.0, %v4787
    %4789 = vdwg.mxu0
    %4790 = vmatprep.subr.mxu0 %v4658
    %4791 = vmatpush1.msra.mxu0 %v4657
    %4792 = vmatprep.subr.mxu0 %v4662
    %4793 = vmatpush1.msra.mxu0 %v4661
    %4794 = vmatprep.subr.mxu0 %v4666
    %4795 = vmatpush1.msra.mxu0 %v4665
    %4796 = vmatprep.subr.mxu0 %v4670
    %4797 = vmatpush1.msra.mxu0 %v4669
    %4798 = vmatprep.subr.mxu0 %v4674
    %4799 = vmatpush1.msra.mxu0 %v4673
    %4800 = vmatprep.subr.mxu0 %v4678
    %4801 = vmatpush1.msra.mxu0 %v4677
    %4802 = vmatprep.subr.mxu0 %v4682
    %4803 = vmatpush1.msra.mxu0 %v4681
    %4804 = vmatprep.subr.mxu0 %v4686
    %4805 = vmatpush1.msra.mxu0 %v4685
    %4806 = vmatprep.subr.mxu0 %v4690
    %4807 = vmatpush1.msra.mxu0 %v4689
    %4808 = vmatprep.subr.mxu0 %v4694
    %4809 = vmatpush1.msra.mxu0 %v4693
    %4810 = vmatprep.subr.mxu0 %v4698
    %4811 = vmatpush1.msra.mxu0 %v4697
    %4812 = vmatprep.subr.mxu0 %v4702
    %4813 = vmatpush1.msra.mxu0 %v4701
    %4814 = vmatprep.subr.mxu0 %v4706
    %4815 = vmatpush1.msra.mxu0 %v4705
    %4816 = vmatprep.subr.mxu0 %v4710
    %4817 = vmatpush1.msra.mxu0 %v4709
    %4818 = vmatprep.subr.mxu0 %v4714
    %4819 = vmatpush1.msra.mxu0 %v4713
    %4820 = vmatprep.subr.mxu0 %v4718
    %4821 = vmatpush1.msra.mxu0 %v4717
    %4822 = vmatprep.subr.mxu0 0.0
    %4823 = vmatpush1.msra.mxu0 0.0
    %4824 = vmatprep.subr.mxu0 0.0
    %4825 = vmatpush1.msra.mxu0 0.0
    %4826 = vmatprep.subr.mxu0 0.0
    %4827 = vmatpush1.msra.mxu0 0.0
    %4828 = vmatprep.subr.mxu0 0.0
    %4829 = vmatpush1.msra.mxu0 0.0
    %4830 = vmatprep.subr.mxu0 0.0
    %4831 = vmatpush1.msra.mxu0 0.0
    %4832 = vmatprep.subr.mxu0 0.0
    %4833 = vmatpush1.msra.mxu0 0.0
    %4834 = vmatprep.subr.mxu0 0.0
    %4835 = vmatpush1.msra.mxu0 0.0
    %4836 = vmatprep.subr.mxu0 0.0
    %4837 = vmatpush1.msra.mxu0 0.0
    %4838 = vmatprep.subr.mxu0 0.0
    %4839 = vmatpush1.msra.mxu0 0.0
    %4840 = vmatprep.subr.mxu0 0.0
    %4841 = vmatpush1.msra.mxu0 0.0
    %4842 = vmatprep.subr.mxu0 0.0
    %4843 = vmatpush1.msra.mxu0 0.0
    %4844 = vmatprep.subr.mxu0 0.0
    %4845 = vmatpush1.msra.mxu0 0.0
    %4846 = vmatprep.subr.mxu0 0.0
    %4847 = vmatpush1.msra.mxu0 0.0
    %4848 = vmatprep.subr.mxu0 0.0
    %4849 = vmatpush1.msra.mxu0 0.0
    %4850 = vmatprep.subr.mxu0 0.0
    %4851 = vmatpush1.msra.mxu0 0.0
    %4852 = vmatprep.subr.mxu0 0.0
    %4853 = vmatpush1.msra.mxu0 0.0
    %4854 = vmatprep.mubr.f32.mxu0 0.0
    %4855 = vmatmul.mubr.f32.gmra.mrb[0].mxu0 %v4065
    %v4856 = vpop.f32.mrb[0].mxu0
    %v4857 = vadd.f32 0.0, %v4856
    %v4858 = vpop.f32.mrb[0].mxu0
    %v4859 = vadd.f32 0.0, %v4858
    %4860 = vdwg.mxu0
    %4861 = vmatprep.subr.mxu0 %v4592
    %4862 = vmatpush1.msra.mxu0 %v4591
    %4863 = vmatprep.subr.mxu0 %v4596
    %4864 = vmatpush1.msra.mxu0 %v4595
    %4865 = vmatprep.subr.mxu0 %v4600
    %4866 = vmatpush1.msra.mxu0 %v4599
    %4867 = vmatprep.subr.mxu0 %v4604
    %4868 = vmatpush1.msra.mxu0 %v4603
    %4869 = vmatprep.subr.mxu0 %v4608
    %4870 = vmatpush1.msra.mxu0 %v4607
    %4871 = vmatprep.subr.mxu0 %v4612
    %4872 = vmatpush1.msra.mxu0 %v4611
    %4873 = vmatprep.subr.mxu0 %v4616
    %4874 = vmatpush1.msra.mxu0 %v4615
    %4875 = vmatprep.subr.mxu0 %v4620
    %4876 = vmatpush1.msra.mxu0 %v4619
    %4877 = vmatprep.subr.mxu0 %v4624
    %4878 = vmatpush1.msra.mxu0 %v4623
    %4879 = vmatprep.subr.mxu0 %v4628
    %4880 = vmatpush1.msra.mxu0 %v4627
    %4881 = vmatprep.subr.mxu0 %v4632
    %4882 = vmatpush1.msra.mxu0 %v4631
    %4883 = vmatprep.subr.mxu0 %v4636
    %4884 = vmatpush1.msra.mxu0 %v4635
    %4885 = vmatprep.subr.mxu0 %v4640
    %4886 = vmatpush1.msra.mxu0 %v4639
    %4887 = vmatprep.subr.mxu0 %v4644
    %4888 = vmatpush1.msra.mxu0 %v4643
    %4889 = vmatprep.subr.mxu0 %v4648
    %4890 = vmatpush1.msra.mxu0 %v4647
    %4891 = vmatprep.subr.mxu0 %v4652
    %4892 = vmatpush1.msra.mxu0 %v4651
    %4893 = vmatprep.subr.mxu0 0.0
    %4894 = vmatpush1.msra.mxu0 0.0
    %4895 = vmatprep.subr.mxu0 0.0
    %4896 = vmatpush1.msra.mxu0 0.0
    %4897 = vmatprep.subr.mxu0 0.0
    %4898 = vmatpush1.msra.mxu0 0.0
    %4899 = vmatprep.subr.mxu0 0.0
    %4900 = vmatpush1.msra.mxu0 0.0
    %4901 = vmatprep.subr.mxu0 0.0
    %4902 = vmatpush1.msra.mxu0 0.0
    %4903 = vmatprep.subr.mxu0 0.0
    %4904 = vmatpush1.msra.mxu0 0.0
    %4905 = vmatprep.subr.mxu0 0.0
    %4906 = vmatpush1.msra.mxu0 0.0
    %4907 = vmatprep.subr.mxu0 0.0
    %4908 = vmatpush1.msra.mxu0 0.0
    %4909 = vmatprep.subr.mxu0 0.0
    %4910 = vmatpush1.msra.mxu0 0.0
    %4911 = vmatprep.subr.mxu0 0.0
    %4912 = vmatpush1.msra.mxu0 0.0
    %4913 = vmatprep.subr.mxu0 0.0
    %4914 = vmatpush1.msra.mxu0 0.0
    %4915 = vmatprep.subr.mxu0 0.0
    %4916 = vmatpush1.msra.mxu0 0.0
    %4917 = vmatprep.subr.mxu0 0.0
    %4918 = vmatpush1.msra.mxu0 0.0
    %4919 = vmatprep.subr.mxu0 0.0
    %4920 = vmatpush1.msra.mxu0 0.0
    %4921 = vmatprep.subr.mxu0 0.0
    %4922 = vmatpush1.msra.mxu0 0.0
    %4923 = vmatprep.subr.mxu0 0.0
    %4924 = vmatpush1.msra.mxu0 0.0
    %4925 = vmatprep.mubr.f32.mxu0 0.0
    %4926 = vmatmul.mubr.f32.gmra.mrb[0].mxu0 %v4590
    %v4927 = vpop.f32.mrb[0].mxu0
    %v4928 = vadd.f32 %v4786, %v4927
    %v4929 = vpop.f32.mrb[0].mxu0
    %v4930 = vadd.f32 %v4788, %v4929
    %4931 = vdwg.mxu0
    %4932 = vmatprep.subr.mxu0 %v4594
    %4933 = vmatpush1.msra.mxu0 %v4593
    %4934 = vmatprep.subr.mxu0 %v4598
    %4935 = vmatpush1.msra.mxu0 %v4597
    %4936 = vmatprep.subr.mxu0 %v4602
    %4937 = vmatpush1.msra.mxu0 %v4601
    %4938 = vmatprep.subr.mxu0 %v4606
    %4939 = vmatpush1.msra.mxu0 %v4605
    %4940 = vmatprep.subr.mxu0 %v4610
    %4941 = vmatpush1.msra.mxu0 %v4609
    %4942 = vmatprep.subr.mxu0 %v4614
    %4943 = vmatpush1.msra.mxu0 %v4613
    %4944 = vmatprep.subr.mxu0 %v4618
    %4945 = vmatpush1.msra.mxu0 %v4617
    %4946 = vmatprep.subr.mxu0 %v4622
    %4947 = vmatpush1.msra.mxu0 %v4621
    %4948 = vmatprep.subr.mxu0 %v4626
    %4949 = vmatpush1.msra.mxu0 %v4625
    %4950 = vmatprep.subr.mxu0 %v4630
    %4951 = vmatpush1.msra.mxu0 %v4629
    %4952 = vmatprep.subr.mxu0 %v4634
    %4953 = vmatpush1.msra.mxu0 %v4633
    %4954 = vmatprep.subr.mxu0 %v4638
    %4955 = vmatpush1.msra.mxu0 %v4637
    %4956 = vmatprep.subr.mxu0 %v4642
    %4957 = vmatpush1.msra.mxu0 %v4641
    %4958 = vmatprep.subr.mxu0 %v4646
    %4959 = vmatpush1.msra.mxu0 %v4645
    %4960 = vmatprep.subr.mxu0 %v4650
    %4961 = vmatpush1.msra.mxu0 %v4649
    %4962 = vmatprep.subr.mxu0 %v4654
    %4963 = vmatpush1.msra.mxu0 %v4653
    %4964 = vmatprep.subr.mxu0 0.0
    %4965 = vmatpush1.msra.mxu0 0.0
    %4966 = vmatprep.subr.mxu0 0.0
    %4967 = vmatpush1.msra.mxu0 0.0
    %4968 = vmatprep.subr.mxu0 0.0
    %4969 = vmatpush1.msra.mxu0 0.0
    %4970 = vmatprep.subr.mxu0 0.0
    %4971 = vmatpush1.msra.mxu0 0.0
    %4972 = vmatprep.subr.mxu0 0.0
    %4973 = vmatpush1.msra.mxu0 0.0
    %4974 = vmatprep.subr.mxu0 0.0
    %4975 = vmatpush1.msra.mxu0 0.0
    %4976 = vmatprep.subr.mxu0 0.0
    %4977 = vmatpush1.msra.mxu0 0.0
    %4978 = vmatprep.subr.mxu0 0.0
    %4979 = vmatpush1.msra.mxu0 0.0
    %4980 = vmatprep.subr.mxu0 0.0
    %4981 = vmatpush1.msra.mxu0 0.0
    %4982 = vmatprep.subr.mxu0 0.0
    %4983 = vmatpush1.msra.mxu0 0.0
    %4984 = vmatprep.subr.mxu0 0.0
    %4985 = vmatpush1.msra.mxu0 0.0
    %4986 = vmatprep.subr.mxu0 0.0
    %4987 = vmatpush1.msra.mxu0 0.0
    %4988 = vmatprep.subr.mxu0 0.0
    %4989 = vmatpush1.msra.mxu0 0.0
    %4990 = vmatprep.subr.mxu0 0.0
    %4991 = vmatpush1.msra.mxu0 0.0
    %4992 = vmatprep.subr.mxu0 0.0
    %4993 = vmatpush1.msra.mxu0 0.0
    %4994 = vmatprep.subr.mxu0 0.0
    %4995 = vmatpush1.msra.mxu0 0.0
    %4996 = vmatprep.mubr.f32.mxu0 0.0
    %4997 = vmatmul.mubr.f32.gmra.mrb[0].mxu0 %v4590
    %v4998 = vpop.f32.mrb[0].mxu0
    %v4999 = vadd.f32 %v4857, %v4998
    %v5000 = vpop.f32.mrb[0].mxu0
    %v5001 = vadd.f32 %v4859, %v5000
    %5002 = vdwg.mxu0
    %v5003 = vadd.f32 %v4928, %v179
    %v5004 = vadd.f32 %v4930, %v183
    %v5005 = vadd.f32 %v4999, %v187
    %v5006 = vadd.f32 %v5001, %v191
    %v5007 = vxor.u32 %v5003, 2147483648
    %v5008 = vxor.u32 %v5004, 2147483648
    %v5009 = vxor.u32 %v5005, 2147483648
    %v5010 = vmul.f32 %v5007, 1.442695
    %v5011 = vpow.pop %v5010
    %v5012 = vmul.f32 %v5008, 1.442695
    %v5013 = vpow.pop %v5012
    %v5014 = vmul.f32 %v5009, 1.442695
    %v5015 = vpow.pop %v5014
    %v5016 = vadd.f32 %v5011, 1.0
    %v5017 = vadd.f32 %v5013, 1.0
    %v5018 = vadd.f32 %v5015, 1.0
    %v5019 = vrcp.pop %v5016
    %v5020 = vmul.f32 1.0, %v5019
    %v5021 = vrcp.pop %v5017
    %v5022 = vmul.f32 1.0, %v5021
    %v5023 = vrcp.pop %v5018
    %v5024 = vmul.f32 1.0, %v5023
    %v5025 = vtanh.pop %v5006
    %v5026 = vmul.f32 %v5022, %v4063
    %v5027 = vmul.f32 %v5020, %v5025
    %v5028 = vadd.f32 %v5026, %v5027
    %v5029 = vtanh.pop %v5028
    %v5030 = vmul.f32 %v5024, %v5029
    %s5031 = scalar_lea.vmem [#allocation4], 32
    %5032 = vst [vmem:[%s5031] sm:$0xff] %v5030
    %s5033 = sadd.s32 %s1172, 5
    %s5034 = smul.u32 %s5033, 8
    %s5035 = sld [smem:[#allocation6 + %s5034]]
    %s5036 = sshra.s32 %s5035, 3
    %s5037 = sand.u32 %s5035, 7
    %s5038 = sshra.s32 %s5035, 3
    %s5039 = sand.u32 %s5035, 7
    %s5040 = smul.u32 %s5036, 4
    %s5041 = smul.u32 %s5040, 8
    %s5042 = sadd.s32 %s5041, %s5039
    %s5043 = scalar_lea.vmem [#allocation12], %s5042
    %v5044 = vld [vmem:[%s5043] ss:$8 sm:$0xf]
    %s5045 = sadd.s32 %s5034, 1
    %s5046 = sld [smem:[#allocation6 + %s5045]]
    %s5047 = sshra.s32 %s5046, 3
    %s5048 = sand.u32 %s5046, 7
    %s5049 = sshra.s32 %s5046, 3
    %s5050 = sand.u32 %s5046, 7
    %s5051 = smul.u32 %s5047, 4
    %s5052 = smul.u32 %s5051, 8
    %s5053 = sadd.s32 %s5052, %s5050
    %s5054 = scalar_lea.vmem [#allocation12], %s5053
    %v5055 = vld [vmem:[%s5054] ss:$8 sm:$0xf]
    %s5056 = sadd.s32 %s5034, 2
    %s5057 = sld [smem:[#allocation6 + %s5056]]
    %s5058 = sshra.s32 %s5057, 3
    %s5059 = sand.u32 %s5057, 7
    %s5060 = sshra.s32 %s5057, 3
    %s5061 = sand.u32 %s5057, 7
    %s5062 = smul.u32 %s5058, 4
    %s5063 = smul.u32 %s5062, 8
    %s5064 = sadd.s32 %s5063, %s5061
    %s5065 = scalar_lea.vmem [#allocation12], %s5064
    %v5066 = vld [vmem:[%s5065] ss:$8 sm:$0xf]
    %s5067 = sadd.s32 %s5034, 3
    %s5068 = sld [smem:[#allocation6 + %s5067]]
    %s5069 = sshra.s32 %s5068, 3
    %s5070 = sand.u32 %s5068, 7
    %s5071 = sshra.s32 %s5068, 3
    %s5072 = sand.u32 %s5068, 7
    %s5073 = smul.u32 %s5069, 4
    %s5074 = smul.u32 %s5073, 8
    %s5075 = sadd.s32 %s5074, %s5072
    %s5076 = scalar_lea.vmem [#allocation12], %s5075
    %v5077 = vld [vmem:[%s5076] ss:$8 sm:$0xf]
    %s5078 = sadd.s32 %s5034, 4
    %s5079 = sld [smem:[#allocation6 + %s5078]]
    %s5080 = sshra.s32 %s5079, 3
    %s5081 = sand.u32 %s5079, 7
    %s5082 = sshra.s32 %s5079, 3
    %s5083 = sand.u32 %s5079, 7
    %s5084 = smul.u32 %s5080, 4
    %s5085 = smul.u32 %s5084, 8
    %s5086 = sadd.s32 %s5085, %s5083
    %s5087 = scalar_lea.vmem [#allocation12], %s5086
    %v5088 = vld [vmem:[%s5087] ss:$8 sm:$0xf]
    %s5089 = sadd.s32 %s5034, 5
    %s5090 = sld [smem:[#allocation6 + %s5089]]
    %s5091 = sshra.s32 %s5090, 3
    %s5092 = sand.u32 %s5090, 7
    %s5093 = sshra.s32 %s5090, 3
    %s5094 = sand.u32 %s5090, 7
    %s5095 = smul.u32 %s5091, 4
    %s5096 = smul.u32 %s5095, 8
    %s5097 = sadd.s32 %s5096, %s5094
    %s5098 = scalar_lea.vmem [#allocation12], %s5097
    %v5099 = vld [vmem:[%s5098] ss:$8 sm:$0xf]
    %s5100 = sadd.s32 %s5034, 6
    %s5101 = sld [smem:[#allocation6 + %s5100]]
    %s5102 = sshra.s32 %s5101, 3
    %s5103 = sand.u32 %s5101, 7
    %s5104 = sshra.s32 %s5101, 3
    %s5105 = sand.u32 %s5101, 7
    %s5106 = smul.u32 %s5102, 4
    %s5107 = smul.u32 %s5106, 8
    %s5108 = sadd.s32 %s5107, %s5105
    %s5109 = scalar_lea.vmem [#allocation12], %s5108
    %v5110 = vld [vmem:[%s5109] ss:$8 sm:$0xf]
    %s5111 = sadd.s32 %s5034, 7
    %s5112 = sld [smem:[#allocation6 + %s5111]]
    %s5113 = sshra.s32 %s5112, 3
    %s5114 = sand.u32 %s5112, 7
    %s5115 = sshra.s32 %s5112, 3
    %s5116 = sand.u32 %s5112, 7
    %s5117 = smul.u32 %s5113, 4
    %s5118 = smul.u32 %s5117, 8
    %s5119 = sadd.s32 %s5118, %s5116
    %s5120 = scalar_lea.vmem [#allocation12], %s5119
    %v5121 = vld [vmem:[%s5120] ss:$8 sm:$0xf]
    %v5123 = vlaneseq
    %v5124 = vshrl.u32 %v5123, 7
    %v5125 = vsub.s32 0, %v5124
    %v5126 = vrot.slane %v5044, %v5125
    %v5127 = vlaneseq
    %v5128 = vshrl.u32 %v5127, 7
    %v5129 = vsub.s32 1, %v5128
    %v5130 = vrot.slane %v5044, %v5129
    %v5131 = vlaneseq
    %v5132 = vshrl.u32 %v5131, 7
    %v5133 = vsub.s32 2, %v5132
    %v5134 = vrot.slane %v5044, %v5133
    %v5135 = vlaneseq
    %v5136 = vshrl.u32 %v5135, 7
    %v5137 = vsub.s32 3, %v5136
    %v5138 = vrot.slane %v5044, %v5137
    %v5144 = vlaneseq
    %v5145 = vshrl.u32 %v5144, 7
    %v5146 = vsub.s32 0, %v5145
    %v5147 = vrot.slane %v5055, %v5146
    %v5148 = vlaneseq
    %v5149 = vshrl.u32 %v5148, 7
    %v5150 = vsub.s32 1, %v5149
    %v5151 = vrot.slane %v5055, %v5150
    %v5152 = vlaneseq
    %v5153 = vshrl.u32 %v5152, 7
    %v5154 = vsub.s32 2, %v5153
    %v5155 = vrot.slane %v5055, %v5154
    %v5156 = vlaneseq
    %v5157 = vshrl.u32 %v5156, 7
    %v5158 = vsub.s32 3, %v5157
    %v5159 = vrot.slane %v5055, %v5158
    %v5165 = vlaneseq
    %v5166 = vshrl.u32 %v5165, 7
    %v5167 = vsub.s32 0, %v5166
    %v5168 = vrot.slane %v5066, %v5167
    %v5169 = vlaneseq
    %v5170 = vshrl.u32 %v5169, 7
    %v5171 = vsub.s32 1, %v5170
    %v5172 = vrot.slane %v5066, %v5171
    %v5173 = vlaneseq
    %v5174 = vshrl.u32 %v5173, 7
    %v5175 = vsub.s32 2, %v5174
    %v5176 = vrot.slane %v5066, %v5175
    %v5177 = vlaneseq
    %v5178 = vshrl.u32 %v5177, 7
    %v5179 = vsub.s32 3, %v5178
    %v5180 = vrot.slane %v5066, %v5179
    %v5186 = vlaneseq
    %v5187 = vshrl.u32 %v5186, 7
    %v5188 = vsub.s32 0, %v5187
    %v5189 = vrot.slane %v5077, %v5188
    %v5190 = vlaneseq
    %v5191 = vshrl.u32 %v5190, 7
    %v5192 = vsub.s32 1, %v5191
    %v5193 = vrot.slane %v5077, %v5192
    %v5194 = vlaneseq
    %v5195 = vshrl.u32 %v5194, 7
    %v5196 = vsub.s32 2, %v5195
    %v5197 = vrot.slane %v5077, %v5196
    %v5198 = vlaneseq
    %v5199 = vshrl.u32 %v5198, 7
    %v5200 = vsub.s32 3, %v5199
    %v5201 = vrot.slane %v5077, %v5200
    %v5207 = vlaneseq
    %v5208 = vshrl.u32 %v5207, 7
    %v5209 = vsub.s32 0, %v5208
    %v5210 = vrot.slane %v5088, %v5209
    %v5211 = vlaneseq
    %v5212 = vshrl.u32 %v5211, 7
    %v5213 = vsub.s32 1, %v5212
    %v5214 = vrot.slane %v5088, %v5213
    %v5215 = vlaneseq
    %v5216 = vshrl.u32 %v5215, 7
    %v5217 = vsub.s32 2, %v5216
    %v5218 = vrot.slane %v5088, %v5217
    %v5219 = vlaneseq
    %v5220 = vshrl.u32 %v5219, 7
    %v5221 = vsub.s32 3, %v5220
    %v5222 = vrot.slane %v5088, %v5221
    %v5228 = vlaneseq
    %v5229 = vshrl.u32 %v5228, 7
    %v5230 = vsub.s32 0, %v5229
    %v5231 = vrot.slane %v5099, %v5230
    %v5232 = vlaneseq
    %v5233 = vshrl.u32 %v5232, 7
    %v5234 = vsub.s32 1, %v5233
    %v5235 = vrot.slane %v5099, %v5234
    %v5236 = vlaneseq
    %v5237 = vshrl.u32 %v5236, 7
    %v5238 = vsub.s32 2, %v5237
    %v5239 = vrot.slane %v5099, %v5238
    %v5240 = vlaneseq
    %v5241 = vshrl.u32 %v5240, 7
    %v5242 = vsub.s32 3, %v5241
    %v5243 = vrot.slane %v5099, %v5242
    %v5249 = vlaneseq
    %v5250 = vshrl.u32 %v5249, 7
    %v5251 = vsub.s32 0, %v5250
    %v5252 = vrot.slane %v5110, %v5251
    %v5253 = vlaneseq
    %v5254 = vshrl.u32 %v5253, 7
    %v5255 = vsub.s32 1, %v5254
    %v5256 = vrot.slane %v5110, %v5255
    %v5257 = vlaneseq
    %v5258 = vshrl.u32 %v5257, 7
    %v5259 = vsub.s32 2, %v5258
    %v5260 = vrot.slane %v5110, %v5259
    %v5261 = vlaneseq
    %v5262 = vshrl.u32 %v5261, 7
    %v5263 = vsub.s32 3, %v5262
    %v5264 = vrot.slane %v5110, %v5263
    %v5270 = vlaneseq
    %v5271 = vshrl.u32 %v5270, 7
    %v5272 = vsub.s32 0, %v5271
    %v5273 = vrot.slane %v5121, %v5272
    %v5274 = vlaneseq
    %v5275 = vshrl.u32 %v5274, 7
    %v5276 = vsub.s32 1, %v5275
    %v5277 = vrot.slane %v5121, %v5276
    %v5278 = vlaneseq
    %v5279 = vshrl.u32 %v5278, 7
    %v5280 = vsub.s32 2, %v5279
    %v5281 = vrot.slane %v5121, %v5280
    %v5282 = vlaneseq
    %v5283 = vshrl.u32 %v5282, 7
    %v5284 = vsub.s32 3, %v5283
    %v5285 = vrot.slane %v5121, %v5284
    %v5290 = vsel %vm458, %v5126, %v5147
    %v5291 = vsel %vm458, %v5130, %v5151
    %v5292 = vsel %vm458, %v5134, %v5155
    %v5293 = vsel %vm458, %v5138, %v5159
    %v5294 = vsel %vm463, %v5290, %v5168
    %v5295 = vsel %vm463, %v5291, %v5172
    %v5296 = vsel %vm463, %v5292, %v5176
    %v5297 = vsel %vm463, %v5293, %v5180
    %v5298 = vsel %vm468, %v5294, %v5189
    %v5299 = vsel %vm468, %v5295, %v5193
    %v5300 = vsel %vm468, %v5296, %v5197
    %v5301 = vsel %vm468, %v5297, %v5201
    %v5302 = vsel %vm473, %v5298, %v5210
    %v5303 = vsel %vm473, %v5299, %v5214
    %v5304 = vsel %vm473, %v5300, %v5218
    %v5305 = vsel %vm473, %v5301, %v5222
    %v5306 = vsel %vm478, %v5302, %v5231
    %v5307 = vsel %vm478, %v5303, %v5235
    %v5308 = vsel %vm478, %v5304, %v5239
    %v5309 = vsel %vm478, %v5305, %v5243
    %v5310 = vsel %vm483, %v5306, %v5252
    %v5311 = vsel %vm483, %v5307, %v5256
    %v5312 = vsel %vm483, %v5308, %v5260
    %v5313 = vsel %vm483, %v5309, %v5264
    %v5314 = vsel %vm488, %v5310, %v5273
    %v5315 = vsel %vm488, %v5311, %v5277
    %v5316 = vsel %vm488, %v5312, %v5281
    %v5317 = vsel %vm488, %v5313, %v5285
    %v5318 = vld [vmem:[#allocation13] sm:$0xff]
    %v5319 = vld [vmem:[#allocation13 + $0x8] sm:$0xff]
    %v5320 = vld [vmem:[#allocation13 + $0x10] sm:$0xff]
    %v5321 = vld [vmem:[#allocation13 + $0x18] sm:$0xff]
    %v5322 = vld [vmem:[#allocation13 + $0x20] sm:$0xff]
    %v5323 = vld [vmem:[#allocation13 + $0x28] sm:$0xff]
    %v5324 = vld [vmem:[#allocation13 + $0x30] sm:$0xff]
    %v5325 = vld [vmem:[#allocation13 + $0x38] sm:$0xff]
    %v5326 = vld [vmem:[#allocation13 + $0x40] sm:$0xff]
    %v5327 = vld [vmem:[#allocation13 + $0x48] sm:$0xff]
    %v5328 = vld [vmem:[#allocation13 + $0x50] sm:$0xff]
    %v5329 = vld [vmem:[#allocation13 + $0x58] sm:$0xff]
    %v5330 = vld [vmem:[#allocation13 + $0x60] sm:$0xff]
    %v5331 = vld [vmem:[#allocation13 + $0x68] sm:$0xff]
    %v5332 = vld [vmem:[#allocation13 + $0x70] sm:$0xff]
    %v5333 = vld [vmem:[#allocation13 + $0x78] sm:$0xff]
    %v5334 = vld [vmem:[#allocation13 + $0x80] sm:$0xff]
    %v5335 = vld [vmem:[#allocation13 + $0x88] sm:$0xff]
    %v5336 = vld [vmem:[#allocation13 + $0x90] sm:$0xff]
    %v5337 = vld [vmem:[#allocation13 + $0x98] sm:$0xff]
    %v5338 = vld [vmem:[#allocation13 + $0xa0] sm:$0xff]
    %v5339 = vld [vmem:[#allocation13 + $0xa8] sm:$0xff]
    %v5340 = vld [vmem:[#allocation13 + $0xb0] sm:$0xff]
    %v5341 = vld [vmem:[#allocation13 + $0xb8] sm:$0xff]
    %v5342 = vld [vmem:[#allocation13 + $0xc0] sm:$0xff]
    %v5343 = vld [vmem:[#allocation13 + $0xc8] sm:$0xff]
    %v5344 = vld [vmem:[#allocation13 + $0xd0] sm:$0xff]
    %v5345 = vld [vmem:[#allocation13 + $0xd8] sm:$0xff]
    %v5346 = vld [vmem:[#allocation13 + $0xe0] sm:$0xff]
    %v5347 = vld [vmem:[#allocation13 + $0xe8] sm:$0xff]
    %v5348 = vld [vmem:[#allocation13 + $0xf0] sm:$0xff]
    %v5349 = vld [vmem:[#allocation13 + $0xf8] sm:$0xff]
    %v5350 = vld [vmem:[#allocation13 + $0x100] sm:$0xff]
    %v5351 = vld [vmem:[#allocation13 + $0x108] sm:$0xff]
    %v5352 = vld [vmem:[#allocation13 + $0x110] sm:$0xff]
    %v5353 = vld [vmem:[#allocation13 + $0x118] sm:$0xff]
    %v5354 = vld [vmem:[#allocation13 + $0x120] sm:$0xff]
    %v5355 = vld [vmem:[#allocation13 + $0x128] sm:$0xff]
    %v5356 = vld [vmem:[#allocation13 + $0x130] sm:$0xff]
    %v5357 = vld [vmem:[#allocation13 + $0x138] sm:$0xff]
    %v5358 = vld [vmem:[#allocation13 + $0x140] sm:$0xff]
    %v5359 = vld [vmem:[#allocation13 + $0x148] sm:$0xff]
    %v5360 = vld [vmem:[#allocation13 + $0x150] sm:$0xff]
    %v5361 = vld [vmem:[#allocation13 + $0x158] sm:$0xff]
    %v5362 = vld [vmem:[#allocation13 + $0x160] sm:$0xff]
    %v5363 = vld [vmem:[#allocation13 + $0x168] sm:$0xff]
    %v5364 = vld [vmem:[#allocation13 + $0x170] sm:$0xff]
    %v5365 = vld [vmem:[#allocation13 + $0x178] sm:$0xff]
    %v5366 = vld [vmem:[#allocation13 + $0x180] sm:$0xff]
    %v5367 = vld [vmem:[#allocation13 + $0x188] sm:$0xff]
    %v5368 = vld [vmem:[#allocation13 + $0x190] sm:$0xff]
    %v5369 = vld [vmem:[#allocation13 + $0x198] sm:$0xff]
    %v5370 = vld [vmem:[#allocation13 + $0x1a0] sm:$0xff]
    %v5371 = vld [vmem:[#allocation13 + $0x1a8] sm:$0xff]
    %v5372 = vld [vmem:[#allocation13 + $0x1b0] sm:$0xff]
    %v5373 = vld [vmem:[#allocation13 + $0x1b8] sm:$0xff]
    %v5374 = vld [vmem:[#allocation13 + $0x1c0] sm:$0xff]
    %v5375 = vld [vmem:[#allocation13 + $0x1c8] sm:$0xff]
    %v5376 = vld [vmem:[#allocation13 + $0x1d0] sm:$0xff]
    %v5377 = vld [vmem:[#allocation13 + $0x1d8] sm:$0xff]
    %v5378 = vld [vmem:[#allocation13 + $0x1e0] sm:$0xff]
    %v5379 = vld [vmem:[#allocation13 + $0x1e8] sm:$0xff]
    %v5380 = vld [vmem:[#allocation13 + $0x1f0] sm:$0xff]
    %v5381 = vld [vmem:[#allocation13 + $0x1f8] sm:$0xff]
    %5382 = vmatprep.subr.mxu0 %v5319
    %5383 = vmatpush1.msra.mxu0 %v5318
    %5384 = vmatprep.subr.mxu0 %v5323
    %5385 = vmatpush1.msra.mxu0 %v5322
    %5386 = vmatprep.subr.mxu0 %v5327
    %5387 = vmatpush1.msra.mxu0 %v5326
    %5388 = vmatprep.subr.mxu0 %v5331
    %5389 = vmatpush1.msra.mxu0 %v5330
    %5390 = vmatprep.subr.mxu0 %v5335
    %5391 = vmatpush1.msra.mxu0 %v5334
    %5392 = vmatprep.subr.mxu0 %v5339
    %5393 = vmatpush1.msra.mxu0 %v5338
    %5394 = vmatprep.subr.mxu0 %v5343
    %5395 = vmatpush1.msra.mxu0 %v5342
    %5396 = vmatprep.subr.mxu0 %v5347
    %5397 = vmatpush1.msra.mxu0 %v5346
    %5398 = vmatprep.subr.mxu0 %v5351
    %5399 = vmatpush1.msra.mxu0 %v5350
    %5400 = vmatprep.subr.mxu0 %v5355
    %5401 = vmatpush1.msra.mxu0 %v5354
    %5402 = vmatprep.subr.mxu0 %v5359
    %5403 = vmatpush1.msra.mxu0 %v5358
    %5404 = vmatprep.subr.mxu0 %v5363
    %5405 = vmatpush1.msra.mxu0 %v5362
    %5406 = vmatprep.subr.mxu0 %v5367
    %5407 = vmatpush1.msra.mxu0 %v5366
    %5408 = vmatprep.subr.mxu0 %v5371
    %5409 = vmatpush1.msra.mxu0 %v5370
    %5410 = vmatprep.subr.mxu0 %v5375
    %5411 = vmatpush1.msra.mxu0 %v5374
    %5412 = vmatprep.subr.mxu0 %v5379
    %5413 = vmatpush1.msra.mxu0 %v5378
    %5414 = vmatprep.subr.mxu0 0.0
    %5415 = vmatpush1.msra.mxu0 0.0
    %5416 = vmatprep.subr.mxu0 0.0
    %5417 = vmatpush1.msra.mxu0 0.0
    %5418 = vmatprep.subr.mxu0 0.0
    %5419 = vmatpush1.msra.mxu0 0.0
    %5420 = vmatprep.subr.mxu0 0.0
    %5421 = vmatpush1.msra.mxu0 0.0
    %5422 = vmatprep.subr.mxu0 0.0
    %5423 = vmatpush1.msra.mxu0 0.0
    %5424 = vmatprep.subr.mxu0 0.0
    %5425 = vmatpush1.msra.mxu0 0.0
    %5426 = vmatprep.subr.mxu0 0.0
    %5427 = vmatpush1.msra.mxu0 0.0
    %5428 = vmatprep.subr.mxu0 0.0
    %5429 = vmatpush1.msra.mxu0 0.0
    %5430 = vmatprep.subr.mxu0 0.0
    %5431 = vmatpush1.msra.mxu0 0.0
    %5432 = vmatprep.subr.mxu0 0.0
    %5433 = vmatpush1.msra.mxu0 0.0
    %5434 = vmatprep.subr.mxu0 0.0
    %5435 = vmatpush1.msra.mxu0 0.0
    %5436 = vmatprep.subr.mxu0 0.0
    %5437 = vmatpush1.msra.mxu0 0.0
    %5438 = vmatprep.subr.mxu0 0.0
    %5439 = vmatpush1.msra.mxu0 0.0
    %5440 = vmatprep.subr.mxu0 0.0
    %5441 = vmatpush1.msra.mxu0 0.0
    %5442 = vmatprep.subr.mxu0 0.0
    %5443 = vmatpush1.msra.mxu0 0.0
    %5444 = vmatprep.subr.mxu0 0.0
    %5445 = vmatpush1.msra.mxu0 0.0
    %5446 = vmatprep.mubr.f32.mxu0 0.0
    %5447 = vmatmul.mubr.f32.gmra.mrb[0].mxu0 %v4590
    %v5448 = vpop.f32.mrb[0].mxu0
    %v5449 = vadd.f32 0.0, %v5448
    %v5450 = vpop.f32.mrb[0].mxu0
    %v5451 = vadd.f32 0.0, %v5450
    %5452 = vdwg.mxu0
    %5453 = vmatprep.subr.mxu0 %v5321
    %5454 = vmatpush1.msra.mxu0 %v5320
    %5455 = vmatprep.subr.mxu0 %v5325
    %5456 = vmatpush1.msra.mxu0 %v5324
    %5457 = vmatprep.subr.mxu0 %v5329
    %5458 = vmatpush1.msra.mxu0 %v5328
    %5459 = vmatprep.subr.mxu0 %v5333
    %5460 = vmatpush1.msra.mxu0 %v5332
    %5461 = vmatprep.subr.mxu0 %v5337
    %5462 = vmatpush1.msra.mxu0 %v5336
    %5463 = vmatprep.subr.mxu0 %v5341
    %5464 = vmatpush1.msra.mxu0 %v5340
    %5465 = vmatprep.subr.mxu0 %v5345
    %5466 = vmatpush1.msra.mxu0 %v5344
    %5467 = vmatprep.subr.mxu0 %v5349
    %5468 = vmatpush1.msra.mxu0 %v5348
    %5469 = vmatprep.subr.mxu0 %v5353
    %5470 = vmatpush1.msra.mxu0 %v5352
    %5471 = vmatprep.subr.mxu0 %v5357
    %5472 = vmatpush1.msra.mxu0 %v5356
    %5473 = vmatprep.subr.mxu0 %v5361
    %5474 = vmatpush1.msra.mxu0 %v5360
    %5475 = vmatprep.subr.mxu0 %v5365
    %5476 = vmatpush1.msra.mxu0 %v5364
    %5477 = vmatprep.subr.mxu0 %v5369
    %5478 = vmatpush1.msra.mxu0 %v5368
    %5479 = vmatprep.subr.mxu0 %v5373
    %5480 = vmatpush1.msra.mxu0 %v5372
    %5481 = vmatprep.subr.mxu0 %v5377
    %5482 = vmatpush1.msra.mxu0 %v5376
    %5483 = vmatprep.subr.mxu0 %v5381
    %5484 = vmatpush1.msra.mxu0 %v5380
    %5485 = vmatprep.subr.mxu0 0.0
    %5486 = vmatpush1.msra.mxu0 0.0
    %5487 = vmatprep.subr.mxu0 0.0
    %5488 = vmatpush1.msra.mxu0 0.0
    %5489 = vmatprep.subr.mxu0 0.0
    %5490 = vmatpush1.msra.mxu0 0.0
    %5491 = vmatprep.subr.mxu0 0.0
    %5492 = vmatpush1.msra.mxu0 0.0
    %5493 = vmatprep.subr.mxu0 0.0
    %5494 = vmatpush1.msra.mxu0 0.0
    %5495 = vmatprep.subr.mxu0 0.0
    %5496 = vmatpush1.msra.mxu0 0.0
    %5497 = vmatprep.subr.mxu0 0.0
    %5498 = vmatpush1.msra.mxu0 0.0
    %5499 = vmatprep.subr.mxu0 0.0
    %5500 = vmatpush1.msra.mxu0 0.0
    %5501 = vmatprep.subr.mxu0 0.0
    %5502 = vmatpush1.msra.mxu0 0.0
    %5503 = vmatprep.subr.mxu0 0.0
    %5504 = vmatpush1.msra.mxu0 0.0
    %5505 = vmatprep.subr.mxu0 0.0
    %5506 = vmatpush1.msra.mxu0 0.0
    %5507 = vmatprep.subr.mxu0 0.0
    %5508 = vmatpush1.msra.mxu0 0.0
    %5509 = vmatprep.subr.mxu0 0.0
    %5510 = vmatpush1.msra.mxu0 0.0
    %5511 = vmatprep.subr.mxu0 0.0
    %5512 = vmatpush1.msra.mxu0 0.0
    %5513 = vmatprep.subr.mxu0 0.0
    %5514 = vmatpush1.msra.mxu0 0.0
    %5515 = vmatprep.subr.mxu0 0.0
    %5516 = vmatpush1.msra.mxu0 0.0
    %5517 = vmatprep.mubr.f32.mxu0 0.0
    %5518 = vmatmul.mubr.f32.gmra.mrb[0].mxu0 %v4590
    %v5519 = vpop.f32.mrb[0].mxu0
    %v5520 = vadd.f32 0.0, %v5519
    %v5521 = vpop.f32.mrb[0].mxu0
    %v5522 = vadd.f32 0.0, %v5521
    %5523 = vdwg.mxu0
    %v5524 = vadd.f32 %v5314, %v5449
    %v5525 = vadd.f32 %v5315, %v5451
    %v5526 = vadd.f32 %v5316, %v5520
    %v5527 = vadd.f32 %v5317, %v5522
    %v5528 = vadd.f32 %v5524, %v157
    %v5529 = vadd.f32 %v5525, %v161
    %v5530 = vadd.f32 %v5526, %v165
    %v5531 = vadd.f32 %v5527, %v169
    %v5532 = vxor.u32 %v5528, 2147483648
    %v5533 = vxor.u32 %v5529, 2147483648
    %v5534 = vxor.u32 %v5530, 2147483648
    %v5535 = vmul.f32 %v5532, 1.442695
    %v5536 = vpow.pop %v5535
    %v5537 = vmul.f32 %v5533, 1.442695
    %v5538 = vpow.pop %v5537
    %v5539 = vmul.f32 %v5534, 1.442695
    %v5540 = vpow.pop %v5539
    %v5541 = vadd.f32 %v5536, 1.0
    %v5542 = vadd.f32 %v5538, 1.0
    %v5543 = vadd.f32 %v5540, 1.0
    %v5544 = vrcp.pop %v5541
    %v5545 = vmul.f32 1.0, %v5544
    %v5546 = vrcp.pop %v5542
    %v5547 = vmul.f32 1.0, %v5546
    %v5548 = vrcp.pop %v5543
    %v5549 = vmul.f32 1.0, %v5548
    %v5550 = vtanh.pop %v5531
    %v5551 = vmul.f32 %v5547, %v4588
    %v5552 = vmul.f32 %v5545, %v5550
    %v5553 = vadd.f32 %v5551, %v5552
    %v5554 = vtanh.pop %v5553
    %v5555 = vmul.f32 %v5549, %v5554
    %v5556 = vld [vmem:[#allocation15] sm:$0xff]
    %v5557 = vld [vmem:[#allocation15 + $0x8] sm:$0xff]
    %v5558 = vld [vmem:[#allocation15 + $0x10] sm:$0xff]
    %v5559 = vld [vmem:[#allocation15 + $0x18] sm:$0xff]
    %v5560 = vld [vmem:[#allocation15 + $0x20] sm:$0xff]
    %v5561 = vld [vmem:[#allocation15 + $0x28] sm:$0xff]
    %v5562 = vld [vmem:[#allocation15 + $0x30] sm:$0xff]
    %v5563 = vld [vmem:[#allocation15 + $0x38] sm:$0xff]
    %v5564 = vld [vmem:[#allocation15 + $0x40] sm:$0xff]
    %v5565 = vld [vmem:[#allocation15 + $0x48] sm:$0xff]
    %v5566 = vld [vmem:[#allocation15 + $0x50] sm:$0xff]
    %v5567 = vld [vmem:[#allocation15 + $0x58] sm:$0xff]
    %v5568 = vld [vmem:[#allocation15 + $0x60] sm:$0xff]
    %v5569 = vld [vmem:[#allocation15 + $0x68] sm:$0xff]
    %v5570 = vld [vmem:[#allocation15 + $0x70] sm:$0xff]
    %v5571 = vld [vmem:[#allocation15 + $0x78] sm:$0xff]
    %v5572 = vld [vmem:[#allocation15 + $0x80] sm:$0xff]
    %v5573 = vld [vmem:[#allocation15 + $0x88] sm:$0xff]
    %v5574 = vld [vmem:[#allocation15 + $0x90] sm:$0xff]
    %v5575 = vld [vmem:[#allocation15 + $0x98] sm:$0xff]
    %v5576 = vld [vmem:[#allocation15 + $0xa0] sm:$0xff]
    %v5577 = vld [vmem:[#allocation15 + $0xa8] sm:$0xff]
    %v5578 = vld [vmem:[#allocation15 + $0xb0] sm:$0xff]
    %v5579 = vld [vmem:[#allocation15 + $0xb8] sm:$0xff]
    %v5580 = vld [vmem:[#allocation15 + $0xc0] sm:$0xff]
    %v5581 = vld [vmem:[#allocation15 + $0xc8] sm:$0xff]
    %v5582 = vld [vmem:[#allocation15 + $0xd0] sm:$0xff]
    %v5583 = vld [vmem:[#allocation15 + $0xd8] sm:$0xff]
    %v5584 = vld [vmem:[#allocation15 + $0xe0] sm:$0xff]
    %v5585 = vld [vmem:[#allocation15 + $0xe8] sm:$0xff]
    %v5586 = vld [vmem:[#allocation15 + $0xf0] sm:$0xff]
    %v5587 = vld [vmem:[#allocation15 + $0xf8] sm:$0xff]
    %v5588 = vld [vmem:[#allocation15 + $0x100] sm:$0xff]
    %v5589 = vld [vmem:[#allocation15 + $0x108] sm:$0xff]
    %v5590 = vld [vmem:[#allocation15 + $0x110] sm:$0xff]
    %v5591 = vld [vmem:[#allocation15 + $0x118] sm:$0xff]
    %v5592 = vld [vmem:[#allocation15 + $0x120] sm:$0xff]
    %v5593 = vld [vmem:[#allocation15 + $0x128] sm:$0xff]
    %v5594 = vld [vmem:[#allocation15 + $0x130] sm:$0xff]
    %v5595 = vld [vmem:[#allocation15 + $0x138] sm:$0xff]
    %v5596 = vld [vmem:[#allocation15 + $0x140] sm:$0xff]
    %v5597 = vld [vmem:[#allocation15 + $0x148] sm:$0xff]
    %v5598 = vld [vmem:[#allocation15 + $0x150] sm:$0xff]
    %v5599 = vld [vmem:[#allocation15 + $0x158] sm:$0xff]
    %v5600 = vld [vmem:[#allocation15 + $0x160] sm:$0xff]
    %v5601 = vld [vmem:[#allocation15 + $0x168] sm:$0xff]
    %v5602 = vld [vmem:[#allocation15 + $0x170] sm:$0xff]
    %v5603 = vld [vmem:[#allocation15 + $0x178] sm:$0xff]
    %v5604 = vld [vmem:[#allocation15 + $0x180] sm:$0xff]
    %v5605 = vld [vmem:[#allocation15 + $0x188] sm:$0xff]
    %v5606 = vld [vmem:[#allocation15 + $0x190] sm:$0xff]
    %v5607 = vld [vmem:[#allocation15 + $0x198] sm:$0xff]
    %v5608 = vld [vmem:[#allocation15 + $0x1a0] sm:$0xff]
    %v5609 = vld [vmem:[#allocation15 + $0x1a8] sm:$0xff]
    %v5610 = vld [vmem:[#allocation15 + $0x1b0] sm:$0xff]
    %v5611 = vld [vmem:[#allocation15 + $0x1b8] sm:$0xff]
    %v5612 = vld [vmem:[#allocation15 + $0x1c0] sm:$0xff]
    %v5613 = vld [vmem:[#allocation15 + $0x1c8] sm:$0xff]
    %v5614 = vld [vmem:[#allocation15 + $0x1d0] sm:$0xff]
    %v5615 = vld [vmem:[#allocation15 + $0x1d8] sm:$0xff]
    %v5616 = vld [vmem:[#allocation15 + $0x1e0] sm:$0xff]
    %v5617 = vld [vmem:[#allocation15 + $0x1e8] sm:$0xff]
    %v5618 = vld [vmem:[#allocation15 + $0x1f0] sm:$0xff]
    %v5619 = vld [vmem:[#allocation15 + $0x1f8] sm:$0xff]
    %v5620 = vld [vmem:[#allocation16] sm:$0xff]
    %v5621 = vld [vmem:[#allocation16 + $0x8] sm:$0xff]
    %v5622 = vld [vmem:[#allocation16 + $0x10] sm:$0xff]
    %v5623 = vld [vmem:[#allocation16 + $0x18] sm:$0xff]
    %v5624 = vld [vmem:[#allocation16 + $0x20] sm:$0xff]
    %v5625 = vld [vmem:[#allocation16 + $0x28] sm:$0xff]
    %v5626 = vld [vmem:[#allocation16 + $0x30] sm:$0xff]
    %v5627 = vld [vmem:[#allocation16 + $0x38] sm:$0xff]
    %v5628 = vld [vmem:[#allocation16 + $0x40] sm:$0xff]
    %v5629 = vld [vmem:[#allocation16 + $0x48] sm:$0xff]
    %v5630 = vld [vmem:[#allocation16 + $0x50] sm:$0xff]
    %v5631 = vld [vmem:[#allocation16 + $0x58] sm:$0xff]
    %v5632 = vld [vmem:[#allocation16 + $0x60] sm:$0xff]
    %v5633 = vld [vmem:[#allocation16 + $0x68] sm:$0xff]
    %v5634 = vld [vmem:[#allocation16 + $0x70] sm:$0xff]
    %v5635 = vld [vmem:[#allocation16 + $0x78] sm:$0xff]
    %v5636 = vld [vmem:[#allocation16 + $0x80] sm:$0xff]
    %v5637 = vld [vmem:[#allocation16 + $0x88] sm:$0xff]
    %v5638 = vld [vmem:[#allocation16 + $0x90] sm:$0xff]
    %v5639 = vld [vmem:[#allocation16 + $0x98] sm:$0xff]
    %v5640 = vld [vmem:[#allocation16 + $0xa0] sm:$0xff]
    %v5641 = vld [vmem:[#allocation16 + $0xa8] sm:$0xff]
    %v5642 = vld [vmem:[#allocation16 + $0xb0] sm:$0xff]
    %v5643 = vld [vmem:[#allocation16 + $0xb8] sm:$0xff]
    %v5644 = vld [vmem:[#allocation16 + $0xc0] sm:$0xff]
    %v5645 = vld [vmem:[#allocation16 + $0xc8] sm:$0xff]
    %v5646 = vld [vmem:[#allocation16 + $0xd0] sm:$0xff]
    %v5647 = vld [vmem:[#allocation16 + $0xd8] sm:$0xff]
    %v5648 = vld [vmem:[#allocation16 + $0xe0] sm:$0xff]
    %v5649 = vld [vmem:[#allocation16 + $0xe8] sm:$0xff]
    %v5650 = vld [vmem:[#allocation16 + $0xf0] sm:$0xff]
    %v5651 = vld [vmem:[#allocation16 + $0xf8] sm:$0xff]
    %v5652 = vld [vmem:[#allocation16 + $0x100] sm:$0xff]
    %v5653 = vld [vmem:[#allocation16 + $0x108] sm:$0xff]
    %v5654 = vld [vmem:[#allocation16 + $0x110] sm:$0xff]
    %v5655 = vld [vmem:[#allocation16 + $0x118] sm:$0xff]
    %v5656 = vld [vmem:[#allocation16 + $0x120] sm:$0xff]
    %v5657 = vld [vmem:[#allocation16 + $0x128] sm:$0xff]
    %v5658 = vld [vmem:[#allocation16 + $0x130] sm:$0xff]
    %v5659 = vld [vmem:[#allocation16 + $0x138] sm:$0xff]
    %v5660 = vld [vmem:[#allocation16 + $0x140] sm:$0xff]
    %v5661 = vld [vmem:[#allocation16 + $0x148] sm:$0xff]
    %v5662 = vld [vmem:[#allocation16 + $0x150] sm:$0xff]
    %v5663 = vld [vmem:[#allocation16 + $0x158] sm:$0xff]
    %v5664 = vld [vmem:[#allocation16 + $0x160] sm:$0xff]
    %v5665 = vld [vmem:[#allocation16 + $0x168] sm:$0xff]
    %v5666 = vld [vmem:[#allocation16 + $0x170] sm:$0xff]
    %v5667 = vld [vmem:[#allocation16 + $0x178] sm:$0xff]
    %v5668 = vld [vmem:[#allocation16 + $0x180] sm:$0xff]
    %v5669 = vld [vmem:[#allocation16 + $0x188] sm:$0xff]
    %v5670 = vld [vmem:[#allocation16 + $0x190] sm:$0xff]
    %v5671 = vld [vmem:[#allocation16 + $0x198] sm:$0xff]
    %v5672 = vld [vmem:[#allocation16 + $0x1a0] sm:$0xff]
    %v5673 = vld [vmem:[#allocation16 + $0x1a8] sm:$0xff]
    %v5674 = vld [vmem:[#allocation16 + $0x1b0] sm:$0xff]
    %v5675 = vld [vmem:[#allocation16 + $0x1b8] sm:$0xff]
    %v5676 = vld [vmem:[#allocation16 + $0x1c0] sm:$0xff]
    %v5677 = vld [vmem:[#allocation16 + $0x1c8] sm:$0xff]
    %v5678 = vld [vmem:[#allocation16 + $0x1d0] sm:$0xff]
    %v5679 = vld [vmem:[#allocation16 + $0x1d8] sm:$0xff]
    %v5680 = vld [vmem:[#allocation16 + $0x1e0] sm:$0xff]
    %v5681 = vld [vmem:[#allocation16 + $0x1e8] sm:$0xff]
    %v5682 = vld [vmem:[#allocation16 + $0x1f0] sm:$0xff]
    %v5683 = vld [vmem:[#allocation16 + $0x1f8] sm:$0xff]
    %5684 = vmatprep.subr.mxu0 %v5621
    %5685 = vmatpush1.msra.mxu0 %v5620
    %5686 = vmatprep.subr.mxu0 %v5625
    %5687 = vmatpush1.msra.mxu0 %v5624
    %5688 = vmatprep.subr.mxu0 %v5629
    %5689 = vmatpush1.msra.mxu0 %v5628
    %5690 = vmatprep.subr.mxu0 %v5633
    %5691 = vmatpush1.msra.mxu0 %v5632
    %5692 = vmatprep.subr.mxu0 %v5637
    %5693 = vmatpush1.msra.mxu0 %v5636
    %5694 = vmatprep.subr.mxu0 %v5641
    %5695 = vmatpush1.msra.mxu0 %v5640
    %5696 = vmatprep.subr.mxu0 %v5645
    %5697 = vmatpush1.msra.mxu0 %v5644
    %5698 = vmatprep.subr.mxu0 %v5649
    %5699 = vmatpush1.msra.mxu0 %v5648
    %5700 = vmatprep.subr.mxu0 %v5653
    %5701 = vmatpush1.msra.mxu0 %v5652
    %5702 = vmatprep.subr.mxu0 %v5657
    %5703 = vmatpush1.msra.mxu0 %v5656
    %5704 = vmatprep.subr.mxu0 %v5661
    %5705 = vmatpush1.msra.mxu0 %v5660
    %5706 = vmatprep.subr.mxu0 %v5665
    %5707 = vmatpush1.msra.mxu0 %v5664
    %5708 = vmatprep.subr.mxu0 %v5669
    %5709 = vmatpush1.msra.mxu0 %v5668
    %5710 = vmatprep.subr.mxu0 %v5673
    %5711 = vmatpush1.msra.mxu0 %v5672
    %5712 = vmatprep.subr.mxu0 %v5677
    %5713 = vmatpush1.msra.mxu0 %v5676
    %5714 = vmatprep.subr.mxu0 %v5681
    %5715 = vmatpush1.msra.mxu0 %v5680
    %5716 = vmatprep.subr.mxu0 0.0
    %5717 = vmatpush1.msra.mxu0 0.0
    %5718 = vmatprep.subr.mxu0 0.0
    %5719 = vmatpush1.msra.mxu0 0.0
    %5720 = vmatprep.subr.mxu0 0.0
    %5721 = vmatpush1.msra.mxu0 0.0
    %5722 = vmatprep.subr.mxu0 0.0
    %5723 = vmatpush1.msra.mxu0 0.0
    %5724 = vmatprep.subr.mxu0 0.0
    %5725 = vmatpush1.msra.mxu0 0.0
    %5726 = vmatprep.subr.mxu0 0.0
    %5727 = vmatpush1.msra.mxu0 0.0
    %5728 = vmatprep.subr.mxu0 0.0
    %5729 = vmatpush1.msra.mxu0 0.0
    %5730 = vmatprep.subr.mxu0 0.0
    %5731 = vmatpush1.msra.mxu0 0.0
    %5732 = vmatprep.subr.mxu0 0.0
    %5733 = vmatpush1.msra.mxu0 0.0
    %5734 = vmatprep.subr.mxu0 0.0
    %5735 = vmatpush1.msra.mxu0 0.0
    %5736 = vmatprep.subr.mxu0 0.0
    %5737 = vmatpush1.msra.mxu0 0.0
    %5738 = vmatprep.subr.mxu0 0.0
    %5739 = vmatpush1.msra.mxu0 0.0
    %5740 = vmatprep.subr.mxu0 0.0
    %5741 = vmatpush1.msra.mxu0 0.0
    %5742 = vmatprep.subr.mxu0 0.0
    %5743 = vmatpush1.msra.mxu0 0.0
    %5744 = vmatprep.subr.mxu0 0.0
    %5745 = vmatpush1.msra.mxu0 0.0
    %5746 = vmatprep.subr.mxu0 0.0
    %5747 = vmatpush1.msra.mxu0 0.0
    %5748 = vmatprep.mubr.f32.mxu0 0.0
    %5749 = vmatmul.mubr.f32.gmra.mrb[0].mxu0 %v5030
    %v5750 = vpop.f32.mrb[0].mxu0
    %v5751 = vadd.f32 0.0, %v5750
    %v5752 = vpop.f32.mrb[0].mxu0
    %v5753 = vadd.f32 0.0, %v5752
    %5754 = vdwg.mxu0
    %5755 = vmatprep.subr.mxu0 %v5623
    %5756 = vmatpush1.msra.mxu0 %v5622
    %5757 = vmatprep.subr.mxu0 %v5627
    %5758 = vmatpush1.msra.mxu0 %v5626
    %5759 = vmatprep.subr.mxu0 %v5631
    %5760 = vmatpush1.msra.mxu0 %v5630
    %5761 = vmatprep.subr.mxu0 %v5635
    %5762 = vmatpush1.msra.mxu0 %v5634
    %5763 = vmatprep.subr.mxu0 %v5639
    %5764 = vmatpush1.msra.mxu0 %v5638
    %5765 = vmatprep.subr.mxu0 %v5643
    %5766 = vmatpush1.msra.mxu0 %v5642
    %5767 = vmatprep.subr.mxu0 %v5647
    %5768 = vmatpush1.msra.mxu0 %v5646
    %5769 = vmatprep.subr.mxu0 %v5651
    %5770 = vmatpush1.msra.mxu0 %v5650
    %5771 = vmatprep.subr.mxu0 %v5655
    %5772 = vmatpush1.msra.mxu0 %v5654
    %5773 = vmatprep.subr.mxu0 %v5659
    %5774 = vmatpush1.msra.mxu0 %v5658
    %5775 = vmatprep.subr.mxu0 %v5663
    %5776 = vmatpush1.msra.mxu0 %v5662
    %5777 = vmatprep.subr.mxu0 %v5667
    %5778 = vmatpush1.msra.mxu0 %v5666
    %5779 = vmatprep.subr.mxu0 %v5671
    %5780 = vmatpush1.msra.mxu0 %v5670
    %5781 = vmatprep.subr.mxu0 %v5675
    %5782 = vmatpush1.msra.mxu0 %v5674
    %5783 = vmatprep.subr.mxu0 %v5679
    %5784 = vmatpush1.msra.mxu0 %v5678
    %5785 = vmatprep.subr.mxu0 %v5683
    %5786 = vmatpush1.msra.mxu0 %v5682
    %5787 = vmatprep.subr.mxu0 0.0
    %5788 = vmatpush1.msra.mxu0 0.0
    %5789 = vmatprep.subr.mxu0 0.0
    %5790 = vmatpush1.msra.mxu0 0.0
    %5791 = vmatprep.subr.mxu0 0.0
    %5792 = vmatpush1.msra.mxu0 0.0
    %5793 = vmatprep.subr.mxu0 0.0
    %5794 = vmatpush1.msra.mxu0 0.0
    %5795 = vmatprep.subr.mxu0 0.0
    %5796 = vmatpush1.msra.mxu0 0.0
    %5797 = vmatprep.subr.mxu0 0.0
    %5798 = vmatpush1.msra.mxu0 0.0
    %5799 = vmatprep.subr.mxu0 0.0
    %5800 = vmatpush1.msra.mxu0 0.0
    %5801 = vmatprep.subr.mxu0 0.0
    %5802 = vmatpush1.msra.mxu0 0.0
    %5803 = vmatprep.subr.mxu0 0.0
    %5804 = vmatpush1.msra.mxu0 0.0
    %5805 = vmatprep.subr.mxu0 0.0
    %5806 = vmatpush1.msra.mxu0 0.0
    %5807 = vmatprep.subr.mxu0 0.0
    %5808 = vmatpush1.msra.mxu0 0.0
    %5809 = vmatprep.subr.mxu0 0.0
    %5810 = vmatpush1.msra.mxu0 0.0
    %5811 = vmatprep.subr.mxu0 0.0
    %5812 = vmatpush1.msra.mxu0 0.0
    %5813 = vmatprep.subr.mxu0 0.0
    %5814 = vmatpush1.msra.mxu0 0.0
    %5815 = vmatprep.subr.mxu0 0.0
    %5816 = vmatpush1.msra.mxu0 0.0
    %5817 = vmatprep.subr.mxu0 0.0
    %5818 = vmatpush1.msra.mxu0 0.0
    %5819 = vmatprep.mubr.f32.mxu0 0.0
    %5820 = vmatmul.mubr.f32.gmra.mrb[0].mxu0 %v5030
    %v5821 = vpop.f32.mrb[0].mxu0
    %v5822 = vadd.f32 0.0, %v5821
    %v5823 = vpop.f32.mrb[0].mxu0
    %v5824 = vadd.f32 0.0, %v5823
    %5825 = vdwg.mxu0
    %5826 = vmatprep.subr.mxu0 %v5557
    %5827 = vmatpush1.msra.mxu0 %v5556
    %5828 = vmatprep.subr.mxu0 %v5561
    %5829 = vmatpush1.msra.mxu0 %v5560
    %5830 = vmatprep.subr.mxu0 %v5565
    %5831 = vmatpush1.msra.mxu0 %v5564
    %5832 = vmatprep.subr.mxu0 %v5569
    %5833 = vmatpush1.msra.mxu0 %v5568
    %5834 = vmatprep.subr.mxu0 %v5573
    %5835 = vmatpush1.msra.mxu0 %v5572
    %5836 = vmatprep.subr.mxu0 %v5577
    %5837 = vmatpush1.msra.mxu0 %v5576
    %5838 = vmatprep.subr.mxu0 %v5581
    %5839 = vmatpush1.msra.mxu0 %v5580
    %5840 = vmatprep.subr.mxu0 %v5585
    %5841 = vmatpush1.msra.mxu0 %v5584
    %5842 = vmatprep.subr.mxu0 %v5589
    %5843 = vmatpush1.msra.mxu0 %v5588
    %5844 = vmatprep.subr.mxu0 %v5593
    %5845 = vmatpush1.msra.mxu0 %v5592
    %5846 = vmatprep.subr.mxu0 %v5597
    %5847 = vmatpush1.msra.mxu0 %v5596
    %5848 = vmatprep.subr.mxu0 %v5601
    %5849 = vmatpush1.msra.mxu0 %v5600
    %5850 = vmatprep.subr.mxu0 %v5605
    %5851 = vmatpush1.msra.mxu0 %v5604
    %5852 = vmatprep.subr.mxu0 %v5609
    %5853 = vmatpush1.msra.mxu0 %v5608
    %5854 = vmatprep.subr.mxu0 %v5613
    %5855 = vmatpush1.msra.mxu0 %v5612
    %5856 = vmatprep.subr.mxu0 %v5617
    %5857 = vmatpush1.msra.mxu0 %v5616
    %5858 = vmatprep.subr.mxu0 0.0
    %5859 = vmatpush1.msra.mxu0 0.0
    %5860 = vmatprep.subr.mxu0 0.0
    %5861 = vmatpush1.msra.mxu0 0.0
    %5862 = vmatprep.subr.mxu0 0.0
    %5863 = vmatpush1.msra.mxu0 0.0
    %5864 = vmatprep.subr.mxu0 0.0
    %5865 = vmatpush1.msra.mxu0 0.0
    %5866 = vmatprep.subr.mxu0 0.0
    %5867 = vmatpush1.msra.mxu0 0.0
    %5868 = vmatprep.subr.mxu0 0.0
    %5869 = vmatpush1.msra.mxu0 0.0
    %5870 = vmatprep.subr.mxu0 0.0
    %5871 = vmatpush1.msra.mxu0 0.0
    %5872 = vmatprep.subr.mxu0 0.0
    %5873 = vmatpush1.msra.mxu0 0.0
    %5874 = vmatprep.subr.mxu0 0.0
    %5875 = vmatpush1.msra.mxu0 0.0
    %5876 = vmatprep.subr.mxu0 0.0
    %5877 = vmatpush1.msra.mxu0 0.0
    %5878 = vmatprep.subr.mxu0 0.0
    %5879 = vmatpush1.msra.mxu0 0.0
    %5880 = vmatprep.subr.mxu0 0.0
    %5881 = vmatpush1.msra.mxu0 0.0
    %5882 = vmatprep.subr.mxu0 0.0
    %5883 = vmatpush1.msra.mxu0 0.0
    %5884 = vmatprep.subr.mxu0 0.0
    %5885 = vmatpush1.msra.mxu0 0.0
    %5886 = vmatprep.subr.mxu0 0.0
    %5887 = vmatpush1.msra.mxu0 0.0
    %5888 = vmatprep.subr.mxu0 0.0
    %5889 = vmatpush1.msra.mxu0 0.0
    %5890 = vmatprep.mubr.f32.mxu0 0.0
    %5891 = vmatmul.mubr.f32.gmra.mrb[0].mxu0 %v5555
    %v5892 = vpop.f32.mrb[0].mxu0
    %v5893 = vadd.f32 %v5751, %v5892
    %v5894 = vpop.f32.mrb[0].mxu0
    %v5895 = vadd.f32 %v5753, %v5894
    %5896 = vdwg.mxu0
    %5897 = vmatprep.subr.mxu0 %v5559
    %5898 = vmatpush1.msra.mxu0 %v5558
    %5899 = vmatprep.subr.mxu0 %v5563
    %5900 = vmatpush1.msra.mxu0 %v5562
    %5901 = vmatprep.subr.mxu0 %v5567
    %5902 = vmatpush1.msra.mxu0 %v5566
    %5903 = vmatprep.subr.mxu0 %v5571
    %5904 = vmatpush1.msra.mxu0 %v5570
    %5905 = vmatprep.subr.mxu0 %v5575
    %5906 = vmatpush1.msra.mxu0 %v5574
    %5907 = vmatprep.subr.mxu0 %v5579
    %5908 = vmatpush1.msra.mxu0 %v5578
    %5909 = vmatprep.subr.mxu0 %v5583
    %5910 = vmatpush1.msra.mxu0 %v5582
    %5911 = vmatprep.subr.mxu0 %v5587
    %5912 = vmatpush1.msra.mxu0 %v5586
    %5913 = vmatprep.subr.mxu0 %v5591
    %5914 = vmatpush1.msra.mxu0 %v5590
    %5915 = vmatprep.subr.mxu0 %v5595
    %5916 = vmatpush1.msra.mxu0 %v5594
    %5917 = vmatprep.subr.mxu0 %v5599
    %5918 = vmatpush1.msra.mxu0 %v5598
    %5919 = vmatprep.subr.mxu0 %v5603
    %5920 = vmatpush1.msra.mxu0 %v5602
    %5921 = vmatprep.subr.mxu0 %v5607
    %5922 = vmatpush1.msra.mxu0 %v5606
    %5923 = vmatprep.subr.mxu0 %v5611
    %5924 = vmatpush1.msra.mxu0 %v5610
    %5925 = vmatprep.subr.mxu0 %v5615
    %5926 = vmatpush1.msra.mxu0 %v5614
    %5927 = vmatprep.subr.mxu0 %v5619
    %5928 = vmatpush1.msra.mxu0 %v5618
    %5929 = vmatprep.subr.mxu0 0.0
    %5930 = vmatpush1.msra.mxu0 0.0
    %5931 = vmatprep.subr.mxu0 0.0
    %5932 = vmatpush1.msra.mxu0 0.0
    %5933 = vmatprep.subr.mxu0 0.0
    %5934 = vmatpush1.msra.mxu0 0.0
    %5935 = vmatprep.subr.mxu0 0.0
    %5936 = vmatpush1.msra.mxu0 0.0
    %5937 = vmatprep.subr.mxu0 0.0
    %5938 = vmatpush1.msra.mxu0 0.0
    %5939 = vmatprep.subr.mxu0 0.0
    %5940 = vmatpush1.msra.mxu0 0.0
    %5941 = vmatprep.subr.mxu0 0.0
    %5942 = vmatpush1.msra.mxu0 0.0
    %5943 = vmatprep.subr.mxu0 0.0
    %5944 = vmatpush1.msra.mxu0 0.0
    %5945 = vmatprep.subr.mxu0 0.0
    %5946 = vmatpush1.msra.mxu0 0.0
    %5947 = vmatprep.subr.mxu0 0.0
    %5948 = vmatpush1.msra.mxu0 0.0
    %5949 = vmatprep.subr.mxu0 0.0
    %5950 = vmatpush1.msra.mxu0 0.0
    %5951 = vmatprep.subr.mxu0 0.0
    %5952 = vmatpush1.msra.mxu0 0.0
    %5953 = vmatprep.subr.mxu0 0.0
    %5954 = vmatpush1.msra.mxu0 0.0
    %5955 = vmatprep.subr.mxu0 0.0
    %5956 = vmatpush1.msra.mxu0 0.0
    %5957 = vmatprep.subr.mxu0 0.0
    %5958 = vmatpush1.msra.mxu0 0.0
    %5959 = vmatprep.subr.mxu0 0.0
    %5960 = vmatpush1.msra.mxu0 0.0
    %5961 = vmatprep.mubr.f32.mxu0 0.0
    %5962 = vmatmul.mubr.f32.gmra.mrb[0].mxu0 %v5555
    %v5963 = vpop.f32.mrb[0].mxu0
    %v5964 = vadd.f32 %v5822, %v5963
    %v5965 = vpop.f32.mrb[0].mxu0
    %v5966 = vadd.f32 %v5824, %v5965
    %5967 = vdwg.mxu0
    %v5968 = vadd.f32 %v5893, %v179
    %v5969 = vadd.f32 %v5895, %v183
    %v5970 = vadd.f32 %v5964, %v187
    %v5971 = vadd.f32 %v5966, %v191
    %v5972 = vxor.u32 %v5968, 2147483648
    %v5973 = vxor.u32 %v5969, 2147483648
    %v5974 = vxor.u32 %v5970, 2147483648
    %v5975 = vmul.f32 %v5972, 1.442695
    %v5976 = vpow.pop %v5975
    %v5977 = vmul.f32 %v5973, 1.442695
    %v5978 = vpow.pop %v5977
    %v5979 = vmul.f32 %v5974, 1.442695
    %v5980 = vpow.pop %v5979
    %v5981 = vadd.f32 %v5976, 1.0
    %v5982 = vadd.f32 %v5978, 1.0
    %v5983 = vadd.f32 %v5980, 1.0
    %v5984 = vrcp.pop %v5981
    %v5985 = vmul.f32 1.0, %v5984
    %v5986 = vrcp.pop %v5982
    %v5987 = vmul.f32 1.0, %v5986
    %v5988 = vrcp.pop %v5983
    %v5989 = vmul.f32 1.0, %v5988
    %v5990 = vtanh.pop %v5971
    %v5991 = vmul.f32 %v5987, %v5028
    %v5992 = vmul.f32 %v5985, %v5990
    %v5993 = vadd.f32 %v5991, %v5992
    %v5994 = vtanh.pop %v5993
    %v5995 = vmul.f32 %v5989, %v5994
    %s5996 = scalar_lea.vmem [#allocation4], 40
    %5997 = vst [vmem:[%s5996] sm:$0xff] %v5995
    %s5998 = sadd.s32 %s1172, 6
    %s5999 = smul.u32 %s5998, 8
    %s6000 = sld [smem:[#allocation6 + %s5999]]
    %s6001 = sshra.s32 %s6000, 3
    %s6002 = sand.u32 %s6000, 7
    %s6003 = sshra.s32 %s6000, 3
    %s6004 = sand.u32 %s6000, 7
    %s6005 = smul.u32 %s6001, 4
    %s6006 = smul.u32 %s6005, 8
    %s6007 = sadd.s32 %s6006, %s6004
    %s6008 = scalar_lea.vmem [#allocation12], %s6007
    %v6009 = vld [vmem:[%s6008] ss:$8 sm:$0xf]
    %s6010 = sadd.s32 %s5999, 1
    %s6011 = sld [smem:[#allocation6 + %s6010]]
    %s6012 = sshra.s32 %s6011, 3
    %s6013 = sand.u32 %s6011, 7
    %s6014 = sshra.s32 %s6011, 3
    %s6015 = sand.u32 %s6011, 7
    %s6016 = smul.u32 %s6012, 4
    %s6017 = smul.u32 %s6016, 8
    %s6018 = sadd.s32 %s6017, %s6015
    %s6019 = scalar_lea.vmem [#allocation12], %s6018
    %v6020 = vld [vmem:[%s6019] ss:$8 sm:$0xf]
    %s6021 = sadd.s32 %s5999, 2
    %s6022 = sld [smem:[#allocation6 + %s6021]]
    %s6023 = sshra.s32 %s6022, 3
    %s6024 = sand.u32 %s6022, 7
    %s6025 = sshra.s32 %s6022, 3
    %s6026 = sand.u32 %s6022, 7
    %s6027 = smul.u32 %s6023, 4
    %s6028 = smul.u32 %s6027, 8
    %s6029 = sadd.s32 %s6028, %s6026
    %s6030 = scalar_lea.vmem [#allocation12], %s6029
    %v6031 = vld [vmem:[%s6030] ss:$8 sm:$0xf]
    %s6032 = sadd.s32 %s5999, 3
    %s6033 = sld [smem:[#allocation6 + %s6032]]
    %s6034 = sshra.s32 %s6033, 3
    %s6035 = sand.u32 %s6033, 7
    %s6036 = sshra.s32 %s6033, 3
    %s6037 = sand.u32 %s6033, 7
    %s6038 = smul.u32 %s6034, 4
    %s6039 = smul.u32 %s6038, 8
    %s6040 = sadd.s32 %s6039, %s6037
    %s6041 = scalar_lea.vmem [#allocation12], %s6040
    %v6042 = vld [vmem:[%s6041] ss:$8 sm:$0xf]
    %s6043 = sadd.s32 %s5999, 4
    %s6044 = sld [smem:[#allocation6 + %s6043]]
    %s6045 = sshra.s32 %s6044, 3
    %s6046 = sand.u32 %s6044, 7
    %s6047 = sshra.s32 %s6044, 3
    %s6048 = sand.u32 %s6044, 7
    %s6049 = smul.u32 %s6045, 4
    %s6050 = smul.u32 %s6049, 8
    %s6051 = sadd.s32 %s6050, %s6048
    %s6052 = scalar_lea.vmem [#allocation12], %s6051
    %v6053 = vld [vmem:[%s6052] ss:$8 sm:$0xf]
    %s6054 = sadd.s32 %s5999, 5
    %s6055 = sld [smem:[#allocation6 + %s6054]]
    %s6056 = sshra.s32 %s6055, 3
    %s6057 = sand.u32 %s6055, 7
    %s6058 = sshra.s32 %s6055, 3
    %s6059 = sand.u32 %s6055, 7
    %s6060 = smul.u32 %s6056, 4
    %s6061 = smul.u32 %s6060, 8
    %s6062 = sadd.s32 %s6061, %s6059
    %s6063 = scalar_lea.vmem [#allocation12], %s6062
    %v6064 = vld [vmem:[%s6063] ss:$8 sm:$0xf]
    %s6065 = sadd.s32 %s5999, 6
    %s6066 = sld [smem:[#allocation6 + %s6065]]
    %s6067 = sshra.s32 %s6066, 3
    %s6068 = sand.u32 %s6066, 7
    %s6069 = sshra.s32 %s6066, 3
    %s6070 = sand.u32 %s6066, 7
    %s6071 = smul.u32 %s6067, 4
    %s6072 = smul.u32 %s6071, 8
    %s6073 = sadd.s32 %s6072, %s6070
    %s6074 = scalar_lea.vmem [#allocation12], %s6073
    %v6075 = vld [vmem:[%s6074] ss:$8 sm:$0xf]
    %s6076 = sadd.s32 %s5999, 7
    %s6077 = sld [smem:[#allocation6 + %s6076]]
    %s6078 = sshra.s32 %s6077, 3
    %s6079 = sand.u32 %s6077, 7
    %s6080 = sshra.s32 %s6077, 3
    %s6081 = sand.u32 %s6077, 7
    %s6082 = smul.u32 %s6078, 4
    %s6083 = smul.u32 %s6082, 8
    %s6084 = sadd.s32 %s6083, %s6081
    %s6085 = scalar_lea.vmem [#allocation12], %s6084
    %v6086 = vld [vmem:[%s6085] ss:$8 sm:$0xf]
    %v6088 = vlaneseq
    %v6089 = vshrl.u32 %v6088, 7
    %v6090 = vsub.s32 0, %v6089
    %v6091 = vrot.slane %v6009, %v6090
    %v6092 = vlaneseq
    %v6093 = vshrl.u32 %v6092, 7
    %v6094 = vsub.s32 1, %v6093
    %v6095 = vrot.slane %v6009, %v6094
    %v6096 = vlaneseq
    %v6097 = vshrl.u32 %v6096, 7
    %v6098 = vsub.s32 2, %v6097
    %v6099 = vrot.slane %v6009, %v6098
    %v6100 = vlaneseq
    %v6101 = vshrl.u32 %v6100, 7
    %v6102 = vsub.s32 3, %v6101
    %v6103 = vrot.slane %v6009, %v6102
    %v6109 = vlaneseq
    %v6110 = vshrl.u32 %v6109, 7
    %v6111 = vsub.s32 0, %v6110
    %v6112 = vrot.slane %v6020, %v6111
    %v6113 = vlaneseq
    %v6114 = vshrl.u32 %v6113, 7
    %v6115 = vsub.s32 1, %v6114
    %v6116 = vrot.slane %v6020, %v6115
    %v6117 = vlaneseq
    %v6118 = vshrl.u32 %v6117, 7
    %v6119 = vsub.s32 2, %v6118
    %v6120 = vrot.slane %v6020, %v6119
    %v6121 = vlaneseq
    %v6122 = vshrl.u32 %v6121, 7
    %v6123 = vsub.s32 3, %v6122
    %v6124 = vrot.slane %v6020, %v6123
    %v6130 = vlaneseq
    %v6131 = vshrl.u32 %v6130, 7
    %v6132 = vsub.s32 0, %v6131
    %v6133 = vrot.slane %v6031, %v6132
    %v6134 = vlaneseq
    %v6135 = vshrl.u32 %v6134, 7
    %v6136 = vsub.s32 1, %v6135
    %v6137 = vrot.slane %v6031, %v6136
    %v6138 = vlaneseq
    %v6139 = vshrl.u32 %v6138, 7
    %v6140 = vsub.s32 2, %v6139
    %v6141 = vrot.slane %v6031, %v6140
    %v6142 = vlaneseq
    %v6143 = vshrl.u32 %v6142, 7
    %v6144 = vsub.s32 3, %v6143
    %v6145 = vrot.slane %v6031, %v6144
    %v6151 = vlaneseq
    %v6152 = vshrl.u32 %v6151, 7
    %v6153 = vsub.s32 0, %v6152
    %v6154 = vrot.slane %v6042, %v6153
    %v6155 = vlaneseq
    %v6156 = vshrl.u32 %v6155, 7
    %v6157 = vsub.s32 1, %v6156
    %v6158 = vrot.slane %v6042, %v6157
    %v6159 = vlaneseq
    %v6160 = vshrl.u32 %v6159, 7
    %v6161 = vsub.s32 2, %v6160
    %v6162 = vrot.slane %v6042, %v6161
    %v6163 = vlaneseq
    %v6164 = vshrl.u32 %v6163, 7
    %v6165 = vsub.s32 3, %v6164
    %v6166 = vrot.slane %v6042, %v6165
    %v6172 = vlaneseq
    %v6173 = vshrl.u32 %v6172, 7
    %v6174 = vsub.s32 0, %v6173
    %v6175 = vrot.slane %v6053, %v6174
    %v6176 = vlaneseq
    %v6177 = vshrl.u32 %v6176, 7
    %v6178 = vsub.s32 1, %v6177
    %v6179 = vrot.slane %v6053, %v6178
    %v6180 = vlaneseq
    %v6181 = vshrl.u32 %v6180, 7
    %v6182 = vsub.s32 2, %v6181
    %v6183 = vrot.slane %v6053, %v6182
    %v6184 = vlaneseq
    %v6185 = vshrl.u32 %v6184, 7
    %v6186 = vsub.s32 3, %v6185
    %v6187 = vrot.slane %v6053, %v6186
    %v6193 = vlaneseq
    %v6194 = vshrl.u32 %v6193, 7
    %v6195 = vsub.s32 0, %v6194
    %v6196 = vrot.slane %v6064, %v6195
    %v6197 = vlaneseq
    %v6198 = vshrl.u32 %v6197, 7
    %v6199 = vsub.s32 1, %v6198
    %v6200 = vrot.slane %v6064, %v6199
    %v6201 = vlaneseq
    %v6202 = vshrl.u32 %v6201, 7
    %v6203 = vsub.s32 2, %v6202
    %v6204 = vrot.slane %v6064, %v6203
    %v6205 = vlaneseq
    %v6206 = vshrl.u32 %v6205, 7
    %v6207 = vsub.s32 3, %v6206
    %v6208 = vrot.slane %v6064, %v6207
    %v6214 = vlaneseq
    %v6215 = vshrl.u32 %v6214, 7
    %v6216 = vsub.s32 0, %v6215
    %v6217 = vrot.slane %v6075, %v6216
    %v6218 = vlaneseq
    %v6219 = vshrl.u32 %v6218, 7
    %v6220 = vsub.s32 1, %v6219
    %v6221 = vrot.slane %v6075, %v6220
    %v6222 = vlaneseq
    %v6223 = vshrl.u32 %v6222, 7
    %v6224 = vsub.s32 2, %v6223
    %v6225 = vrot.slane %v6075, %v6224
    %v6226 = vlaneseq
    %v6227 = vshrl.u32 %v6226, 7
    %v6228 = vsub.s32 3, %v6227
    %v6229 = vrot.slane %v6075, %v6228
    %v6235 = vlaneseq
    %v6236 = vshrl.u32 %v6235, 7
    %v6237 = vsub.s32 0, %v6236
    %v6238 = vrot.slane %v6086, %v6237
    %v6239 = vlaneseq
    %v6240 = vshrl.u32 %v6239, 7
    %v6241 = vsub.s32 1, %v6240
    %v6242 = vrot.slane %v6086, %v6241
    %v6243 = vlaneseq
    %v6244 = vshrl.u32 %v6243, 7
    %v6245 = vsub.s32 2, %v6244
    %v6246 = vrot.slane %v6086, %v6245
    %v6247 = vlaneseq
    %v6248 = vshrl.u32 %v6247, 7
    %v6249 = vsub.s32 3, %v6248
    %v6250 = vrot.slane %v6086, %v6249
    %v6255 = vsel %vm458, %v6091, %v6112
    %v6256 = vsel %vm458, %v6095, %v6116
    %v6257 = vsel %vm458, %v6099, %v6120
    %v6258 = vsel %vm458, %v6103, %v6124
    %v6259 = vsel %vm463, %v6255, %v6133
    %v6260 = vsel %vm463, %v6256, %v6137
    %v6261 = vsel %vm463, %v6257, %v6141
    %v6262 = vsel %vm463, %v6258, %v6145
    %v6263 = vsel %vm468, %v6259, %v6154
    %v6264 = vsel %vm468, %v6260, %v6158
    %v6265 = vsel %vm468, %v6261, %v6162
    %v6266 = vsel %vm468, %v6262, %v6166
    %v6267 = vsel %vm473, %v6263, %v6175
    %v6268 = vsel %vm473, %v6264, %v6179
    %v6269 = vsel %vm473, %v6265, %v6183
    %v6270 = vsel %vm473, %v6266, %v6187
    %v6271 = vsel %vm478, %v6267, %v6196
    %v6272 = vsel %vm478, %v6268, %v6200
    %v6273 = vsel %vm478, %v6269, %v6204
    %v6274 = vsel %vm478, %v6270, %v6208
    %v6275 = vsel %vm483, %v6271, %v6217
    %v6276 = vsel %vm483, %v6272, %v6221
    %v6277 = vsel %vm483, %v6273, %v6225
    %v6278 = vsel %vm483, %v6274, %v6229
    %v6279 = vsel %vm488, %v6275, %v6238
    %v6280 = vsel %vm488, %v6276, %v6242
    %v6281 = vsel %vm488, %v6277, %v6246
    %v6282 = vsel %vm488, %v6278, %v6250
    %v6283 = vld [vmem:[#allocation13] sm:$0xff]
    %v6284 = vld [vmem:[#allocation13 + $0x8] sm:$0xff]
    %v6285 = vld [vmem:[#allocation13 + $0x10] sm:$0xff]
    %v6286 = vld [vmem:[#allocation13 + $0x18] sm:$0xff]
    %v6287 = vld [vmem:[#allocation13 + $0x20] sm:$0xff]
    %v6288 = vld [vmem:[#allocation13 + $0x28] sm:$0xff]
    %v6289 = vld [vmem:[#allocation13 + $0x30] sm:$0xff]
    %v6290 = vld [vmem:[#allocation13 + $0x38] sm:$0xff]
    %v6291 = vld [vmem:[#allocation13 + $0x40] sm:$0xff]
    %v6292 = vld [vmem:[#allocation13 + $0x48] sm:$0xff]
    %v6293 = vld [vmem:[#allocation13 + $0x50] sm:$0xff]
    %v6294 = vld [vmem:[#allocation13 + $0x58] sm:$0xff]
    %v6295 = vld [vmem:[#allocation13 + $0x60] sm:$0xff]
    %v6296 = vld [vmem:[#allocation13 + $0x68] sm:$0xff]
    %v6297 = vld [vmem:[#allocation13 + $0x70] sm:$0xff]
    %v6298 = vld [vmem:[#allocation13 + $0x78] sm:$0xff]
    %v6299 = vld [vmem:[#allocation13 + $0x80] sm:$0xff]
    %v6300 = vld [vmem:[#allocation13 + $0x88] sm:$0xff]
    %v6301 = vld [vmem:[#allocation13 + $0x90] sm:$0xff]
    %v6302 = vld [vmem:[#allocation13 + $0x98] sm:$0xff]
    %v6303 = vld [vmem:[#allocation13 + $0xa0] sm:$0xff]
    %v6304 = vld [vmem:[#allocation13 + $0xa8] sm:$0xff]
    %v6305 = vld [vmem:[#allocation13 + $0xb0] sm:$0xff]
    %v6306 = vld [vmem:[#allocation13 + $0xb8] sm:$0xff]
    %v6307 = vld [vmem:[#allocation13 + $0xc0] sm:$0xff]
    %v6308 = vld [vmem:[#allocation13 + $0xc8] sm:$0xff]
    %v6309 = vld [vmem:[#allocation13 + $0xd0] sm:$0xff]
    %v6310 = vld [vmem:[#allocation13 + $0xd8] sm:$0xff]
    %v6311 = vld [vmem:[#allocation13 + $0xe0] sm:$0xff]
    %v6312 = vld [vmem:[#allocation13 + $0xe8] sm:$0xff]
    %v6313 = vld [vmem:[#allocation13 + $0xf0] sm:$0xff]
    %v6314 = vld [vmem:[#allocation13 + $0xf8] sm:$0xff]
    %v6315 = vld [vmem:[#allocation13 + $0x100] sm:$0xff]
    %v6316 = vld [vmem:[#allocation13 + $0x108] sm:$0xff]
    %v6317 = vld [vmem:[#allocation13 + $0x110] sm:$0xff]
    %v6318 = vld [vmem:[#allocation13 + $0x118] sm:$0xff]
    %v6319 = vld [vmem:[#allocation13 + $0x120] sm:$0xff]
    %v6320 = vld [vmem:[#allocation13 + $0x128] sm:$0xff]
    %v6321 = vld [vmem:[#allocation13 + $0x130] sm:$0xff]
    %v6322 = vld [vmem:[#allocation13 + $0x138] sm:$0xff]
    %v6323 = vld [vmem:[#allocation13 + $0x140] sm:$0xff]
    %v6324 = vld [vmem:[#allocation13 + $0x148] sm:$0xff]
    %v6325 = vld [vmem:[#allocation13 + $0x150] sm:$0xff]
    %v6326 = vld [vmem:[#allocation13 + $0x158] sm:$0xff]
    %v6327 = vld [vmem:[#allocation13 + $0x160] sm:$0xff]
    %v6328 = vld [vmem:[#allocation13 + $0x168] sm:$0xff]
    %v6329 = vld [vmem:[#allocation13 + $0x170] sm:$0xff]
    %v6330 = vld [vmem:[#allocation13 + $0x178] sm:$0xff]
    %v6331 = vld [vmem:[#allocation13 + $0x180] sm:$0xff]
    %v6332 = vld [vmem:[#allocation13 + $0x188] sm:$0xff]
    %v6333 = vld [vmem:[#allocation13 + $0x190] sm:$0xff]
    %v6334 = vld [vmem:[#allocation13 + $0x198] sm:$0xff]
    %v6335 = vld [vmem:[#allocation13 + $0x1a0] sm:$0xff]
    %v6336 = vld [vmem:[#allocation13 + $0x1a8] sm:$0xff]
    %v6337 = vld [vmem:[#allocation13 + $0x1b0] sm:$0xff]
    %v6338 = vld [vmem:[#allocation13 + $0x1b8] sm:$0xff]
    %v6339 = vld [vmem:[#allocation13 + $0x1c0] sm:$0xff]
    %v6340 = vld [vmem:[#allocation13 + $0x1c8] sm:$0xff]
    %v6341 = vld [vmem:[#allocation13 + $0x1d0] sm:$0xff]
    %v6342 = vld [vmem:[#allocation13 + $0x1d8] sm:$0xff]
    %v6343 = vld [vmem:[#allocation13 + $0x1e0] sm:$0xff]
    %v6344 = vld [vmem:[#allocation13 + $0x1e8] sm:$0xff]
    %v6345 = vld [vmem:[#allocation13 + $0x1f0] sm:$0xff]
    %v6346 = vld [vmem:[#allocation13 + $0x1f8] sm:$0xff]
    %6347 = vmatprep.subr.mxu0 %v6284
    %6348 = vmatpush1.msra.mxu0 %v6283
    %6349 = vmatprep.subr.mxu0 %v6288
    %6350 = vmatpush1.msra.mxu0 %v6287
    %6351 = vmatprep.subr.mxu0 %v6292
    %6352 = vmatpush1.msra.mxu0 %v6291
    %6353 = vmatprep.subr.mxu0 %v6296
    %6354 = vmatpush1.msra.mxu0 %v6295
    %6355 = vmatprep.subr.mxu0 %v6300
    %6356 = vmatpush1.msra.mxu0 %v6299
    %6357 = vmatprep.subr.mxu0 %v6304
    %6358 = vmatpush1.msra.mxu0 %v6303
    %6359 = vmatprep.subr.mxu0 %v6308
    %6360 = vmatpush1.msra.mxu0 %v6307
    %6361 = vmatprep.subr.mxu0 %v6312
    %6362 = vmatpush1.msra.mxu0 %v6311
    %6363 = vmatprep.subr.mxu0 %v6316
    %6364 = vmatpush1.msra.mxu0 %v6315
    %6365 = vmatprep.subr.mxu0 %v6320
    %6366 = vmatpush1.msra.mxu0 %v6319
    %6367 = vmatprep.subr.mxu0 %v6324
    %6368 = vmatpush1.msra.mxu0 %v6323
    %6369 = vmatprep.subr.mxu0 %v6328
    %6370 = vmatpush1.msra.mxu0 %v6327
    %6371 = vmatprep.subr.mxu0 %v6332
    %6372 = vmatpush1.msra.mxu0 %v6331
    %6373 = vmatprep.subr.mxu0 %v6336
    %6374 = vmatpush1.msra.mxu0 %v6335
    %6375 = vmatprep.subr.mxu0 %v6340
    %6376 = vmatpush1.msra.mxu0 %v6339
    %6377 = vmatprep.subr.mxu0 %v6344
    %6378 = vmatpush1.msra.mxu0 %v6343
    %6379 = vmatprep.subr.mxu0 0.0
    %6380 = vmatpush1.msra.mxu0 0.0
    %6381 = vmatprep.subr.mxu0 0.0
    %6382 = vmatpush1.msra.mxu0 0.0
    %6383 = vmatprep.subr.mxu0 0.0
    %6384 = vmatpush1.msra.mxu0 0.0
    %6385 = vmatprep.subr.mxu0 0.0
    %6386 = vmatpush1.msra.mxu0 0.0
    %6387 = vmatprep.subr.mxu0 0.0
    %6388 = vmatpush1.msra.mxu0 0.0
    %6389 = vmatprep.subr.mxu0 0.0
    %6390 = vmatpush1.msra.mxu0 0.0
    %6391 = vmatprep.subr.mxu0 0.0
    %6392 = vmatpush1.msra.mxu0 0.0
    %6393 = vmatprep.subr.mxu0 0.0
    %6394 = vmatpush1.msra.mxu0 0.0
    %6395 = vmatprep.subr.mxu0 0.0
    %6396 = vmatpush1.msra.mxu0 0.0
    %6397 = vmatprep.subr.mxu0 0.0
    %6398 = vmatpush1.msra.mxu0 0.0
    %6399 = vmatprep.subr.mxu0 0.0
    %6400 = vmatpush1.msra.mxu0 0.0
    %6401 = vmatprep.subr.mxu0 0.0
    %6402 = vmatpush1.msra.mxu0 0.0
    %6403 = vmatprep.subr.mxu0 0.0
    %6404 = vmatpush1.msra.mxu0 0.0
    %6405 = vmatprep.subr.mxu0 0.0
    %6406 = vmatpush1.msra.mxu0 0.0
    %6407 = vmatprep.subr.mxu0 0.0
    %6408 = vmatpush1.msra.mxu0 0.0
    %6409 = vmatprep.subr.mxu0 0.0
    %6410 = vmatpush1.msra.mxu0 0.0
    %6411 = vmatprep.mubr.f32.mxu0 0.0
    %6412 = vmatmul.mubr.f32.gmra.mrb[0].mxu0 %v5555
    %v6413 = vpop.f32.mrb[0].mxu0
    %v6414 = vadd.f32 0.0, %v6413
    %v6415 = vpop.f32.mrb[0].mxu0
    %v6416 = vadd.f32 0.0, %v6415
    %6417 = vdwg.mxu0
    %6418 = vmatprep.subr.mxu0 %v6286
    %6419 = vmatpush1.msra.mxu0 %v6285
    %6420 = vmatprep.subr.mxu0 %v6290
    %6421 = vmatpush1.msra.mxu0 %v6289
    %6422 = vmatprep.subr.mxu0 %v6294
    %6423 = vmatpush1.msra.mxu0 %v6293
    %6424 = vmatprep.subr.mxu0 %v6298
    %6425 = vmatpush1.msra.mxu0 %v6297
    %6426 = vmatprep.subr.mxu0 %v6302
    %6427 = vmatpush1.msra.mxu0 %v6301
    %6428 = vmatprep.subr.mxu0 %v6306
    %6429 = vmatpush1.msra.mxu0 %v6305
    %6430 = vmatprep.subr.mxu0 %v6310
    %6431 = vmatpush1.msra.mxu0 %v6309
    %6432 = vmatprep.subr.mxu0 %v6314
    %6433 = vmatpush1.msra.mxu0 %v6313
    %6434 = vmatprep.subr.mxu0 %v6318
    %6435 = vmatpush1.msra.mxu0 %v6317
    %6436 = vmatprep.subr.mxu0 %v6322
    %6437 = vmatpush1.msra.mxu0 %v6321
    %6438 = vmatprep.subr.mxu0 %v6326
    %6439 = vmatpush1.msra.mxu0 %v6325
    %6440 = vmatprep.subr.mxu0 %v6330
    %6441 = vmatpush1.msra.mxu0 %v6329
    %6442 = vmatprep.subr.mxu0 %v6334
    %6443 = vmatpush1.msra.mxu0 %v6333
    %6444 = vmatprep.subr.mxu0 %v6338
    %6445 = vmatpush1.msra.mxu0 %v6337
    %6446 = vmatprep.subr.mxu0 %v6342
    %6447 = vmatpush1.msra.mxu0 %v6341
    %6448 = vmatprep.subr.mxu0 %v6346
    %6449 = vmatpush1.msra.mxu0 %v6345
    %6450 = vmatprep.subr.mxu0 0.0
    %6451 = vmatpush1.msra.mxu0 0.0
    %6452 = vmatprep.subr.mxu0 0.0
    %6453 = vmatpush1.msra.mxu0 0.0
    %6454 = vmatprep.subr.mxu0 0.0
    %6455 = vmatpush1.msra.mxu0 0.0
    %6456 = vmatprep.subr.mxu0 0.0
    %6457 = vmatpush1.msra.mxu0 0.0
    %6458 = vmatprep.subr.mxu0 0.0
    %6459 = vmatpush1.msra.mxu0 0.0
    %6460 = vmatprep.subr.mxu0 0.0
    %6461 = vmatpush1.msra.mxu0 0.0
    %6462 = vmatprep.subr.mxu0 0.0
    %6463 = vmatpush1.msra.mxu0 0.0
    %6464 = vmatprep.subr.mxu0 0.0
    %6465 = vmatpush1.msra.mxu0 0.0
    %6466 = vmatprep.subr.mxu0 0.0
    %6467 = vmatpush1.msra.mxu0 0.0
    %6468 = vmatprep.subr.mxu0 0.0
    %6469 = vmatpush1.msra.mxu0 0.0
    %6470 = vmatprep.subr.mxu0 0.0
    %6471 = vmatpush1.msra.mxu0 0.0
    %6472 = vmatprep.subr.mxu0 0.0
    %6473 = vmatpush1.msra.mxu0 0.0
    %6474 = vmatprep.subr.mxu0 0.0
    %6475 = vmatpush1.msra.mxu0 0.0
    %6476 = vmatprep.subr.mxu0 0.0
    %6477 = vmatpush1.msra.mxu0 0.0
    %6478 = vmatprep.subr.mxu0 0.0
    %6479 = vmatpush1.msra.mxu0 0.0
    %6480 = vmatprep.subr.mxu0 0.0
    %6481 = vmatpush1.msra.mxu0 0.0
    %6482 = vmatprep.mubr.f32.mxu0 0.0
    %6483 = vmatmul.mubr.f32.gmra.mrb[0].mxu0 %v5555
    %v6484 = vpop.f32.mrb[0].mxu0
    %v6485 = vadd.f32 0.0, %v6484
    %v6486 = vpop.f32.mrb[0].mxu0
    %v6487 = vadd.f32 0.0, %v6486
    %6488 = vdwg.mxu0
    %v6489 = vadd.f32 %v6279, %v6414
    %v6490 = vadd.f32 %v6280, %v6416
    %v6491 = vadd.f32 %v6281, %v6485
    %v6492 = vadd.f32 %v6282, %v6487
    %v6493 = vadd.f32 %v6489, %v157
    %v6494 = vadd.f32 %v6490, %v161
    %v6495 = vadd.f32 %v6491, %v165
    %v6496 = vadd.f32 %v6492, %v169
    %v6497 = vxor.u32 %v6493, 2147483648
    %v6498 = vxor.u32 %v6494, 2147483648
    %v6499 = vxor.u32 %v6495, 2147483648
    %v6500 = vmul.f32 %v6497, 1.442695
    %v6501 = vpow.pop %v6500
    %v6502 = vmul.f32 %v6498, 1.442695
    %v6503 = vpow.pop %v6502
    %v6504 = vmul.f32 %v6499, 1.442695
    %v6505 = vpow.pop %v6504
    %v6506 = vadd.f32 %v6501, 1.0
    %v6507 = vadd.f32 %v6503, 1.0
    %v6508 = vadd.f32 %v6505, 1.0
    %v6509 = vrcp.pop %v6506
    %v6510 = vmul.f32 1.0, %v6509
    %v6511 = vrcp.pop %v6507
    %v6512 = vmul.f32 1.0, %v6511
    %v6513 = vrcp.pop %v6508
    %v6514 = vmul.f32 1.0, %v6513
    %v6515 = vtanh.pop %v6496
    %v6516 = vmul.f32 %v6512, %v5553
    %v6517 = vmul.f32 %v6510, %v6515
    %v6518 = vadd.f32 %v6516, %v6517
    %v6519 = vtanh.pop %v6518
    %v6520 = vmul.f32 %v6514, %v6519
    %v6521 = vld [vmem:[#allocation15] sm:$0xff]
    %v6522 = vld [vmem:[#allocation15 + $0x8] sm:$0xff]
    %v6523 = vld [vmem:[#allocation15 + $0x10] sm:$0xff]
    %v6524 = vld [vmem:[#allocation15 + $0x18] sm:$0xff]
    %v6525 = vld [vmem:[#allocation15 + $0x20] sm:$0xff]
    %v6526 = vld [vmem:[#allocation15 + $0x28] sm:$0xff]
    %v6527 = vld [vmem:[#allocation15 + $0x30] sm:$0xff]
    %v6528 = vld [vmem:[#allocation15 + $0x38] sm:$0xff]
    %v6529 = vld [vmem:[#allocation15 + $0x40] sm:$0xff]
    %v6530 = vld [vmem:[#allocation15 + $0x48] sm:$0xff]
    %v6531 = vld [vmem:[#allocation15 + $0x50] sm:$0xff]
    %v6532 = vld [vmem:[#allocation15 + $0x58] sm:$0xff]
    %v6533 = vld [vmem:[#allocation15 + $0x60] sm:$0xff]
    %v6534 = vld [vmem:[#allocation15 + $0x68] sm:$0xff]
    %v6535 = vld [vmem:[#allocation15 + $0x70] sm:$0xff]
    %v6536 = vld [vmem:[#allocation15 + $0x78] sm:$0xff]
    %v6537 = vld [vmem:[#allocation15 + $0x80] sm:$0xff]
    %v6538 = vld [vmem:[#allocation15 + $0x88] sm:$0xff]
    %v6539 = vld [vmem:[#allocation15 + $0x90] sm:$0xff]
    %v6540 = vld [vmem:[#allocation15 + $0x98] sm:$0xff]
    %v6541 = vld [vmem:[#allocation15 + $0xa0] sm:$0xff]
    %v6542 = vld [vmem:[#allocation15 + $0xa8] sm:$0xff]
    %v6543 = vld [vmem:[#allocation15 + $0xb0] sm:$0xff]
    %v6544 = vld [vmem:[#allocation15 + $0xb8] sm:$0xff]
    %v6545 = vld [vmem:[#allocation15 + $0xc0] sm:$0xff]
    %v6546 = vld [vmem:[#allocation15 + $0xc8] sm:$0xff]
    %v6547 = vld [vmem:[#allocation15 + $0xd0] sm:$0xff]
    %v6548 = vld [vmem:[#allocation15 + $0xd8] sm:$0xff]
    %v6549 = vld [vmem:[#allocation15 + $0xe0] sm:$0xff]
    %v6550 = vld [vmem:[#allocation15 + $0xe8] sm:$0xff]
    %v6551 = vld [vmem:[#allocation15 + $0xf0] sm:$0xff]
    %v6552 = vld [vmem:[#allocation15 + $0xf8] sm:$0xff]
    %v6553 = vld [vmem:[#allocation15 + $0x100] sm:$0xff]
    %v6554 = vld [vmem:[#allocation15 + $0x108] sm:$0xff]
    %v6555 = vld [vmem:[#allocation15 + $0x110] sm:$0xff]
    %v6556 = vld [vmem:[#allocation15 + $0x118] sm:$0xff]
    %v6557 = vld [vmem:[#allocation15 + $0x120] sm:$0xff]
    %v6558 = vld [vmem:[#allocation15 + $0x128] sm:$0xff]
    %v6559 = vld [vmem:[#allocation15 + $0x130] sm:$0xff]
    %v6560 = vld [vmem:[#allocation15 + $0x138] sm:$0xff]
    %v6561 = vld [vmem:[#allocation15 + $0x140] sm:$0xff]
    %v6562 = vld [vmem:[#allocation15 + $0x148] sm:$0xff]
    %v6563 = vld [vmem:[#allocation15 + $0x150] sm:$0xff]
    %v6564 = vld [vmem:[#allocation15 + $0x158] sm:$0xff]
    %v6565 = vld [vmem:[#allocation15 + $0x160] sm:$0xff]
    %v6566 = vld [vmem:[#allocation15 + $0x168] sm:$0xff]
    %v6567 = vld [vmem:[#allocation15 + $0x170] sm:$0xff]
    %v6568 = vld [vmem:[#allocation15 + $0x178] sm:$0xff]
    %v6569 = vld [vmem:[#allocation15 + $0x180] sm:$0xff]
    %v6570 = vld [vmem:[#allocation15 + $0x188] sm:$0xff]
    %v6571 = vld [vmem:[#allocation15 + $0x190] sm:$0xff]
    %v6572 = vld [vmem:[#allocation15 + $0x198] sm:$0xff]
    %v6573 = vld [vmem:[#allocation15 + $0x1a0] sm:$0xff]
    %v6574 = vld [vmem:[#allocation15 + $0x1a8] sm:$0xff]
    %v6575 = vld [vmem:[#allocation15 + $0x1b0] sm:$0xff]
    %v6576 = vld [vmem:[#allocation15 + $0x1b8] sm:$0xff]
    %v6577 = vld [vmem:[#allocation15 + $0x1c0] sm:$0xff]
    %v6578 = vld [vmem:[#allocation15 + $0x1c8] sm:$0xff]
    %v6579 = vld [vmem:[#allocation15 + $0x1d0] sm:$0xff]
    %v6580 = vld [vmem:[#allocation15 + $0x1d8] sm:$0xff]
    %v6581 = vld [vmem:[#allocation15 + $0x1e0] sm:$0xff]
    %v6582 = vld [vmem:[#allocation15 + $0x1e8] sm:$0xff]
    %v6583 = vld [vmem:[#allocation15 + $0x1f0] sm:$0xff]
    %v6584 = vld [vmem:[#allocation15 + $0x1f8] sm:$0xff]
    %v6585 = vld [vmem:[#allocation16] sm:$0xff]
    %v6586 = vld [vmem:[#allocation16 + $0x8] sm:$0xff]
    %v6587 = vld [vmem:[#allocation16 + $0x10] sm:$0xff]
    %v6588 = vld [vmem:[#allocation16 + $0x18] sm:$0xff]
    %v6589 = vld [vmem:[#allocation16 + $0x20] sm:$0xff]
    %v6590 = vld [vmem:[#allocation16 + $0x28] sm:$0xff]
    %v6591 = vld [vmem:[#allocation16 + $0x30] sm:$0xff]
    %v6592 = vld [vmem:[#allocation16 + $0x38] sm:$0xff]
    %v6593 = vld [vmem:[#allocation16 + $0x40] sm:$0xff]
    %v6594 = vld [vmem:[#allocation16 + $0x48] sm:$0xff]
    %v6595 = vld [vmem:[#allocation16 + $0x50] sm:$0xff]
    %v6596 = vld [vmem:[#allocation16 + $0x58] sm:$0xff]
    %v6597 = vld [vmem:[#allocation16 + $0x60] sm:$0xff]
    %v6598 = vld [vmem:[#allocation16 + $0x68] sm:$0xff]
    %v6599 = vld [vmem:[#allocation16 + $0x70] sm:$0xff]
    %v6600 = vld [vmem:[#allocation16 + $0x78] sm:$0xff]
    %v6601 = vld [vmem:[#allocation16 + $0x80] sm:$0xff]
    %v6602 = vld [vmem:[#allocation16 + $0x88] sm:$0xff]
    %v6603 = vld [vmem:[#allocation16 + $0x90] sm:$0xff]
    %v6604 = vld [vmem:[#allocation16 + $0x98] sm:$0xff]
    %v6605 = vld [vmem:[#allocation16 + $0xa0] sm:$0xff]
    %v6606 = vld [vmem:[#allocation16 + $0xa8] sm:$0xff]
    %v6607 = vld [vmem:[#allocation16 + $0xb0] sm:$0xff]
    %v6608 = vld [vmem:[#allocation16 + $0xb8] sm:$0xff]
    %v6609 = vld [vmem:[#allocation16 + $0xc0] sm:$0xff]
    %v6610 = vld [vmem:[#allocation16 + $0xc8] sm:$0xff]
    %v6611 = vld [vmem:[#allocation16 + $0xd0] sm:$0xff]
    %v6612 = vld [vmem:[#allocation16 + $0xd8] sm:$0xff]
    %v6613 = vld [vmem:[#allocation16 + $0xe0] sm:$0xff]
    %v6614 = vld [vmem:[#allocation16 + $0xe8] sm:$0xff]
    %v6615 = vld [vmem:[#allocation16 + $0xf0] sm:$0xff]
    %v6616 = vld [vmem:[#allocation16 + $0xf8] sm:$0xff]
    %v6617 = vld [vmem:[#allocation16 + $0x100] sm:$0xff]
    %v6618 = vld [vmem:[#allocation16 + $0x108] sm:$0xff]
    %v6619 = vld [vmem:[#allocation16 + $0x110] sm:$0xff]
    %v6620 = vld [vmem:[#allocation16 + $0x118] sm:$0xff]
    %v6621 = vld [vmem:[#allocation16 + $0x120] sm:$0xff]
    %v6622 = vld [vmem:[#allocation16 + $0x128] sm:$0xff]
    %v6623 = vld [vmem:[#allocation16 + $0x130] sm:$0xff]
    %v6624 = vld [vmem:[#allocation16 + $0x138] sm:$0xff]
    %v6625 = vld [vmem:[#allocation16 + $0x140] sm:$0xff]
    %v6626 = vld [vmem:[#allocation16 + $0x148] sm:$0xff]
    %v6627 = vld [vmem:[#allocation16 + $0x150] sm:$0xff]
    %v6628 = vld [vmem:[#allocation16 + $0x158] sm:$0xff]
    %v6629 = vld [vmem:[#allocation16 + $0x160] sm:$0xff]
    %v6630 = vld [vmem:[#allocation16 + $0x168] sm:$0xff]
    %v6631 = vld [vmem:[#allocation16 + $0x170] sm:$0xff]
    %v6632 = vld [vmem:[#allocation16 + $0x178] sm:$0xff]
    %v6633 = vld [vmem:[#allocation16 + $0x180] sm:$0xff]
    %v6634 = vld [vmem:[#allocation16 + $0x188] sm:$0xff]
    %v6635 = vld [vmem:[#allocation16 + $0x190] sm:$0xff]
    %v6636 = vld [vmem:[#allocation16 + $0x198] sm:$0xff]
    %v6637 = vld [vmem:[#allocation16 + $0x1a0] sm:$0xff]
    %v6638 = vld [vmem:[#allocation16 + $0x1a8] sm:$0xff]
    %v6639 = vld [vmem:[#allocation16 + $0x1b0] sm:$0xff]
    %v6640 = vld [vmem:[#allocation16 + $0x1b8] sm:$0xff]
    %v6641 = vld [vmem:[#allocation16 + $0x1c0] sm:$0xff]
    %v6642 = vld [vmem:[#allocation16 + $0x1c8] sm:$0xff]
    %v6643 = vld [vmem:[#allocation16 + $0x1d0] sm:$0xff]
    %v6644 = vld [vmem:[#allocation16 + $0x1d8] sm:$0xff]
    %v6645 = vld [vmem:[#allocation16 + $0x1e0] sm:$0xff]
    %v6646 = vld [vmem:[#allocation16 + $0x1e8] sm:$0xff]
    %v6647 = vld [vmem:[#allocation16 + $0x1f0] sm:$0xff]
    %v6648 = vld [vmem:[#allocation16 + $0x1f8] sm:$0xff]
    %6649 = vmatprep.subr.mxu0 %v6586
    %6650 = vmatpush1.msra.mxu0 %v6585
    %6651 = vmatprep.subr.mxu0 %v6590
    %6652 = vmatpush1.msra.mxu0 %v6589
    %6653 = vmatprep.subr.mxu0 %v6594
    %6654 = vmatpush1.msra.mxu0 %v6593
    %6655 = vmatprep.subr.mxu0 %v6598
    %6656 = vmatpush1.msra.mxu0 %v6597
    %6657 = vmatprep.subr.mxu0 %v6602
    %6658 = vmatpush1.msra.mxu0 %v6601
    %6659 = vmatprep.subr.mxu0 %v6606
    %6660 = vmatpush1.msra.mxu0 %v6605
    %6661 = vmatprep.subr.mxu0 %v6610
    %6662 = vmatpush1.msra.mxu0 %v6609
    %6663 = vmatprep.subr.mxu0 %v6614
    %6664 = vmatpush1.msra.mxu0 %v6613
    %6665 = vmatprep.subr.mxu0 %v6618
    %6666 = vmatpush1.msra.mxu0 %v6617
    %6667 = vmatprep.subr.mxu0 %v6622
    %6668 = vmatpush1.msra.mxu0 %v6621
    %6669 = vmatprep.subr.mxu0 %v6626
    %6670 = vmatpush1.msra.mxu0 %v6625
    %6671 = vmatprep.subr.mxu0 %v6630
    %6672 = vmatpush1.msra.mxu0 %v6629
    %6673 = vmatprep.subr.mxu0 %v6634
    %6674 = vmatpush1.msra.mxu0 %v6633
    %6675 = vmatprep.subr.mxu0 %v6638
    %6676 = vmatpush1.msra.mxu0 %v6637
    %6677 = vmatprep.subr.mxu0 %v6642
    %6678 = vmatpush1.msra.mxu0 %v6641
    %6679 = vmatprep.subr.mxu0 %v6646
    %6680 = vmatpush1.msra.mxu0 %v6645
    %6681 = vmatprep.subr.mxu0 0.0
    %6682 = vmatpush1.msra.mxu0 0.0
    %6683 = vmatprep.subr.mxu0 0.0
    %6684 = vmatpush1.msra.mxu0 0.0
    %6685 = vmatprep.subr.mxu0 0.0
    %6686 = vmatpush1.msra.mxu0 0.0
    %6687 = vmatprep.subr.mxu0 0.0
    %6688 = vmatpush1.msra.mxu0 0.0
    %6689 = vmatprep.subr.mxu0 0.0
    %6690 = vmatpush1.msra.mxu0 0.0
    %6691 = vmatprep.subr.mxu0 0.0
    %6692 = vmatpush1.msra.mxu0 0.0
    %6693 = vmatprep.subr.mxu0 0.0
    %6694 = vmatpush1.msra.mxu0 0.0
    %6695 = vmatprep.subr.mxu0 0.0
    %6696 = vmatpush1.msra.mxu0 0.0
    %6697 = vmatprep.subr.mxu0 0.0
    %6698 = vmatpush1.msra.mxu0 0.0
    %6699 = vmatprep.subr.mxu0 0.0
    %6700 = vmatpush1.msra.mxu0 0.0
    %6701 = vmatprep.subr.mxu0 0.0
    %6702 = vmatpush1.msra.mxu0 0.0
    %6703 = vmatprep.subr.mxu0 0.0
    %6704 = vmatpush1.msra.mxu0 0.0
    %6705 = vmatprep.subr.mxu0 0.0
    %6706 = vmatpush1.msra.mxu0 0.0
    %6707 = vmatprep.subr.mxu0 0.0
    %6708 = vmatpush1.msra.mxu0 0.0
    %6709 = vmatprep.subr.mxu0 0.0
    %6710 = vmatpush1.msra.mxu0 0.0
    %6711 = vmatprep.subr.mxu0 0.0
    %6712 = vmatpush1.msra.mxu0 0.0
    %6713 = vmatprep.mubr.f32.mxu0 0.0
    %6714 = vmatmul.mubr.f32.gmra.mrb[0].mxu0 %v5995
    %v6715 = vpop.f32.mrb[0].mxu0
    %v6716 = vadd.f32 0.0, %v6715
    %v6717 = vpop.f32.mrb[0].mxu0
    %v6718 = vadd.f32 0.0, %v6717
    %6719 = vdwg.mxu0
    %6720 = vmatprep.subr.mxu0 %v6588
    %6721 = vmatpush1.msra.mxu0 %v6587
    %6722 = vmatprep.subr.mxu0 %v6592
    %6723 = vmatpush1.msra.mxu0 %v6591
    %6724 = vmatprep.subr.mxu0 %v6596
    %6725 = vmatpush1.msra.mxu0 %v6595
    %6726 = vmatprep.subr.mxu0 %v6600
    %6727 = vmatpush1.msra.mxu0 %v6599
    %6728 = vmatprep.subr.mxu0 %v6604
    %6729 = vmatpush1.msra.mxu0 %v6603
    %6730 = vmatprep.subr.mxu0 %v6608
    %6731 = vmatpush1.msra.mxu0 %v6607
    %6732 = vmatprep.subr.mxu0 %v6612
    %6733 = vmatpush1.msra.mxu0 %v6611
    %6734 = vmatprep.subr.mxu0 %v6616
    %6735 = vmatpush1.msra.mxu0 %v6615
    %6736 = vmatprep.subr.mxu0 %v6620
    %6737 = vmatpush1.msra.mxu0 %v6619
    %6738 = vmatprep.subr.mxu0 %v6624
    %6739 = vmatpush1.msra.mxu0 %v6623
    %6740 = vmatprep.subr.mxu0 %v6628
    %6741 = vmatpush1.msra.mxu0 %v6627
    %6742 = vmatprep.subr.mxu0 %v6632
    %6743 = vmatpush1.msra.mxu0 %v6631
    %6744 = vmatprep.subr.mxu0 %v6636
    %6745 = vmatpush1.msra.mxu0 %v6635
    %6746 = vmatprep.subr.mxu0 %v6640
    %6747 = vmatpush1.msra.mxu0 %v6639
    %6748 = vmatprep.subr.mxu0 %v6644
    %6749 = vmatpush1.msra.mxu0 %v6643
    %6750 = vmatprep.subr.mxu0 %v6648
    %6751 = vmatpush1.msra.mxu0 %v6647
    %6752 = vmatprep.subr.mxu0 0.0
    %6753 = vmatpush1.msra.mxu0 0.0
    %6754 = vmatprep.subr.mxu0 0.0
    %6755 = vmatpush1.msra.mxu0 0.0
    %6756 = vmatprep.subr.mxu0 0.0
    %6757 = vmatpush1.msra.mxu0 0.0
    %6758 = vmatprep.subr.mxu0 0.0
    %6759 = vmatpush1.msra.mxu0 0.0
    %6760 = vmatprep.subr.mxu0 0.0
    %6761 = vmatpush1.msra.mxu0 0.0
    %6762 = vmatprep.subr.mxu0 0.0
    %6763 = vmatpush1.msra.mxu0 0.0
    %6764 = vmatprep.subr.mxu0 0.0
    %6765 = vmatpush1.msra.mxu0 0.0
    %6766 = vmatprep.subr.mxu0 0.0
    %6767 = vmatpush1.msra.mxu0 0.0
    %6768 = vmatprep.subr.mxu0 0.0
    %6769 = vmatpush1.msra.mxu0 0.0
    %6770 = vmatprep.subr.mxu0 0.0
    %6771 = vmatpush1.msra.mxu0 0.0
    %6772 = vmatprep.subr.mxu0 0.0
    %6773 = vmatpush1.msra.mxu0 0.0
    %6774 = vmatprep.subr.mxu0 0.0
    %6775 = vmatpush1.msra.mxu0 0.0
    %6776 = vmatprep.subr.mxu0 0.0
    %6777 = vmatpush1.msra.mxu0 0.0
    %6778 = vmatprep.subr.mxu0 0.0
    %6779 = vmatpush1.msra.mxu0 0.0
    %6780 = vmatprep.subr.mxu0 0.0
    %6781 = vmatpush1.msra.mxu0 0.0
    %6782 = vmatprep.subr.mxu0 0.0
    %6783 = vmatpush1.msra.mxu0 0.0
    %6784 = vmatprep.mubr.f32.mxu0 0.0
    %6785 = vmatmul.mubr.f32.gmra.mrb[0].mxu0 %v5995
    %v6786 = vpop.f32.mrb[0].mxu0
    %v6787 = vadd.f32 0.0, %v6786
    %v6788 = vpop.f32.mrb[0].mxu0
    %v6789 = vadd.f32 0.0, %v6788
    %6790 = vdwg.mxu0
    %6791 = vmatprep.subr.mxu0 %v6522
    %6792 = vmatpush1.msra.mxu0 %v6521
    %6793 = vmatprep.subr.mxu0 %v6526
    %6794 = vmatpush1.msra.mxu0 %v6525
    %6795 = vmatprep.subr.mxu0 %v6530
    %6796 = vmatpush1.msra.mxu0 %v6529
    %6797 = vmatprep.subr.mxu0 %v6534
    %6798 = vmatpush1.msra.mxu0 %v6533
    %6799 = vmatprep.subr.mxu0 %v6538
    %6800 = vmatpush1.msra.mxu0 %v6537
    %6801 = vmatprep.subr.mxu0 %v6542
    %6802 = vmatpush1.msra.mxu0 %v6541
    %6803 = vmatprep.subr.mxu0 %v6546
    %6804 = vmatpush1.msra.mxu0 %v6545
    %6805 = vmatprep.subr.mxu0 %v6550
    %6806 = vmatpush1.msra.mxu0 %v6549
    %6807 = vmatprep.subr.mxu0 %v6554
    %6808 = vmatpush1.msra.mxu0 %v6553
    %6809 = vmatprep.subr.mxu0 %v6558
    %6810 = vmatpush1.msra.mxu0 %v6557
    %6811 = vmatprep.subr.mxu0 %v6562
    %6812 = vmatpush1.msra.mxu0 %v6561
    %6813 = vmatprep.subr.mxu0 %v6566
    %6814 = vmatpush1.msra.mxu0 %v6565
    %6815 = vmatprep.subr.mxu0 %v6570
    %6816 = vmatpush1.msra.mxu0 %v6569
    %6817 = vmatprep.subr.mxu0 %v6574
    %6818 = vmatpush1.msra.mxu0 %v6573
    %6819 = vmatprep.subr.mxu0 %v6578
    %6820 = vmatpush1.msra.mxu0 %v6577
    %6821 = vmatprep.subr.mxu0 %v6582
    %6822 = vmatpush1.msra.mxu0 %v6581
    %6823 = vmatprep.subr.mxu0 0.0
    %6824 = vmatpush1.msra.mxu0 0.0
    %6825 = vmatprep.subr.mxu0 0.0
    %6826 = vmatpush1.msra.mxu0 0.0
    %6827 = vmatprep.subr.mxu0 0.0
    %6828 = vmatpush1.msra.mxu0 0.0
    %6829 = vmatprep.subr.mxu0 0.0
    %6830 = vmatpush1.msra.mxu0 0.0
    %6831 = vmatprep.subr.mxu0 0.0
    %6832 = vmatpush1.msra.mxu0 0.0
    %6833 = vmatprep.subr.mxu0 0.0
    %6834 = vmatpush1.msra.mxu0 0.0
    %6835 = vmatprep.subr.mxu0 0.0
    %6836 = vmatpush1.msra.mxu0 0.0
    %6837 = vmatprep.subr.mxu0 0.0
    %6838 = vmatpush1.msra.mxu0 0.0
    %6839 = vmatprep.subr.mxu0 0.0
    %6840 = vmatpush1.msra.mxu0 0.0
    %6841 = vmatprep.subr.mxu0 0.0
    %6842 = vmatpush1.msra.mxu0 0.0
    %6843 = vmatprep.subr.mxu0 0.0
    %6844 = vmatpush1.msra.mxu0 0.0
    %6845 = vmatprep.subr.mxu0 0.0
    %6846 = vmatpush1.msra.mxu0 0.0
    %6847 = vmatprep.subr.mxu0 0.0
    %6848 = vmatpush1.msra.mxu0 0.0
    %6849 = vmatprep.subr.mxu0 0.0
    %6850 = vmatpush1.msra.mxu0 0.0
    %6851 = vmatprep.subr.mxu0 0.0
    %6852 = vmatpush1.msra.mxu0 0.0
    %6853 = vmatprep.subr.mxu0 0.0
    %6854 = vmatpush1.msra.mxu0 0.0
    %6855 = vmatprep.mubr.f32.mxu0 0.0
    %6856 = vmatmul.mubr.f32.gmra.mrb[0].mxu0 %v6520
    %v6857 = vpop.f32.mrb[0].mxu0
    %v6858 = vadd.f32 %v6716, %v6857
    %v6859 = vpop.f32.mrb[0].mxu0
    %v6860 = vadd.f32 %v6718, %v6859
    %6861 = vdwg.mxu0
    %6862 = vmatprep.subr.mxu0 %v6524
    %6863 = vmatpush1.msra.mxu0 %v6523
    %6864 = vmatprep.subr.mxu0 %v6528
    %6865 = vmatpush1.msra.mxu0 %v6527
    %6866 = vmatprep.subr.mxu0 %v6532
    %6867 = vmatpush1.msra.mxu0 %v6531
    %6868 = vmatprep.subr.mxu0 %v6536
    %6869 = vmatpush1.msra.mxu0 %v6535
    %6870 = vmatprep.subr.mxu0 %v6540
    %6871 = vmatpush1.msra.mxu0 %v6539
    %6872 = vmatprep.subr.mxu0 %v6544
    %6873 = vmatpush1.msra.mxu0 %v6543
    %6874 = vmatprep.subr.mxu0 %v6548
    %6875 = vmatpush1.msra.mxu0 %v6547
    %6876 = vmatprep.subr.mxu0 %v6552
    %6877 = vmatpush1.msra.mxu0 %v6551
    %6878 = vmatprep.subr.mxu0 %v6556
    %6879 = vmatpush1.msra.mxu0 %v6555
    %6880 = vmatprep.subr.mxu0 %v6560
    %6881 = vmatpush1.msra.mxu0 %v6559
    %6882 = vmatprep.subr.mxu0 %v6564
    %6883 = vmatpush1.msra.mxu0 %v6563
    %6884 = vmatprep.subr.mxu0 %v6568
    %6885 = vmatpush1.msra.mxu0 %v6567
    %6886 = vmatprep.subr.mxu0 %v6572
    %6887 = vmatpush1.msra.mxu0 %v6571
    %6888 = vmatprep.subr.mxu0 %v6576
    %6889 = vmatpush1.msra.mxu0 %v6575
    %6890 = vmatprep.subr.mxu0 %v6580
    %6891 = vmatpush1.msra.mxu0 %v6579
    %6892 = vmatprep.subr.mxu0 %v6584
    %6893 = vmatpush1.msra.mxu0 %v6583
    %6894 = vmatprep.subr.mxu0 0.0
    %6895 = vmatpush1.msra.mxu0 0.0
    %6896 = vmatprep.subr.mxu0 0.0
    %6897 = vmatpush1.msra.mxu0 0.0
    %6898 = vmatprep.subr.mxu0 0.0
    %6899 = vmatpush1.msra.mxu0 0.0
    %6900 = vmatprep.subr.mxu0 0.0
    %6901 = vmatpush1.msra.mxu0 0.0
    %6902 = vmatprep.subr.mxu0 0.0
    %6903 = vmatpush1.msra.mxu0 0.0
    %6904 = vmatprep.subr.mxu0 0.0
    %6905 = vmatpush1.msra.mxu0 0.0
    %6906 = vmatprep.subr.mxu0 0.0
    %6907 = vmatpush1.msra.mxu0 0.0
    %6908 = vmatprep.subr.mxu0 0.0
    %6909 = vmatpush1.msra.mxu0 0.0
    %6910 = vmatprep.subr.mxu0 0.0
    %6911 = vmatpush1.msra.mxu0 0.0
    %6912 = vmatprep.subr.mxu0 0.0
    %6913 = vmatpush1.msra.mxu0 0.0
    %6914 = vmatprep.subr.mxu0 0.0
    %6915 = vmatpush1.msra.mxu0 0.0
    %6916 = vmatprep.subr.mxu0 0.0
    %6917 = vmatpush1.msra.mxu0 0.0
    %6918 = vmatprep.subr.mxu0 0.0
    %6919 = vmatpush1.msra.mxu0 0.0
    %6920 = vmatprep.subr.mxu0 0.0
    %6921 = vmatpush1.msra.mxu0 0.0
    %6922 = vmatprep.subr.mxu0 0.0
    %6923 = vmatpush1.msra.mxu0 0.0
    %6924 = vmatprep.subr.mxu0 0.0
    %6925 = vmatpush1.msra.mxu0 0.0
    %6926 = vmatprep.mubr.f32.mxu0 0.0
    %6927 = vmatmul.mubr.f32.gmra.mrb[0].mxu0 %v6520
    %v6928 = vpop.f32.mrb[0].mxu0
    %v6929 = vadd.f32 %v6787, %v6928
    %v6930 = vpop.f32.mrb[0].mxu0
    %v6931 = vadd.f32 %v6789, %v6930
    %6932 = vdwg.mxu0
    %v6933 = vadd.f32 %v6858, %v179
    %v6934 = vadd.f32 %v6860, %v183
    %v6935 = vadd.f32 %v6929, %v187
    %v6936 = vadd.f32 %v6931, %v191
    %v6937 = vxor.u32 %v6933, 2147483648
    %v6938 = vxor.u32 %v6934, 2147483648
    %v6939 = vxor.u32 %v6935, 2147483648
    %v6940 = vmul.f32 %v6937, 1.442695
    %v6941 = vpow.pop %v6940
    %v6942 = vmul.f32 %v6938, 1.442695
    %v6943 = vpow.pop %v6942
    %v6944 = vmul.f32 %v6939, 1.442695
    %v6945 = vpow.pop %v6944
    %v6946 = vadd.f32 %v6941, 1.0
    %v6947 = vadd.f32 %v6943, 1.0
    %v6948 = vadd.f32 %v6945, 1.0
    %v6949 = vrcp.pop %v6946
    %v6950 = vmul.f32 1.0, %v6949
    %v6951 = vrcp.pop %v6947
    %v6952 = vmul.f32 1.0, %v6951
    %v6953 = vrcp.pop %v6948
    %v6954 = vmul.f32 1.0, %v6953
    %v6955 = vtanh.pop %v6936
    %v6956 = vmul.f32 %v6952, %v5993
    %v6957 = vmul.f32 %v6950, %v6955
    %v6958 = vadd.f32 %v6956, %v6957
    %v6959 = vtanh.pop %v6958
    %v6960 = vmul.f32 %v6954, %v6959
    %s6961 = scalar_lea.vmem [#allocation4], 48
    %6962 = vst [vmem:[%s6961] sm:$0xff] %v6960
    %s6963 = sadd.s32 %s1172, 7
    %s6964 = smul.u32 %s6963, 8
    %s6965 = sld [smem:[#allocation6 + %s6964]]
    %s6966 = sshra.s32 %s6965, 3
    %s6967 = sand.u32 %s6965, 7
    %s6968 = sshra.s32 %s6965, 3
    %s6969 = sand.u32 %s6965, 7
    %s6970 = smul.u32 %s6966, 4
    %s6971 = smul.u32 %s6970, 8
    %s6972 = sadd.s32 %s6971, %s6969
    %s6973 = scalar_lea.vmem [#allocation12], %s6972
    %v6974 = vld [vmem:[%s6973] ss:$8 sm:$0xf]
    %s6975 = sadd.s32 %s6964, 1
    %s6976 = sld [smem:[#allocation6 + %s6975]]
    %s6977 = sshra.s32 %s6976, 3
    %s6978 = sand.u32 %s6976, 7
    %s6979 = sshra.s32 %s6976, 3
    %s6980 = sand.u32 %s6976, 7
    %s6981 = smul.u32 %s6977, 4
    %s6982 = smul.u32 %s6981, 8
    %s6983 = sadd.s32 %s6982, %s6980
    %s6984 = scalar_lea.vmem [#allocation12], %s6983
    %v6985 = vld [vmem:[%s6984] ss:$8 sm:$0xf]
    %s6986 = sadd.s32 %s6964, 2
    %s6987 = sld [smem:[#allocation6 + %s6986]]
    %s6988 = sshra.s32 %s6987, 3
    %s6989 = sand.u32 %s6987, 7
    %s6990 = sshra.s32 %s6987, 3
    %s6991 = sand.u32 %s6987, 7
    %s6992 = smul.u32 %s6988, 4
    %s6993 = smul.u32 %s6992, 8
    %s6994 = sadd.s32 %s6993, %s6991
    %s6995 = scalar_lea.vmem [#allocation12], %s6994
    %v6996 = vld [vmem:[%s6995] ss:$8 sm:$0xf]
    %s6997 = sadd.s32 %s6964, 3
    %s6998 = sld [smem:[#allocation6 + %s6997]]
    %s6999 = sshra.s32 %s6998, 3
    %s7000 = sand.u32 %s6998, 7
    %s7001 = sshra.s32 %s6998, 3
    %s7002 = sand.u32 %s6998, 7
    %s7003 = smul.u32 %s6999, 4
    %s7004 = smul.u32 %s7003, 8
    %s7005 = sadd.s32 %s7004, %s7002
    %s7006 = scalar_lea.vmem [#allocation12], %s7005
    %v7007 = vld [vmem:[%s7006] ss:$8 sm:$0xf]
    %s7008 = sadd.s32 %s6964, 4
    %s7009 = sld [smem:[#allocation6 + %s7008]]
    %s7010 = sshra.s32 %s7009, 3
    %s7011 = sand.u32 %s7009, 7
    %s7012 = sshra.s32 %s7009, 3
    %s7013 = sand.u32 %s7009, 7
    %s7014 = smul.u32 %s7010, 4
    %s7015 = smul.u32 %s7014, 8
    %s7016 = sadd.s32 %s7015, %s7013
    %s7017 = scalar_lea.vmem [#allocation12], %s7016
    %v7018 = vld [vmem:[%s7017] ss:$8 sm:$0xf]
    %s7019 = sadd.s32 %s6964, 5
    %s7020 = sld [smem:[#allocation6 + %s7019]]
    %s7021 = sshra.s32 %s7020, 3
    %s7022 = sand.u32 %s7020, 7
    %s7023 = sshra.s32 %s7020, 3
    %s7024 = sand.u32 %s7020, 7
    %s7025 = smul.u32 %s7021, 4
    %s7026 = smul.u32 %s7025, 8
    %s7027 = sadd.s32 %s7026, %s7024
    %s7028 = scalar_lea.vmem [#allocation12], %s7027
    %v7029 = vld [vmem:[%s7028] ss:$8 sm:$0xf]
    %s7030 = sadd.s32 %s6964, 6
    %s7031 = sld [smem:[#allocation6 + %s7030]]
    %s7032 = sshra.s32 %s7031, 3
    %s7033 = sand.u32 %s7031, 7
    %s7034 = sshra.s32 %s7031, 3
    %s7035 = sand.u32 %s7031, 7
    %s7036 = smul.u32 %s7032, 4
    %s7037 = smul.u32 %s7036, 8
    %s7038 = sadd.s32 %s7037, %s7035
    %s7039 = scalar_lea.vmem [#allocation12], %s7038
    %v7040 = vld [vmem:[%s7039] ss:$8 sm:$0xf]
    %s7041 = sadd.s32 %s6964, 7
    %s7042 = sld [smem:[#allocation6 + %s7041]]
    %s7043 = sshra.s32 %s7042, 3
    %s7044 = sand.u32 %s7042, 7
    %s7045 = sshra.s32 %s7042, 3
    %s7046 = sand.u32 %s7042, 7
    %s7047 = smul.u32 %s7043, 4
    %s7048 = smul.u32 %s7047, 8
    %s7049 = sadd.s32 %s7048, %s7046
    %s7050 = scalar_lea.vmem [#allocation12], %s7049
    %v7051 = vld [vmem:[%s7050] ss:$8 sm:$0xf]
    %v7053 = vlaneseq
    %v7054 = vshrl.u32 %v7053, 7
    %v7055 = vsub.s32 0, %v7054
    %v7056 = vrot.slane %v6974, %v7055
    %v7057 = vlaneseq
    %v7058 = vshrl.u32 %v7057, 7
    %v7059 = vsub.s32 1, %v7058
    %v7060 = vrot.slane %v6974, %v7059
    %v7061 = vlaneseq
    %v7062 = vshrl.u32 %v7061, 7
    %v7063 = vsub.s32 2, %v7062
    %v7064 = vrot.slane %v6974, %v7063
    %v7065 = vlaneseq
    %v7066 = vshrl.u32 %v7065, 7
    %v7067 = vsub.s32 3, %v7066
    %v7068 = vrot.slane %v6974, %v7067
    %v7074 = vlaneseq
    %v7075 = vshrl.u32 %v7074, 7
    %v7076 = vsub.s32 0, %v7075
    %v7077 = vrot.slane %v6985, %v7076
    %v7078 = vlaneseq
    %v7079 = vshrl.u32 %v7078, 7
    %v7080 = vsub.s32 1, %v7079
    %v7081 = vrot.slane %v6985, %v7080
    %v7082 = vlaneseq
    %v7083 = vshrl.u32 %v7082, 7
    %v7084 = vsub.s32 2, %v7083
    %v7085 = vrot.slane %v6985, %v7084
    %v7086 = vlaneseq
    %v7087 = vshrl.u32 %v7086, 7
    %v7088 = vsub.s32 3, %v7087
    %v7089 = vrot.slane %v6985, %v7088
    %v7095 = vlaneseq
    %v7096 = vshrl.u32 %v7095, 7
    %v7097 = vsub.s32 0, %v7096
    %v7098 = vrot.slane %v6996, %v7097
    %v7099 = vlaneseq
    %v7100 = vshrl.u32 %v7099, 7
    %v7101 = vsub.s32 1, %v7100
    %v7102 = vrot.slane %v6996, %v7101
    %v7103 = vlaneseq
    %v7104 = vshrl.u32 %v7103, 7
    %v7105 = vsub.s32 2, %v7104
    %v7106 = vrot.slane %v6996, %v7105
    %v7107 = vlaneseq
    %v7108 = vshrl.u32 %v7107, 7
    %v7109 = vsub.s32 3, %v7108
    %v7110 = vrot.slane %v6996, %v7109
    %v7116 = vlaneseq
    %v7117 = vshrl.u32 %v7116, 7
    %v7118 = vsub.s32 0, %v7117
    %v7119 = vrot.slane %v7007, %v7118
    %v7120 = vlaneseq
    %v7121 = vshrl.u32 %v7120, 7
    %v7122 = vsub.s32 1, %v7121
    %v7123 = vrot.slane %v7007, %v7122
    %v7124 = vlaneseq
    %v7125 = vshrl.u32 %v7124, 7
    %v7126 = vsub.s32 2, %v7125
    %v7127 = vrot.slane %v7007, %v7126
    %v7128 = vlaneseq
    %v7129 = vshrl.u32 %v7128, 7
    %v7130 = vsub.s32 3, %v7129
    %v7131 = vrot.slane %v7007, %v7130
    %v7137 = vlaneseq
    %v7138 = vshrl.u32 %v7137, 7
    %v7139 = vsub.s32 0, %v7138
    %v7140 = vrot.slane %v7018, %v7139
    %v7141 = vlaneseq
    %v7142 = vshrl.u32 %v7141, 7
    %v7143 = vsub.s32 1, %v7142
    %v7144 = vrot.slane %v7018, %v7143
    %v7145 = vlaneseq
    %v7146 = vshrl.u32 %v7145, 7
    %v7147 = vsub.s32 2, %v7146
    %v7148 = vrot.slane %v7018, %v7147
    %v7149 = vlaneseq
    %v7150 = vshrl.u32 %v7149, 7
    %v7151 = vsub.s32 3, %v7150
    %v7152 = vrot.slane %v7018, %v7151
    %v7158 = vlaneseq
    %v7159 = vshrl.u32 %v7158, 7
    %v7160 = vsub.s32 0, %v7159
    %v7161 = vrot.slane %v7029, %v7160
    %v7162 = vlaneseq
    %v7163 = vshrl.u32 %v7162, 7
    %v7164 = vsub.s32 1, %v7163
    %v7165 = vrot.slane %v7029, %v7164
    %v7166 = vlaneseq
    %v7167 = vshrl.u32 %v7166, 7
    %v7168 = vsub.s32 2, %v7167
    %v7169 = vrot.slane %v7029, %v7168
    %v7170 = vlaneseq
    %v7171 = vshrl.u32 %v7170, 7
    %v7172 = vsub.s32 3, %v7171
    %v7173 = vrot.slane %v7029, %v7172
    %v7179 = vlaneseq
    %v7180 = vshrl.u32 %v7179, 7
    %v7181 = vsub.s32 0, %v7180
    %v7182 = vrot.slane %v7040, %v7181
    %v7183 = vlaneseq
    %v7184 = vshrl.u32 %v7183, 7
    %v7185 = vsub.s32 1, %v7184
    %v7186 = vrot.slane %v7040, %v7185
    %v7187 = vlaneseq
    %v7188 = vshrl.u32 %v7187, 7
    %v7189 = vsub.s32 2, %v7188
    %v7190 = vrot.slane %v7040, %v7189
    %v7191 = vlaneseq
    %v7192 = vshrl.u32 %v7191, 7
    %v7193 = vsub.s32 3, %v7192
    %v7194 = vrot.slane %v7040, %v7193
    %v7200 = vlaneseq
    %v7201 = vshrl.u32 %v7200, 7
    %v7202 = vsub.s32 0, %v7201
    %v7203 = vrot.slane %v7051, %v7202
    %v7204 = vlaneseq
    %v7205 = vshrl.u32 %v7204, 7
    %v7206 = vsub.s32 1, %v7205
    %v7207 = vrot.slane %v7051, %v7206
    %v7208 = vlaneseq
    %v7209 = vshrl.u32 %v7208, 7
    %v7210 = vsub.s32 2, %v7209
    %v7211 = vrot.slane %v7051, %v7210
    %v7212 = vlaneseq
    %v7213 = vshrl.u32 %v7212, 7
    %v7214 = vsub.s32 3, %v7213
    %v7215 = vrot.slane %v7051, %v7214
    %v7220 = vsel %vm458, %v7056, %v7077
    %v7221 = vsel %vm458, %v7060, %v7081
    %v7222 = vsel %vm458, %v7064, %v7085
    %v7223 = vsel %vm458, %v7068, %v7089
    %v7224 = vsel %vm463, %v7220, %v7098
    %v7225 = vsel %vm463, %v7221, %v7102
    %v7226 = vsel %vm463, %v7222, %v7106
    %v7227 = vsel %vm463, %v7223, %v7110
    %v7228 = vsel %vm468, %v7224, %v7119
    %v7229 = vsel %vm468, %v7225, %v7123
    %v7230 = vsel %vm468, %v7226, %v7127
    %v7231 = vsel %vm468, %v7227, %v7131
    %v7232 = vsel %vm473, %v7228, %v7140
    %v7233 = vsel %vm473, %v7229, %v7144
    %v7234 = vsel %vm473, %v7230, %v7148
    %v7235 = vsel %vm473, %v7231, %v7152
    %v7236 = vsel %vm478, %v7232, %v7161
    %v7237 = vsel %vm478, %v7233, %v7165
    %v7238 = vsel %vm478, %v7234, %v7169
    %v7239 = vsel %vm478, %v7235, %v7173
    %v7240 = vsel %vm483, %v7236, %v7182
    %v7241 = vsel %vm483, %v7237, %v7186
    %v7242 = vsel %vm483, %v7238, %v7190
    %v7243 = vsel %vm483, %v7239, %v7194
    %v7244 = vsel %vm488, %v7240, %v7203
    %v7245 = vsel %vm488, %v7241, %v7207
    %v7246 = vsel %vm488, %v7242, %v7211
    %v7247 = vsel %vm488, %v7243, %v7215
    %v7248 = vld [vmem:[#allocation13] sm:$0xff]
    %v7249 = vld [vmem:[#allocation13 + $0x8] sm:$0xff]
    %v7250 = vld [vmem:[#allocation13 + $0x10] sm:$0xff]
    %v7251 = vld [vmem:[#allocation13 + $0x18] sm:$0xff]
    %v7252 = vld [vmem:[#allocation13 + $0x20] sm:$0xff]
    %v7253 = vld [vmem:[#allocation13 + $0x28] sm:$0xff]
    %v7254 = vld [vmem:[#allocation13 + $0x30] sm:$0xff]
    %v7255 = vld [vmem:[#allocation13 + $0x38] sm:$0xff]
    %v7256 = vld [vmem:[#allocation13 + $0x40] sm:$0xff]
    %v7257 = vld [vmem:[#allocation13 + $0x48] sm:$0xff]
    %v7258 = vld [vmem:[#allocation13 + $0x50] sm:$0xff]
    %v7259 = vld [vmem:[#allocation13 + $0x58] sm:$0xff]
    %v7260 = vld [vmem:[#allocation13 + $0x60] sm:$0xff]
    %v7261 = vld [vmem:[#allocation13 + $0x68] sm:$0xff]
    %v7262 = vld [vmem:[#allocation13 + $0x70] sm:$0xff]
    %v7263 = vld [vmem:[#allocation13 + $0x78] sm:$0xff]
    %v7264 = vld [vmem:[#allocation13 + $0x80] sm:$0xff]
    %v7265 = vld [vmem:[#allocation13 + $0x88] sm:$0xff]
    %v7266 = vld [vmem:[#allocation13 + $0x90] sm:$0xff]
    %v7267 = vld [vmem:[#allocation13 + $0x98] sm:$0xff]
    %v7268 = vld [vmem:[#allocation13 + $0xa0] sm:$0xff]
    %v7269 = vld [vmem:[#allocation13 + $0xa8] sm:$0xff]
    %v7270 = vld [vmem:[#allocation13 + $0xb0] sm:$0xff]
    %v7271 = vld [vmem:[#allocation13 + $0xb8] sm:$0xff]
    %v7272 = vld [vmem:[#allocation13 + $0xc0] sm:$0xff]
    %v7273 = vld [vmem:[#allocation13 + $0xc8] sm:$0xff]
    %v7274 = vld [vmem:[#allocation13 + $0xd0] sm:$0xff]
    %v7275 = vld [vmem:[#allocation13 + $0xd8] sm:$0xff]
    %v7276 = vld [vmem:[#allocation13 + $0xe0] sm:$0xff]
    %v7277 = vld [vmem:[#allocation13 + $0xe8] sm:$0xff]
    %v7278 = vld [vmem:[#allocation13 + $0xf0] sm:$0xff]
    %v7279 = vld [vmem:[#allocation13 + $0xf8] sm:$0xff]
    %v7280 = vld [vmem:[#allocation13 + $0x100] sm:$0xff]
    %v7281 = vld [vmem:[#allocation13 + $0x108] sm:$0xff]
    %v7282 = vld [vmem:[#allocation13 + $0x110] sm:$0xff]
    %v7283 = vld [vmem:[#allocation13 + $0x118] sm:$0xff]
    %v7284 = vld [vmem:[#allocation13 + $0x120] sm:$0xff]
    %v7285 = vld [vmem:[#allocation13 + $0x128] sm:$0xff]
    %v7286 = vld [vmem:[#allocation13 + $0x130] sm:$0xff]
    %v7287 = vld [vmem:[#allocation13 + $0x138] sm:$0xff]
    %v7288 = vld [vmem:[#allocation13 + $0x140] sm:$0xff]
    %v7289 = vld [vmem:[#allocation13 + $0x148] sm:$0xff]
    %v7290 = vld [vmem:[#allocation13 + $0x150] sm:$0xff]
    %v7291 = vld [vmem:[#allocation13 + $0x158] sm:$0xff]
    %v7292 = vld [vmem:[#allocation13 + $0x160] sm:$0xff]
    %v7293 = vld [vmem:[#allocation13 + $0x168] sm:$0xff]
    %v7294 = vld [vmem:[#allocation13 + $0x170] sm:$0xff]
    %v7295 = vld [vmem:[#allocation13 + $0x178] sm:$0xff]
    %v7296 = vld [vmem:[#allocation13 + $0x180] sm:$0xff]
    %v7297 = vld [vmem:[#allocation13 + $0x188] sm:$0xff]
    %v7298 = vld [vmem:[#allocation13 + $0x190] sm:$0xff]
    %v7299 = vld [vmem:[#allocation13 + $0x198] sm:$0xff]
    %v7300 = vld [vmem:[#allocation13 + $0x1a0] sm:$0xff]
    %v7301 = vld [vmem:[#allocation13 + $0x1a8] sm:$0xff]
    %v7302 = vld [vmem:[#allocation13 + $0x1b0] sm:$0xff]
    %v7303 = vld [vmem:[#allocation13 + $0x1b8] sm:$0xff]
    %v7304 = vld [vmem:[#allocation13 + $0x1c0] sm:$0xff]
    %v7305 = vld [vmem:[#allocation13 + $0x1c8] sm:$0xff]
    %v7306 = vld [vmem:[#allocation13 + $0x1d0] sm:$0xff]
    %v7307 = vld [vmem:[#allocation13 + $0x1d8] sm:$0xff]
    %v7308 = vld [vmem:[#allocation13 + $0x1e0] sm:$0xff]
    %v7309 = vld [vmem:[#allocation13 + $0x1e8] sm:$0xff]
    %v7310 = vld [vmem:[#allocation13 + $0x1f0] sm:$0xff]
    %v7311 = vld [vmem:[#allocation13 + $0x1f8] sm:$0xff]
    %7312 = vmatprep.subr.mxu0 %v7249
    %7313 = vmatpush1.msra.mxu0 %v7248
    %7314 = vmatprep.subr.mxu0 %v7253
    %7315 = vmatpush1.msra.mxu0 %v7252
    %7316 = vmatprep.subr.mxu0 %v7257
    %7317 = vmatpush1.msra.mxu0 %v7256
    %7318 = vmatprep.subr.mxu0 %v7261
    %7319 = vmatpush1.msra.mxu0 %v7260
    %7320 = vmatprep.subr.mxu0 %v7265
    %7321 = vmatpush1.msra.mxu0 %v7264
    %7322 = vmatprep.subr.mxu0 %v7269
    %7323 = vmatpush1.msra.mxu0 %v7268
    %7324 = vmatprep.subr.mxu0 %v7273
    %7325 = vmatpush1.msra.mxu0 %v7272
    %7326 = vmatprep.subr.mxu0 %v7277
    %7327 = vmatpush1.msra.mxu0 %v7276
    %7328 = vmatprep.subr.mxu0 %v7281
    %7329 = vmatpush1.msra.mxu0 %v7280
    %7330 = vmatprep.subr.mxu0 %v7285
    %7331 = vmatpush1.msra.mxu0 %v7284
    %7332 = vmatprep.subr.mxu0 %v7289
    %7333 = vmatpush1.msra.mxu0 %v7288
    %7334 = vmatprep.subr.mxu0 %v7293
    %7335 = vmatpush1.msra.mxu0 %v7292
    %7336 = vmatprep.subr.mxu0 %v7297
    %7337 = vmatpush1.msra.mxu0 %v7296
    %7338 = vmatprep.subr.mxu0 %v7301
    %7339 = vmatpush1.msra.mxu0 %v7300
    %7340 = vmatprep.subr.mxu0 %v7305
    %7341 = vmatpush1.msra.mxu0 %v7304
    %7342 = vmatprep.subr.mxu0 %v7309
    %7343 = vmatpush1.msra.mxu0 %v7308
    %7344 = vmatprep.subr.mxu0 0.0
    %7345 = vmatpush1.msra.mxu0 0.0
    %7346 = vmatprep.subr.mxu0 0.0
    %7347 = vmatpush1.msra.mxu0 0.0
    %7348 = vmatprep.subr.mxu0 0.0
    %7349 = vmatpush1.msra.mxu0 0.0
    %7350 = vmatprep.subr.mxu0 0.0
    %7351 = vmatpush1.msra.mxu0 0.0
    %7352 = vmatprep.subr.mxu0 0.0
    %7353 = vmatpush1.msra.mxu0 0.0
    %7354 = vmatprep.subr.mxu0 0.0
    %7355 = vmatpush1.msra.mxu0 0.0
    %7356 = vmatprep.subr.mxu0 0.0
    %7357 = vmatpush1.msra.mxu0 0.0
    %7358 = vmatprep.subr.mxu0 0.0
    %7359 = vmatpush1.msra.mxu0 0.0
    %7360 = vmatprep.subr.mxu0 0.0
    %7361 = vmatpush1.msra.mxu0 0.0
    %7362 = vmatprep.subr.mxu0 0.0
    %7363 = vmatpush1.msra.mxu0 0.0
    %7364 = vmatprep.subr.mxu0 0.0
    %7365 = vmatpush1.msra.mxu0 0.0
    %7366 = vmatprep.subr.mxu0 0.0
    %7367 = vmatpush1.msra.mxu0 0.0
    %7368 = vmatprep.subr.mxu0 0.0
    %7369 = vmatpush1.msra.mxu0 0.0
    %7370 = vmatprep.subr.mxu0 0.0
    %7371 = vmatpush1.msra.mxu0 0.0
    %7372 = vmatprep.subr.mxu0 0.0
    %7373 = vmatpush1.msra.mxu0 0.0
    %7374 = vmatprep.subr.mxu0 0.0
    %7375 = vmatpush1.msra.mxu0 0.0
    %7376 = vmatprep.mubr.f32.mxu0 0.0
    %7377 = vmatmul.mubr.f32.gmra.mrb[0].mxu0 %v6520
    %v7378 = vpop.f32.mrb[0].mxu0
    %v7379 = vadd.f32 0.0, %v7378
    %v7380 = vpop.f32.mrb[0].mxu0
    %v7381 = vadd.f32 0.0, %v7380
    %7382 = vdwg.mxu0
    %7383 = vmatprep.subr.mxu0 %v7251
    %7384 = vmatpush1.msra.mxu0 %v7250
    %7385 = vmatprep.subr.mxu0 %v7255
    %7386 = vmatpush1.msra.mxu0 %v7254
    %7387 = vmatprep.subr.mxu0 %v7259
    %7388 = vmatpush1.msra.mxu0 %v7258
    %7389 = vmatprep.subr.mxu0 %v7263
    %7390 = vmatpush1.msra.mxu0 %v7262
    %7391 = vmatprep.subr.mxu0 %v7267
    %7392 = vmatpush1.msra.mxu0 %v7266
    %7393 = vmatprep.subr.mxu0 %v7271
    %7394 = vmatpush1.msra.mxu0 %v7270
    %7395 = vmatprep.subr.mxu0 %v7275
    %7396 = vmatpush1.msra.mxu0 %v7274
    %7397 = vmatprep.subr.mxu0 %v7279
    %7398 = vmatpush1.msra.mxu0 %v7278
    %7399 = vmatprep.subr.mxu0 %v7283
    %7400 = vmatpush1.msra.mxu0 %v7282
    %7401 = vmatprep.subr.mxu0 %v7287
    %7402 = vmatpush1.msra.mxu0 %v7286
    %7403 = vmatprep.subr.mxu0 %v7291
    %7404 = vmatpush1.msra.mxu0 %v7290
    %7405 = vmatprep.subr.mxu0 %v7295
    %7406 = vmatpush1.msra.mxu0 %v7294
    %7407 = vmatprep.subr.mxu0 %v7299
    %7408 = vmatpush1.msra.mxu0 %v7298
    %7409 = vmatprep.subr.mxu0 %v7303
    %7410 = vmatpush1.msra.mxu0 %v7302
    %7411 = vmatprep.subr.mxu0 %v7307
    %7412 = vmatpush1.msra.mxu0 %v7306
    %7413 = vmatprep.subr.mxu0 %v7311
    %7414 = vmatpush1.msra.mxu0 %v7310
    %7415 = vmatprep.subr.mxu0 0.0
    %7416 = vmatpush1.msra.mxu0 0.0
    %7417 = vmatprep.subr.mxu0 0.0
    %7418 = vmatpush1.msra.mxu0 0.0
    %7419 = vmatprep.subr.mxu0 0.0
    %7420 = vmatpush1.msra.mxu0 0.0
    %7421 = vmatprep.subr.mxu0 0.0
    %7422 = vmatpush1.msra.mxu0 0.0
    %7423 = vmatprep.subr.mxu0 0.0
    %7424 = vmatpush1.msra.mxu0 0.0
    %7425 = vmatprep.subr.mxu0 0.0
    %7426 = vmatpush1.msra.mxu0 0.0
    %7427 = vmatprep.subr.mxu0 0.0
    %7428 = vmatpush1.msra.mxu0 0.0
    %7429 = vmatprep.subr.mxu0 0.0
    %7430 = vmatpush1.msra.mxu0 0.0
    %7431 = vmatprep.subr.mxu0 0.0
    %7432 = vmatpush1.msra.mxu0 0.0
    %7433 = vmatprep.subr.mxu0 0.0
    %7434 = vmatpush1.msra.mxu0 0.0
    %7435 = vmatprep.subr.mxu0 0.0
    %7436 = vmatpush1.msra.mxu0 0.0
    %7437 = vmatprep.subr.mxu0 0.0
    %7438 = vmatpush1.msra.mxu0 0.0
    %7439 = vmatprep.subr.mxu0 0.0
    %7440 = vmatpush1.msra.mxu0 0.0
    %7441 = vmatprep.subr.mxu0 0.0
    %7442 = vmatpush1.msra.mxu0 0.0
    %7443 = vmatprep.subr.mxu0 0.0
    %7444 = vmatpush1.msra.mxu0 0.0
    %7445 = vmatprep.subr.mxu0 0.0
    %7446 = vmatpush1.msra.mxu0 0.0
    %7447 = vmatprep.mubr.f32.mxu0 0.0
    %7448 = vmatmul.mubr.f32.gmra.mrb[0].mxu0 %v6520
    %v7449 = vpop.f32.mrb[0].mxu0
    %v7450 = vadd.f32 0.0, %v7449
    %v7451 = vpop.f32.mrb[0].mxu0
    %v7452 = vadd.f32 0.0, %v7451
    %7453 = vdwg.mxu0
    %v7454 = vadd.f32 %v7244, %v7379
    %v7455 = vadd.f32 %v7245, %v7381
    %v7456 = vadd.f32 %v7246, %v7450
    %v7457 = vadd.f32 %v7247, %v7452
    %v7458 = vadd.f32 %v7454, %v157
    %v7459 = vadd.f32 %v7455, %v161
    %v7460 = vadd.f32 %v7456, %v165
    %v7461 = vadd.f32 %v7457, %v169
    %v7462 = vxor.u32 %v7458, 2147483648
    %v7463 = vxor.u32 %v7459, 2147483648
    %v7464 = vxor.u32 %v7460, 2147483648
    %v7465 = vmul.f32 %v7462, 1.442695
    %v7466 = vpow.pop %v7465
    %v7467 = vmul.f32 %v7463, 1.442695
    %v7468 = vpow.pop %v7467
    %v7469 = vmul.f32 %v7464, 1.442695
    %v7470 = vpow.pop %v7469
    %v7471 = vadd.f32 %v7466, 1.0
    %v7472 = vadd.f32 %v7468, 1.0
    %v7473 = vadd.f32 %v7470, 1.0
    %v7474 = vrcp.pop %v7471
    %v7475 = vmul.f32 1.0, %v7474
    %v7476 = vrcp.pop %v7472
    %v7477 = vmul.f32 1.0, %v7476
    %v7478 = vrcp.pop %v7473
    %v7479 = vmul.f32 1.0, %v7478
    %v7480 = vtanh.pop %v7461
    %v7481 = vmul.f32 %v7477, %v6518
    %v7482 = vmul.f32 %v7475, %v7480
    %v7483 = vadd.f32 %v7481, %v7482
    %v7484 = vtanh.pop %v7483
    %v7485 = vmul.f32 %v7479, %v7484
    %v7486 = vld [vmem:[#allocation15] sm:$0xff]
    %v7487 = vld [vmem:[#allocation15 + $0x8] sm:$0xff]
    %v7488 = vld [vmem:[#allocation15 + $0x10] sm:$0xff]
    %v7489 = vld [vmem:[#allocation15 + $0x18] sm:$0xff]
    %v7490 = vld [vmem:[#allocation15 + $0x20] sm:$0xff]
    %v7491 = vld [vmem:[#allocation15 + $0x28] sm:$0xff]
    %v7492 = vld [vmem:[#allocation15 + $0x30] sm:$0xff]
    %v7493 = vld [vmem:[#allocation15 + $0x38] sm:$0xff]
    %v7494 = vld [vmem:[#allocation15 + $0x40] sm:$0xff]
    %v7495 = vld [vmem:[#allocation15 + $0x48] sm:$0xff]
    %v7496 = vld [vmem:[#allocation15 + $0x50] sm:$0xff]
    %v7497 = vld [vmem:[#allocation15 + $0x58] sm:$0xff]
    %v7498 = vld [vmem:[#allocation15 + $0x60] sm:$0xff]
    %v7499 = vld [vmem:[#allocation15 + $0x68] sm:$0xff]
    %v7500 = vld [vmem:[#allocation15 + $0x70] sm:$0xff]
    %v7501 = vld [vmem:[#allocation15 + $0x78] sm:$0xff]
    %v7502 = vld [vmem:[#allocation15 + $0x80] sm:$0xff]
    %v7503 = vld [vmem:[#allocation15 + $0x88] sm:$0xff]
    %v7504 = vld [vmem:[#allocation15 + $0x90] sm:$0xff]
    %v7505 = vld [vmem:[#allocation15 + $0x98] sm:$0xff]
    %v7506 = vld [vmem:[#allocation15 + $0xa0] sm:$0xff]
    %v7507 = vld [vmem:[#allocation15 + $0xa8] sm:$0xff]
    %v7508 = vld [vmem:[#allocation15 + $0xb0] sm:$0xff]
    %v7509 = vld [vmem:[#allocation15 + $0xb8] sm:$0xff]
    %v7510 = vld [vmem:[#allocation15 + $0xc0] sm:$0xff]
    %v7511 = vld [vmem:[#allocation15 + $0xc8] sm:$0xff]
    %v7512 = vld [vmem:[#allocation15 + $0xd0] sm:$0xff]
    %v7513 = vld [vmem:[#allocation15 + $0xd8] sm:$0xff]
    %v7514 = vld [vmem:[#allocation15 + $0xe0] sm:$0xff]
    %v7515 = vld [vmem:[#allocation15 + $0xe8] sm:$0xff]
    %v7516 = vld [vmem:[#allocation15 + $0xf0] sm:$0xff]
    %v7517 = vld [vmem:[#allocation15 + $0xf8] sm:$0xff]
    %v7518 = vld [vmem:[#allocation15 + $0x100] sm:$0xff]
    %v7519 = vld [vmem:[#allocation15 + $0x108] sm:$0xff]
    %v7520 = vld [vmem:[#allocation15 + $0x110] sm:$0xff]
    %v7521 = vld [vmem:[#allocation15 + $0x118] sm:$0xff]
    %v7522 = vld [vmem:[#allocation15 + $0x120] sm:$0xff]
    %v7523 = vld [vmem:[#allocation15 + $0x128] sm:$0xff]
    %v7524 = vld [vmem:[#allocation15 + $0x130] sm:$0xff]
    %v7525 = vld [vmem:[#allocation15 + $0x138] sm:$0xff]
    %v7526 = vld [vmem:[#allocation15 + $0x140] sm:$0xff]
    %v7527 = vld [vmem:[#allocation15 + $0x148] sm:$0xff]
    %v7528 = vld [vmem:[#allocation15 + $0x150] sm:$0xff]
    %v7529 = vld [vmem:[#allocation15 + $0x158] sm:$0xff]
    %v7530 = vld [vmem:[#allocation15 + $0x160] sm:$0xff]
    %v7531 = vld [vmem:[#allocation15 + $0x168] sm:$0xff]
    %v7532 = vld [vmem:[#allocation15 + $0x170] sm:$0xff]
    %v7533 = vld [vmem:[#allocation15 + $0x178] sm:$0xff]
    %v7534 = vld [vmem:[#allocation15 + $0x180] sm:$0xff]
    %v7535 = vld [vmem:[#allocation15 + $0x188] sm:$0xff]
    %v7536 = vld [vmem:[#allocation15 + $0x190] sm:$0xff]
    %v7537 = vld [vmem:[#allocation15 + $0x198] sm:$0xff]
    %v7538 = vld [vmem:[#allocation15 + $0x1a0] sm:$0xff]
    %v7539 = vld [vmem:[#allocation15 + $0x1a8] sm:$0xff]
    %v7540 = vld [vmem:[#allocation15 + $0x1b0] sm:$0xff]
    %v7541 = vld [vmem:[#allocation15 + $0x1b8] sm:$0xff]
    %v7542 = vld [vmem:[#allocation15 + $0x1c0] sm:$0xff]
    %v7543 = vld [vmem:[#allocation15 + $0x1c8] sm:$0xff]
    %v7544 = vld [vmem:[#allocation15 + $0x1d0] sm:$0xff]
    %v7545 = vld [vmem:[#allocation15 + $0x1d8] sm:$0xff]
    %v7546 = vld [vmem:[#allocation15 + $0x1e0] sm:$0xff]
    %v7547 = vld [vmem:[#allocation15 + $0x1e8] sm:$0xff]
    %v7548 = vld [vmem:[#allocation15 + $0x1f0] sm:$0xff]
    %v7549 = vld [vmem:[#allocation15 + $0x1f8] sm:$0xff]
    %v7550 = vld [vmem:[#allocation16] sm:$0xff]
    %v7551 = vld [vmem:[#allocation16 + $0x8] sm:$0xff]
    %v7552 = vld [vmem:[#allocation16 + $0x10] sm:$0xff]
    %v7553 = vld [vmem:[#allocation16 + $0x18] sm:$0xff]
    %v7554 = vld [vmem:[#allocation16 + $0x20] sm:$0xff]
    %v7555 = vld [vmem:[#allocation16 + $0x28] sm:$0xff]
    %v7556 = vld [vmem:[#allocation16 + $0x30] sm:$0xff]
    %v7557 = vld [vmem:[#allocation16 + $0x38] sm:$0xff]
    %v7558 = vld [vmem:[#allocation16 + $0x40] sm:$0xff]
    %v7559 = vld [vmem:[#allocation16 + $0x48] sm:$0xff]
    %v7560 = vld [vmem:[#allocation16 + $0x50] sm:$0xff]
    %v7561 = vld [vmem:[#allocation16 + $0x58] sm:$0xff]
    %v7562 = vld [vmem:[#allocation16 + $0x60] sm:$0xff]
    %v7563 = vld [vmem:[#allocation16 + $0x68] sm:$0xff]
    %v7564 = vld [vmem:[#allocation16 + $0x70] sm:$0xff]
    %v7565 = vld [vmem:[#allocation16 + $0x78] sm:$0xff]
    %v7566 = vld [vmem:[#allocation16 + $0x80] sm:$0xff]
    %v7567 = vld [vmem:[#allocation16 + $0x88] sm:$0xff]
    %v7568 = vld [vmem:[#allocation16 + $0x90] sm:$0xff]
    %v7569 = vld [vmem:[#allocation16 + $0x98] sm:$0xff]
    %v7570 = vld [vmem:[#allocation16 + $0xa0] sm:$0xff]
    %v7571 = vld [vmem:[#allocation16 + $0xa8] sm:$0xff]
    %v7572 = vld [vmem:[#allocation16 + $0xb0] sm:$0xff]
    %v7573 = vld [vmem:[#allocation16 + $0xb8] sm:$0xff]
    %v7574 = vld [vmem:[#allocation16 + $0xc0] sm:$0xff]
    %v7575 = vld [vmem:[#allocation16 + $0xc8] sm:$0xff]
    %v7576 = vld [vmem:[#allocation16 + $0xd0] sm:$0xff]
    %v7577 = vld [vmem:[#allocation16 + $0xd8] sm:$0xff]
    %v7578 = vld [vmem:[#allocation16 + $0xe0] sm:$0xff]
    %v7579 = vld [vmem:[#allocation16 + $0xe8] sm:$0xff]
    %v7580 = vld [vmem:[#allocation16 + $0xf0] sm:$0xff]
    %v7581 = vld [vmem:[#allocation16 + $0xf8] sm:$0xff]
    %v7582 = vld [vmem:[#allocation16 + $0x100] sm:$0xff]
    %v7583 = vld [vmem:[#allocation16 + $0x108] sm:$0xff]
    %v7584 = vld [vmem:[#allocation16 + $0x110] sm:$0xff]
    %v7585 = vld [vmem:[#allocation16 + $0x118] sm:$0xff]
    %v7586 = vld [vmem:[#allocation16 + $0x120] sm:$0xff]
    %v7587 = vld [vmem:[#allocation16 + $0x128] sm:$0xff]
    %v7588 = vld [vmem:[#allocation16 + $0x130] sm:$0xff]
    %v7589 = vld [vmem:[#allocation16 + $0x138] sm:$0xff]
    %v7590 = vld [vmem:[#allocation16 + $0x140] sm:$0xff]
    %v7591 = vld [vmem:[#allocation16 + $0x148] sm:$0xff]
    %v7592 = vld [vmem:[#allocation16 + $0x150] sm:$0xff]
    %v7593 = vld [vmem:[#allocation16 + $0x158] sm:$0xff]
    %v7594 = vld [vmem:[#allocation16 + $0x160] sm:$0xff]
    %v7595 = vld [vmem:[#allocation16 + $0x168] sm:$0xff]
    %v7596 = vld [vmem:[#allocation16 + $0x170] sm:$0xff]
    %v7597 = vld [vmem:[#allocation16 + $0x178] sm:$0xff]
    %v7598 = vld [vmem:[#allocation16 + $0x180] sm:$0xff]
    %v7599 = vld [vmem:[#allocation16 + $0x188] sm:$0xff]
    %v7600 = vld [vmem:[#allocation16 + $0x190] sm:$0xff]
    %v7601 = vld [vmem:[#allocation16 + $0x198] sm:$0xff]
    %v7602 = vld [vmem:[#allocation16 + $0x1a0] sm:$0xff]
    %v7603 = vld [vmem:[#allocation16 + $0x1a8] sm:$0xff]
    %v7604 = vld [vmem:[#allocation16 + $0x1b0] sm:$0xff]
    %v7605 = vld [vmem:[#allocation16 + $0x1b8] sm:$0xff]
    %v7606 = vld [vmem:[#allocation16 + $0x1c0] sm:$0xff]
    %v7607 = vld [vmem:[#allocation16 + $0x1c8] sm:$0xff]
    %v7608 = vld [vmem:[#allocation16 + $0x1d0] sm:$0xff]
    %v7609 = vld [vmem:[#allocation16 + $0x1d8] sm:$0xff]
    %v7610 = vld [vmem:[#allocation16 + $0x1e0] sm:$0xff]
    %v7611 = vld [vmem:[#allocation16 + $0x1e8] sm:$0xff]
    %v7612 = vld [vmem:[#allocation16 + $0x1f0] sm:$0xff]
    %v7613 = vld [vmem:[#allocation16 + $0x1f8] sm:$0xff]
    %7614 = vmatprep.subr.mxu0 %v7551
    %7615 = vmatpush1.msra.mxu0 %v7550
    %7616 = vmatprep.subr.mxu0 %v7555
    %7617 = vmatpush1.msra.mxu0 %v7554
    %7618 = vmatprep.subr.mxu0 %v7559
    %7619 = vmatpush1.msra.mxu0 %v7558
    %7620 = vmatprep.subr.mxu0 %v7563
    %7621 = vmatpush1.msra.mxu0 %v7562
    %7622 = vmatprep.subr.mxu0 %v7567
    %7623 = vmatpush1.msra.mxu0 %v7566
    %7624 = vmatprep.subr.mxu0 %v7571
    %7625 = vmatpush1.msra.mxu0 %v7570
    %7626 = vmatprep.subr.mxu0 %v7575
    %7627 = vmatpush1.msra.mxu0 %v7574
    %7628 = vmatprep.subr.mxu0 %v7579
    %7629 = vmatpush1.msra.mxu0 %v7578
    %7630 = vmatprep.subr.mxu0 %v7583
    %7631 = vmatpush1.msra.mxu0 %v7582
    %7632 = vmatprep.subr.mxu0 %v7587
    %7633 = vmatpush1.msra.mxu0 %v7586
    %7634 = vmatprep.subr.mxu0 %v7591
    %7635 = vmatpush1.msra.mxu0 %v7590
    %7636 = vmatprep.subr.mxu0 %v7595
    %7637 = vmatpush1.msra.mxu0 %v7594
    %7638 = vmatprep.subr.mxu0 %v7599
    %7639 = vmatpush1.msra.mxu0 %v7598
    %7640 = vmatprep.subr.mxu0 %v7603
    %7641 = vmatpush1.msra.mxu0 %v7602
    %7642 = vmatprep.subr.mxu0 %v7607
    %7643 = vmatpush1.msra.mxu0 %v7606
    %7644 = vmatprep.subr.mxu0 %v7611
    %7645 = vmatpush1.msra.mxu0 %v7610
    %7646 = vmatprep.subr.mxu0 0.0
    %7647 = vmatpush1.msra.mxu0 0.0
    %7648 = vmatprep.subr.mxu0 0.0
    %7649 = vmatpush1.msra.mxu0 0.0
    %7650 = vmatprep.subr.mxu0 0.0
    %7651 = vmatpush1.msra.mxu0 0.0
    %7652 = vmatprep.subr.mxu0 0.0
    %7653 = vmatpush1.msra.mxu0 0.0
    %7654 = vmatprep.subr.mxu0 0.0
    %7655 = vmatpush1.msra.mxu0 0.0
    %7656 = vmatprep.subr.mxu0 0.0
    %7657 = vmatpush1.msra.mxu0 0.0
    %7658 = vmatprep.subr.mxu0 0.0
    %7659 = vmatpush1.msra.mxu0 0.0
    %7660 = vmatprep.subr.mxu0 0.0
    %7661 = vmatpush1.msra.mxu0 0.0
    %7662 = vmatprep.subr.mxu0 0.0
    %7663 = vmatpush1.msra.mxu0 0.0
    %7664 = vmatprep.subr.mxu0 0.0
    %7665 = vmatpush1.msra.mxu0 0.0
    %7666 = vmatprep.subr.mxu0 0.0
    %7667 = vmatpush1.msra.mxu0 0.0
    %7668 = vmatprep.subr.mxu0 0.0
    %7669 = vmatpush1.msra.mxu0 0.0
    %7670 = vmatprep.subr.mxu0 0.0
    %7671 = vmatpush1.msra.mxu0 0.0
    %7672 = vmatprep.subr.mxu0 0.0
    %7673 = vmatpush1.msra.mxu0 0.0
    %7674 = vmatprep.subr.mxu0 0.0
    %7675 = vmatpush1.msra.mxu0 0.0
    %7676 = vmatprep.subr.mxu0 0.0
    %7677 = vmatpush1.msra.mxu0 0.0
    %7678 = vmatprep.mubr.f32.mxu0 0.0
    %7679 = vmatmul.mubr.f32.gmra.mrb[0].mxu0 %v6960
    %v7680 = vpop.f32.mrb[0].mxu0
    %v7681 = vadd.f32 0.0, %v7680
    %v7682 = vpop.f32.mrb[0].mxu0
    %v7683 = vadd.f32 0.0, %v7682
    %7684 = vdwg.mxu0
    %7685 = vmatprep.subr.mxu0 %v7553
    %7686 = vmatpush1.msra.mxu0 %v7552
    %7687 = vmatprep.subr.mxu0 %v7557
    %7688 = vmatpush1.msra.mxu0 %v7556
    %7689 = vmatprep.subr.mxu0 %v7561
    %7690 = vmatpush1.msra.mxu0 %v7560
    %7691 = vmatprep.subr.mxu0 %v7565
    %7692 = vmatpush1.msra.mxu0 %v7564
    %7693 = vmatprep.subr.mxu0 %v7569
    %7694 = vmatpush1.msra.mxu0 %v7568
    %7695 = vmatprep.subr.mxu0 %v7573
    %7696 = vmatpush1.msra.mxu0 %v7572
    %7697 = vmatprep.subr.mxu0 %v7577
    %7698 = vmatpush1.msra.mxu0 %v7576
    %7699 = vmatprep.subr.mxu0 %v7581
    %7700 = vmatpush1.msra.mxu0 %v7580
    %7701 = vmatprep.subr.mxu0 %v7585
    %7702 = vmatpush1.msra.mxu0 %v7584
    %7703 = vmatprep.subr.mxu0 %v7589
    %7704 = vmatpush1.msra.mxu0 %v7588
    %7705 = vmatprep.subr.mxu0 %v7593
    %7706 = vmatpush1.msra.mxu0 %v7592
    %7707 = vmatprep.subr.mxu0 %v7597
    %7708 = vmatpush1.msra.mxu0 %v7596
    %7709 = vmatprep.subr.mxu0 %v7601
    %7710 = vmatpush1.msra.mxu0 %v7600
    %7711 = vmatprep.subr.mxu0 %v7605
    %7712 = vmatpush1.msra.mxu0 %v7604
    %7713 = vmatprep.subr.mxu0 %v7609
    %7714 = vmatpush1.msra.mxu0 %v7608
    %7715 = vmatprep.subr.mxu0 %v7613
    %7716 = vmatpush1.msra.mxu0 %v7612
    %7717 = vmatprep.subr.mxu0 0.0
    %7718 = vmatpush1.msra.mxu0 0.0
    %7719 = vmatprep.subr.mxu0 0.0
    %7720 = vmatpush1.msra.mxu0 0.0
    %7721 = vmatprep.subr.mxu0 0.0
    %7722 = vmatpush1.msra.mxu0 0.0
    %7723 = vmatprep.subr.mxu0 0.0
    %7724 = vmatpush1.msra.mxu0 0.0
    %7725 = vmatprep.subr.mxu0 0.0
    %7726 = vmatpush1.msra.mxu0 0.0
    %7727 = vmatprep.subr.mxu0 0.0
    %7728 = vmatpush1.msra.mxu0 0.0
    %7729 = vmatprep.subr.mxu0 0.0
    %7730 = vmatpush1.msra.mxu0 0.0
    %7731 = vmatprep.subr.mxu0 0.0
    %7732 = vmatpush1.msra.mxu0 0.0
    %7733 = vmatprep.subr.mxu0 0.0
    %7734 = vmatpush1.msra.mxu0 0.0
    %7735 = vmatprep.subr.mxu0 0.0
    %7736 = vmatpush1.msra.mxu0 0.0
    %7737 = vmatprep.subr.mxu0 0.0
    %7738 = vmatpush1.msra.mxu0 0.0
    %7739 = vmatprep.subr.mxu0 0.0
    %7740 = vmatpush1.msra.mxu0 0.0
    %7741 = vmatprep.subr.mxu0 0.0
    %7742 = vmatpush1.msra.mxu0 0.0
    %7743 = vmatprep.subr.mxu0 0.0
    %7744 = vmatpush1.msra.mxu0 0.0
    %7745 = vmatprep.subr.mxu0 0.0
    %7746 = vmatpush1.msra.mxu0 0.0
    %7747 = vmatprep.subr.mxu0 0.0
    %7748 = vmatpush1.msra.mxu0 0.0
    %7749 = vmatprep.mubr.f32.mxu0 0.0
    %7750 = vmatmul.mubr.f32.gmra.mrb[0].mxu0 %v6960
    %v7751 = vpop.f32.mrb[0].mxu0
    %v7752 = vadd.f32 0.0, %v7751
    %v7753 = vpop.f32.mrb[0].mxu0
    %v7754 = vadd.f32 0.0, %v7753
    %7755 = vdwg.mxu0
    %7756 = vmatprep.subr.mxu0 %v7487
    %7757 = vmatpush1.msra.mxu0 %v7486
    %7758 = vmatprep.subr.mxu0 %v7491
    %7759 = vmatpush1.msra.mxu0 %v7490
    %7760 = vmatprep.subr.mxu0 %v7495
    %7761 = vmatpush1.msra.mxu0 %v7494
    %7762 = vmatprep.subr.mxu0 %v7499
    %7763 = vmatpush1.msra.mxu0 %v7498
    %7764 = vmatprep.subr.mxu0 %v7503
    %7765 = vmatpush1.msra.mxu0 %v7502
    %7766 = vmatprep.subr.mxu0 %v7507
    %7767 = vmatpush1.msra.mxu0 %v7506
    %7768 = vmatprep.subr.mxu0 %v7511
    %7769 = vmatpush1.msra.mxu0 %v7510
    %7770 = vmatprep.subr.mxu0 %v7515
    %7771 = vmatpush1.msra.mxu0 %v7514
    %7772 = vmatprep.subr.mxu0 %v7519
    %7773 = vmatpush1.msra.mxu0 %v7518
    %7774 = vmatprep.subr.mxu0 %v7523
    %7775 = vmatpush1.msra.mxu0 %v7522
    %7776 = vmatprep.subr.mxu0 %v7527
    %7777 = vmatpush1.msra.mxu0 %v7526
    %7778 = vmatprep.subr.mxu0 %v7531
    %7779 = vmatpush1.msra.mxu0 %v7530
    %7780 = vmatprep.subr.mxu0 %v7535
    %7781 = vmatpush1.msra.mxu0 %v7534
    %7782 = vmatprep.subr.mxu0 %v7539
    %7783 = vmatpush1.msra.mxu0 %v7538
    %7784 = vmatprep.subr.mxu0 %v7543
    %7785 = vmatpush1.msra.mxu0 %v7542
    %7786 = vmatprep.subr.mxu0 %v7547
    %7787 = vmatpush1.msra.mxu0 %v7546
    %7788 = vmatprep.subr.mxu0 0.0
    %7789 = vmatpush1.msra.mxu0 0.0
    %7790 = vmatprep.subr.mxu0 0.0
    %7791 = vmatpush1.msra.mxu0 0.0
    %7792 = vmatprep.subr.mxu0 0.0
    %7793 = vmatpush1.msra.mxu0 0.0
    %7794 = vmatprep.subr.mxu0 0.0
    %7795 = vmatpush1.msra.mxu0 0.0
    %7796 = vmatprep.subr.mxu0 0.0
    %7797 = vmatpush1.msra.mxu0 0.0
    %7798 = vmatprep.subr.mxu0 0.0
    %7799 = vmatpush1.msra.mxu0 0.0
    %7800 = vmatprep.subr.mxu0 0.0
    %7801 = vmatpush1.msra.mxu0 0.0
    %7802 = vmatprep.subr.mxu0 0.0
    %7803 = vmatpush1.msra.mxu0 0.0
    %7804 = vmatprep.subr.mxu0 0.0
    %7805 = vmatpush1.msra.mxu0 0.0
    %7806 = vmatprep.subr.mxu0 0.0
    %7807 = vmatpush1.msra.mxu0 0.0
    %7808 = vmatprep.subr.mxu0 0.0
    %7809 = vmatpush1.msra.mxu0 0.0
    %7810 = vmatprep.subr.mxu0 0.0
    %7811 = vmatpush1.msra.mxu0 0.0
    %7812 = vmatprep.subr.mxu0 0.0
    %7813 = vmatpush1.msra.mxu0 0.0
    %7814 = vmatprep.subr.mxu0 0.0
    %7815 = vmatpush1.msra.mxu0 0.0
    %7816 = vmatprep.subr.mxu0 0.0
    %7817 = vmatpush1.msra.mxu0 0.0
    %7818 = vmatprep.subr.mxu0 0.0
    %7819 = vmatpush1.msra.mxu0 0.0
    %7820 = vmatprep.mubr.f32.mxu0 0.0
    %7821 = vmatmul.mubr.f32.gmra.mrb[0].mxu0 %v7485
    %v7822 = vpop.f32.mrb[0].mxu0
    %v7823 = vadd.f32 %v7681, %v7822
    %v7824 = vpop.f32.mrb[0].mxu0
    %v7825 = vadd.f32 %v7683, %v7824
    %7826 = vdwg.mxu0
    %7827 = vmatprep.subr.mxu0 %v7489
    %7828 = vmatpush1.msra.mxu0 %v7488
    %7829 = vmatprep.subr.mxu0 %v7493
    %7830 = vmatpush1.msra.mxu0 %v7492
    %7831 = vmatprep.subr.mxu0 %v7497
    %7832 = vmatpush1.msra.mxu0 %v7496
    %7833 = vmatprep.subr.mxu0 %v7501
    %7834 = vmatpush1.msra.mxu0 %v7500
    %7835 = vmatprep.subr.mxu0 %v7505
    %7836 = vmatpush1.msra.mxu0 %v7504
    %7837 = vmatprep.subr.mxu0 %v7509
    %7838 = vmatpush1.msra.mxu0 %v7508
    %7839 = vmatprep.subr.mxu0 %v7513
    %7840 = vmatpush1.msra.mxu0 %v7512
    %7841 = vmatprep.subr.mxu0 %v7517
    %7842 = vmatpush1.msra.mxu0 %v7516
    %7843 = vmatprep.subr.mxu0 %v7521
    %7844 = vmatpush1.msra.mxu0 %v7520
    %7845 = vmatprep.subr.mxu0 %v7525
    %7846 = vmatpush1.msra.mxu0 %v7524
    %7847 = vmatprep.subr.mxu0 %v7529
    %7848 = vmatpush1.msra.mxu0 %v7528
    %7849 = vmatprep.subr.mxu0 %v7533
    %7850 = vmatpush1.msra.mxu0 %v7532
    %7851 = vmatprep.subr.mxu0 %v7537
    %7852 = vmatpush1.msra.mxu0 %v7536
    %7853 = vmatprep.subr.mxu0 %v7541
    %7854 = vmatpush1.msra.mxu0 %v7540
    %7855 = vmatprep.subr.mxu0 %v7545
    %7856 = vmatpush1.msra.mxu0 %v7544
    %7857 = vmatprep.subr.mxu0 %v7549
    %7858 = vmatpush1.msra.mxu0 %v7548
    %7859 = vmatprep.subr.mxu0 0.0
    %7860 = vmatpush1.msra.mxu0 0.0
    %7861 = vmatprep.subr.mxu0 0.0
    %7862 = vmatpush1.msra.mxu0 0.0
    %7863 = vmatprep.subr.mxu0 0.0
    %7864 = vmatpush1.msra.mxu0 0.0
    %7865 = vmatprep.subr.mxu0 0.0
    %7866 = vmatpush1.msra.mxu0 0.0
    %7867 = vmatprep.subr.mxu0 0.0
    %7868 = vmatpush1.msra.mxu0 0.0
    %7869 = vmatprep.subr.mxu0 0.0
    %7870 = vmatpush1.msra.mxu0 0.0
    %7871 = vmatprep.subr.mxu0 0.0
    %7872 = vmatpush1.msra.mxu0 0.0
    %7873 = vmatprep.subr.mxu0 0.0
    %7874 = vmatpush1.msra.mxu0 0.0
    %7875 = vmatprep.subr.mxu0 0.0
    %7876 = vmatpush1.msra.mxu0 0.0
    %7877 = vmatprep.subr.mxu0 0.0
    %7878 = vmatpush1.msra.mxu0 0.0
    %7879 = vmatprep.subr.mxu0 0.0
    %7880 = vmatpush1.msra.mxu0 0.0
    %7881 = vmatprep.subr.mxu0 0.0
    %7882 = vmatpush1.msra.mxu0 0.0
    %7883 = vmatprep.subr.mxu0 0.0
    %7884 = vmatpush1.msra.mxu0 0.0
    %7885 = vmatprep.subr.mxu0 0.0
    %7886 = vmatpush1.msra.mxu0 0.0
    %7887 = vmatprep.subr.mxu0 0.0
    %7888 = vmatpush1.msra.mxu0 0.0
    %7889 = vmatprep.subr.mxu0 0.0
    %7890 = vmatpush1.msra.mxu0 0.0
    %7891 = vmatprep.mubr.f32.mxu0 0.0
    %7892 = vmatmul.mubr.f32.gmra.mrb[0].mxu0 %v7485
    %v7893 = vpop.f32.mrb[0].mxu0
    %v7894 = vadd.f32 %v7752, %v7893
    %v7895 = vpop.f32.mrb[0].mxu0
    %v7896 = vadd.f32 %v7754, %v7895
    %7897 = vdwg.mxu0
    %v7898 = vadd.f32 %v7823, %v179
    %v7899 = vadd.f32 %v7825, %v183
    %v7900 = vadd.f32 %v7894, %v187
    %v7901 = vadd.f32 %v7896, %v191
    %v7902 = vxor.u32 %v7898, 2147483648
    %v7903 = vxor.u32 %v7899, 2147483648
    %v7904 = vxor.u32 %v7900, 2147483648
    %v7905 = vmul.f32 %v7902, 1.442695
    %v7906 = vpow.pop %v7905
    %v7907 = vmul.f32 %v7903, 1.442695
    %v7908 = vpow.pop %v7907
    %v7909 = vmul.f32 %v7904, 1.442695
    %v7910 = vpow.pop %v7909
    %v7911 = vadd.f32 %v7906, 1.0
    %v7912 = vadd.f32 %v7908, 1.0
    %v7913 = vadd.f32 %v7910, 1.0
    %v7914 = vrcp.pop %v7911
    %v7915 = vmul.f32 1.0, %v7914
    %v7916 = vrcp.pop %v7912
    %v7917 = vmul.f32 1.0, %v7916
    %v7918 = vrcp.pop %v7913
    %v7919 = vmul.f32 1.0, %v7918
    %v7920 = vtanh.pop %v7901
    %v7921 = vmul.f32 %v7917, %v6958
    %v7922 = vmul.f32 %v7915, %v7920
    %v7923 = vadd.f32 %v7921, %v7922
    %v7924 = vtanh.pop %v7923
    %v7925 = vmul.f32 %v7919, %v7924
    %s7926 = scalar_lea.vmem [#allocation4], 56
    %7927 = vst [vmem:[%s7926] sm:$0xff] %v7925
    %7928 = vst [vmem:[#allocation2] sm:$0xff] %v7485
    %7929 = vst [vmem:[#allocation3] sm:$0xff] %v7483
    %7930 = vst [vmem:[%s197] sm:$0xff] %v7925
    %7931 = vst [vmem:[%s200] sm:$0xff] %v7923
    %v7932 = vld [vmem:[#allocation4] sm:$0xff]
    %v7933 = vld [vmem:[#allocation4 + $0x8] sm:$0xff]
    %v7934 = vld [vmem:[#allocation4 + $0x10] sm:$0xff]
    %v7935 = vld [vmem:[#allocation4 + $0x18] sm:$0xff]
    %v7936 = vld [vmem:[#allocation4 + $0x20] sm:$0xff]
    %v7937 = vld [vmem:[#allocation4 + $0x28] sm:$0xff]
    %v7938 = vld [vmem:[#allocation4 + $0x30] sm:$0xff]
    %v7939 = vld [vmem:[#allocation4 + $0x38] sm:$0xff]
    %v7940 = vld [vmem:[#allocation18] sm:$0xff]
    %v7941 = vld [vmem:[#allocation18 + $0x8] sm:$0xff]
    %v7942 = vld [vmem:[#allocation18 + $0x10] sm:$0xff]
    %v7943 = vld [vmem:[#allocation18 + $0x18] sm:$0xff]
    %v7944 = vld [vmem:[#allocation18 + $0x20] sm:$0xff]
    %v7945 = vld [vmem:[#allocation18 + $0x28] sm:$0xff]
    %v7946 = vld [vmem:[#allocation18 + $0x30] sm:$0xff]
    %v7947 = vld [vmem:[#allocation18 + $0x38] sm:$0xff]
    %v7948 = vld [vmem:[#allocation18 + $0x40] sm:$0xff]
    %v7949 = vld [vmem:[#allocation18 + $0x48] sm:$0xff]
    %v7950 = vld [vmem:[#allocation18 + $0x50] sm:$0xff]
    %v7951 = vld [vmem:[#allocation18 + $0x58] sm:$0xff]
    %v7952 = vld [vmem:[#allocation18 + $0x60] sm:$0xff]
    %v7953 = vld [vmem:[#allocation18 + $0x68] sm:$0xff]
    %v7954 = vld [vmem:[#allocation18 + $0x70] sm:$0xff]
    %v7955 = vld [vmem:[#allocation18 + $0x78] sm:$0xff]
    %v7956 = vld [vmem:[%s10] sm:$0x1]
    %v7958 = vlaneseq
    %v7959 = vshrl.u32 %v7958, 7
    %v7960 = vsub.s32 0, %v7959
    %v7961 = vrot.slane %v7956, %v7960
    %7963 = vmatprep.subr.mxu0 0.0
    %7964 = vmatpush1.msra.mxu0 %v7940
    %7965 = vmatprep.subr.mxu0 0.0
    %7966 = vmatpush1.msra.mxu0 %v7941
    %7967 = vmatprep.subr.mxu0 0.0
    %7968 = vmatpush1.msra.mxu0 %v7942
    %7969 = vmatprep.subr.mxu0 0.0
    %7970 = vmatpush1.msra.mxu0 %v7943
    %7971 = vmatprep.subr.mxu0 0.0
    %7972 = vmatpush1.msra.mxu0 %v7944
    %7973 = vmatprep.subr.mxu0 0.0
    %7974 = vmatpush1.msra.mxu0 %v7945
    %7975 = vmatprep.subr.mxu0 0.0
    %7976 = vmatpush1.msra.mxu0 %v7946
    %7977 = vmatprep.subr.mxu0 0.0
    %7978 = vmatpush1.msra.mxu0 %v7947
    %7979 = vmatprep.subr.mxu0 0.0
    %7980 = vmatpush1.msra.mxu0 %v7948
    %7981 = vmatprep.subr.mxu0 0.0
    %7982 = vmatpush1.msra.mxu0 %v7949
    %7983 = vmatprep.subr.mxu0 0.0
    %7984 = vmatpush1.msra.mxu0 %v7950
    %7985 = vmatprep.subr.mxu0 0.0
    %7986 = vmatpush1.msra.mxu0 %v7951
    %7987 = vmatprep.subr.mxu0 0.0
    %7988 = vmatpush1.msra.mxu0 %v7952
    %7989 = vmatprep.subr.mxu0 0.0
    %7990 = vmatpush1.msra.mxu0 %v7953
    %7991 = vmatprep.subr.mxu0 0.0
    %7992 = vmatpush1.msra.mxu0 %v7954
    %7993 = vmatprep.subr.mxu0 0.0
    %7994 = vmatpush1.msra.mxu0 %v7955
    %7995 = vmatprep.subr.mxu0 0.0
    %7996 = vmatpush1.msra.mxu0 0.0
    %7997 = vmatprep.subr.mxu0 0.0
    %7998 = vmatpush1.msra.mxu0 0.0
    %7999 = vmatprep.subr.mxu0 0.0
    %8000 = vmatpush1.msra.mxu0 0.0
    %8001 = vmatprep.subr.mxu0 0.0
    %8002 = vmatpush1.msra.mxu0 0.0
    %8003 = vmatprep.subr.mxu0 0.0
    %8004 = vmatpush1.msra.mxu0 0.0
    %8005 = vmatprep.subr.mxu0 0.0
    %8006 = vmatpush1.msra.mxu0 0.0
    %8007 = vmatprep.subr.mxu0 0.0
    %8008 = vmatpush1.msra.mxu0 0.0
    %8009 = vmatprep.subr.mxu0 0.0
    %8010 = vmatpush1.msra.mxu0 0.0
    %8011 = vmatprep.subr.mxu0 0.0
    %8012 = vmatpush1.msra.mxu0 0.0
    %8013 = vmatprep.subr.mxu0 0.0
    %8014 = vmatpush1.msra.mxu0 0.0
    %8015 = vmatprep.subr.mxu0 0.0
    %8016 = vmatpush1.msra.mxu0 0.0
    %8017 = vmatprep.subr.mxu0 0.0
    %8018 = vmatpush1.msra.mxu0 0.0
    %8019 = vmatprep.subr.mxu0 0.0
    %8020 = vmatpush1.msra.mxu0 0.0
    %8021 = vmatprep.subr.mxu0 0.0
    %8022 = vmatpush1.msra.mxu0 0.0
    %8023 = vmatprep.subr.mxu0 0.0
    %8024 = vmatpush1.msra.mxu0 0.0
    %8025 = vmatprep.subr.mxu0 0.0
    %8026 = vmatpush1.msra.mxu0 0.0
    %8027 = vmatprep.mubr.f32.mxu0 0.0
    %8028 = vmatmul.mubr.f32.gmra.mrb[0].mxu0 %v7932
    %v8029 = vpop.f32.mrb[0].mxu0
    %v8030 = vadd.f32 %v7961, %v8029
    %v8031 = vpop.f32.mrb[0].mxu0
    %8032 = vmatprep.mubr.f32.mxu0 0.0
    %8033 = vmatmul.mubr.f32.gmra.mrb[0].mxu0 %v7933
    %v8034 = vpop.f32.mrb[0].mxu0
    %v8035 = vadd.f32 %v7961, %v8034
    %v8036 = vpop.f32.mrb[0].mxu0
    %8037 = vmatprep.mubr.f32.mxu0 0.0
    %8038 = vmatmul.mubr.f32.gmra.mrb[0].mxu0 %v7934
    %v8039 = vpop.f32.mrb[0].mxu0
    %v8040 = vadd.f32 %v7961, %v8039
    %v8041 = vpop.f32.mrb[0].mxu0
    %8042 = vmatprep.mubr.f32.mxu0 0.0
    %8043 = vmatmul.mubr.f32.gmra.mrb[0].mxu0 %v7935
    %v8044 = vpop.f32.mrb[0].mxu0
    %v8045 = vadd.f32 %v7961, %v8044
    %v8046 = vpop.f32.mrb[0].mxu0
    %8047 = vmatprep.mubr.f32.mxu0 0.0
    %8048 = vmatmul.mubr.f32.gmra.mrb[0].mxu0 %v7936
    %v8049 = vpop.f32.mrb[0].mxu0
    %v8050 = vadd.f32 %v7961, %v8049
    %v8051 = vpop.f32.mrb[0].mxu0
    %8052 = vmatprep.mubr.f32.mxu0 0.0
    %8053 = vmatmul.mubr.f32.gmra.mrb[0].mxu0 %v7937
    %v8054 = vpop.f32.mrb[0].mxu0
    %v8055 = vadd.f32 %v7961, %v8054
    %v8056 = vpop.f32.mrb[0].mxu0
    %8057 = vmatprep.mubr.f32.mxu0 0.0
    %8058 = vmatmul.mubr.f32.gmra.mrb[0].mxu0 %v7938
    %v8059 = vpop.f32.mrb[0].mxu0
    %v8060 = vadd.f32 %v7961, %v8059
    %v8061 = vpop.f32.mrb[0].mxu0
    %8062 = vmatprep.mubr.f32.mxu0 0.0
    %8063 = vmatmul.mubr.f32.gmra.mrb[0].mxu0 %v7939
    %v8064 = vpop.f32.mrb[0].mxu0
    %v8065 = vadd.f32 %v7961, %v8064
    %v8066 = vpop.f32.mrb[0].mxu0
    %8067 = vdwg.mxu0
    %8068 = vst [vmem:[#allocation19] sm:$0xff] %v8030
    %8069 = vst [vmem:[#allocation19 + $0x8] sm:$0xff] %v8035
    %8070 = vst [vmem:[#allocation19 + $0x10] sm:$0xff] %v8040
    %8071 = vst [vmem:[#allocation19 + $0x18] sm:$0xff] %v8045
    %8072 = vst [vmem:[#allocation19 + $0x20] sm:$0xff] %v8050
    %8073 = vst [vmem:[#allocation19 + $0x28] sm:$0xff] %v8055
    %8074 = vst [vmem:[#allocation19 + $0x30] sm:$0xff] %v8060
    %8075 = vst [vmem:[#allocation19 + $0x38] sm:$0xff] %v8065
    // Predicated region
    $region74: #{tpu_custom_call.1} parent=1 // pred_check
      %p8076 = pneg %p140
    $region75: #{tpu_custom_call.1} parent=1 // pred_check_branch
      %8078 = sbr.rel (%p8076) target = $region77
    $region76: #{tpu_custom_call.1} parent=1 // pred_region
      %8079 = vst [vmem:[#allocation20] sm:$0xff] %v7485
      %8080 = vst [vmem:[#allocation22] sm:$0xff] %v7483
      %s8081 = scalar_lea.vmem [#allocation20], 8
      %8082 = vst [vmem:[%s8081] sm:$0xff] %v7925
      %s8083 = scalar_lea.vmem [#allocation22], 8
      %8084 = vst [vmem:[%s8083] sm:$0xff] %v7923
    $region77: #{tpu_custom_call.1} parent=1 // pred_fallthru
      _
    // Predicated region
    $region78: #{tpu_custom_call.1} parent=1 // pred_check
      _
    $region79: #{tpu_custom_call.1} parent=1 // pred_check_branch
      %8086 = sbr.rel (0) target = $region81
    $region80: #{tpu_custom_call.1} parent=1 // pred_region
      %s8088 = ssub.s32 1024, 1024
      %8089 = vsyncadd [#allocation9], %s8088
      %s8090 = sshll.u32 [#allocation19], 4
      %s8091 = int_to_ptr.vmem [resolvable:$true] %s8090
      %8096 = dma.vmem_to_hbm [thread:$0]  %s8091, 1024, %s11, [#allocation9], 128, 128, 8
    $region81: #{tpu_custom_call.1} parent=1 // pred_fallthru
      _
    // Predicated region
    $region82: #{tpu_custom_call.1} parent=1 // pred_check
      _
    $region83: #{tpu_custom_call.1} parent=1 // pred_check_branch
      %8098 = sbr.rel (0) target = $region85
    $region84: #{tpu_custom_call.1} parent=1 // pred_region
      %s8100 = ssub.s32 256, 256
      %8101 = vsyncadd [#allocation21], %s8100
      %s8102 = sshll.u32 [#allocation20], 4
      %s8103 = int_to_ptr.vmem [resolvable:$true] %s8102
      %8108 = dma.vmem_to_hbm [thread:$0]  %s8103, 256, %s12, [#allocation21], 128, 128, 8
    $region85: #{tpu_custom_call.1} parent=1 // pred_fallthru
      _
    // Predicated region
    $region86: #{tpu_custom_call.1} parent=1 // pred_check
      _
    $region87: #{tpu_custom_call.1} parent=1 // pred_check_branch
      %8110 = sbr.rel (0) target = $region89
    $region88: #{tpu_custom_call.1} parent=1 // pred_region
      %s8112 = ssub.s32 256, 256
      %8113 = vsyncadd [#allocation21], %s8112
      %s8114 = sshll.u32 [#allocation22], 4
      %s8115 = int_to_ptr.vmem [resolvable:$true] %s8114
      %8120 = dma.vmem_to_hbm [thread:$0]  %s8115, 256, %s13, [#allocation21], 128, 128, 8
    $region89: #{tpu_custom_call.1} parent=1 // pred_fallthru
      _
    // Predicated region
    $region90: #{tpu_custom_call.1} parent=1 // pred_check
      _
    $region91: #{tpu_custom_call.1} parent=1 // pred_check_branch
      %8122 = sbr.rel (0) target = $region93
    $region92: #{tpu_custom_call.1} parent=1 // pred_region
      %8123 = dma.done [#allocation9], 1024
    $region93: #{tpu_custom_call.1} parent=1 // pred_fallthru
      _
    // Predicated region
    $region94: #{tpu_custom_call.1} parent=1 // pred_check
      _
    $region95: #{tpu_custom_call.1} parent=1 // pred_check_branch
      %8125 = sbr.rel (0) target = $region97
    $region96: #{tpu_custom_call.1} parent=1 // pred_region
      %8126 = dma.done [#allocation21], 256
    $region97: #{tpu_custom_call.1} parent=1 // pred_fallthru
      _
    // Predicated region
    $region98: #{tpu_custom_call.1} parent=1 // pred_check
      _
    $region99: #{tpu_custom_call.1} parent=1 // pred_check_branch
      %8128 = sbr.rel (0) target = $region101
    $region100: #{tpu_custom_call.1} parent=1 // pred_region
      %8129 = dma.done [#allocation21], 256
    $region101: #{tpu_custom_call.1} parent=1 // pred_fallthru
      _
    %8130 = vsyncpa [#allocation8], 1
    %8131 = vsyncpa [#allocation11], 1
    %8132 = vsyncpa [#allocation14], 1
    %8133 = vsyncpa [#allocation17], 1
    %8134 = vsyncpa [#allocation9], 1
    %8135 = vsyncpa [#allocation21], 1

</llo_original>
